<compile_context>
chip_gen: v5e
topology: v5e:2x2
jax: 0.10.0
libtpu: 0.0.40
codegen_flags: <defaults>
</compile_context>

<pallas_src>
import jax
import jax.numpy as jnp
from jax.experimental import pallas as pl
from jax.experimental.pallas import tpu as pltpu

LANE = 128
DOT_PREC = jax.lax.Precision.HIGHEST


def _round_up(v, m):
    return ((v + m - 1) // m) * m


# ----------------------------- Pallas kernel ------------------------------ #

def dendritic_ann_kernel(x_ref, w_in_ref, b_in_ref, wd_ref, s_ref,
                         w_out_ref, b_out_ref, o_ref):
    neg_slope = 0.01
    eps_bn = 1e-5
    eps_norm_sq = 1e-24            # (1e-12)**2, clamp applied on the squared norm

    def leaky(v):                  # LeakyReLU(0.01): 1 mul + 1 max on the VPU
        return jnp.maximum(v, neg_slope * v)

    def leaky2(v):                 # leaky(leaky(v)) fused: slope 0.01**2
        return jnp.maximum(v, 1e-4 * v)

    def batchnorm(v):              # fresh BatchNorm1d, batch stats, biased var
        mu = jnp.mean(v, axis=0, keepdims=True)
        c = v - mu
        var = jnp.mean(c * c, axis=0, keepdims=True)
        return c * jax.lax.rsqrt(var + eps_bn)

    def dot(a, b):
        return jnp.dot(a, b, preferred_element_type=jnp.float32,
                       precision=DOT_PREC)

    x = x_ref[...]                                               # (B, In_pad)
    h = batchnorm(leaky(dot(x, w_in_ref[...]) + b_in_ref[...]))  # (B, Hp)

    num_layers = wd_ref.shape[0]
    Hp = wd_ref.shape[1]
    Dmax = wd_ref.shape[2] // Hp

    for l in range(num_layers):                                  # static unroll
        # F.normalize(p=2, dim=1): h / max(||h||, 1e-12) via rsqrt on sumsq (EUP)
        sumsq = jnp.sum(h * h, axis=1, keepdims=True)
        xn = h * jax.lax.rsqrt(jnp.maximum(sumsq, eps_norm_sq))

        # all neurons' dendrites in one MXU matmul, dendrite-major columns:
        #   dend[:, d*Hp + n] = xn @ Wd_n[d]
        dend = dot(xn, wd_ref[l])                                # (B, Dmax*Hp)
        ds = leaky(dend) * s_ref[l]                              # * (1, Dmax*Hp)

        # soma contraction: vreg-aligned slices + log2-depth tree of adds
        parts = [ds[:, d * Hp:(d + 1) * Hp] for d in range(Dmax)]
        while len(parts) > 1:
            nxt = [parts[i] + parts[i + 1] for i in range(0, len(parts) - 1, 2)]
            if len(parts) % 2:
                nxt.append(parts[-1])
            parts = nxt

        h = batchnorm(leaky2(parts[0]))                          # (B, Hp)

    o_ref[...] = dot(h, w_out_ref[...]) + b_out_ref[...]         # (B, O_pad)


# ------------------------ packing + jitted wrapper ------------------------- #

def pack_params(w_in, b_in, dend_lists, soma_lists, w_out, b_out, Dmax):
    """One-time: pad all dims to 128 lanes, pre-transpose, dendrite-major pack."""
    H, In = w_in.shape
    O = w_out.shape[0]
    Inp, Hp, Op = _round_up(In, LANE), _round_up(H, LANE), _round_up(O, LANE)

    w_in_p = jnp.zeros((Inp, Hp), jnp.float32).at[:In, :H].set(w_in.T)
    b_in_p = jnp.zeros((1, Hp), jnp.float32).at[0, :H].set(b_in)

    wd_layers, s_layers = [], []
    for layer_w, layer_s in zip(dend_lists, soma_lists):
        A = jnp.zeros((Dmax, Hp, Hp), jnp.float32)   # (dendrite, neuron, in_feat)
        S = jnp.zeros((Dmax, Hp), jnp.float32)
        for n, (Wn, sn) in enumerate(zip(layer_w, layer_s)):
            cnt = Wn.shape[0]
            A = A.at[:cnt, n, :H].set(Wn)
            S = S.at[:cnt, n].set(sn)
        wd_layers.append(A.reshape(Dmax * Hp, Hp).T)             # (Hp, Dmax*Hp)
        s_layers.append(S.reshape(1, Dmax * Hp))                 # (1, Dmax*Hp)

    w_out_p = jnp.zeros((Hp, Op), jnp.float32).at[:H, :O].set(w_out.T)
    b_out_p = jnp.zeros((1, Op), jnp.float32).at[0, :O].set(b_out)

    return dict(w_in=w_in_p, b_in=b_in_p,
                wd=jnp.stack(wd_layers), s=jnp.stack(s_layers),
                w_out=w_out_p, b_out=b_out_p)


def make_forward(packed, flat_input_size, output_size):
    Inp = packed["w_in"].shape[0]
    Op = packed["b_out"].shape[1]
    vmem = pl.BlockSpec(memory_space=pltpu.MemorySpace.VMEM)

    @jax.jit
    def forward(x):
        B = x.shape[0]
        x2d = x.reshape(B, -1).astype(jnp.float32)
        x2d = jnp.pad(x2d, ((0, 0), (0, Inp - flat_input_size)))
        out_padded = pl.pallas_call(
            dendritic_ann_kernel,
            out_shape=jax.ShapeDtypeStruct((B, Op), jnp.float32),
            in_specs=[vmem] * 7,
            out_specs=vmem,
        )(x2d, packed["w_in"], packed["b_in"], packed["wd"], packed["s"],
          packed["w_out"], packed["b_out"])
        return out_padded[:, :output_size]

    return forward


# --------------------------- pure-JAX reference ---------------------------- #

def reference_forward(x, w_in, b_in, dend_lists, soma_lists, w_out, b_out):
    def dot(a, b):
        return jnp.dot(a, b, precision=DOT_PREC)

    def leaky(v):
        return jnp.where(v >= 0, v, 0.01 * v)

    def bn(v):
        mu = v.mean(0, keepdims=True)
        var = ((v - mu) ** 2).mean(0, keepdims=True)
        return (v - mu) / jnp.sqrt(var + 1e-5)

    h = x.reshape(x.shape[0], -1)
    h = leaky(dot(h, w_in.T) + b_in)
    h = bn(h)
    for layer_w, layer_s in zip(dend_lists, soma_lists):
        norm = jnp.sqrt((h * h).sum(1, keepdims=True))
        xn = h / jnp.maximum(norm, 1e-12)
        cols = []
        for Wn, sn in zip(layer_w, layer_s):
            d = leaky(dot(xn, Wn.T))          # (B, cnt)
            cols.append(leaky(dot(d, sn)))    # (B,)
        out = jnp.stack(cols, axis=1)
        h = bn(leaky(out))
    return dot(h, w_out.T) + b_out


# ------------------------------- main ------------------------------------- #

if __name__ == "__main__":
    # Small, module-consistent shapes
    B, C, S = 8, 4, 4                 # input images (B, C, S, S), NCHW
    input_size = C * S * S            # 64 after flatten
    hidden_size = 32
    output_size = 4
    num_hidden_layers = 2
    Dmax = 8
    # varying dendrite counts per neuron (4..8), padded to Dmax with zeros
    dendrite_counts = [4 + (i % 5) for i in range(num_hidden_layers * hidden_size)]

    key = jax.random.PRNGKey(0)
    k_x, k_wi, k_bi, k_wo, k_bo, k_d = jax.random.split(key, 6)

    x = jax.random.normal(k_x, (B, C, S, S), dtype=jnp.float32)

    # input Linear: xavier_uniform with leaky_relu(0.01) gain
    gain_lrelu = (2.0 / (1.0 + 0.01 ** 2)) ** 0.5
    bnd_in = gain_lrelu * (6.0 / (input_size + hidden_size)) ** 0.5
    w_in = jax.random.uniform(k_wi, (hidden_size, input_size),
                              minval=-bnd_in, maxval=bnd_in, dtype=jnp.float32)
    b_in = jax.random.uniform(k_bi, (hidden_size,), dtype=jnp.float32,
                              minval=-1.0 / input_size ** 0.5,
                              maxval=1.0 / input_size ** 0.5)

    # output Linear: xavier_uniform with linear gain (=1)
    bnd_out = (6.0 / (hidden_size + output_size)) ** 0.5
    w_out = jax.random.uniform(k_wo, (output_size, hidden_size),
                               minval=-bnd_out, maxval=bnd_out, dtype=jnp.float32)
    b_out = jax.random.uniform(k_bo, (output_size,), dtype=jnp.float32,
                               minval=-1.0 / hidden_size ** 0.5,
                               maxval=1.0 / hidden_size ** 0.5)

    # per-neuron dendritic / soma weights (randn * 0.1), variable dendrite counts
    dend_lists, soma_lists = [], []
    dk = k_d
    for l in range(num_hidden_layers):
        layer_w, layer_s = [], []
        for n in range(hidden_size):
            cnt = dendrite_counts[l * hidden_size + n]
            dk, ka, kb = jax.random.split(dk, 3)
            layer_w.append(0.1 * jax.random.normal(ka, (cnt, hidden_size),
                                                   dtype=jnp.float32))
            layer_s.append(0.1 * jax.random.normal(kb, (cnt,), dtype=jnp.float32))
        dend_lists.append(layer_w)
        soma_lists.append(layer_s)

    packed = pack_params(w_in, b_in, dend_lists, soma_lists, w_out, b_out, Dmax)
    forward = make_forward(packed, input_size, output_size)

    out = jax.block_until_ready(forward(x))
    ref = jax.block_until_ready(
        reference_forward(x, w_in, b_in, dend_lists, soma_lists, w_out, b_out))

    assert out.shape == (B, output_size)
    assert jnp.allclose(out, ref, rtol=1e-4, atol=1e-4), (
        f"mismatch: max abs err {jnp.max(jnp.abs(out - ref))}")
    print("KERNEL_OK")
</pallas_src>

<mosaic_0001>
module attributes {stable_mosaic.version = 11 : i64} {
  func.func @dendritic_ann_kernel(%arg0: memref<8x128xf32, #tpu.memory_space<vmem>>, %arg1: memref<128x128xf32, #tpu.memory_space<vmem>>, %arg2: memref<1x128xf32, #tpu.memory_space<vmem>>, %arg3: memref<2x128x1024xf32, #tpu.memory_space<vmem>>, %arg4: memref<2x1x1024xf32, #tpu.memory_space<vmem>>, %arg5: memref<128x128xf32, #tpu.memory_space<vmem>>, %arg6: memref<1x128xf32, #tpu.memory_space<vmem>>, %arg7: memref<8x128xf32, #tpu.memory_space<vmem>>) attributes {dimension_semantics = [], scalar_prefetch = 0 : i64, scratch_operands = 0 : i64, tpu.core_type = #tpu.core_type<tc>} {
    %c0 = arith.constant 0 : index
    %c0_0 = arith.constant 0 : index
    %0 = vector.load %arg0[%c0, %c0_0] : memref<8x128xf32, #tpu.memory_space<vmem>>, vector<8x128xf32>
    %c0_1 = arith.constant 0 : index
    %c0_2 = arith.constant 0 : index
    %1 = vector.load %arg1[%c0_1, %c0_2] : memref<128x128xf32, #tpu.memory_space<vmem>>, vector<128x128xf32>
    %cst = arith.constant dense<0.000000e+00> : vector<8x128xf32>
    %2 = tpu.matmul %0, %1, %cst {dimension_numbers = #tpu.dot_dimension_numbers<[1], [0], [0], [1], [0, 0, 1, 1], [], []>, precision = #tpu.contract_precision<fp32>} : vector<8x128xf32>, vector<128x128xf32>, vector<8x128xf32> -> vector<8x128xf32>
    %c0_3 = arith.constant 0 : index
    %c0_4 = arith.constant 0 : index
    %3 = vector.load %arg2[%c0_3, %c0_4] : memref<1x128xf32, #tpu.memory_space<vmem>>, vector<1x128xf32>
    %4 = vector.broadcast %3 : vector<1x128xf32> to vector<8x128xf32>
    %5 = arith.addf %2, %4 : vector<8x128xf32>
    %cst_5 = arith.constant 0.00999999977 : f32
    %6 = vector.broadcast %cst_5 : f32 to vector<8x128xf32>
    %7 = arith.mulf %6, %5 : vector<8x128xf32>
    %8 = arith.maximumf %5, %7 : vector<8x128xf32>
    %cst_6 = arith.constant dense<0.000000e+00> : vector<128xf32>
    %9 = vector.multi_reduction <add>, %8, %cst_6 [0] : vector<8x128xf32> to vector<128xf32>
    %10 = vector.shape_cast %9 : vector<128xf32> to vector<1x128xf32>
    %cst_7 = arith.constant 8.000000e+00 : f32
    %11 = vector.broadcast %cst_7 : f32 to vector<1x128xf32>
    %12 = arith.divf %10, %11 : vector<1x128xf32>
    %13 = vector.broadcast %12 : vector<1x128xf32> to vector<8x128xf32>
    %14 = arith.subf %8, %13 : vector<8x128xf32>
    %15 = arith.mulf %14, %14 : vector<8x128xf32>
    %cst_8 = arith.constant dense<0.000000e+00> : vector<128xf32>
    %16 = vector.multi_reduction <add>, %15, %cst_8 [0] : vector<8x128xf32> to vector<128xf32>
    %17 = vector.shape_cast %16 : vector<128xf32> to vector<1x128xf32>
    %cst_9 = arith.constant 8.000000e+00 : f32
    %18 = vector.broadcast %cst_9 : f32 to vector<1x128xf32>
    %19 = arith.divf %17, %18 : vector<1x128xf32>
    %cst_10 = arith.constant 9.99999974E-6 : f32
    %20 = vector.broadcast %cst_10 : f32 to vector<1x128xf32>
    %21 = arith.addf %19, %20 : vector<1x128xf32>
    %22 = math.rsqrt %21 : vector<1x128xf32>
    %23 = vector.broadcast %22 : vector<1x128xf32> to vector<8x128xf32>
    %24 = arith.mulf %14, %23 : vector<8x128xf32>
    %25 = arith.mulf %24, %24 : vector<8x128xf32>
    %cst_11 = arith.constant dense<0.000000e+00> : vector<8xf32>
    %26 = vector.multi_reduction <add>, %25, %cst_11 [1] : vector<8x128xf32> to vector<8xf32>
    %27 = vector.shape_cast %26 : vector<8xf32> to vector<8x1xf32>
    %cst_12 = arith.constant 1.000000e-24 : f32
    %28 = vector.broadcast %cst_12 : f32 to vector<8x1xf32>
    %29 = arith.maximumf %27, %28 : vector<8x1xf32>
    %30 = math.rsqrt %29 : vector<8x1xf32>
    %31 = vector.broadcast %30 : vector<8x1xf32> to vector<8x128xf32>
    %32 = arith.mulf %24, %31 : vector<8x128xf32>
    %c0_13 = arith.constant 0 : index
    %c0_14 = arith.constant 0 : index
    %c0_15 = arith.constant 0 : index
    %33 = vector.load %arg3[%c0_13, %c0_14, %c0_15] : memref<2x128x1024xf32, #tpu.memory_space<vmem>>, vector<1x128x1024xf32>
    %34 = vector.shape_cast %33 : vector<1x128x1024xf32> to vector<128x1024xf32>
    %cst_16 = arith.constant dense<0.000000e+00> : vector<8x1024xf32>
    %35 = tpu.matmul %32, %34, %cst_16 {dimension_numbers = #tpu.dot_dimension_numbers<[1], [0], [0], [1], [0, 0, 1, 1], [], []>, precision = #tpu.contract_precision<fp32>} : vector<8x128xf32>, vector<128x1024xf32>, vector<8x1024xf32> -> vector<8x1024xf32>
    %cst_17 = arith.constant 0.00999999977 : f32
    %36 = vector.broadcast %cst_17 : f32 to vector<8x1024xf32>
    %37 = arith.mulf %36, %35 : vector<8x1024xf32>
    %38 = arith.maximumf %35, %37 : vector<8x1024xf32>
    %c0_18 = arith.constant 0 : index
    %c0_19 = arith.constant 0 : index
    %c0_20 = arith.constant 0 : index
    %39 = vector.load %arg4[%c0_18, %c0_19, %c0_20] : memref<2x1x1024xf32, #tpu.memory_space<vmem>>, vector<1x1x1024xf32>
    %40 = vector.shape_cast %39 : vector<1x1x1024xf32> to vector<1x1024xf32>
    %41 = vector.broadcast %40 : vector<1x1024xf32> to vector<8x1024xf32>
    %42 = arith.mulf %38, %41 : vector<8x1024xf32>
    %43 = vector.extract_strided_slice %42 {offsets = [0, 0], sizes = [8, 128], strides = [1, 1]} : vector<8x1024xf32> to vector<8x128xf32>
    %44 = vector.extract_strided_slice %42 {offsets = [0, 128], sizes = [8, 128], strides = [1, 1]} : vector<8x1024xf32> to vector<8x128xf32>
    %45 = vector.extract_strided_slice %42 {offsets = [0, 256], sizes = [8, 128], strides = [1, 1]} : vector<8x1024xf32> to vector<8x128xf32>
    %46 = vector.extract_strided_slice %42 {offsets = [0, 384], sizes = [8, 128], strides = [1, 1]} : vector<8x1024xf32> to vector<8x128xf32>
    %47 = vector.extract_strided_slice %42 {offsets = [0, 512], sizes = [8, 128], strides = [1, 1]} : vector<8x1024xf32> to vector<8x128xf32>
    %48 = vector.extract_strided_slice %42 {offsets = [0, 640], sizes = [8, 128], strides = [1, 1]} : vector<8x1024xf32> to vector<8x128xf32>
    %49 = vector.extract_strided_slice %42 {offsets = [0, 768], sizes = [8, 128], strides = [1, 1]} : vector<8x1024xf32> to vector<8x128xf32>
    %50 = vector.extract_strided_slice %42 {offsets = [0, 896], sizes = [8, 128], strides = [1, 1]} : vector<8x1024xf32> to vector<8x128xf32>
    %51 = arith.addf %43, %44 : vector<8x128xf32>
    %52 = arith.addf %45, %46 : vector<8x128xf32>
    %53 = arith.addf %47, %48 : vector<8x128xf32>
    %54 = arith.addf %49, %50 : vector<8x128xf32>
    %55 = arith.addf %51, %52 : vector<8x128xf32>
    %56 = arith.addf %53, %54 : vector<8x128xf32>
    %57 = arith.addf %55, %56 : vector<8x128xf32>
    %cst_21 = arith.constant 9.99999974E-5 : f32
    %58 = vector.broadcast %cst_21 : f32 to vector<8x128xf32>
    %59 = arith.mulf %58, %57 : vector<8x128xf32>
    %60 = arith.maximumf %57, %59 : vector<8x128xf32>
    %cst_22 = arith.constant dense<0.000000e+00> : vector<128xf32>
    %61 = vector.multi_reduction <add>, %60, %cst_22 [0] : vector<8x128xf32> to vector<128xf32>
    %62 = vector.shape_cast %61 : vector<128xf32> to vector<1x128xf32>
    %cst_23 = arith.constant 8.000000e+00 : f32
    %63 = vector.broadcast %cst_23 : f32 to vector<1x128xf32>
    %64 = arith.divf %62, %63 : vector<1x128xf32>
    %65 = vector.broadcast %64 : vector<1x128xf32> to vector<8x128xf32>
    %66 = arith.subf %60, %65 : vector<8x128xf32>
    %67 = arith.mulf %66, %66 : vector<8x128xf32>
    %cst_24 = arith.constant dense<0.000000e+00> : vector<128xf32>
    %68 = vector.multi_reduction <add>, %67, %cst_24 [0] : vector<8x128xf32> to vector<128xf32>
    %69 = vector.shape_cast %68 : vector<128xf32> to vector<1x128xf32>
    %cst_25 = arith.constant 8.000000e+00 : f32
    %70 = vector.broadcast %cst_25 : f32 to vector<1x128xf32>
    %71 = arith.divf %69, %70 : vector<1x128xf32>
    %cst_26 = arith.constant 9.99999974E-6 : f32
    %72 = vector.broadcast %cst_26 : f32 to vector<1x128xf32>
    %73 = arith.addf %71, %72 : vector<1x128xf32>
    %74 = math.rsqrt %73 : vector<1x128xf32>
    %75 = vector.broadcast %74 : vector<1x128xf32> to vector<8x128xf32>
    %76 = arith.mulf %66, %75 : vector<8x128xf32>
    %77 = arith.mulf %76, %76 : vector<8x128xf32>
    %cst_27 = arith.constant dense<0.000000e+00> : vector<8xf32>
    %78 = vector.multi_reduction <add>, %77, %cst_27 [1] : vector<8x128xf32> to vector<8xf32>
    %79 = vector.shape_cast %78 : vector<8xf32> to vector<8x1xf32>
    %cst_28 = arith.constant 1.000000e-24 : f32
    %80 = vector.broadcast %cst_28 : f32 to vector<8x1xf32>
    %81 = arith.maximumf %79, %80 : vector<8x1xf32>
    %82 = math.rsqrt %81 : vector<8x1xf32>
    %83 = vector.broadcast %82 : vector<8x1xf32> to vector<8x128xf32>
    %84 = arith.mulf %76, %83 : vector<8x128xf32>
    %c1 = arith.constant 1 : index
    %c0_29 = arith.constant 0 : index
    %c0_30 = arith.constant 0 : index
    %85 = vector.load %arg3[%c1, %c0_29, %c0_30] : memref<2x128x1024xf32, #tpu.memory_space<vmem>>, vector<1x128x1024xf32>
    %86 = vector.shape_cast %85 : vector<1x128x1024xf32> to vector<128x1024xf32>
    %cst_31 = arith.constant dense<0.000000e+00> : vector<8x1024xf32>
    %87 = tpu.matmul %84, %86, %cst_31 {dimension_numbers = #tpu.dot_dimension_numbers<[1], [0], [0], [1], [0, 0, 1, 1], [], []>, precision = #tpu.contract_precision<fp32>} : vector<8x128xf32>, vector<128x1024xf32>, vector<8x1024xf32> -> vector<8x1024xf32>
    %cst_32 = arith.constant 0.00999999977 : f32
    %88 = vector.broadcast %cst_32 : f32 to vector<8x1024xf32>
    %89 = arith.mulf %88, %87 : vector<8x1024xf32>
    %90 = arith.maximumf %87, %89 : vector<8x1024xf32>
    %c1_33 = arith.constant 1 : index
    %c0_34 = arith.constant 0 : index
    %c0_35 = arith.constant 0 : index
    %91 = vector.load %arg4[%c1_33, %c0_34, %c0_35] : memref<2x1x1024xf32, #tpu.memory_space<vmem>>, vector<1x1x1024xf32>
    %92 = vector.shape_cast %91 : vector<1x1x1024xf32> to vector<1x1024xf32>
    %93 = vector.broadcast %92 : vector<1x1024xf32> to vector<8x1024xf32>
    %94 = arith.mulf %90, %93 : vector<8x1024xf32>
    %95 = vector.extract_strided_slice %94 {offsets = [0, 0], sizes = [8, 128], strides = [1, 1]} : vector<8x1024xf32> to vector<8x128xf32>
    %96 = vector.extract_strided_slice %94 {offsets = [0, 128], sizes = [8, 128], strides = [1, 1]} : vector<8x1024xf32> to vector<8x128xf32>
    %97 = vector.extract_strided_slice %94 {offsets = [0, 256], sizes = [8, 128], strides = [1, 1]} : vector<8x1024xf32> to vector<8x128xf32>
    %98 = vector.extract_strided_slice %94 {offsets = [0, 384], sizes = [8, 128], strides = [1, 1]} : vector<8x1024xf32> to vector<8x128xf32>
    %99 = vector.extract_strided_slice %94 {offsets = [0, 512], sizes = [8, 128], strides = [1, 1]} : vector<8x1024xf32> to vector<8x128xf32>
    %100 = vector.extract_strided_slice %94 {offsets = [0, 640], sizes = [8, 128], strides = [1, 1]} : vector<8x1024xf32> to vector<8x128xf32>
    %101 = vector.extract_strided_slice %94 {offsets = [0, 768], sizes = [8, 128], strides = [1, 1]} : vector<8x1024xf32> to vector<8x128xf32>
    %102 = vector.extract_strided_slice %94 {offsets = [0, 896], sizes = [8, 128], strides = [1, 1]} : vector<8x1024xf32> to vector<8x128xf32>
    %103 = arith.addf %95, %96 : vector<8x128xf32>
    %104 = arith.addf %97, %98 : vector<8x128xf32>
    %105 = arith.addf %99, %100 : vector<8x128xf32>
    %106 = arith.addf %101, %102 : vector<8x128xf32>
    %107 = arith.addf %103, %104 : vector<8x128xf32>
    %108 = arith.addf %105, %106 : vector<8x128xf32>
    %109 = arith.addf %107, %108 : vector<8x128xf32>
    %cst_36 = arith.constant 9.99999974E-5 : f32
    %110 = vector.broadcast %cst_36 : f32 to vector<8x128xf32>
    %111 = arith.mulf %110, %109 : vector<8x128xf32>
    %112 = arith.maximumf %109, %111 : vector<8x128xf32>
    %cst_37 = arith.constant dense<0.000000e+00> : vector<128xf32>
    %113 = vector.multi_reduction <add>, %112, %cst_37 [0] : vector<8x128xf32> to vector<128xf32>
    %114 = vector.shape_cast %113 : vector<128xf32> to vector<1x128xf32>
    %cst_38 = arith.constant 8.000000e+00 : f32
    %115 = vector.broadcast %cst_38 : f32 to vector<1x128xf32>
    %116 = arith.divf %114, %115 : vector<1x128xf32>
    %117 = vector.broadcast %116 : vector<1x128xf32> to vector<8x128xf32>
    %118 = arith.subf %112, %117 : vector<8x128xf32>
    %119 = arith.mulf %118, %118 : vector<8x128xf32>
    %cst_39 = arith.constant dense<0.000000e+00> : vector<128xf32>
    %120 = vector.multi_reduction <add>, %119, %cst_39 [0] : vector<8x128xf32> to vector<128xf32>
    %121 = vector.shape_cast %120 : vector<128xf32> to vector<1x128xf32>
    %cst_40 = arith.constant 8.000000e+00 : f32
    %122 = vector.broadcast %cst_40 : f32 to vector<1x128xf32>
    %123 = arith.divf %121, %122 : vector<1x128xf32>
    %cst_41 = arith.constant 9.99999974E-6 : f32
    %124 = vector.broadcast %cst_41 : f32 to vector<1x128xf32>
    %125 = arith.addf %123, %124 : vector<1x128xf32>
    %126 = math.rsqrt %125 : vector<1x128xf32>
    %127 = vector.broadcast %126 : vector<1x128xf32> to vector<8x128xf32>
    %128 = arith.mulf %118, %127 : vector<8x128xf32>
    %c0_42 = arith.constant 0 : index
    %c0_43 = arith.constant 0 : index
    %129 = vector.load %arg5[%c0_42, %c0_43] : memref<128x128xf32, #tpu.memory_space<vmem>>, vector<128x128xf32>
    %cst_44 = arith.constant dense<0.000000e+00> : vector<8x128xf32>
    %130 = tpu.matmul %128, %129, %cst_44 {dimension_numbers = #tpu.dot_dimension_numbers<[1], [0], [0], [1], [0, 0, 1, 1], [], []>, precision = #tpu.contract_precision<fp32>} : vector<8x128xf32>, vector<128x128xf32>, vector<8x128xf32> -> vector<8x128xf32>
    %c0_45 = arith.constant 0 : index
    %c0_46 = arith.constant 0 : index
    %131 = vector.load %arg6[%c0_45, %c0_46] : memref<1x128xf32, #tpu.memory_space<vmem>>, vector<1x128xf32>
    %132 = vector.broadcast %131 : vector<1x128xf32> to vector<8x128xf32>
    %133 = arith.addf %130, %132 : vector<8x128xf32>
    %c0_47 = arith.constant 0 : index
    %c0_48 = arith.constant 0 : index
    %134 = vector.load %arg7[%c0_47, %c0_48] : memref<8x128xf32, #tpu.memory_space<vmem>>, vector<8x128xf32>
    tpu.vector_store %arg7[%c0_47, %c0_48], %133 {strides = array<i32>} : memref<8x128xf32, #tpu.memory_space<vmem>>, vector<8x128xf32>,
    return
  }
}

</mosaic_0001>

<llo_original>
// kernel: forward.1
$region0: #{forward.1}
  #allocation0 [shape = 'u32[]', space=smem, size = 0x4, offset = 0x4, fixed_abs, tag = 'smem constant byte address 0x4 - core index']
  #allocation1 [shape = 'u32[72,128]{1,0:T(1,128)}', space=vmem, size = 0x9000, scoped, tag = 'internal scratch']
  %s0 = inlined_call_operand.vmem [shape: f32[8,128], index: 0, kind: input, shape index: {}]
  %s1 = inlined_call_operand.hbm [shape: f32[128,128], index: 1, kind: input, shape index: {}]
  %s2 = inlined_call_operand.vmem [shape: f32[1,128], index: 2, kind: input, shape index: {}]
  %s3 = inlined_call_operand.hbm [shape: f32[2,128,1024], index: 3, kind: input, shape index: {}]
  %s4 = inlined_call_operand.vmem [shape: f32[2,1,1024], index: 4, kind: input, shape index: {}]
  %s5 = inlined_call_operand.hbm [shape: f32[128,128], index: 5, kind: input, shape index: {}]
  %s6 = inlined_call_operand.vmem [shape: f32[1,128], index: 6, kind: input, shape index: {}]
  %s7 = inlined_call_operand.vmem [shape: f32[8,128], index: 7, kind: output, shape index: {}]
  %s8 = sld [smem:[#allocation0]]
  $region50: #{forward.1} parent=0
    _
  %s10 = ssub.s32 1, %s8
  %s11 = scalar_select 0, %s10, %s8
  $region1: #{forward.1} parent=0
    #allocation2 [shape = 'u8[65536]{0}', space=vmem, size = 0x10000, scoped, tag = 'input window, operand 1, single buffered']
    #allocation3 [shape = 's32[1]{0}', space=sflag, size = 0x4, scoped, tag = 'scoped memory for forward.1']
    #allocation4 [shape = 'u8[1048576]{0}', space=vmem, size = 0x100000, scoped, tag = 'input window, operand 3, single buffered']
    #allocation5 [shape = 's32[1]{0}', space=sflag, size = 0x4, scoped, tag = 'scoped memory for forward.1']
    #allocation6 [shape = 'u8[65536]{0}', space=vmem, size = 0x10000, scoped, tag = 'input window, operand 5, single buffered']
    %12 = vsyncpa [#allocation3], 0
    %13 = vsyncpa [#allocation5], 0
    // Predicated region
    $region2: #{forward.1} parent=1 // pred_check
      _
    $region3: #{forward.1} parent=1 // pred_check_branch
      %15 = sbr.rel (0) target = $region5
    $region4: #{forward.1} parent=1 // pred_region
      _
    $region5: #{forward.1} parent=1 // pred_fallthru
      _
    // Predicated region
    $region6: #{forward.1} parent=1 // pred_check
      _
    $region7: #{forward.1} parent=1 // pred_check_branch
      %17 = sbr.rel (0) target = $region9
    $region8: #{forward.1} parent=1 // pred_region
      %19 = vsyncadd [#allocation3], 0
      %s20 = sshll.u32 %s1, 4
      %s21 = int_to_ptr.hbm [resolvable:$true] %s20
      %s22 = sshll.u32 [#allocation2], 4
      %s23 = int_to_ptr.vmem [resolvable:$true] %s22
      %28 = dma.hbm_to_vmem [thread:$0]  %s21, 2048, %s23, [#allocation3], 128, 128, 8
    $region9: #{forward.1} parent=1 // pred_fallthru
      _
    // Predicated region
    $region10: #{forward.1} parent=1 // pred_check
      _
    $region11: #{forward.1} parent=1 // pred_check_branch
      %30 = sbr.rel (0) target = $region13
    $region12: #{forward.1} parent=1 // pred_region
      _
    $region13: #{forward.1} parent=1 // pred_fallthru
      _
    // Predicated region
    $region14: #{forward.1} parent=1 // pred_check
      _
    $region15: #{forward.1} parent=1 // pred_check_branch
      %32 = sbr.rel (0) target = $region17
    $region16: #{forward.1} parent=1 // pred_region
      %34 = vsyncadd [#allocation5], 0
      %s35 = sshll.u32 %s3, 4
      %s36 = int_to_ptr.hbm [resolvable:$true] %s35
      %s37 = sshll.u32 [#allocation4], 4
      %s38 = int_to_ptr.vmem [resolvable:$true] %s37
      %43 = dma.hbm_to_vmem [thread:$0]  %s36, 32768, %s38, [#allocation5], 1024, 1024, 64
    $region17: #{forward.1} parent=1 // pred_fallthru
      _
    // Predicated region
    $region18: #{forward.1} parent=1 // pred_check
      _
    $region19: #{forward.1} parent=1 // pred_check_branch
      %45 = sbr.rel (0) target = $region21
    $region20: #{forward.1} parent=1 // pred_region
      _
    $region21: #{forward.1} parent=1 // pred_fallthru
      _
    // Predicated region
    $region22: #{forward.1} parent=1 // pred_check
      _
    $region23: #{forward.1} parent=1 // pred_check_branch
      %47 = sbr.rel (0) target = $region25
    $region24: #{forward.1} parent=1 // pred_region
      %49 = vsyncadd [#allocation5], 0
      %s50 = sshll.u32 %s5, 4
      %s51 = int_to_ptr.hbm [resolvable:$true] %s50
      %s52 = sshll.u32 [#allocation6], 4
      %s53 = int_to_ptr.vmem [resolvable:$true] %s52
      %58 = dma.hbm_to_vmem [thread:$0]  %s51, 2048, %s53, [#allocation5], 128, 128, 8
    $region25: #{forward.1} parent=1 // pred_fallthru
      _
    // Predicated region
    $region26: #{forward.1} parent=1 // pred_check
      _
    $region27: #{forward.1} parent=1 // pred_check_branch
      %60 = sbr.rel (0) target = $region29
    $region28: #{forward.1} parent=1 // pred_region
      _
    $region29: #{forward.1} parent=1 // pred_fallthru
      _
    // Predicated region
    $region30: #{forward.1} parent=1 // pred_check
      _
    $region31: #{forward.1} parent=1 // pred_check_branch
      %62 = sbr.rel (0) target = $region33
    $region32: #{forward.1} parent=1 // pred_region
      %64 = dma.done [#allocation3], 2048
    $region33: #{forward.1} parent=1 // pred_fallthru
      _
    // Predicated region
    $region34: #{forward.1} parent=1 // pred_check
      _
    $region35: #{forward.1} parent=1 // pred_check_branch
      %66 = sbr.rel (0) target = $region37
    $region36: #{forward.1} parent=1 // pred_region
      %68 = dma.done [#allocation5], 32768
    $region37: #{forward.1} parent=1 // pred_fallthru
      _
    // Predicated region
    $region38: #{forward.1} parent=1 // pred_check
      _
    $region39: #{forward.1} parent=1 // pred_check_branch
      %70 = sbr.rel (0) target = $region41
    $region40: #{forward.1} parent=1 // pred_region
      %72 = dma.done [#allocation5], 2048
    $region41: #{forward.1} parent=1 // pred_fallthru
      _
    %v73 = vld [vmem:[%s0] sm:$0xff]
    %v74 = vld [vmem:[#allocation2] sm:$0xff]
    %v75 = vld [vmem:[#allocation2 + $0x8] sm:$0xff]
    %v76 = vld [vmem:[#allocation2 + $0x10] sm:$0xff]
    %v77 = vld [vmem:[#allocation2 + $0x18] sm:$0xff]
    %v78 = vld [vmem:[#allocation2 + $0x20] sm:$0xff]
    %v79 = vld [vmem:[#allocation2 + $0x28] sm:$0xff]
    %v80 = vld [vmem:[#allocation2 + $0x30] sm:$0xff]
    %v81 = vld [vmem:[#allocation2 + $0x38] sm:$0xff]
    %v82 = vld [vmem:[#allocation2 + $0x40] sm:$0xff]
    %v83 = vld [vmem:[#allocation2 + $0x48] sm:$0xff]
    %v84 = vld [vmem:[#allocation2 + $0x50] sm:$0xff]
    %v85 = vld [vmem:[#allocation2 + $0x58] sm:$0xff]
    %v86 = vld [vmem:[#allocation2 + $0x60] sm:$0xff]
    %v87 = vld [vmem:[#allocation2 + $0x68] sm:$0xff]
    %v88 = vld [vmem:[#allocation2 + $0x70] sm:$0xff]
    %v89 = vld [vmem:[#allocation2 + $0x78] sm:$0xff]
    %v90 = vld [vmem:[%s2] sm:$0x1]
    %v92 = vperm.slane %v90, 0
    %v94 = vand.u32 %v89, 4294901760
    %95 = vmatpush.msra.mxu0 %v94
    %v96 = vand.u32 %v88, 4294901760
    %97 = vmatpush.msra.mxu0 %v96
    %v98 = vand.u32 %v87, 4294901760
    %99 = vmatpush.msra.mxu0 %v98
    %v100 = vand.u32 %v86, 4294901760
    %101 = vmatpush.msra.mxu0 %v100
    %v102 = vand.u32 %v85, 4294901760
    %103 = vmatpush.msra.mxu0 %v102
    %v104 = vand.u32 %v84, 4294901760
    %105 = vmatpush.msra.mxu0 %v104
    %v106 = vand.u32 %v83, 4294901760
    %107 = vmatpush.msra.mxu0 %v106
    %v108 = vand.u32 %v82, 4294901760
    %109 = vmatpush.msra.mxu0 %v108
    %v110 = vand.u32 %v81, 4294901760
    %111 = vmatpush.msra.mxu0 %v110
    %v112 = vand.u32 %v80, 4294901760
    %113 = vmatpush.msra.mxu0 %v112
    %v114 = vand.u32 %v79, 4294901760
    %115 = vmatpush.msra.mxu0 %v114
    %v116 = vand.u32 %v78, 4294901760
    %117 = vmatpush.msra.mxu0 %v116
    %v118 = vand.u32 %v77, 4294901760
    %119 = vmatpush.msra.mxu0 %v118
    %v120 = vand.u32 %v76, 4294901760
    %121 = vmatpush.msra.mxu0 %v120
    %v122 = vand.u32 %v75, 4294901760
    %123 = vmatpush.msra.mxu0 %v122
    %v124 = vand.u32 %v74, 4294901760
    %125 = vmatpush.msra.mxu0 %v124
    %v126 = vand.u32 %v73, 4294901760
    %v127 = vsub.f32 %v73, %v126
    %v128 = vand.u32 %v127, 4294901760
    %v129 = vsub.f32 %v127, %v128
    %v130 = vand.u32 %v129, 4294901760
    %131 = vmatmul.f32.gmra.mxu0 %v130
    %v132 = vpop.f32.mrf.mxu0
    %v133 = vadd.f32 %v92, %v132
    %134 = vdwg.mxu0
    %v135 = vand.u32 %v89, 4294901760
    %v136 = vsub.f32 %v89, %v135
    %v137 = vand.u32 %v136, 4294901760
    %v138 = vsub.f32 %v136, %v137
    %v139 = vand.u32 %v138, 4294901760
    %140 = vmatpush.msra.mxu0 %v139
    %v141 = vand.u32 %v88, 4294901760
    %v142 = vsub.f32 %v88, %v141
    %v143 = vand.u32 %v142, 4294901760
    %v144 = vsub.f32 %v142, %v143
    %v145 = vand.u32 %v144, 4294901760
    %146 = vmatpush.msra.mxu0 %v145
    %v147 = vand.u32 %v87, 4294901760
    %v148 = vsub.f32 %v87, %v147
    %v149 = vand.u32 %v148, 4294901760
    %v150 = vsub.f32 %v148, %v149
    %v151 = vand.u32 %v150, 4294901760
    %152 = vmatpush.msra.mxu0 %v151
    %v153 = vand.u32 %v86, 4294901760
    %v154 = vsub.f32 %v86, %v153
    %v155 = vand.u32 %v154, 4294901760
    %v156 = vsub.f32 %v154, %v155
    %v157 = vand.u32 %v156, 4294901760
    %158 = vmatpush.msra.mxu0 %v157
    %v159 = vand.u32 %v85, 4294901760
    %v160 = vsub.f32 %v85, %v159
    %v161 = vand.u32 %v160, 4294901760
    %v162 = vsub.f32 %v160, %v161
    %v163 = vand.u32 %v162, 4294901760
    %164 = vmatpush.msra.mxu0 %v163
    %v165 = vand.u32 %v84, 4294901760
    %v166 = vsub.f32 %v84, %v165
    %v167 = vand.u32 %v166, 4294901760
    %v168 = vsub.f32 %v166, %v167
    %v169 = vand.u32 %v168, 4294901760
    %170 = vmatpush.msra.mxu0 %v169
    %v171 = vand.u32 %v83, 4294901760
    %v172 = vsub.f32 %v83, %v171
    %v173 = vand.u32 %v172, 4294901760
    %v174 = vsub.f32 %v172, %v173
    %v175 = vand.u32 %v174, 4294901760
    %176 = vmatpush.msra.mxu0 %v175
    %v177 = vand.u32 %v82, 4294901760
    %v178 = vsub.f32 %v82, %v177
    %v179 = vand.u32 %v178, 4294901760
    %v180 = vsub.f32 %v178, %v179
    %v181 = vand.u32 %v180, 4294901760
    %182 = vmatpush.msra.mxu0 %v181
    %v183 = vand.u32 %v81, 4294901760
    %v184 = vsub.f32 %v81, %v183
    %v185 = vand.u32 %v184, 4294901760
    %v186 = vsub.f32 %v184, %v185
    %v187 = vand.u32 %v186, 4294901760
    %188 = vmatpush.msra.mxu0 %v187
    %v189 = vand.u32 %v80, 4294901760
    %v190 = vsub.f32 %v80, %v189
    %v191 = vand.u32 %v190, 4294901760
    %v192 = vsub.f32 %v190, %v191
    %v193 = vand.u32 %v192, 4294901760
    %194 = vmatpush.msra.mxu0 %v193
    %v195 = vand.u32 %v79, 4294901760
    %v196 = vsub.f32 %v79, %v195
    %v197 = vand.u32 %v196, 4294901760
    %v198 = vsub.f32 %v196, %v197
    %v199 = vand.u32 %v198, 4294901760
    %200 = vmatpush.msra.mxu0 %v199
    %v201 = vand.u32 %v78, 4294901760
    %v202 = vsub.f32 %v78, %v201
    %v203 = vand.u32 %v202, 4294901760
    %v204 = vsub.f32 %v202, %v203
    %v205 = vand.u32 %v204, 4294901760
    %206 = vmatpush.msra.mxu0 %v205
    %v207 = vand.u32 %v77, 4294901760
    %v208 = vsub.f32 %v77, %v207
    %v209 = vand.u32 %v208, 4294901760
    %v210 = vsub.f32 %v208, %v209
    %v211 = vand.u32 %v210, 4294901760
    %212 = vmatpush.msra.mxu0 %v211
    %v213 = vand.u32 %v76, 4294901760
    %v214 = vsub.f32 %v76, %v213
    %v215 = vand.u32 %v214, 4294901760
    %v216 = vsub.f32 %v214, %v215
    %v217 = vand.u32 %v216, 4294901760
    %218 = vmatpush.msra.mxu0 %v217
    %v219 = vand.u32 %v75, 4294901760
    %v220 = vsub.f32 %v75, %v219
    %v221 = vand.u32 %v220, 4294901760
    %v222 = vsub.f32 %v220, %v221
    %v223 = vand.u32 %v222, 4294901760
    %224 = vmatpush.msra.mxu0 %v223
    %v225 = vand.u32 %v74, 4294901760
    %v226 = vsub.f32 %v74, %v225
    %v227 = vand.u32 %v226, 4294901760
    %v228 = vsub.f32 %v226, %v227
    %v229 = vand.u32 %v228, 4294901760
    %230 = vmatpush.msra.mxu0 %v229
    %v231 = vand.u32 %v73, 4294901760
    %232 = vmatmul.f32.gmra.mxu0 %v231
    %v233 = vpop.f32.mrf.mxu0
    %v234 = vadd.f32 %v133, %v233
    %235 = vdwg.mxu0
    %v236 = vand.u32 %v89, 4294901760
    %v237 = vsub.f32 %v89, %v236
    %238 = vmatpush.msra.mxu0 %v237
    %v239 = vand.u32 %v88, 4294901760
    %v240 = vsub.f32 %v88, %v239
    %241 = vmatpush.msra.mxu0 %v240
    %v242 = vand.u32 %v87, 4294901760
    %v243 = vsub.f32 %v87, %v242
    %244 = vmatpush.msra.mxu0 %v243
    %v245 = vand.u32 %v86, 4294901760
    %v246 = vsub.f32 %v86, %v245
    %247 = vmatpush.msra.mxu0 %v246
    %v248 = vand.u32 %v85, 4294901760
    %v249 = vsub.f32 %v85, %v248
    %250 = vmatpush.msra.mxu0 %v249
    %v251 = vand.u32 %v84, 4294901760
    %v252 = vsub.f32 %v84, %v251
    %253 = vmatpush.msra.mxu0 %v252
    %v254 = vand.u32 %v83, 4294901760
    %v255 = vsub.f32 %v83, %v254
    %256 = vmatpush.msra.mxu0 %v255
    %v257 = vand.u32 %v82, 4294901760
    %v258 = vsub.f32 %v82, %v257
    %259 = vmatpush.msra.mxu0 %v258
    %v260 = vand.u32 %v81, 4294901760
    %v261 = vsub.f32 %v81, %v260
    %262 = vmatpush.msra.mxu0 %v261
    %v263 = vand.u32 %v80, 4294901760
    %v264 = vsub.f32 %v80, %v263
    %265 = vmatpush.msra.mxu0 %v264
    %v266 = vand.u32 %v79, 4294901760
    %v267 = vsub.f32 %v79, %v266
    %268 = vmatpush.msra.mxu0 %v267
    %v269 = vand.u32 %v78, 4294901760
    %v270 = vsub.f32 %v78, %v269
    %271 = vmatpush.msra.mxu0 %v270
    %v272 = vand.u32 %v77, 4294901760
    %v273 = vsub.f32 %v77, %v272
    %274 = vmatpush.msra.mxu0 %v273
    %v275 = vand.u32 %v76, 4294901760
    %v276 = vsub.f32 %v76, %v275
    %277 = vmatpush.msra.mxu0 %v276
    %v278 = vand.u32 %v75, 4294901760
    %v279 = vsub.f32 %v75, %v278
    %280 = vmatpush.msra.mxu0 %v279
    %v281 = vand.u32 %v74, 4294901760
    %v282 = vsub.f32 %v74, %v281
    %283 = vmatpush.msra.mxu0 %v282
    %v284 = vand.u32 %v73, 4294901760
    %v285 = vsub.f32 %v73, %v284
    %286 = vmatmul.f32.gmra.mxu0 %v285
    %v287 = vpop.f32.mrf.mxu0
    %v288 = vadd.f32 %v234, %v287
    %289 = vdwg.mxu0
    %v290 = vand.u32 %v89, 4294901760
    %291 = vmatpush.msra.mxu0 %v290
    %v292 = vand.u32 %v88, 4294901760
    %293 = vmatpush.msra.mxu0 %v292
    %v294 = vand.u32 %v87, 4294901760
    %295 = vmatpush.msra.mxu0 %v294
    %v296 = vand.u32 %v86, 4294901760
    %297 = vmatpush.msra.mxu0 %v296
    %v298 = vand.u32 %v85, 4294901760
    %299 = vmatpush.msra.mxu0 %v298
    %v300 = vand.u32 %v84, 4294901760
    %301 = vmatpush.msra.mxu0 %v300
    %v302 = vand.u32 %v83, 4294901760
    %303 = vmatpush.msra.mxu0 %v302
    %v304 = vand.u32 %v82, 4294901760
    %305 = vmatpush.msra.mxu0 %v304
    %v306 = vand.u32 %v81, 4294901760
    %307 = vmatpush.msra.mxu0 %v306
    %v308 = vand.u32 %v80, 4294901760
    %309 = vmatpush.msra.mxu0 %v308
    %v310 = vand.u32 %v79, 4294901760
    %311 = vmatpush.msra.mxu0 %v310
    %v312 = vand.u32 %v78, 4294901760
    %313 = vmatpush.msra.mxu0 %v312
    %v314 = vand.u32 %v77, 4294901760
    %315 = vmatpush.msra.mxu0 %v314
    %v316 = vand.u32 %v76, 4294901760
    %317 = vmatpush.msra.mxu0 %v316
    %v318 = vand.u32 %v75, 4294901760
    %319 = vmatpush.msra.mxu0 %v318
    %v320 = vand.u32 %v74, 4294901760
    %321 = vmatpush.msra.mxu0 %v320
    %v322 = vand.u32 %v73, 4294901760
    %v323 = vsub.f32 %v73, %v322
    %v324 = vand.u32 %v323, 4294901760
    %325 = vmatmul.f32.gmra.mxu0 %v324
    %v326 = vpop.f32.mrf.mxu0
    %v327 = vadd.f32 %v288, %v326
    %328 = vdwg.mxu0
    %v329 = vand.u32 %v89, 4294901760
    %v330 = vsub.f32 %v89, %v329
    %v331 = vand.u32 %v330, 4294901760
    %332 = vmatpush.msra.mxu0 %v331
    %v333 = vand.u32 %v88, 4294901760
    %v334 = vsub.f32 %v88, %v333
    %v335 = vand.u32 %v334, 4294901760
    %336 = vmatpush.msra.mxu0 %v335
    %v337 = vand.u32 %v87, 4294901760
    %v338 = vsub.f32 %v87, %v337
    %v339 = vand.u32 %v338, 4294901760
    %340 = vmatpush.msra.mxu0 %v339
    %v341 = vand.u32 %v86, 4294901760
    %v342 = vsub.f32 %v86, %v341
    %v343 = vand.u32 %v342, 4294901760
    %344 = vmatpush.msra.mxu0 %v343
    %v345 = vand.u32 %v85, 4294901760
    %v346 = vsub.f32 %v85, %v345
    %v347 = vand.u32 %v346, 4294901760
    %348 = vmatpush.msra.mxu0 %v347
    %v349 = vand.u32 %v84, 4294901760
    %v350 = vsub.f32 %v84, %v349
    %v351 = vand.u32 %v350, 4294901760
    %352 = vmatpush.msra.mxu0 %v351
    %v353 = vand.u32 %v83, 4294901760
    %v354 = vsub.f32 %v83, %v353
    %v355 = vand.u32 %v354, 4294901760
    %356 = vmatpush.msra.mxu0 %v355
    %v357 = vand.u32 %v82, 4294901760
    %v358 = vsub.f32 %v82, %v357
    %v359 = vand.u32 %v358, 4294901760
    %360 = vmatpush.msra.mxu0 %v359
    %v361 = vand.u32 %v81, 4294901760
    %v362 = vsub.f32 %v81, %v361
    %v363 = vand.u32 %v362, 4294901760
    %364 = vmatpush.msra.mxu0 %v363
    %v365 = vand.u32 %v80, 4294901760
    %v366 = vsub.f32 %v80, %v365
    %v367 = vand.u32 %v366, 4294901760
    %368 = vmatpush.msra.mxu0 %v367
    %v369 = vand.u32 %v79, 4294901760
    %v370 = vsub.f32 %v79, %v369
    %v371 = vand.u32 %v370, 4294901760
    %372 = vmatpush.msra.mxu0 %v371
    %v373 = vand.u32 %v78, 4294901760
    %v374 = vsub.f32 %v78, %v373
    %v375 = vand.u32 %v374, 4294901760
    %376 = vmatpush.msra.mxu0 %v375
    %v377 = vand.u32 %v77, 4294901760
    %v378 = vsub.f32 %v77, %v377
    %v379 = vand.u32 %v378, 4294901760
    %380 = vmatpush.msra.mxu0 %v379
    %v381 = vand.u32 %v76, 4294901760
    %v382 = vsub.f32 %v76, %v381
    %v383 = vand.u32 %v382, 4294901760
    %384 = vmatpush.msra.mxu0 %v383
    %v385 = vand.u32 %v75, 4294901760
    %v386 = vsub.f32 %v75, %v385
    %v387 = vand.u32 %v386, 4294901760
    %388 = vmatpush.msra.mxu0 %v387
    %v389 = vand.u32 %v74, 4294901760
    %v390 = vsub.f32 %v74, %v389
    %v391 = vand.u32 %v390, 4294901760
    %392 = vmatpush.msra.mxu0 %v391
    %v393 = vand.u32 %v73, 4294901760
    %394 = vmatmul.f32.gmra.mxu0 %v393
    %v395 = vpop.f32.mrf.mxu0
    %v396 = vadd.f32 %v327, %v395
    %397 = vdwg.mxu0
    %v398 = vand.u32 %v89, 4294901760
    %399 = vmatpush.msra.mxu0 %v398
    %v400 = vand.u32 %v88, 4294901760
    %401 = vmatpush.msra.mxu0 %v400
    %v402 = vand.u32 %v87, 4294901760
    %403 = vmatpush.msra.mxu0 %v402
    %v404 = vand.u32 %v86, 4294901760
    %405 = vmatpush.msra.mxu0 %v404
    %v406 = vand.u32 %v85, 4294901760
    %407 = vmatpush.msra.mxu0 %v406
    %v408 = vand.u32 %v84, 4294901760
    %409 = vmatpush.msra.mxu0 %v408
    %v410 = vand.u32 %v83, 4294901760
    %411 = vmatpush.msra.mxu0 %v410
    %v412 = vand.u32 %v82, 4294901760
    %413 = vmatpush.msra.mxu0 %v412
    %v414 = vand.u32 %v81, 4294901760
    %415 = vmatpush.msra.mxu0 %v414
    %v416 = vand.u32 %v80, 4294901760
    %417 = vmatpush.msra.mxu0 %v416
    %v418 = vand.u32 %v79, 4294901760
    %419 = vmatpush.msra.mxu0 %v418
    %v420 = vand.u32 %v78, 4294901760
    %421 = vmatpush.msra.mxu0 %v420
    %v422 = vand.u32 %v77, 4294901760
    %423 = vmatpush.msra.mxu0 %v422
    %v424 = vand.u32 %v76, 4294901760
    %425 = vmatpush.msra.mxu0 %v424
    %v426 = vand.u32 %v75, 4294901760
    %427 = vmatpush.msra.mxu0 %v426
    %v428 = vand.u32 %v74, 4294901760
    %429 = vmatpush.msra.mxu0 %v428
    %v430 = vand.u32 %v73, 4294901760
    %431 = vmatmul.f32.gmra.mxu0 %v430
    %v432 = vpop.f32.mrf.mxu0
    %v433 = vadd.f32 %v396, %v432
    %434 = vdwg.mxu0
    %v435 = vmul.f32 %v433, 0.01
    %v436 = vmax.f32 %v433, %v435
    %v437 = vrot.slane %v436, 4
    %v438 = vadd.f32 %v436, %v437
    %v439 = vrot.slane %v438, 2
    %v440 = vadd.f32 %v438, %v439
    %v441 = vrot.slane %v440, 1
    %v442 = vadd.f32 %v440, %v441
    %v443 = vrcp.pop 8.0
    %v444 = vmul.f32 8.0, %v443
    %v445 = vsub.f32 1.0, %v444
    %v446 = vmul.f32 %v443, %v445
    %v447 = vadd.f32 %v443, %v446
    %vm448 = vweird.f32 %v443
    %v449 = vsel %vm448, %v443, %v447
    %v450 = vmul.f32 %v442, %v449
    %v451 = vsub.f32 %v436, %v450
    %v452 = vmul.f32 %v451, %v451
    %v453 = vrot.slane %v452, 4
    %v454 = vadd.f32 %v452, %v453
    %v455 = vrot.slane %v454, 2
    %v456 = vadd.f32 %v454, %v455
    %v457 = vrot.slane %v456, 1
    %v458 = vadd.f32 %v456, %v457
    %v459 = vmul.f32 %v458, %v449
    %v460 = vadd.f32 %v459, 1e-05
    %v461 = vrsqrt.pop %v460
    %v462 = vmul.f32 %v461, %v460
    %v463 = vmul.f32 %v462, %v461
    %v464 = vmul.f32 0.5, %v463
    %v465 = vsub.f32 1.5, %v464
    %v466 = vmul.f32 %v461, %v465
    %vm467 = vweird.f32 %v460
    %vm468 = vweird.f32 %v461
    %vm469 = vmor %vm467, %vm468
    %v470 = vsel %vm469, %v461, %v466
    %v471 = vmul.f32 %v451, %v470
    %v472 = vmul.f32 %v471, %v471
    %473 = vadd.xlane.f32.xlu0 %v472
    %v474 = vpop.xlane.xlu0 %473
    %v475 = vmax.f32 %v474, 1e-24
    %v476 = vrsqrt.pop %v475
    %v477 = vmul.f32 %v476, %v475
    %v478 = vmul.f32 %v477, %v476
    %v479 = vmul.f32 0.5, %v478
    %v480 = vsub.f32 1.5, %v479
    %v481 = vmul.f32 %v476, %v480
    %vm482 = vweird.f32 %v475
    %vm483 = vweird.f32 %v476
    %vm484 = vmor %vm482, %vm483
    %v485 = vsel %vm484, %v476, %v481
    %v486 = vmul.f32 %v471, %v485
    %v487 = vld [vmem:[#allocation4] sm:$0xff]
    %v488 = vld [vmem:[#allocation4 + $0x8] sm:$0xff]
    %v489 = vld [vmem:[#allocation4 + $0x10] sm:$0xff]
    %v490 = vld [vmem:[#allocation4 + $0x18] sm:$0xff]
    %v491 = vld [vmem:[#allocation4 + $0x20] sm:$0xff]
    %v492 = vld [vmem:[#allocation4 + $0x28] sm:$0xff]
    %v493 = vld [vmem:[#allocation4 + $0x30] sm:$0xff]
    %v494 = vld [vmem:[#allocation4 + $0x38] sm:$0xff]
    %v495 = vld [vmem:[#allocation4 + $0x40] sm:$0xff]
    %v496 = vld [vmem:[#allocation4 + $0x48] sm:$0xff]
    %v497 = vld [vmem:[#allocation4 + $0x50] sm:$0xff]
    %v498 = vld [vmem:[#allocation4 + $0x58] sm:$0xff]
    %v499 = vld [vmem:[#allocation4 + $0x60] sm:$0xff]
    %v500 = vld [vmem:[#allocation4 + $0x68] sm:$0xff]
    %v501 = vld [vmem:[#allocation4 + $0x70] sm:$0xff]
    %v502 = vld [vmem:[#allocation4 + $0x78] sm:$0xff]
    %v503 = vld [vmem:[#allocation4 + $0x80] sm:$0xff]
    %v504 = vld [vmem:[#allocation4 + $0x88] sm:$0xff]
    %v505 = vld [vmem:[#allocation4 + $0x90] sm:$0xff]
    %v506 = vld [vmem:[#allocation4 + $0x98] sm:$0xff]
    %v507 = vld [vmem:[#allocation4 + $0xa0] sm:$0xff]
    %v508 = vld [vmem:[#allocation4 + $0xa8] sm:$0xff]
    %v509 = vld [vmem:[#allocation4 + $0xb0] sm:$0xff]
    %v510 = vld [vmem:[#allocation4 + $0xb8] sm:$0xff]
    %v511 = vld [vmem:[#allocation4 + $0xc0] sm:$0xff]
    %v512 = vld [vmem:[#allocation4 + $0xc8] sm:$0xff]
    %v513 = vld [vmem:[#allocation4 + $0xd0] sm:$0xff]
    %v514 = vld [vmem:[#allocation4 + $0xd8] sm:$0xff]
    %v515 = vld [vmem:[#allocation4 + $0xe0] sm:$0xff]
    %v516 = vld [vmem:[#allocation4 + $0xe8] sm:$0xff]
    %v517 = vld [vmem:[#allocation4 + $0xf0] sm:$0xff]
    %v518 = vld [vmem:[#allocation4 + $0xf8] sm:$0xff]
    %v519 = vld [vmem:[#allocation4 + $0x100] sm:$0xff]
    %v520 = vld [vmem:[#allocation4 + $0x108] sm:$0xff]
    %v521 = vld [vmem:[#allocation4 + $0x110] sm:$0xff]
    %v522 = vld [vmem:[#allocation4 + $0x118] sm:$0xff]
    %v523 = vld [vmem:[#allocation4 + $0x120] sm:$0xff]
    %v524 = vld [vmem:[#allocation4 + $0x128] sm:$0xff]
    %v525 = vld [vmem:[#allocation4 + $0x130] sm:$0xff]
    %v526 = vld [vmem:[#allocation4 + $0x138] sm:$0xff]
    %v527 = vld [vmem:[#allocation4 + $0x140] sm:$0xff]
    %v528 = vld [vmem:[#allocation4 + $0x148] sm:$0xff]
    %v529 = vld [vmem:[#allocation4 + $0x150] sm:$0xff]
    %v530 = vld [vmem:[#allocation4 + $0x158] sm:$0xff]
    %v531 = vld [vmem:[#allocation4 + $0x160] sm:$0xff]
    %v532 = vld [vmem:[#allocation4 + $0x168] sm:$0xff]
    %v533 = vld [vmem:[#allocation4 + $0x170] sm:$0xff]
    %v534 = vld [vmem:[#allocation4 + $0x178] sm:$0xff]
    %v535 = vld [vmem:[#allocation4 + $0x180] sm:$0xff]
    %v536 = vld [vmem:[#allocation4 + $0x188] sm:$0xff]
    %v537 = vld [vmem:[#allocation4 + $0x190] sm:$0xff]
    %v538 = vld [vmem:[#allocation4 + $0x198] sm:$0xff]
    %v539 = vld [vmem:[#allocation4 + $0x1a0] sm:$0xff]
    %v540 = vld [vmem:[#allocation4 + $0x1a8] sm:$0xff]
    %v541 = vld [vmem:[#allocation4 + $0x1b0] sm:$0xff]
    %v542 = vld [vmem:[#allocation4 + $0x1b8] sm:$0xff]
    %v543 = vld [vmem:[#allocation4 + $0x1c0] sm:$0xff]
    %v544 = vld [vmem:[#allocation4 + $0x1c8] sm:$0xff]
    %v545 = vld [vmem:[#allocation4 + $0x1d0] sm:$0xff]
    %v546 = vld [vmem:[#allocation4 + $0x1d8] sm:$0xff]
    %v547 = vld [vmem:[#allocation4 + $0x1e0] sm:$0xff]
    %v548 = vld [vmem:[#allocation4 + $0x1e8] sm:$0xff]
    %v549 = vld [vmem:[#allocation4 + $0x1f0] sm:$0xff]
    %v550 = vld [vmem:[#allocation4 + $0x1f8] sm:$0xff]
    %v551 = vld [vmem:[#allocation4 + $0x200] sm:$0xff]
    %v552 = vld [vmem:[#allocation4 + $0x208] sm:$0xff]
    %v553 = vld [vmem:[#allocation4 + $0x210] sm:$0xff]
    %v554 = vld [vmem:[#allocation4 + $0x218] sm:$0xff]
    %v555 = vld [vmem:[#allocation4 + $0x220] sm:$0xff]
    %v556 = vld [vmem:[#allocation4 + $0x228] sm:$0xff]
    %v557 = vld [vmem:[#allocation4 + $0x230] sm:$0xff]
    %v558 = vld [vmem:[#allocation4 + $0x238] sm:$0xff]
    %v559 = vld [vmem:[#allocation4 + $0x240] sm:$0xff]
    %v560 = vld [vmem:[#allocation4 + $0x248] sm:$0xff]
    %v561 = vld [vmem:[#allocation4 + $0x250] sm:$0xff]
    %v562 = vld [vmem:[#allocation4 + $0x258] sm:$0xff]
    %v563 = vld [vmem:[#allocation4 + $0x260] sm:$0xff]
    %v564 = vld [vmem:[#allocation4 + $0x268] sm:$0xff]
    %v565 = vld [vmem:[#allocation4 + $0x270] sm:$0xff]
    %v566 = vld [vmem:[#allocation4 + $0x278] sm:$0xff]
    %v567 = vld [vmem:[#allocation4 + $0x280] sm:$0xff]
    %v568 = vld [vmem:[#allocation4 + $0x288] sm:$0xff]
    %v569 = vld [vmem:[#allocation4 + $0x290] sm:$0xff]
    %v570 = vld [vmem:[#allocation4 + $0x298] sm:$0xff]
    %v571 = vld [vmem:[#allocation4 + $0x2a0] sm:$0xff]
    %v572 = vld [vmem:[#allocation4 + $0x2a8] sm:$0xff]
    %v573 = vld [vmem:[#allocation4 + $0x2b0] sm:$0xff]
    %v574 = vld [vmem:[#allocation4 + $0x2b8] sm:$0xff]
    %v575 = vld [vmem:[#allocation4 + $0x2c0] sm:$0xff]
    %v576 = vld [vmem:[#allocation4 + $0x2c8] sm:$0xff]
    %v577 = vld [vmem:[#allocation4 + $0x2d0] sm:$0xff]
    %v578 = vld [vmem:[#allocation4 + $0x2d8] sm:$0xff]
    %v579 = vld [vmem:[#allocation4 + $0x2e0] sm:$0xff]
    %v580 = vld [vmem:[#allocation4 + $0x2e8] sm:$0xff]
    %v581 = vld [vmem:[#allocation4 + $0x2f0] sm:$0xff]
    %v582 = vld [vmem:[#allocation4 + $0x2f8] sm:$0xff]
    %v583 = vld [vmem:[#allocation4 + $0x300] sm:$0xff]
    %v584 = vld [vmem:[#allocation4 + $0x308] sm:$0xff]
    %v585 = vld [vmem:[#allocation4 + $0x310] sm:$0xff]
    %v586 = vld [vmem:[#allocation4 + $0x318] sm:$0xff]
    %v587 = vld [vmem:[#allocation4 + $0x320] sm:$0xff]
    %v588 = vld [vmem:[#allocation4 + $0x328] sm:$0xff]
    %v589 = vld [vmem:[#allocation4 + $0x330] sm:$0xff]
    %v590 = vld [vmem:[#allocation4 + $0x338] sm:$0xff]
    %v591 = vld [vmem:[#allocation4 + $0x340] sm:$0xff]
    %v592 = vld [vmem:[#allocation4 + $0x348] sm:$0xff]
    %v593 = vld [vmem:[#allocation4 + $0x350] sm:$0xff]
    %v594 = vld [vmem:[#allocation4 + $0x358] sm:$0xff]
    %v595 = vld [vmem:[#allocation4 + $0x360] sm:$0xff]
    %v596 = vld [vmem:[#allocation4 + $0x368] sm:$0xff]
    %v597 = vld [vmem:[#allocation4 + $0x370] sm:$0xff]
    %v598 = vld [vmem:[#allocation4 + $0x378] sm:$0xff]
    %v599 = vld [vmem:[#allocation4 + $0x380] sm:$0xff]
    %v600 = vld [vmem:[#allocation4 + $0x388] sm:$0xff]
    %v601 = vld [vmem:[#allocation4 + $0x390] sm:$0xff]
    %v602 = vld [vmem:[#allocation4 + $0x398] sm:$0xff]
    %v603 = vld [vmem:[#allocation4 + $0x3a0] sm:$0xff]
    %v604 = vld [vmem:[#allocation4 + $0x3a8] sm:$0xff]
    %v605 = vld [vmem:[#allocation4 + $0x3b0] sm:$0xff]
    %v606 = vld [vmem:[#allocation4 + $0x3b8] sm:$0xff]
    %v607 = vld [vmem:[#allocation4 + $0x3c0] sm:$0xff]
    %v608 = vld [vmem:[#allocation4 + $0x3c8] sm:$0xff]
    %v609 = vld [vmem:[#allocation4 + $0x3d0] sm:$0xff]
    %v610 = vld [vmem:[#allocation4 + $0x3d8] sm:$0xff]
    %v611 = vld [vmem:[#allocation4 + $0x3e0] sm:$0xff]
    %v612 = vld [vmem:[#allocation4 + $0x3e8] sm:$0xff]
    %v613 = vld [vmem:[#allocation4 + $0x3f0] sm:$0xff]
    %v614 = vld [vmem:[#allocation4 + $0x3f8] sm:$0xff]
    %v615 = vand.u32 %v607, 4294901760
    %616 = vmatpush.msra.mxu0 %v615
    %v617 = vand.u32 %v599, 4294901760
    %618 = vmatpush.msra.mxu0 %v617
    %v619 = vand.u32 %v591, 4294901760
    %620 = vmatpush.msra.mxu0 %v619
    %v621 = vand.u32 %v583, 4294901760
    %622 = vmatpush.msra.mxu0 %v621
    %v623 = vand.u32 %v575, 4294901760
    %624 = vmatpush.msra.mxu0 %v623
    %v625 = vand.u32 %v567, 4294901760
    %626 = vmatpush.msra.mxu0 %v625
    %v627 = vand.u32 %v559, 4294901760
    %628 = vmatpush.msra.mxu0 %v627
    %v629 = vand.u32 %v551, 4294901760
    %630 = vmatpush.msra.mxu0 %v629
    %v631 = vand.u32 %v543, 4294901760
    %632 = vmatpush.msra.mxu0 %v631
    %v633 = vand.u32 %v535, 4294901760
    %634 = vmatpush.msra.mxu0 %v633
    %v635 = vand.u32 %v527, 4294901760
    %636 = vmatpush.msra.mxu0 %v635
    %v637 = vand.u32 %v519, 4294901760
    %638 = vmatpush.msra.mxu0 %v637
    %v639 = vand.u32 %v511, 4294901760
    %640 = vmatpush.msra.mxu0 %v639
    %v641 = vand.u32 %v503, 4294901760
    %642 = vmatpush.msra.mxu0 %v641
    %v643 = vand.u32 %v495, 4294901760
    %644 = vmatpush.msra.mxu0 %v643
    %v645 = vand.u32 %v487, 4294901760
    %646 = vmatpush.msra.mxu0 %v645
    %v647 = vand.u32 %v486, 4294901760
    %v648 = vsub.f32 %v486, %v647
    %v649 = vand.u32 %v648, 4294901760
    %v650 = vsub.f32 %v648, %v649
    %v651 = vand.u32 %v650, 4294901760
    %652 = vmatmul.f32.gmra.mxu0 %v651
    %v653 = vpop.f32.mrf.mxu0
    %v654 = vadd.f32 0.0, %v653
    %655 = vdwg.mxu0
    %v656 = vand.u32 %v607, 4294901760
    %v657 = vsub.f32 %v607, %v656
    %v658 = vand.u32 %v657, 4294901760
    %v659 = vsub.f32 %v657, %v658
    %v660 = vand.u32 %v659, 4294901760
    %661 = vmatpush.msra.mxu0 %v660
    %v662 = vand.u32 %v599, 4294901760
    %v663 = vsub.f32 %v599, %v662
    %v664 = vand.u32 %v663, 4294901760
    %v665 = vsub.f32 %v663, %v664
    %v666 = vand.u32 %v665, 4294901760
    %667 = vmatpush.msra.mxu0 %v666
    %v668 = vand.u32 %v591, 4294901760
    %v669 = vsub.f32 %v591, %v668
    %v670 = vand.u32 %v669, 4294901760
    %v671 = vsub.f32 %v669, %v670
    %v672 = vand.u32 %v671, 4294901760
    %673 = vmatpush.msra.mxu0 %v672
    %v674 = vand.u32 %v583, 4294901760
    %v675 = vsub.f32 %v583, %v674
    %v676 = vand.u32 %v675, 4294901760
    %v677 = vsub.f32 %v675, %v676
    %v678 = vand.u32 %v677, 4294901760
    %679 = vmatpush.msra.mxu0 %v678
    %v680 = vand.u32 %v575, 4294901760
    %v681 = vsub.f32 %v575, %v680
    %v682 = vand.u32 %v681, 4294901760
    %v683 = vsub.f32 %v681, %v682
    %v684 = vand.u32 %v683, 4294901760
    %685 = vmatpush.msra.mxu0 %v684
    %v686 = vand.u32 %v567, 4294901760
    %v687 = vsub.f32 %v567, %v686
    %v688 = vand.u32 %v687, 4294901760
    %v689 = vsub.f32 %v687, %v688
    %v690 = vand.u32 %v689, 4294901760
    %691 = vmatpush.msra.mxu0 %v690
    %v692 = vand.u32 %v559, 4294901760
    %v693 = vsub.f32 %v559, %v692
    %v694 = vand.u32 %v693, 4294901760
    %v695 = vsub.f32 %v693, %v694
    %v696 = vand.u32 %v695, 4294901760
    %697 = vmatpush.msra.mxu0 %v696
    %v698 = vand.u32 %v551, 4294901760
    %v699 = vsub.f32 %v551, %v698
    %v700 = vand.u32 %v699, 4294901760
    %v701 = vsub.f32 %v699, %v700
    %v702 = vand.u32 %v701, 4294901760
    %703 = vmatpush.msra.mxu0 %v702
    %v704 = vand.u32 %v543, 4294901760
    %v705 = vsub.f32 %v543, %v704
    %v706 = vand.u32 %v705, 4294901760
    %v707 = vsub.f32 %v705, %v706
    %v708 = vand.u32 %v707, 4294901760
    %709 = vmatpush.msra.mxu0 %v708
    %v710 = vand.u32 %v535, 4294901760
    %v711 = vsub.f32 %v535, %v710
    %v712 = vand.u32 %v711, 4294901760
    %v713 = vsub.f32 %v711, %v712
    %v714 = vand.u32 %v713, 4294901760
    %715 = vmatpush.msra.mxu0 %v714
    %v716 = vand.u32 %v527, 4294901760
    %v717 = vsub.f32 %v527, %v716
    %v718 = vand.u32 %v717, 4294901760
    %v719 = vsub.f32 %v717, %v718
    %v720 = vand.u32 %v719, 4294901760
    %721 = vmatpush.msra.mxu0 %v720
    %v722 = vand.u32 %v519, 4294901760
    %v723 = vsub.f32 %v519, %v722
    %v724 = vand.u32 %v723, 4294901760
    %v725 = vsub.f32 %v723, %v724
    %v726 = vand.u32 %v725, 4294901760
    %727 = vmatpush.msra.mxu0 %v726
    %v728 = vand.u32 %v511, 4294901760
    %v729 = vsub.f32 %v511, %v728
    %v730 = vand.u32 %v729, 4294901760
    %v731 = vsub.f32 %v729, %v730
    %v732 = vand.u32 %v731, 4294901760
    %733 = vmatpush.msra.mxu0 %v732
    %v734 = vand.u32 %v503, 4294901760
    %v735 = vsub.f32 %v503, %v734
    %v736 = vand.u32 %v735, 4294901760
    %v737 = vsub.f32 %v735, %v736
    %v738 = vand.u32 %v737, 4294901760
    %739 = vmatpush.msra.mxu0 %v738
    %v740 = vand.u32 %v495, 4294901760
    %v741 = vsub.f32 %v495, %v740
    %v742 = vand.u32 %v741, 4294901760
    %v743 = vsub.f32 %v741, %v742
    %v744 = vand.u32 %v743, 4294901760
    %745 = vmatpush.msra.mxu0 %v744
    %v746 = vand.u32 %v487, 4294901760
    %v747 = vsub.f32 %v487, %v746
    %v748 = vand.u32 %v747, 4294901760
    %v749 = vsub.f32 %v747, %v748
    %v750 = vand.u32 %v749, 4294901760
    %751 = vmatpush.msra.mxu0 %v750
    %v752 = vand.u32 %v486, 4294901760
    %753 = vmatmul.f32.gmra.mxu0 %v752
    %v754 = vpop.f32.mrf.mxu0
    %v755 = vadd.f32 %v654, %v754
    %756 = vdwg.mxu0
    %v757 = vand.u32 %v607, 4294901760
    %v758 = vsub.f32 %v607, %v757
    %759 = vmatpush.msra.mxu0 %v758
    %v760 = vand.u32 %v599, 4294901760
    %v761 = vsub.f32 %v599, %v760
    %762 = vmatpush.msra.mxu0 %v761
    %v763 = vand.u32 %v591, 4294901760
    %v764 = vsub.f32 %v591, %v763
    %765 = vmatpush.msra.mxu0 %v764
    %v766 = vand.u32 %v583, 4294901760
    %v767 = vsub.f32 %v583, %v766
    %768 = vmatpush.msra.mxu0 %v767
    %v769 = vand.u32 %v575, 4294901760
    %v770 = vsub.f32 %v575, %v769
    %771 = vmatpush.msra.mxu0 %v770
    %v772 = vand.u32 %v567, 4294901760
    %v773 = vsub.f32 %v567, %v772
    %774 = vmatpush.msra.mxu0 %v773
    %v775 = vand.u32 %v559, 4294901760
    %v776 = vsub.f32 %v559, %v775
    %777 = vmatpush.msra.mxu0 %v776
    %v778 = vand.u32 %v551, 4294901760
    %v779 = vsub.f32 %v551, %v778
    %780 = vmatpush.msra.mxu0 %v779
    %v781 = vand.u32 %v543, 4294901760
    %v782 = vsub.f32 %v543, %v781
    %783 = vmatpush.msra.mxu0 %v782
    %v784 = vand.u32 %v535, 4294901760
    %v785 = vsub.f32 %v535, %v784
    %786 = vmatpush.msra.mxu0 %v785
    %v787 = vand.u32 %v527, 4294901760
    %v788 = vsub.f32 %v527, %v787
    %789 = vmatpush.msra.mxu0 %v788
    %v790 = vand.u32 %v519, 4294901760
    %v791 = vsub.f32 %v519, %v790
    %792 = vmatpush.msra.mxu0 %v791
    %v793 = vand.u32 %v511, 4294901760
    %v794 = vsub.f32 %v511, %v793
    %795 = vmatpush.msra.mxu0 %v794
    %v796 = vand.u32 %v503, 4294901760
    %v797 = vsub.f32 %v503, %v796
    %798 = vmatpush.msra.mxu0 %v797
    %v799 = vand.u32 %v495, 4294901760
    %v800 = vsub.f32 %v495, %v799
    %801 = vmatpush.msra.mxu0 %v800
    %v802 = vand.u32 %v487, 4294901760
    %v803 = vsub.f32 %v487, %v802
    %804 = vmatpush.msra.mxu0 %v803
    %v805 = vand.u32 %v486, 4294901760
    %v806 = vsub.f32 %v486, %v805
    %807 = vmatmul.f32.gmra.mxu0 %v806
    %v808 = vpop.f32.mrf.mxu0
    %v809 = vadd.f32 %v755, %v808
    %810 = vdwg.mxu0
    %v811 = vand.u32 %v607, 4294901760
    %812 = vmatpush.msra.mxu0 %v811
    %v813 = vand.u32 %v599, 4294901760
    %814 = vmatpush.msra.mxu0 %v813
    %v815 = vand.u32 %v591, 4294901760
    %816 = vmatpush.msra.mxu0 %v815
    %v817 = vand.u32 %v583, 4294901760
    %818 = vmatpush.msra.mxu0 %v817
    %v819 = vand.u32 %v575, 4294901760
    %820 = vmatpush.msra.mxu0 %v819
    %v821 = vand.u32 %v567, 4294901760
    %822 = vmatpush.msra.mxu0 %v821
    %v823 = vand.u32 %v559, 4294901760
    %824 = vmatpush.msra.mxu0 %v823
    %v825 = vand.u32 %v551, 4294901760
    %826 = vmatpush.msra.mxu0 %v825
    %v827 = vand.u32 %v543, 4294901760
    %828 = vmatpush.msra.mxu0 %v827
    %v829 = vand.u32 %v535, 4294901760
    %830 = vmatpush.msra.mxu0 %v829
    %v831 = vand.u32 %v527, 4294901760
    %832 = vmatpush.msra.mxu0 %v831
    %v833 = vand.u32 %v519, 4294901760
    %834 = vmatpush.msra.mxu0 %v833
    %v835 = vand.u32 %v511, 4294901760
    %836 = vmatpush.msra.mxu0 %v835
    %v837 = vand.u32 %v503, 4294901760
    %838 = vmatpush.msra.mxu0 %v837
    %v839 = vand.u32 %v495, 4294901760
    %840 = vmatpush.msra.mxu0 %v839
    %v841 = vand.u32 %v487, 4294901760
    %842 = vmatpush.msra.mxu0 %v841
    %v843 = vand.u32 %v486, 4294901760
    %v844 = vsub.f32 %v486, %v843
    %v845 = vand.u32 %v844, 4294901760
    %846 = vmatmul.f32.gmra.mxu0 %v845
    %v847 = vpop.f32.mrf.mxu0
    %v848 = vadd.f32 %v809, %v847
    %849 = vdwg.mxu0
    %v850 = vand.u32 %v607, 4294901760
    %v851 = vsub.f32 %v607, %v850
    %v852 = vand.u32 %v851, 4294901760
    %853 = vmatpush.msra.mxu0 %v852
    %v854 = vand.u32 %v599, 4294901760
    %v855 = vsub.f32 %v599, %v854
    %v856 = vand.u32 %v855, 4294901760
    %857 = vmatpush.msra.mxu0 %v856
    %v858 = vand.u32 %v591, 4294901760
    %v859 = vsub.f32 %v591, %v858
    %v860 = vand.u32 %v859, 4294901760
    %861 = vmatpush.msra.mxu0 %v860
    %v862 = vand.u32 %v583, 4294901760
    %v863 = vsub.f32 %v583, %v862
    %v864 = vand.u32 %v863, 4294901760
    %865 = vmatpush.msra.mxu0 %v864
    %v866 = vand.u32 %v575, 4294901760
    %v867 = vsub.f32 %v575, %v866
    %v868 = vand.u32 %v867, 4294901760
    %869 = vmatpush.msra.mxu0 %v868
    %v870 = vand.u32 %v567, 4294901760
    %v871 = vsub.f32 %v567, %v870
    %v872 = vand.u32 %v871, 4294901760
    %873 = vmatpush.msra.mxu0 %v872
    %v874 = vand.u32 %v559, 4294901760
    %v875 = vsub.f32 %v559, %v874
    %v876 = vand.u32 %v875, 4294901760
    %877 = vmatpush.msra.mxu0 %v876
    %v878 = vand.u32 %v551, 4294901760
    %v879 = vsub.f32 %v551, %v878
    %v880 = vand.u32 %v879, 4294901760
    %881 = vmatpush.msra.mxu0 %v880
    %v882 = vand.u32 %v543, 4294901760
    %v883 = vsub.f32 %v543, %v882
    %v884 = vand.u32 %v883, 4294901760
    %885 = vmatpush.msra.mxu0 %v884
    %v886 = vand.u32 %v535, 4294901760
    %v887 = vsub.f32 %v535, %v886
    %v888 = vand.u32 %v887, 4294901760
    %889 = vmatpush.msra.mxu0 %v888
    %v890 = vand.u32 %v527, 4294901760
    %v891 = vsub.f32 %v527, %v890
    %v892 = vand.u32 %v891, 4294901760
    %893 = vmatpush.msra.mxu0 %v892
    %v894 = vand.u32 %v519, 4294901760
    %v895 = vsub.f32 %v519, %v894
    %v896 = vand.u32 %v895, 4294901760
    %897 = vmatpush.msra.mxu0 %v896
    %v898 = vand.u32 %v511, 4294901760
    %v899 = vsub.f32 %v511, %v898
    %v900 = vand.u32 %v899, 4294901760
    %901 = vmatpush.msra.mxu0 %v900
    %v902 = vand.u32 %v503, 4294901760
    %v903 = vsub.f32 %v503, %v902
    %v904 = vand.u32 %v903, 4294901760
    %905 = vmatpush.msra.mxu0 %v904
    %v906 = vand.u32 %v495, 4294901760
    %v907 = vsub.f32 %v495, %v906
    %v908 = vand.u32 %v907, 4294901760
    %909 = vmatpush.msra.mxu0 %v908
    %v910 = vand.u32 %v487, 4294901760
    %v911 = vsub.f32 %v487, %v910
    %v912 = vand.u32 %v911, 4294901760
    %913 = vmatpush.msra.mxu0 %v912
    %v914 = vand.u32 %v486, 4294901760
    %915 = vmatmul.f32.gmra.mxu0 %v914
    %v916 = vpop.f32.mrf.mxu0
    %v917 = vadd.f32 %v848, %v916
    %918 = vdwg.mxu0
    %v919 = vand.u32 %v607, 4294901760
    %920 = vmatpush.msra.mxu0 %v919
    %v921 = vand.u32 %v599, 4294901760
    %922 = vmatpush.msra.mxu0 %v921
    %v923 = vand.u32 %v591, 4294901760
    %924 = vmatpush.msra.mxu0 %v923
    %v925 = vand.u32 %v583, 4294901760
    %926 = vmatpush.msra.mxu0 %v925
    %v927 = vand.u32 %v575, 4294901760
    %928 = vmatpush.msra.mxu0 %v927
    %v929 = vand.u32 %v567, 4294901760
    %930 = vmatpush.msra.mxu0 %v929
    %v931 = vand.u32 %v559, 4294901760
    %932 = vmatpush.msra.mxu0 %v931
    %v933 = vand.u32 %v551, 4294901760
    %934 = vmatpush.msra.mxu0 %v933
    %v935 = vand.u32 %v543, 4294901760
    %936 = vmatpush.msra.mxu0 %v935
    %v937 = vand.u32 %v535, 4294901760
    %938 = vmatpush.msra.mxu0 %v937
    %v939 = vand.u32 %v527, 4294901760
    %940 = vmatpush.msra.mxu0 %v939
    %v941 = vand.u32 %v519, 4294901760
    %942 = vmatpush.msra.mxu0 %v941
    %v943 = vand.u32 %v511, 4294901760
    %944 = vmatpush.msra.mxu0 %v943
    %v945 = vand.u32 %v503, 4294901760
    %946 = vmatpush.msra.mxu0 %v945
    %v947 = vand.u32 %v495, 4294901760
    %948 = vmatpush.msra.mxu0 %v947
    %v949 = vand.u32 %v487, 4294901760
    %950 = vmatpush.msra.mxu0 %v949
    %v951 = vand.u32 %v486, 4294901760
    %952 = vmatmul.f32.gmra.mxu0 %v951
    %v953 = vpop.f32.mrf.mxu0
    %v954 = vadd.f32 %v917, %v953
    %955 = vdwg.mxu0
    %v956 = vand.u32 %v608, 4294901760
    %957 = vmatpush.msra.mxu0 %v956
    %v958 = vand.u32 %v600, 4294901760
    %959 = vmatpush.msra.mxu0 %v958
    %v960 = vand.u32 %v592, 4294901760
    %961 = vmatpush.msra.mxu0 %v960
    %v962 = vand.u32 %v584, 4294901760
    %963 = vmatpush.msra.mxu0 %v962
    %v964 = vand.u32 %v576, 4294901760
    %965 = vmatpush.msra.mxu0 %v964
    %v966 = vand.u32 %v568, 4294901760
    %967 = vmatpush.msra.mxu0 %v966
    %v968 = vand.u32 %v560, 4294901760
    %969 = vmatpush.msra.mxu0 %v968
    %v970 = vand.u32 %v552, 4294901760
    %971 = vmatpush.msra.mxu0 %v970
    %v972 = vand.u32 %v544, 4294901760
    %973 = vmatpush.msra.mxu0 %v972
    %v974 = vand.u32 %v536, 4294901760
    %975 = vmatpush.msra.mxu0 %v974
    %v976 = vand.u32 %v528, 4294901760
    %977 = vmatpush.msra.mxu0 %v976
    %v978 = vand.u32 %v520, 4294901760
    %979 = vmatpush.msra.mxu0 %v978
    %v980 = vand.u32 %v512, 4294901760
    %981 = vmatpush.msra.mxu0 %v980
    %v982 = vand.u32 %v504, 4294901760
    %983 = vmatpush.msra.mxu0 %v982
    %v984 = vand.u32 %v496, 4294901760
    %985 = vmatpush.msra.mxu0 %v984
    %v986 = vand.u32 %v488, 4294901760
    %987 = vmatpush.msra.mxu0 %v986
    %v988 = vand.u32 %v486, 4294901760
    %v989 = vsub.f32 %v486, %v988
    %v990 = vand.u32 %v989, 4294901760
    %v991 = vsub.f32 %v989, %v990
    %v992 = vand.u32 %v991, 4294901760
    %993 = vmatmul.f32.gmra.mxu0 %v992
    %v994 = vpop.f32.mrf.mxu0
    %v995 = vadd.f32 0.0, %v994
    %996 = vdwg.mxu0
    %v997 = vand.u32 %v608, 4294901760
    %v998 = vsub.f32 %v608, %v997
    %v999 = vand.u32 %v998, 4294901760
    %v1000 = vsub.f32 %v998, %v999
    %v1001 = vand.u32 %v1000, 4294901760
    %1002 = vmatpush.msra.mxu0 %v1001
    %v1003 = vand.u32 %v600, 4294901760
    %v1004 = vsub.f32 %v600, %v1003
    %v1005 = vand.u32 %v1004, 4294901760
    %v1006 = vsub.f32 %v1004, %v1005
    %v1007 = vand.u32 %v1006, 4294901760
    %1008 = vmatpush.msra.mxu0 %v1007
    %v1009 = vand.u32 %v592, 4294901760
    %v1010 = vsub.f32 %v592, %v1009
    %v1011 = vand.u32 %v1010, 4294901760
    %v1012 = vsub.f32 %v1010, %v1011
    %v1013 = vand.u32 %v1012, 4294901760
    %1014 = vmatpush.msra.mxu0 %v1013
    %v1015 = vand.u32 %v584, 4294901760
    %v1016 = vsub.f32 %v584, %v1015
    %v1017 = vand.u32 %v1016, 4294901760
    %v1018 = vsub.f32 %v1016, %v1017
    %v1019 = vand.u32 %v1018, 4294901760
    %1020 = vmatpush.msra.mxu0 %v1019
    %v1021 = vand.u32 %v576, 4294901760
    %v1022 = vsub.f32 %v576, %v1021
    %v1023 = vand.u32 %v1022, 4294901760
    %v1024 = vsub.f32 %v1022, %v1023
    %v1025 = vand.u32 %v1024, 4294901760
    %1026 = vmatpush.msra.mxu0 %v1025
    %v1027 = vand.u32 %v568, 4294901760
    %v1028 = vsub.f32 %v568, %v1027
    %v1029 = vand.u32 %v1028, 4294901760
    %v1030 = vsub.f32 %v1028, %v1029
    %v1031 = vand.u32 %v1030, 4294901760
    %1032 = vmatpush.msra.mxu0 %v1031
    %v1033 = vand.u32 %v560, 4294901760
    %v1034 = vsub.f32 %v560, %v1033
    %v1035 = vand.u32 %v1034, 4294901760
    %v1036 = vsub.f32 %v1034, %v1035
    %v1037 = vand.u32 %v1036, 4294901760
    %1038 = vmatpush.msra.mxu0 %v1037
    %v1039 = vand.u32 %v552, 4294901760
    %v1040 = vsub.f32 %v552, %v1039
    %v1041 = vand.u32 %v1040, 4294901760
    %v1042 = vsub.f32 %v1040, %v1041
    %v1043 = vand.u32 %v1042, 4294901760
    %1044 = vmatpush.msra.mxu0 %v1043
    %v1045 = vand.u32 %v544, 4294901760
    %v1046 = vsub.f32 %v544, %v1045
    %v1047 = vand.u32 %v1046, 4294901760
    %v1048 = vsub.f32 %v1046, %v1047
    %v1049 = vand.u32 %v1048, 4294901760
    %1050 = vmatpush.msra.mxu0 %v1049
    %v1051 = vand.u32 %v536, 4294901760
    %v1052 = vsub.f32 %v536, %v1051
    %v1053 = vand.u32 %v1052, 4294901760
    %v1054 = vsub.f32 %v1052, %v1053
    %v1055 = vand.u32 %v1054, 4294901760
    %1056 = vmatpush.msra.mxu0 %v1055
    %v1057 = vand.u32 %v528, 4294901760
    %v1058 = vsub.f32 %v528, %v1057
    %v1059 = vand.u32 %v1058, 4294901760
    %v1060 = vsub.f32 %v1058, %v1059
    %v1061 = vand.u32 %v1060, 4294901760
    %1062 = vmatpush.msra.mxu0 %v1061
    %v1063 = vand.u32 %v520, 4294901760
    %v1064 = vsub.f32 %v520, %v1063
    %v1065 = vand.u32 %v1064, 4294901760
    %v1066 = vsub.f32 %v1064, %v1065
    %v1067 = vand.u32 %v1066, 4294901760
    %1068 = vmatpush.msra.mxu0 %v1067
    %v1069 = vand.u32 %v512, 4294901760
    %v1070 = vsub.f32 %v512, %v1069
    %v1071 = vand.u32 %v1070, 4294901760
    %v1072 = vsub.f32 %v1070, %v1071
    %v1073 = vand.u32 %v1072, 4294901760
    %1074 = vmatpush.msra.mxu0 %v1073
    %v1075 = vand.u32 %v504, 4294901760
    %v1076 = vsub.f32 %v504, %v1075
    %v1077 = vand.u32 %v1076, 4294901760
    %v1078 = vsub.f32 %v1076, %v1077
    %v1079 = vand.u32 %v1078, 4294901760
    %1080 = vmatpush.msra.mxu0 %v1079
    %v1081 = vand.u32 %v496, 4294901760
    %v1082 = vsub.f32 %v496, %v1081
    %v1083 = vand.u32 %v1082, 4294901760
    %v1084 = vsub.f32 %v1082, %v1083
    %v1085 = vand.u32 %v1084, 4294901760
    %1086 = vmatpush.msra.mxu0 %v1085
    %v1087 = vand.u32 %v488, 4294901760
    %v1088 = vsub.f32 %v488, %v1087
    %v1089 = vand.u32 %v1088, 4294901760
    %v1090 = vsub.f32 %v1088, %v1089
    %v1091 = vand.u32 %v1090, 4294901760
    %1092 = vmatpush.msra.mxu0 %v1091
    %v1093 = vand.u32 %v486, 4294901760
    %1094 = vmatmul.f32.gmra.mxu0 %v1093
    %v1095 = vpop.f32.mrf.mxu0
    %v1096 = vadd.f32 %v995, %v1095
    %1097 = vdwg.mxu0
    %v1098 = vand.u32 %v608, 4294901760
    %v1099 = vsub.f32 %v608, %v1098
    %1100 = vmatpush.msra.mxu0 %v1099
    %v1101 = vand.u32 %v600, 4294901760
    %v1102 = vsub.f32 %v600, %v1101
    %1103 = vmatpush.msra.mxu0 %v1102
    %v1104 = vand.u32 %v592, 4294901760
    %v1105 = vsub.f32 %v592, %v1104
    %1106 = vmatpush.msra.mxu0 %v1105
    %v1107 = vand.u32 %v584, 4294901760
    %v1108 = vsub.f32 %v584, %v1107
    %1109 = vmatpush.msra.mxu0 %v1108
    %v1110 = vand.u32 %v576, 4294901760
    %v1111 = vsub.f32 %v576, %v1110
    %1112 = vmatpush.msra.mxu0 %v1111
    %v1113 = vand.u32 %v568, 4294901760
    %v1114 = vsub.f32 %v568, %v1113
    %1115 = vmatpush.msra.mxu0 %v1114
    %v1116 = vand.u32 %v560, 4294901760
    %v1117 = vsub.f32 %v560, %v1116
    %1118 = vmatpush.msra.mxu0 %v1117
    %v1119 = vand.u32 %v552, 4294901760
    %v1120 = vsub.f32 %v552, %v1119
    %1121 = vmatpush.msra.mxu0 %v1120
    %v1122 = vand.u32 %v544, 4294901760
    %v1123 = vsub.f32 %v544, %v1122
    %1124 = vmatpush.msra.mxu0 %v1123
    %v1125 = vand.u32 %v536, 4294901760
    %v1126 = vsub.f32 %v536, %v1125
    %1127 = vmatpush.msra.mxu0 %v1126
    %v1128 = vand.u32 %v528, 4294901760
    %v1129 = vsub.f32 %v528, %v1128
    %1130 = vmatpush.msra.mxu0 %v1129
    %v1131 = vand.u32 %v520, 4294901760
    %v1132 = vsub.f32 %v520, %v1131
    %1133 = vmatpush.msra.mxu0 %v1132
    %v1134 = vand.u32 %v512, 4294901760
    %v1135 = vsub.f32 %v512, %v1134
    %1136 = vmatpush.msra.mxu0 %v1135
    %v1137 = vand.u32 %v504, 4294901760
    %v1138 = vsub.f32 %v504, %v1137
    %1139 = vmatpush.msra.mxu0 %v1138
    %v1140 = vand.u32 %v496, 4294901760
    %v1141 = vsub.f32 %v496, %v1140
    %1142 = vmatpush.msra.mxu0 %v1141
    %v1143 = vand.u32 %v488, 4294901760
    %v1144 = vsub.f32 %v488, %v1143
    %1145 = vmatpush.msra.mxu0 %v1144
    %v1146 = vand.u32 %v486, 4294901760
    %v1147 = vsub.f32 %v486, %v1146
    %1148 = vmatmul.f32.gmra.mxu0 %v1147
    %v1149 = vpop.f32.mrf.mxu0
    %v1150 = vadd.f32 %v1096, %v1149
    %1151 = vdwg.mxu0
    %v1152 = vand.u32 %v608, 4294901760
    %1153 = vmatpush.msra.mxu0 %v1152
    %v1154 = vand.u32 %v600, 4294901760
    %1155 = vmatpush.msra.mxu0 %v1154
    %v1156 = vand.u32 %v592, 4294901760
    %1157 = vmatpush.msra.mxu0 %v1156
    %v1158 = vand.u32 %v584, 4294901760
    %1159 = vmatpush.msra.mxu0 %v1158
    %v1160 = vand.u32 %v576, 4294901760
    %1161 = vmatpush.msra.mxu0 %v1160
    %v1162 = vand.u32 %v568, 4294901760
    %1163 = vmatpush.msra.mxu0 %v1162
    %v1164 = vand.u32 %v560, 4294901760
    %1165 = vmatpush.msra.mxu0 %v1164
    %v1166 = vand.u32 %v552, 4294901760
    %1167 = vmatpush.msra.mxu0 %v1166
    %v1168 = vand.u32 %v544, 4294901760
    %1169 = vmatpush.msra.mxu0 %v1168
    %v1170 = vand.u32 %v536, 4294901760
    %1171 = vmatpush.msra.mxu0 %v1170
    %v1172 = vand.u32 %v528, 4294901760
    %1173 = vmatpush.msra.mxu0 %v1172
    %v1174 = vand.u32 %v520, 4294901760
    %1175 = vmatpush.msra.mxu0 %v1174
    %v1176 = vand.u32 %v512, 4294901760
    %1177 = vmatpush.msra.mxu0 %v1176
    %v1178 = vand.u32 %v504, 4294901760
    %1179 = vmatpush.msra.mxu0 %v1178
    %v1180 = vand.u32 %v496, 4294901760
    %1181 = vmatpush.msra.mxu0 %v1180
    %v1182 = vand.u32 %v488, 4294901760
    %1183 = vmatpush.msra.mxu0 %v1182
    %v1184 = vand.u32 %v486, 4294901760
    %v1185 = vsub.f32 %v486, %v1184
    %v1186 = vand.u32 %v1185, 4294901760
    %1187 = vmatmul.f32.gmra.mxu0 %v1186
    %v1188 = vpop.f32.mrf.mxu0
    %v1189 = vadd.f32 %v1150, %v1188
    %1190 = vdwg.mxu0
    %v1191 = vand.u32 %v608, 4294901760
    %v1192 = vsub.f32 %v608, %v1191
    %v1193 = vand.u32 %v1192, 4294901760
    %1194 = vmatpush.msra.mxu0 %v1193
    %v1195 = vand.u32 %v600, 4294901760
    %v1196 = vsub.f32 %v600, %v1195
    %v1197 = vand.u32 %v1196, 4294901760
    %1198 = vmatpush.msra.mxu0 %v1197
    %v1199 = vand.u32 %v592, 4294901760
    %v1200 = vsub.f32 %v592, %v1199
    %v1201 = vand.u32 %v1200, 4294901760
    %1202 = vmatpush.msra.mxu0 %v1201
    %v1203 = vand.u32 %v584, 4294901760
    %v1204 = vsub.f32 %v584, %v1203
    %v1205 = vand.u32 %v1204, 4294901760
    %1206 = vmatpush.msra.mxu0 %v1205
    %v1207 = vand.u32 %v576, 4294901760
    %v1208 = vsub.f32 %v576, %v1207
    %v1209 = vand.u32 %v1208, 4294901760
    %1210 = vmatpush.msra.mxu0 %v1209
    %v1211 = vand.u32 %v568, 4294901760
    %v1212 = vsub.f32 %v568, %v1211
    %v1213 = vand.u32 %v1212, 4294901760
    %1214 = vmatpush.msra.mxu0 %v1213
    %v1215 = vand.u32 %v560, 4294901760
    %v1216 = vsub.f32 %v560, %v1215
    %v1217 = vand.u32 %v1216, 4294901760
    %1218 = vmatpush.msra.mxu0 %v1217
    %v1219 = vand.u32 %v552, 4294901760
    %v1220 = vsub.f32 %v552, %v1219
    %v1221 = vand.u32 %v1220, 4294901760
    %1222 = vmatpush.msra.mxu0 %v1221
    %v1223 = vand.u32 %v544, 4294901760
    %v1224 = vsub.f32 %v544, %v1223
    %v1225 = vand.u32 %v1224, 4294901760
    %1226 = vmatpush.msra.mxu0 %v1225
    %v1227 = vand.u32 %v536, 4294901760
    %v1228 = vsub.f32 %v536, %v1227
    %v1229 = vand.u32 %v1228, 4294901760
    %1230 = vmatpush.msra.mxu0 %v1229
    %v1231 = vand.u32 %v528, 4294901760
    %v1232 = vsub.f32 %v528, %v1231
    %v1233 = vand.u32 %v1232, 4294901760
    %1234 = vmatpush.msra.mxu0 %v1233
    %v1235 = vand.u32 %v520, 4294901760
    %v1236 = vsub.f32 %v520, %v1235
    %v1237 = vand.u32 %v1236, 4294901760
    %1238 = vmatpush.msra.mxu0 %v1237
    %v1239 = vand.u32 %v512, 4294901760
    %v1240 = vsub.f32 %v512, %v1239
    %v1241 = vand.u32 %v1240, 4294901760
    %1242 = vmatpush.msra.mxu0 %v1241
    %v1243 = vand.u32 %v504, 4294901760
    %v1244 = vsub.f32 %v504, %v1243
    %v1245 = vand.u32 %v1244, 4294901760
    %1246 = vmatpush.msra.mxu0 %v1245
    %v1247 = vand.u32 %v496, 4294901760
    %v1248 = vsub.f32 %v496, %v1247
    %v1249 = vand.u32 %v1248, 4294901760
    %1250 = vmatpush.msra.mxu0 %v1249
    %v1251 = vand.u32 %v488, 4294901760
    %v1252 = vsub.f32 %v488, %v1251
    %v1253 = vand.u32 %v1252, 4294901760
    %1254 = vmatpush.msra.mxu0 %v1253
    %v1255 = vand.u32 %v486, 4294901760
    %1256 = vmatmul.f32.gmra.mxu0 %v1255
    %v1257 = vpop.f32.mrf.mxu0
    %v1258 = vadd.f32 %v1189, %v1257
    %1259 = vdwg.mxu0
    %v1260 = vand.u32 %v608, 4294901760
    %1261 = vmatpush.msra.mxu0 %v1260
    %v1262 = vand.u32 %v600, 4294901760
    %1263 = vmatpush.msra.mxu0 %v1262
    %v1264 = vand.u32 %v592, 4294901760
    %1265 = vmatpush.msra.mxu0 %v1264
    %v1266 = vand.u32 %v584, 4294901760
    %1267 = vmatpush.msra.mxu0 %v1266
    %v1268 = vand.u32 %v576, 4294901760
    %1269 = vmatpush.msra.mxu0 %v1268
    %v1270 = vand.u32 %v568, 4294901760
    %1271 = vmatpush.msra.mxu0 %v1270
    %v1272 = vand.u32 %v560, 4294901760
    %1273 = vmatpush.msra.mxu0 %v1272
    %v1274 = vand.u32 %v552, 4294901760
    %1275 = vmatpush.msra.mxu0 %v1274
    %v1276 = vand.u32 %v544, 4294901760
    %1277 = vmatpush.msra.mxu0 %v1276
    %v1278 = vand.u32 %v536, 4294901760
    %1279 = vmatpush.msra.mxu0 %v1278
    %v1280 = vand.u32 %v528, 4294901760
    %1281 = vmatpush.msra.mxu0 %v1280
    %v1282 = vand.u32 %v520, 4294901760
    %1283 = vmatpush.msra.mxu0 %v1282
    %v1284 = vand.u32 %v512, 4294901760
    %1285 = vmatpush.msra.mxu0 %v1284
    %v1286 = vand.u32 %v504, 4294901760
    %1287 = vmatpush.msra.mxu0 %v1286
    %v1288 = vand.u32 %v496, 4294901760
    %1289 = vmatpush.msra.mxu0 %v1288
    %v1290 = vand.u32 %v488, 4294901760
    %1291 = vmatpush.msra.mxu0 %v1290
    %v1292 = vand.u32 %v486, 4294901760
    %1293 = vmatmul.f32.gmra.mxu0 %v1292
    %v1294 = vpop.f32.mrf.mxu0
    %v1295 = vadd.f32 %v1258, %v1294
    %1296 = vdwg.mxu0
    %v1297 = vand.u32 %v609, 4294901760
    %1298 = vmatpush.msra.mxu0 %v1297
    %v1299 = vand.u32 %v601, 4294901760
    %1300 = vmatpush.msra.mxu0 %v1299
    %v1301 = vand.u32 %v593, 4294901760
    %1302 = vmatpush.msra.mxu0 %v1301
    %v1303 = vand.u32 %v585, 4294901760
    %1304 = vmatpush.msra.mxu0 %v1303
    %v1305 = vand.u32 %v577, 4294901760
    %1306 = vmatpush.msra.mxu0 %v1305
    %v1307 = vand.u32 %v569, 4294901760
    %1308 = vmatpush.msra.mxu0 %v1307
    %v1309 = vand.u32 %v561, 4294901760
    %1310 = vmatpush.msra.mxu0 %v1309
    %v1311 = vand.u32 %v553, 4294901760
    %1312 = vmatpush.msra.mxu0 %v1311
    %v1313 = vand.u32 %v545, 4294901760
    %1314 = vmatpush.msra.mxu0 %v1313
    %v1315 = vand.u32 %v537, 4294901760
    %1316 = vmatpush.msra.mxu0 %v1315
    %v1317 = vand.u32 %v529, 4294901760
    %1318 = vmatpush.msra.mxu0 %v1317
    %v1319 = vand.u32 %v521, 4294901760
    %1320 = vmatpush.msra.mxu0 %v1319
    %v1321 = vand.u32 %v513, 4294901760
    %1322 = vmatpush.msra.mxu0 %v1321
    %v1323 = vand.u32 %v505, 4294901760
    %1324 = vmatpush.msra.mxu0 %v1323
    %v1325 = vand.u32 %v497, 4294901760
    %1326 = vmatpush.msra.mxu0 %v1325
    %v1327 = vand.u32 %v489, 4294901760
    %1328 = vmatpush.msra.mxu0 %v1327
    %v1329 = vand.u32 %v486, 4294901760
    %v1330 = vsub.f32 %v486, %v1329
    %v1331 = vand.u32 %v1330, 4294901760
    %v1332 = vsub.f32 %v1330, %v1331
    %v1333 = vand.u32 %v1332, 4294901760
    %1334 = vmatmul.f32.gmra.mxu0 %v1333
    %v1335 = vpop.f32.mrf.mxu0
    %v1336 = vadd.f32 0.0, %v1335
    %1337 = vdwg.mxu0
    %v1338 = vand.u32 %v609, 4294901760
    %v1339 = vsub.f32 %v609, %v1338
    %v1340 = vand.u32 %v1339, 4294901760
    %v1341 = vsub.f32 %v1339, %v1340
    %v1342 = vand.u32 %v1341, 4294901760
    %1343 = vmatpush.msra.mxu0 %v1342
    %v1344 = vand.u32 %v601, 4294901760
    %v1345 = vsub.f32 %v601, %v1344
    %v1346 = vand.u32 %v1345, 4294901760
    %v1347 = vsub.f32 %v1345, %v1346
    %v1348 = vand.u32 %v1347, 4294901760
    %1349 = vmatpush.msra.mxu0 %v1348
    %v1350 = vand.u32 %v593, 4294901760
    %v1351 = vsub.f32 %v593, %v1350
    %v1352 = vand.u32 %v1351, 4294901760
    %v1353 = vsub.f32 %v1351, %v1352
    %v1354 = vand.u32 %v1353, 4294901760
    %1355 = vmatpush.msra.mxu0 %v1354
    %v1356 = vand.u32 %v585, 4294901760
    %v1357 = vsub.f32 %v585, %v1356
    %v1358 = vand.u32 %v1357, 4294901760
    %v1359 = vsub.f32 %v1357, %v1358
    %v1360 = vand.u32 %v1359, 4294901760
    %1361 = vmatpush.msra.mxu0 %v1360
    %v1362 = vand.u32 %v577, 4294901760
    %v1363 = vsub.f32 %v577, %v1362
    %v1364 = vand.u32 %v1363, 4294901760
    %v1365 = vsub.f32 %v1363, %v1364
    %v1366 = vand.u32 %v1365, 4294901760
    %1367 = vmatpush.msra.mxu0 %v1366
    %v1368 = vand.u32 %v569, 4294901760
    %v1369 = vsub.f32 %v569, %v1368
    %v1370 = vand.u32 %v1369, 4294901760
    %v1371 = vsub.f32 %v1369, %v1370
    %v1372 = vand.u32 %v1371, 4294901760
    %1373 = vmatpush.msra.mxu0 %v1372
    %v1374 = vand.u32 %v561, 4294901760
    %v1375 = vsub.f32 %v561, %v1374
    %v1376 = vand.u32 %v1375, 4294901760
    %v1377 = vsub.f32 %v1375, %v1376
    %v1378 = vand.u32 %v1377, 4294901760
    %1379 = vmatpush.msra.mxu0 %v1378
    %v1380 = vand.u32 %v553, 4294901760
    %v1381 = vsub.f32 %v553, %v1380
    %v1382 = vand.u32 %v1381, 4294901760
    %v1383 = vsub.f32 %v1381, %v1382
    %v1384 = vand.u32 %v1383, 4294901760
    %1385 = vmatpush.msra.mxu0 %v1384
    %v1386 = vand.u32 %v545, 4294901760
    %v1387 = vsub.f32 %v545, %v1386
    %v1388 = vand.u32 %v1387, 4294901760
    %v1389 = vsub.f32 %v1387, %v1388
    %v1390 = vand.u32 %v1389, 4294901760
    %1391 = vmatpush.msra.mxu0 %v1390
    %v1392 = vand.u32 %v537, 4294901760
    %v1393 = vsub.f32 %v537, %v1392
    %v1394 = vand.u32 %v1393, 4294901760
    %v1395 = vsub.f32 %v1393, %v1394
    %v1396 = vand.u32 %v1395, 4294901760
    %1397 = vmatpush.msra.mxu0 %v1396
    %v1398 = vand.u32 %v529, 4294901760
    %v1399 = vsub.f32 %v529, %v1398
    %v1400 = vand.u32 %v1399, 4294901760
    %v1401 = vsub.f32 %v1399, %v1400
    %v1402 = vand.u32 %v1401, 4294901760
    %1403 = vmatpush.msra.mxu0 %v1402
    %v1404 = vand.u32 %v521, 4294901760
    %v1405 = vsub.f32 %v521, %v1404
    %v1406 = vand.u32 %v1405, 4294901760
    %v1407 = vsub.f32 %v1405, %v1406
    %v1408 = vand.u32 %v1407, 4294901760
    %1409 = vmatpush.msra.mxu0 %v1408
    %v1410 = vand.u32 %v513, 4294901760
    %v1411 = vsub.f32 %v513, %v1410
    %v1412 = vand.u32 %v1411, 4294901760
    %v1413 = vsub.f32 %v1411, %v1412
    %v1414 = vand.u32 %v1413, 4294901760
    %1415 = vmatpush.msra.mxu0 %v1414
    %v1416 = vand.u32 %v505, 4294901760
    %v1417 = vsub.f32 %v505, %v1416
    %v1418 = vand.u32 %v1417, 4294901760
    %v1419 = vsub.f32 %v1417, %v1418
    %v1420 = vand.u32 %v1419, 4294901760
    %1421 = vmatpush.msra.mxu0 %v1420
    %v1422 = vand.u32 %v497, 4294901760
    %v1423 = vsub.f32 %v497, %v1422
    %v1424 = vand.u32 %v1423, 4294901760
    %v1425 = vsub.f32 %v1423, %v1424
    %v1426 = vand.u32 %v1425, 4294901760
    %1427 = vmatpush.msra.mxu0 %v1426
    %v1428 = vand.u32 %v489, 4294901760
    %v1429 = vsub.f32 %v489, %v1428
    %v1430 = vand.u32 %v1429, 4294901760
    %v1431 = vsub.f32 %v1429, %v1430
    %v1432 = vand.u32 %v1431, 4294901760
    %1433 = vmatpush.msra.mxu0 %v1432
    %v1434 = vand.u32 %v486, 4294901760
    %1435 = vmatmul.f32.gmra.mxu0 %v1434
    %v1436 = vpop.f32.mrf.mxu0
    %v1437 = vadd.f32 %v1336, %v1436
    %1438 = vdwg.mxu0
    %v1439 = vand.u32 %v609, 4294901760
    %v1440 = vsub.f32 %v609, %v1439
    %1441 = vmatpush.msra.mxu0 %v1440
    %v1442 = vand.u32 %v601, 4294901760
    %v1443 = vsub.f32 %v601, %v1442
    %1444 = vmatpush.msra.mxu0 %v1443
    %v1445 = vand.u32 %v593, 4294901760
    %v1446 = vsub.f32 %v593, %v1445
    %1447 = vmatpush.msra.mxu0 %v1446
    %v1448 = vand.u32 %v585, 4294901760
    %v1449 = vsub.f32 %v585, %v1448
    %1450 = vmatpush.msra.mxu0 %v1449
    %v1451 = vand.u32 %v577, 4294901760
    %v1452 = vsub.f32 %v577, %v1451
    %1453 = vmatpush.msra.mxu0 %v1452
    %v1454 = vand.u32 %v569, 4294901760
    %v1455 = vsub.f32 %v569, %v1454
    %1456 = vmatpush.msra.mxu0 %v1455
    %v1457 = vand.u32 %v561, 4294901760
    %v1458 = vsub.f32 %v561, %v1457
    %1459 = vmatpush.msra.mxu0 %v1458
    %v1460 = vand.u32 %v553, 4294901760
    %v1461 = vsub.f32 %v553, %v1460
    %1462 = vmatpush.msra.mxu0 %v1461
    %v1463 = vand.u32 %v545, 4294901760
    %v1464 = vsub.f32 %v545, %v1463
    %1465 = vmatpush.msra.mxu0 %v1464
    %v1466 = vand.u32 %v537, 4294901760
    %v1467 = vsub.f32 %v537, %v1466
    %1468 = vmatpush.msra.mxu0 %v1467
    %v1469 = vand.u32 %v529, 4294901760
    %v1470 = vsub.f32 %v529, %v1469
    %1471 = vmatpush.msra.mxu0 %v1470
    %v1472 = vand.u32 %v521, 4294901760
    %v1473 = vsub.f32 %v521, %v1472
    %1474 = vmatpush.msra.mxu0 %v1473
    %v1475 = vand.u32 %v513, 4294901760
    %v1476 = vsub.f32 %v513, %v1475
    %1477 = vmatpush.msra.mxu0 %v1476
    %v1478 = vand.u32 %v505, 4294901760
    %v1479 = vsub.f32 %v505, %v1478
    %1480 = vmatpush.msra.mxu0 %v1479
    %v1481 = vand.u32 %v497, 4294901760
    %v1482 = vsub.f32 %v497, %v1481
    %1483 = vmatpush.msra.mxu0 %v1482
    %v1484 = vand.u32 %v489, 4294901760
    %v1485 = vsub.f32 %v489, %v1484
    %1486 = vmatpush.msra.mxu0 %v1485
    %v1487 = vand.u32 %v486, 4294901760
    %v1488 = vsub.f32 %v486, %v1487
    %1489 = vmatmul.f32.gmra.mxu0 %v1488
    %v1490 = vpop.f32.mrf.mxu0
    %v1491 = vadd.f32 %v1437, %v1490
    %1492 = vdwg.mxu0
    %v1493 = vand.u32 %v609, 4294901760
    %1494 = vmatpush.msra.mxu0 %v1493
    %v1495 = vand.u32 %v601, 4294901760
    %1496 = vmatpush.msra.mxu0 %v1495
    %v1497 = vand.u32 %v593, 4294901760
    %1498 = vmatpush.msra.mxu0 %v1497
    %v1499 = vand.u32 %v585, 4294901760
    %1500 = vmatpush.msra.mxu0 %v1499
    %v1501 = vand.u32 %v577, 4294901760
    %1502 = vmatpush.msra.mxu0 %v1501
    %v1503 = vand.u32 %v569, 4294901760
    %1504 = vmatpush.msra.mxu0 %v1503
    %v1505 = vand.u32 %v561, 4294901760
    %1506 = vmatpush.msra.mxu0 %v1505
    %v1507 = vand.u32 %v553, 4294901760
    %1508 = vmatpush.msra.mxu0 %v1507
    %v1509 = vand.u32 %v545, 4294901760
    %1510 = vmatpush.msra.mxu0 %v1509
    %v1511 = vand.u32 %v537, 4294901760
    %1512 = vmatpush.msra.mxu0 %v1511
    %v1513 = vand.u32 %v529, 4294901760
    %1514 = vmatpush.msra.mxu0 %v1513
    %v1515 = vand.u32 %v521, 4294901760
    %1516 = vmatpush.msra.mxu0 %v1515
    %v1517 = vand.u32 %v513, 4294901760
    %1518 = vmatpush.msra.mxu0 %v1517
    %v1519 = vand.u32 %v505, 4294901760
    %1520 = vmatpush.msra.mxu0 %v1519
    %v1521 = vand.u32 %v497, 4294901760
    %1522 = vmatpush.msra.mxu0 %v1521
    %v1523 = vand.u32 %v489, 4294901760
    %1524 = vmatpush.msra.mxu0 %v1523
    %v1525 = vand.u32 %v486, 4294901760
    %v1526 = vsub.f32 %v486, %v1525
    %v1527 = vand.u32 %v1526, 4294901760
    %1528 = vmatmul.f32.gmra.mxu0 %v1527
    %v1529 = vpop.f32.mrf.mxu0
    %v1530 = vadd.f32 %v1491, %v1529
    %1531 = vdwg.mxu0
    %v1532 = vand.u32 %v609, 4294901760
    %v1533 = vsub.f32 %v609, %v1532
    %v1534 = vand.u32 %v1533, 4294901760
    %1535 = vmatpush.msra.mxu0 %v1534
    %v1536 = vand.u32 %v601, 4294901760
    %v1537 = vsub.f32 %v601, %v1536
    %v1538 = vand.u32 %v1537, 4294901760
    %1539 = vmatpush.msra.mxu0 %v1538
    %v1540 = vand.u32 %v593, 4294901760
    %v1541 = vsub.f32 %v593, %v1540
    %v1542 = vand.u32 %v1541, 4294901760
    %1543 = vmatpush.msra.mxu0 %v1542
    %v1544 = vand.u32 %v585, 4294901760
    %v1545 = vsub.f32 %v585, %v1544
    %v1546 = vand.u32 %v1545, 4294901760
    %1547 = vmatpush.msra.mxu0 %v1546
    %v1548 = vand.u32 %v577, 4294901760
    %v1549 = vsub.f32 %v577, %v1548
    %v1550 = vand.u32 %v1549, 4294901760
    %1551 = vmatpush.msra.mxu0 %v1550
    %v1552 = vand.u32 %v569, 4294901760
    %v1553 = vsub.f32 %v569, %v1552
    %v1554 = vand.u32 %v1553, 4294901760
    %1555 = vmatpush.msra.mxu0 %v1554
    %v1556 = vand.u32 %v561, 4294901760
    %v1557 = vsub.f32 %v561, %v1556
    %v1558 = vand.u32 %v1557, 4294901760
    %1559 = vmatpush.msra.mxu0 %v1558
    %v1560 = vand.u32 %v553, 4294901760
    %v1561 = vsub.f32 %v553, %v1560
    %v1562 = vand.u32 %v1561, 4294901760
    %1563 = vmatpush.msra.mxu0 %v1562
    %v1564 = vand.u32 %v545, 4294901760
    %v1565 = vsub.f32 %v545, %v1564
    %v1566 = vand.u32 %v1565, 4294901760
    %1567 = vmatpush.msra.mxu0 %v1566
    %v1568 = vand.u32 %v537, 4294901760
    %v1569 = vsub.f32 %v537, %v1568
    %v1570 = vand.u32 %v1569, 4294901760
    %1571 = vmatpush.msra.mxu0 %v1570
    %v1572 = vand.u32 %v529, 4294901760
    %v1573 = vsub.f32 %v529, %v1572
    %v1574 = vand.u32 %v1573, 4294901760
    %1575 = vmatpush.msra.mxu0 %v1574
    %v1576 = vand.u32 %v521, 4294901760
    %v1577 = vsub.f32 %v521, %v1576
    %v1578 = vand.u32 %v1577, 4294901760
    %1579 = vmatpush.msra.mxu0 %v1578
    %v1580 = vand.u32 %v513, 4294901760
    %v1581 = vsub.f32 %v513, %v1580
    %v1582 = vand.u32 %v1581, 4294901760
    %1583 = vmatpush.msra.mxu0 %v1582
    %v1584 = vand.u32 %v505, 4294901760
    %v1585 = vsub.f32 %v505, %v1584
    %v1586 = vand.u32 %v1585, 4294901760
    %1587 = vmatpush.msra.mxu0 %v1586
    %v1588 = vand.u32 %v497, 4294901760
    %v1589 = vsub.f32 %v497, %v1588
    %v1590 = vand.u32 %v1589, 4294901760
    %1591 = vmatpush.msra.mxu0 %v1590
    %v1592 = vand.u32 %v489, 4294901760
    %v1593 = vsub.f32 %v489, %v1592
    %v1594 = vand.u32 %v1593, 4294901760
    %1595 = vmatpush.msra.mxu0 %v1594
    %v1596 = vand.u32 %v486, 4294901760
    %1597 = vmatmul.f32.gmra.mxu0 %v1596
    %v1598 = vpop.f32.mrf.mxu0
    %v1599 = vadd.f32 %v1530, %v1598
    %1600 = vdwg.mxu0
    %v1601 = vand.u32 %v609, 4294901760
    %1602 = vmatpush.msra.mxu0 %v1601
    %v1603 = vand.u32 %v601, 4294901760
    %1604 = vmatpush.msra.mxu0 %v1603
    %v1605 = vand.u32 %v593, 4294901760
    %1606 = vmatpush.msra.mxu0 %v1605
    %v1607 = vand.u32 %v585, 4294901760
    %1608 = vmatpush.msra.mxu0 %v1607
    %v1609 = vand.u32 %v577, 4294901760
    %1610 = vmatpush.msra.mxu0 %v1609
    %v1611 = vand.u32 %v569, 4294901760
    %1612 = vmatpush.msra.mxu0 %v1611
    %v1613 = vand.u32 %v561, 4294901760
    %1614 = vmatpush.msra.mxu0 %v1613
    %v1615 = vand.u32 %v553, 4294901760
    %1616 = vmatpush.msra.mxu0 %v1615
    %v1617 = vand.u32 %v545, 4294901760
    %1618 = vmatpush.msra.mxu0 %v1617
    %v1619 = vand.u32 %v537, 4294901760
    %1620 = vmatpush.msra.mxu0 %v1619
    %v1621 = vand.u32 %v529, 4294901760
    %1622 = vmatpush.msra.mxu0 %v1621
    %v1623 = vand.u32 %v521, 4294901760
    %1624 = vmatpush.msra.mxu0 %v1623
    %v1625 = vand.u32 %v513, 4294901760
    %1626 = vmatpush.msra.mxu0 %v1625
    %v1627 = vand.u32 %v505, 4294901760
    %1628 = vmatpush.msra.mxu0 %v1627
    %v1629 = vand.u32 %v497, 4294901760
    %1630 = vmatpush.msra.mxu0 %v1629
    %v1631 = vand.u32 %v489, 4294901760
    %1632 = vmatpush.msra.mxu0 %v1631
    %v1633 = vand.u32 %v486, 4294901760
    %1634 = vmatmul.f32.gmra.mxu0 %v1633
    %v1635 = vpop.f32.mrf.mxu0
    %v1636 = vadd.f32 %v1599, %v1635
    %1637 = vdwg.mxu0
    %v1638 = vand.u32 %v610, 4294901760
    %1639 = vmatpush.msra.mxu0 %v1638
    %v1640 = vand.u32 %v602, 4294901760
    %1641 = vmatpush.msra.mxu0 %v1640
    %v1642 = vand.u32 %v594, 4294901760
    %1643 = vmatpush.msra.mxu0 %v1642
    %v1644 = vand.u32 %v586, 4294901760
    %1645 = vmatpush.msra.mxu0 %v1644
    %v1646 = vand.u32 %v578, 4294901760
    %1647 = vmatpush.msra.mxu0 %v1646
    %v1648 = vand.u32 %v570, 4294901760
    %1649 = vmatpush.msra.mxu0 %v1648
    %v1650 = vand.u32 %v562, 4294901760
    %1651 = vmatpush.msra.mxu0 %v1650
    %v1652 = vand.u32 %v554, 4294901760
    %1653 = vmatpush.msra.mxu0 %v1652
    %v1654 = vand.u32 %v546, 4294901760
    %1655 = vmatpush.msra.mxu0 %v1654
    %v1656 = vand.u32 %v538, 4294901760
    %1657 = vmatpush.msra.mxu0 %v1656
    %v1658 = vand.u32 %v530, 4294901760
    %1659 = vmatpush.msra.mxu0 %v1658
    %v1660 = vand.u32 %v522, 4294901760
    %1661 = vmatpush.msra.mxu0 %v1660
    %v1662 = vand.u32 %v514, 4294901760
    %1663 = vmatpush.msra.mxu0 %v1662
    %v1664 = vand.u32 %v506, 4294901760
    %1665 = vmatpush.msra.mxu0 %v1664
    %v1666 = vand.u32 %v498, 4294901760
    %1667 = vmatpush.msra.mxu0 %v1666
    %v1668 = vand.u32 %v490, 4294901760
    %1669 = vmatpush.msra.mxu0 %v1668
    %v1670 = vand.u32 %v486, 4294901760
    %v1671 = vsub.f32 %v486, %v1670
    %v1672 = vand.u32 %v1671, 4294901760
    %v1673 = vsub.f32 %v1671, %v1672
    %v1674 = vand.u32 %v1673, 4294901760
    %1675 = vmatmul.f32.gmra.mxu0 %v1674
    %v1676 = vpop.f32.mrf.mxu0
    %v1677 = vadd.f32 0.0, %v1676
    %1678 = vdwg.mxu0
    %v1679 = vand.u32 %v610, 4294901760
    %v1680 = vsub.f32 %v610, %v1679
    %v1681 = vand.u32 %v1680, 4294901760
    %v1682 = vsub.f32 %v1680, %v1681
    %v1683 = vand.u32 %v1682, 4294901760
    %1684 = vmatpush.msra.mxu0 %v1683
    %v1685 = vand.u32 %v602, 4294901760
    %v1686 = vsub.f32 %v602, %v1685
    %v1687 = vand.u32 %v1686, 4294901760
    %v1688 = vsub.f32 %v1686, %v1687
    %v1689 = vand.u32 %v1688, 4294901760
    %1690 = vmatpush.msra.mxu0 %v1689
    %v1691 = vand.u32 %v594, 4294901760
    %v1692 = vsub.f32 %v594, %v1691
    %v1693 = vand.u32 %v1692, 4294901760
    %v1694 = vsub.f32 %v1692, %v1693
    %v1695 = vand.u32 %v1694, 4294901760
    %1696 = vmatpush.msra.mxu0 %v1695
    %v1697 = vand.u32 %v586, 4294901760
    %v1698 = vsub.f32 %v586, %v1697
    %v1699 = vand.u32 %v1698, 4294901760
    %v1700 = vsub.f32 %v1698, %v1699
    %v1701 = vand.u32 %v1700, 4294901760
    %1702 = vmatpush.msra.mxu0 %v1701
    %v1703 = vand.u32 %v578, 4294901760
    %v1704 = vsub.f32 %v578, %v1703
    %v1705 = vand.u32 %v1704, 4294901760
    %v1706 = vsub.f32 %v1704, %v1705
    %v1707 = vand.u32 %v1706, 4294901760
    %1708 = vmatpush.msra.mxu0 %v1707
    %v1709 = vand.u32 %v570, 4294901760
    %v1710 = vsub.f32 %v570, %v1709
    %v1711 = vand.u32 %v1710, 4294901760
    %v1712 = vsub.f32 %v1710, %v1711
    %v1713 = vand.u32 %v1712, 4294901760
    %1714 = vmatpush.msra.mxu0 %v1713
    %v1715 = vand.u32 %v562, 4294901760
    %v1716 = vsub.f32 %v562, %v1715
    %v1717 = vand.u32 %v1716, 4294901760
    %v1718 = vsub.f32 %v1716, %v1717
    %v1719 = vand.u32 %v1718, 4294901760
    %1720 = vmatpush.msra.mxu0 %v1719
    %v1721 = vand.u32 %v554, 4294901760
    %v1722 = vsub.f32 %v554, %v1721
    %v1723 = vand.u32 %v1722, 4294901760
    %v1724 = vsub.f32 %v1722, %v1723
    %v1725 = vand.u32 %v1724, 4294901760
    %1726 = vmatpush.msra.mxu0 %v1725
    %v1727 = vand.u32 %v546, 4294901760
    %v1728 = vsub.f32 %v546, %v1727
    %v1729 = vand.u32 %v1728, 4294901760
    %v1730 = vsub.f32 %v1728, %v1729
    %v1731 = vand.u32 %v1730, 4294901760
    %1732 = vmatpush.msra.mxu0 %v1731
    %v1733 = vand.u32 %v538, 4294901760
    %v1734 = vsub.f32 %v538, %v1733
    %v1735 = vand.u32 %v1734, 4294901760
    %v1736 = vsub.f32 %v1734, %v1735
    %v1737 = vand.u32 %v1736, 4294901760
    %1738 = vmatpush.msra.mxu0 %v1737
    %v1739 = vand.u32 %v530, 4294901760
    %v1740 = vsub.f32 %v530, %v1739
    %v1741 = vand.u32 %v1740, 4294901760
    %v1742 = vsub.f32 %v1740, %v1741
    %v1743 = vand.u32 %v1742, 4294901760
    %1744 = vmatpush.msra.mxu0 %v1743
    %v1745 = vand.u32 %v522, 4294901760
    %v1746 = vsub.f32 %v522, %v1745
    %v1747 = vand.u32 %v1746, 4294901760
    %v1748 = vsub.f32 %v1746, %v1747
    %v1749 = vand.u32 %v1748, 4294901760
    %1750 = vmatpush.msra.mxu0 %v1749
    %v1751 = vand.u32 %v514, 4294901760
    %v1752 = vsub.f32 %v514, %v1751
    %v1753 = vand.u32 %v1752, 4294901760
    %v1754 = vsub.f32 %v1752, %v1753
    %v1755 = vand.u32 %v1754, 4294901760
    %1756 = vmatpush.msra.mxu0 %v1755
    %v1757 = vand.u32 %v506, 4294901760
    %v1758 = vsub.f32 %v506, %v1757
    %v1759 = vand.u32 %v1758, 4294901760
    %v1760 = vsub.f32 %v1758, %v1759
    %v1761 = vand.u32 %v1760, 4294901760
    %1762 = vmatpush.msra.mxu0 %v1761
    %v1763 = vand.u32 %v498, 4294901760
    %v1764 = vsub.f32 %v498, %v1763
    %v1765 = vand.u32 %v1764, 4294901760
    %v1766 = vsub.f32 %v1764, %v1765
    %v1767 = vand.u32 %v1766, 4294901760
    %1768 = vmatpush.msra.mxu0 %v1767
    %v1769 = vand.u32 %v490, 4294901760
    %v1770 = vsub.f32 %v490, %v1769
    %v1771 = vand.u32 %v1770, 4294901760
    %v1772 = vsub.f32 %v1770, %v1771
    %v1773 = vand.u32 %v1772, 4294901760
    %1774 = vmatpush.msra.mxu0 %v1773
    %v1775 = vand.u32 %v486, 4294901760
    %1776 = vmatmul.f32.gmra.mxu0 %v1775
    %v1777 = vpop.f32.mrf.mxu0
    %v1778 = vadd.f32 %v1677, %v1777
    %1779 = vdwg.mxu0
    %v1780 = vand.u32 %v610, 4294901760
    %v1781 = vsub.f32 %v610, %v1780
    %1782 = vmatpush.msra.mxu0 %v1781
    %v1783 = vand.u32 %v602, 4294901760
    %v1784 = vsub.f32 %v602, %v1783
    %1785 = vmatpush.msra.mxu0 %v1784
    %v1786 = vand.u32 %v594, 4294901760
    %v1787 = vsub.f32 %v594, %v1786
    %1788 = vmatpush.msra.mxu0 %v1787
    %v1789 = vand.u32 %v586, 4294901760
    %v1790 = vsub.f32 %v586, %v1789
    %1791 = vmatpush.msra.mxu0 %v1790
    %v1792 = vand.u32 %v578, 4294901760
    %v1793 = vsub.f32 %v578, %v1792
    %1794 = vmatpush.msra.mxu0 %v1793
    %v1795 = vand.u32 %v570, 4294901760
    %v1796 = vsub.f32 %v570, %v1795
    %1797 = vmatpush.msra.mxu0 %v1796
    %v1798 = vand.u32 %v562, 4294901760
    %v1799 = vsub.f32 %v562, %v1798
    %1800 = vmatpush.msra.mxu0 %v1799
    %v1801 = vand.u32 %v554, 4294901760
    %v1802 = vsub.f32 %v554, %v1801
    %1803 = vmatpush.msra.mxu0 %v1802
    %v1804 = vand.u32 %v546, 4294901760
    %v1805 = vsub.f32 %v546, %v1804
    %1806 = vmatpush.msra.mxu0 %v1805
    %v1807 = vand.u32 %v538, 4294901760
    %v1808 = vsub.f32 %v538, %v1807
    %1809 = vmatpush.msra.mxu0 %v1808
    %v1810 = vand.u32 %v530, 4294901760
    %v1811 = vsub.f32 %v530, %v1810
    %1812 = vmatpush.msra.mxu0 %v1811
    %v1813 = vand.u32 %v522, 4294901760
    %v1814 = vsub.f32 %v522, %v1813
    %1815 = vmatpush.msra.mxu0 %v1814
    %v1816 = vand.u32 %v514, 4294901760
    %v1817 = vsub.f32 %v514, %v1816
    %1818 = vmatpush.msra.mxu0 %v1817
    %v1819 = vand.u32 %v506, 4294901760
    %v1820 = vsub.f32 %v506, %v1819
    %1821 = vmatpush.msra.mxu0 %v1820
    %v1822 = vand.u32 %v498, 4294901760
    %v1823 = vsub.f32 %v498, %v1822
    %1824 = vmatpush.msra.mxu0 %v1823
    %v1825 = vand.u32 %v490, 4294901760
    %v1826 = vsub.f32 %v490, %v1825
    %1827 = vmatpush.msra.mxu0 %v1826
    %v1828 = vand.u32 %v486, 4294901760
    %v1829 = vsub.f32 %v486, %v1828
    %1830 = vmatmul.f32.gmra.mxu0 %v1829
    %v1831 = vpop.f32.mrf.mxu0
    %v1832 = vadd.f32 %v1778, %v1831
    %1833 = vdwg.mxu0
    %v1834 = vand.u32 %v610, 4294901760
    %1835 = vmatpush.msra.mxu0 %v1834
    %v1836 = vand.u32 %v602, 4294901760
    %1837 = vmatpush.msra.mxu0 %v1836
    %v1838 = vand.u32 %v594, 4294901760
    %1839 = vmatpush.msra.mxu0 %v1838
    %v1840 = vand.u32 %v586, 4294901760
    %1841 = vmatpush.msra.mxu0 %v1840
    %v1842 = vand.u32 %v578, 4294901760
    %1843 = vmatpush.msra.mxu0 %v1842
    %v1844 = vand.u32 %v570, 4294901760
    %1845 = vmatpush.msra.mxu0 %v1844
    %v1846 = vand.u32 %v562, 4294901760
    %1847 = vmatpush.msra.mxu0 %v1846
    %v1848 = vand.u32 %v554, 4294901760
    %1849 = vmatpush.msra.mxu0 %v1848
    %v1850 = vand.u32 %v546, 4294901760
    %1851 = vmatpush.msra.mxu0 %v1850
    %v1852 = vand.u32 %v538, 4294901760
    %1853 = vmatpush.msra.mxu0 %v1852
    %v1854 = vand.u32 %v530, 4294901760
    %1855 = vmatpush.msra.mxu0 %v1854
    %v1856 = vand.u32 %v522, 4294901760
    %1857 = vmatpush.msra.mxu0 %v1856
    %v1858 = vand.u32 %v514, 4294901760
    %1859 = vmatpush.msra.mxu0 %v1858
    %v1860 = vand.u32 %v506, 4294901760
    %1861 = vmatpush.msra.mxu0 %v1860
    %v1862 = vand.u32 %v498, 4294901760
    %1863 = vmatpush.msra.mxu0 %v1862
    %v1864 = vand.u32 %v490, 4294901760
    %1865 = vmatpush.msra.mxu0 %v1864
    %v1866 = vand.u32 %v486, 4294901760
    %v1867 = vsub.f32 %v486, %v1866
    %v1868 = vand.u32 %v1867, 4294901760
    %1869 = vmatmul.f32.gmra.mxu0 %v1868
    %v1870 = vpop.f32.mrf.mxu0
    %v1871 = vadd.f32 %v1832, %v1870
    %1872 = vdwg.mxu0
    %v1873 = vand.u32 %v610, 4294901760
    %v1874 = vsub.f32 %v610, %v1873
    %v1875 = vand.u32 %v1874, 4294901760
    %1876 = vmatpush.msra.mxu0 %v1875
    %v1877 = vand.u32 %v602, 4294901760
    %v1878 = vsub.f32 %v602, %v1877
    %v1879 = vand.u32 %v1878, 4294901760
    %1880 = vmatpush.msra.mxu0 %v1879
    %v1881 = vand.u32 %v594, 4294901760
    %v1882 = vsub.f32 %v594, %v1881
    %v1883 = vand.u32 %v1882, 4294901760
    %1884 = vmatpush.msra.mxu0 %v1883
    %v1885 = vand.u32 %v586, 4294901760
    %v1886 = vsub.f32 %v586, %v1885
    %v1887 = vand.u32 %v1886, 4294901760
    %1888 = vmatpush.msra.mxu0 %v1887
    %v1889 = vand.u32 %v578, 4294901760
    %v1890 = vsub.f32 %v578, %v1889
    %v1891 = vand.u32 %v1890, 4294901760
    %1892 = vmatpush.msra.mxu0 %v1891
    %v1893 = vand.u32 %v570, 4294901760
    %v1894 = vsub.f32 %v570, %v1893
    %v1895 = vand.u32 %v1894, 4294901760
    %1896 = vmatpush.msra.mxu0 %v1895
    %v1897 = vand.u32 %v562, 4294901760
    %v1898 = vsub.f32 %v562, %v1897
    %v1899 = vand.u32 %v1898, 4294901760
    %1900 = vmatpush.msra.mxu0 %v1899
    %v1901 = vand.u32 %v554, 4294901760
    %v1902 = vsub.f32 %v554, %v1901
    %v1903 = vand.u32 %v1902, 4294901760
    %1904 = vmatpush.msra.mxu0 %v1903
    %v1905 = vand.u32 %v546, 4294901760
    %v1906 = vsub.f32 %v546, %v1905
    %v1907 = vand.u32 %v1906, 4294901760
    %1908 = vmatpush.msra.mxu0 %v1907
    %v1909 = vand.u32 %v538, 4294901760
    %v1910 = vsub.f32 %v538, %v1909
    %v1911 = vand.u32 %v1910, 4294901760
    %1912 = vmatpush.msra.mxu0 %v1911
    %v1913 = vand.u32 %v530, 4294901760
    %v1914 = vsub.f32 %v530, %v1913
    %v1915 = vand.u32 %v1914, 4294901760
    %1916 = vmatpush.msra.mxu0 %v1915
    %v1917 = vand.u32 %v522, 4294901760
    %v1918 = vsub.f32 %v522, %v1917
    %v1919 = vand.u32 %v1918, 4294901760
    %1920 = vmatpush.msra.mxu0 %v1919
    %v1921 = vand.u32 %v514, 4294901760
    %v1922 = vsub.f32 %v514, %v1921
    %v1923 = vand.u32 %v1922, 4294901760
    %1924 = vmatpush.msra.mxu0 %v1923
    %v1925 = vand.u32 %v506, 4294901760
    %v1926 = vsub.f32 %v506, %v1925
    %v1927 = vand.u32 %v1926, 4294901760
    %1928 = vmatpush.msra.mxu0 %v1927
    %v1929 = vand.u32 %v498, 4294901760
    %v1930 = vsub.f32 %v498, %v1929
    %v1931 = vand.u32 %v1930, 4294901760
    %1932 = vmatpush.msra.mxu0 %v1931
    %v1933 = vand.u32 %v490, 4294901760
    %v1934 = vsub.f32 %v490, %v1933
    %v1935 = vand.u32 %v1934, 4294901760
    %1936 = vmatpush.msra.mxu0 %v1935
    %v1937 = vand.u32 %v486, 4294901760
    %1938 = vmatmul.f32.gmra.mxu0 %v1937
    %v1939 = vpop.f32.mrf.mxu0
    %v1940 = vadd.f32 %v1871, %v1939
    %1941 = vdwg.mxu0
    %v1942 = vand.u32 %v610, 4294901760
    %1943 = vmatpush.msra.mxu0 %v1942
    %v1944 = vand.u32 %v602, 4294901760
    %1945 = vmatpush.msra.mxu0 %v1944
    %v1946 = vand.u32 %v594, 4294901760
    %1947 = vmatpush.msra.mxu0 %v1946
    %v1948 = vand.u32 %v586, 4294901760
    %1949 = vmatpush.msra.mxu0 %v1948
    %v1950 = vand.u32 %v578, 4294901760
    %1951 = vmatpush.msra.mxu0 %v1950
    %v1952 = vand.u32 %v570, 4294901760
    %1953 = vmatpush.msra.mxu0 %v1952
    %v1954 = vand.u32 %v562, 4294901760
    %1955 = vmatpush.msra.mxu0 %v1954
    %v1956 = vand.u32 %v554, 4294901760
    %1957 = vmatpush.msra.mxu0 %v1956
    %v1958 = vand.u32 %v546, 4294901760
    %1959 = vmatpush.msra.mxu0 %v1958
    %v1960 = vand.u32 %v538, 4294901760
    %1961 = vmatpush.msra.mxu0 %v1960
    %v1962 = vand.u32 %v530, 4294901760
    %1963 = vmatpush.msra.mxu0 %v1962
    %v1964 = vand.u32 %v522, 4294901760
    %1965 = vmatpush.msra.mxu0 %v1964
    %v1966 = vand.u32 %v514, 4294901760
    %1967 = vmatpush.msra.mxu0 %v1966
    %v1968 = vand.u32 %v506, 4294901760
    %1969 = vmatpush.msra.mxu0 %v1968
    %v1970 = vand.u32 %v498, 4294901760
    %1971 = vmatpush.msra.mxu0 %v1970
    %v1972 = vand.u32 %v490, 4294901760
    %1973 = vmatpush.msra.mxu0 %v1972
    %v1974 = vand.u32 %v486, 4294901760
    %1975 = vmatmul.f32.gmra.mxu0 %v1974
    %v1976 = vpop.f32.mrf.mxu0
    %v1977 = vadd.f32 %v1940, %v1976
    %1978 = vdwg.mxu0
    %v1979 = vand.u32 %v611, 4294901760
    %1980 = vmatpush.msra.mxu0 %v1979
    %v1981 = vand.u32 %v603, 4294901760
    %1982 = vmatpush.msra.mxu0 %v1981
    %v1983 = vand.u32 %v595, 4294901760
    %1984 = vmatpush.msra.mxu0 %v1983
    %v1985 = vand.u32 %v587, 4294901760
    %1986 = vmatpush.msra.mxu0 %v1985
    %v1987 = vand.u32 %v579, 4294901760
    %1988 = vmatpush.msra.mxu0 %v1987
    %v1989 = vand.u32 %v571, 4294901760
    %1990 = vmatpush.msra.mxu0 %v1989
    %v1991 = vand.u32 %v563, 4294901760
    %1992 = vmatpush.msra.mxu0 %v1991
    %v1993 = vand.u32 %v555, 4294901760
    %1994 = vmatpush.msra.mxu0 %v1993
    %v1995 = vand.u32 %v547, 4294901760
    %1996 = vmatpush.msra.mxu0 %v1995
    %v1997 = vand.u32 %v539, 4294901760
    %1998 = vmatpush.msra.mxu0 %v1997
    %v1999 = vand.u32 %v531, 4294901760
    %2000 = vmatpush.msra.mxu0 %v1999
    %v2001 = vand.u32 %v523, 4294901760
    %2002 = vmatpush.msra.mxu0 %v2001
    %v2003 = vand.u32 %v515, 4294901760
    %2004 = vmatpush.msra.mxu0 %v2003
    %v2005 = vand.u32 %v507, 4294901760
    %2006 = vmatpush.msra.mxu0 %v2005
    %v2007 = vand.u32 %v499, 4294901760
    %2008 = vmatpush.msra.mxu0 %v2007
    %v2009 = vand.u32 %v491, 4294901760
    %2010 = vmatpush.msra.mxu0 %v2009
    %v2011 = vand.u32 %v486, 4294901760
    %v2012 = vsub.f32 %v486, %v2011
    %v2013 = vand.u32 %v2012, 4294901760
    %v2014 = vsub.f32 %v2012, %v2013
    %v2015 = vand.u32 %v2014, 4294901760
    %2016 = vmatmul.f32.gmra.mxu0 %v2015
    %v2017 = vpop.f32.mrf.mxu0
    %v2018 = vadd.f32 0.0, %v2017
    %2019 = vdwg.mxu0
    %v2020 = vand.u32 %v611, 4294901760
    %v2021 = vsub.f32 %v611, %v2020
    %v2022 = vand.u32 %v2021, 4294901760
    %v2023 = vsub.f32 %v2021, %v2022
    %v2024 = vand.u32 %v2023, 4294901760
    %2025 = vmatpush.msra.mxu0 %v2024
    %v2026 = vand.u32 %v603, 4294901760
    %v2027 = vsub.f32 %v603, %v2026
    %v2028 = vand.u32 %v2027, 4294901760
    %v2029 = vsub.f32 %v2027, %v2028
    %v2030 = vand.u32 %v2029, 4294901760
    %2031 = vmatpush.msra.mxu0 %v2030
    %v2032 = vand.u32 %v595, 4294901760
    %v2033 = vsub.f32 %v595, %v2032
    %v2034 = vand.u32 %v2033, 4294901760
    %v2035 = vsub.f32 %v2033, %v2034
    %v2036 = vand.u32 %v2035, 4294901760
    %2037 = vmatpush.msra.mxu0 %v2036
    %v2038 = vand.u32 %v587, 4294901760
    %v2039 = vsub.f32 %v587, %v2038
    %v2040 = vand.u32 %v2039, 4294901760
    %v2041 = vsub.f32 %v2039, %v2040
    %v2042 = vand.u32 %v2041, 4294901760
    %2043 = vmatpush.msra.mxu0 %v2042
    %v2044 = vand.u32 %v579, 4294901760
    %v2045 = vsub.f32 %v579, %v2044
    %v2046 = vand.u32 %v2045, 4294901760
    %v2047 = vsub.f32 %v2045, %v2046
    %v2048 = vand.u32 %v2047, 4294901760
    %2049 = vmatpush.msra.mxu0 %v2048
    %v2050 = vand.u32 %v571, 4294901760
    %v2051 = vsub.f32 %v571, %v2050
    %v2052 = vand.u32 %v2051, 4294901760
    %v2053 = vsub.f32 %v2051, %v2052
    %v2054 = vand.u32 %v2053, 4294901760
    %2055 = vmatpush.msra.mxu0 %v2054
    %v2056 = vand.u32 %v563, 4294901760
    %v2057 = vsub.f32 %v563, %v2056
    %v2058 = vand.u32 %v2057, 4294901760
    %v2059 = vsub.f32 %v2057, %v2058
    %v2060 = vand.u32 %v2059, 4294901760
    %2061 = vmatpush.msra.mxu0 %v2060
    %v2062 = vand.u32 %v555, 4294901760
    %v2063 = vsub.f32 %v555, %v2062
    %v2064 = vand.u32 %v2063, 4294901760
    %v2065 = vsub.f32 %v2063, %v2064
    %v2066 = vand.u32 %v2065, 4294901760
    %2067 = vmatpush.msra.mxu0 %v2066
    %v2068 = vand.u32 %v547, 4294901760
    %v2069 = vsub.f32 %v547, %v2068
    %v2070 = vand.u32 %v2069, 4294901760
    %v2071 = vsub.f32 %v2069, %v2070
    %v2072 = vand.u32 %v2071, 4294901760
    %2073 = vmatpush.msra.mxu0 %v2072
    %v2074 = vand.u32 %v539, 4294901760
    %v2075 = vsub.f32 %v539, %v2074
    %v2076 = vand.u32 %v2075, 4294901760
    %v2077 = vsub.f32 %v2075, %v2076
    %v2078 = vand.u32 %v2077, 4294901760
    %2079 = vmatpush.msra.mxu0 %v2078
    %v2080 = vand.u32 %v531, 4294901760
    %v2081 = vsub.f32 %v531, %v2080
    %v2082 = vand.u32 %v2081, 4294901760
    %v2083 = vsub.f32 %v2081, %v2082
    %v2084 = vand.u32 %v2083, 4294901760
    %2085 = vmatpush.msra.mxu0 %v2084
    %v2086 = vand.u32 %v523, 4294901760
    %v2087 = vsub.f32 %v523, %v2086
    %v2088 = vand.u32 %v2087, 4294901760
    %v2089 = vsub.f32 %v2087, %v2088
    %v2090 = vand.u32 %v2089, 4294901760
    %2091 = vmatpush.msra.mxu0 %v2090
    %v2092 = vand.u32 %v515, 4294901760
    %v2093 = vsub.f32 %v515, %v2092
    %v2094 = vand.u32 %v2093, 4294901760
    %v2095 = vsub.f32 %v2093, %v2094
    %v2096 = vand.u32 %v2095, 4294901760
    %2097 = vmatpush.msra.mxu0 %v2096
    %v2098 = vand.u32 %v507, 4294901760
    %v2099 = vsub.f32 %v507, %v2098
    %v2100 = vand.u32 %v2099, 4294901760
    %v2101 = vsub.f32 %v2099, %v2100
    %v2102 = vand.u32 %v2101, 4294901760
    %2103 = vmatpush.msra.mxu0 %v2102
    %v2104 = vand.u32 %v499, 4294901760
    %v2105 = vsub.f32 %v499, %v2104
    %v2106 = vand.u32 %v2105, 4294901760
    %v2107 = vsub.f32 %v2105, %v2106
    %v2108 = vand.u32 %v2107, 4294901760
    %2109 = vmatpush.msra.mxu0 %v2108
    %v2110 = vand.u32 %v491, 4294901760
    %v2111 = vsub.f32 %v491, %v2110
    %v2112 = vand.u32 %v2111, 4294901760
    %v2113 = vsub.f32 %v2111, %v2112
    %v2114 = vand.u32 %v2113, 4294901760
    %2115 = vmatpush.msra.mxu0 %v2114
    %v2116 = vand.u32 %v486, 4294901760
    %2117 = vmatmul.f32.gmra.mxu0 %v2116
    %v2118 = vpop.f32.mrf.mxu0
    %v2119 = vadd.f32 %v2018, %v2118
    %2120 = vdwg.mxu0
    %v2121 = vand.u32 %v611, 4294901760
    %v2122 = vsub.f32 %v611, %v2121
    %2123 = vmatpush.msra.mxu0 %v2122
    %v2124 = vand.u32 %v603, 4294901760
    %v2125 = vsub.f32 %v603, %v2124
    %2126 = vmatpush.msra.mxu0 %v2125
    %v2127 = vand.u32 %v595, 4294901760
    %v2128 = vsub.f32 %v595, %v2127
    %2129 = vmatpush.msra.mxu0 %v2128
    %v2130 = vand.u32 %v587, 4294901760
    %v2131 = vsub.f32 %v587, %v2130
    %2132 = vmatpush.msra.mxu0 %v2131
    %v2133 = vand.u32 %v579, 4294901760
    %v2134 = vsub.f32 %v579, %v2133
    %2135 = vmatpush.msra.mxu0 %v2134
    %v2136 = vand.u32 %v571, 4294901760
    %v2137 = vsub.f32 %v571, %v2136
    %2138 = vmatpush.msra.mxu0 %v2137
    %v2139 = vand.u32 %v563, 4294901760
    %v2140 = vsub.f32 %v563, %v2139
    %2141 = vmatpush.msra.mxu0 %v2140
    %v2142 = vand.u32 %v555, 4294901760
    %v2143 = vsub.f32 %v555, %v2142
    %2144 = vmatpush.msra.mxu0 %v2143
    %v2145 = vand.u32 %v547, 4294901760
    %v2146 = vsub.f32 %v547, %v2145
    %2147 = vmatpush.msra.mxu0 %v2146
    %v2148 = vand.u32 %v539, 4294901760
    %v2149 = vsub.f32 %v539, %v2148
    %2150 = vmatpush.msra.mxu0 %v2149
    %v2151 = vand.u32 %v531, 4294901760
    %v2152 = vsub.f32 %v531, %v2151
    %2153 = vmatpush.msra.mxu0 %v2152
    %v2154 = vand.u32 %v523, 4294901760
    %v2155 = vsub.f32 %v523, %v2154
    %2156 = vmatpush.msra.mxu0 %v2155
    %v2157 = vand.u32 %v515, 4294901760
    %v2158 = vsub.f32 %v515, %v2157
    %2159 = vmatpush.msra.mxu0 %v2158
    %v2160 = vand.u32 %v507, 4294901760
    %v2161 = vsub.f32 %v507, %v2160
    %2162 = vmatpush.msra.mxu0 %v2161
    %v2163 = vand.u32 %v499, 4294901760
    %v2164 = vsub.f32 %v499, %v2163
    %2165 = vmatpush.msra.mxu0 %v2164
    %v2166 = vand.u32 %v491, 4294901760
    %v2167 = vsub.f32 %v491, %v2166
    %2168 = vmatpush.msra.mxu0 %v2167
    %v2169 = vand.u32 %v486, 4294901760
    %v2170 = vsub.f32 %v486, %v2169
    %2171 = vmatmul.f32.gmra.mxu0 %v2170
    %v2172 = vpop.f32.mrf.mxu0
    %v2173 = vadd.f32 %v2119, %v2172
    %2174 = vdwg.mxu0
    %v2175 = vand.u32 %v611, 4294901760
    %2176 = vmatpush.msra.mxu0 %v2175
    %v2177 = vand.u32 %v603, 4294901760
    %2178 = vmatpush.msra.mxu0 %v2177
    %v2179 = vand.u32 %v595, 4294901760
    %2180 = vmatpush.msra.mxu0 %v2179
    %v2181 = vand.u32 %v587, 4294901760
    %2182 = vmatpush.msra.mxu0 %v2181
    %v2183 = vand.u32 %v579, 4294901760
    %2184 = vmatpush.msra.mxu0 %v2183
    %v2185 = vand.u32 %v571, 4294901760
    %2186 = vmatpush.msra.mxu0 %v2185
    %v2187 = vand.u32 %v563, 4294901760
    %2188 = vmatpush.msra.mxu0 %v2187
    %v2189 = vand.u32 %v555, 4294901760
    %2190 = vmatpush.msra.mxu0 %v2189
    %v2191 = vand.u32 %v547, 4294901760
    %2192 = vmatpush.msra.mxu0 %v2191
    %v2193 = vand.u32 %v539, 4294901760
    %2194 = vmatpush.msra.mxu0 %v2193
    %v2195 = vand.u32 %v531, 4294901760
    %2196 = vmatpush.msra.mxu0 %v2195
    %v2197 = vand.u32 %v523, 4294901760
    %2198 = vmatpush.msra.mxu0 %v2197
    %v2199 = vand.u32 %v515, 4294901760
    %2200 = vmatpush.msra.mxu0 %v2199
    %v2201 = vand.u32 %v507, 4294901760
    %2202 = vmatpush.msra.mxu0 %v2201
    %v2203 = vand.u32 %v499, 4294901760
    %2204 = vmatpush.msra.mxu0 %v2203
    %v2205 = vand.u32 %v491, 4294901760
    %2206 = vmatpush.msra.mxu0 %v2205
    %v2207 = vand.u32 %v486, 4294901760
    %v2208 = vsub.f32 %v486, %v2207
    %v2209 = vand.u32 %v2208, 4294901760
    %2210 = vmatmul.f32.gmra.mxu0 %v2209
    %v2211 = vpop.f32.mrf.mxu0
    %v2212 = vadd.f32 %v2173, %v2211
    %2213 = vdwg.mxu0
    %v2214 = vand.u32 %v611, 4294901760
    %v2215 = vsub.f32 %v611, %v2214
    %v2216 = vand.u32 %v2215, 4294901760
    %2217 = vmatpush.msra.mxu0 %v2216
    %v2218 = vand.u32 %v603, 4294901760
    %v2219 = vsub.f32 %v603, %v2218
    %v2220 = vand.u32 %v2219, 4294901760
    %2221 = vmatpush.msra.mxu0 %v2220
    %v2222 = vand.u32 %v595, 4294901760
    %v2223 = vsub.f32 %v595, %v2222
    %v2224 = vand.u32 %v2223, 4294901760
    %2225 = vmatpush.msra.mxu0 %v2224
    %v2226 = vand.u32 %v587, 4294901760
    %v2227 = vsub.f32 %v587, %v2226
    %v2228 = vand.u32 %v2227, 4294901760
    %2229 = vmatpush.msra.mxu0 %v2228
    %v2230 = vand.u32 %v579, 4294901760
    %v2231 = vsub.f32 %v579, %v2230
    %v2232 = vand.u32 %v2231, 4294901760
    %2233 = vmatpush.msra.mxu0 %v2232
    %v2234 = vand.u32 %v571, 4294901760
    %v2235 = vsub.f32 %v571, %v2234
    %v2236 = vand.u32 %v2235, 4294901760
    %2237 = vmatpush.msra.mxu0 %v2236
    %v2238 = vand.u32 %v563, 4294901760
    %v2239 = vsub.f32 %v563, %v2238
    %v2240 = vand.u32 %v2239, 4294901760
    %2241 = vmatpush.msra.mxu0 %v2240
    %v2242 = vand.u32 %v555, 4294901760
    %v2243 = vsub.f32 %v555, %v2242
    %v2244 = vand.u32 %v2243, 4294901760
    %2245 = vmatpush.msra.mxu0 %v2244
    %v2246 = vand.u32 %v547, 4294901760
    %v2247 = vsub.f32 %v547, %v2246
    %v2248 = vand.u32 %v2247, 4294901760
    %2249 = vmatpush.msra.mxu0 %v2248
    %v2250 = vand.u32 %v539, 4294901760
    %v2251 = vsub.f32 %v539, %v2250
    %v2252 = vand.u32 %v2251, 4294901760
    %2253 = vmatpush.msra.mxu0 %v2252
    %v2254 = vand.u32 %v531, 4294901760
    %v2255 = vsub.f32 %v531, %v2254
    %v2256 = vand.u32 %v2255, 4294901760
    %2257 = vmatpush.msra.mxu0 %v2256
    %v2258 = vand.u32 %v523, 4294901760
    %v2259 = vsub.f32 %v523, %v2258
    %v2260 = vand.u32 %v2259, 4294901760
    %2261 = vmatpush.msra.mxu0 %v2260
    %v2262 = vand.u32 %v515, 4294901760
    %v2263 = vsub.f32 %v515, %v2262
    %v2264 = vand.u32 %v2263, 4294901760
    %2265 = vmatpush.msra.mxu0 %v2264
    %v2266 = vand.u32 %v507, 4294901760
    %v2267 = vsub.f32 %v507, %v2266
    %v2268 = vand.u32 %v2267, 4294901760
    %2269 = vmatpush.msra.mxu0 %v2268
    %v2270 = vand.u32 %v499, 4294901760
    %v2271 = vsub.f32 %v499, %v2270
    %v2272 = vand.u32 %v2271, 4294901760
    %2273 = vmatpush.msra.mxu0 %v2272
    %v2274 = vand.u32 %v491, 4294901760
    %v2275 = vsub.f32 %v491, %v2274
    %v2276 = vand.u32 %v2275, 4294901760
    %2277 = vmatpush.msra.mxu0 %v2276
    %v2278 = vand.u32 %v486, 4294901760
    %2279 = vmatmul.f32.gmra.mxu0 %v2278
    %v2280 = vpop.f32.mrf.mxu0
    %v2281 = vadd.f32 %v2212, %v2280
    %2282 = vdwg.mxu0
    %v2283 = vand.u32 %v611, 4294901760
    %2284 = vmatpush.msra.mxu0 %v2283
    %v2285 = vand.u32 %v603, 4294901760
    %2286 = vmatpush.msra.mxu0 %v2285
    %v2287 = vand.u32 %v595, 4294901760
    %2288 = vmatpush.msra.mxu0 %v2287
    %v2289 = vand.u32 %v587, 4294901760
    %2290 = vmatpush.msra.mxu0 %v2289
    %v2291 = vand.u32 %v579, 4294901760
    %2292 = vmatpush.msra.mxu0 %v2291
    %v2293 = vand.u32 %v571, 4294901760
    %2294 = vmatpush.msra.mxu0 %v2293
    %v2295 = vand.u32 %v563, 4294901760
    %2296 = vmatpush.msra.mxu0 %v2295
    %v2297 = vand.u32 %v555, 4294901760
    %2298 = vmatpush.msra.mxu0 %v2297
    %v2299 = vand.u32 %v547, 4294901760
    %2300 = vmatpush.msra.mxu0 %v2299
    %v2301 = vand.u32 %v539, 4294901760
    %2302 = vmatpush.msra.mxu0 %v2301
    %v2303 = vand.u32 %v531, 4294901760
    %2304 = vmatpush.msra.mxu0 %v2303
    %v2305 = vand.u32 %v523, 4294901760
    %2306 = vmatpush.msra.mxu0 %v2305
    %v2307 = vand.u32 %v515, 4294901760
    %2308 = vmatpush.msra.mxu0 %v2307
    %v2309 = vand.u32 %v507, 4294901760
    %2310 = vmatpush.msra.mxu0 %v2309
    %v2311 = vand.u32 %v499, 4294901760
    %2312 = vmatpush.msra.mxu0 %v2311
    %v2313 = vand.u32 %v491, 4294901760
    %2314 = vmatpush.msra.mxu0 %v2313
    %v2315 = vand.u32 %v486, 4294901760
    %2316 = vmatmul.f32.gmra.mxu0 %v2315
    %v2317 = vpop.f32.mrf.mxu0
    %v2318 = vadd.f32 %v2281, %v2317
    %2319 = vdwg.mxu0
    %v2320 = vand.u32 %v612, 4294901760
    %2321 = vmatpush.msra.mxu0 %v2320
    %v2322 = vand.u32 %v604, 4294901760
    %2323 = vmatpush.msra.mxu0 %v2322
    %v2324 = vand.u32 %v596, 4294901760
    %2325 = vmatpush.msra.mxu0 %v2324
    %v2326 = vand.u32 %v588, 4294901760
    %2327 = vmatpush.msra.mxu0 %v2326
    %v2328 = vand.u32 %v580, 4294901760
    %2329 = vmatpush.msra.mxu0 %v2328
    %v2330 = vand.u32 %v572, 4294901760
    %2331 = vmatpush.msra.mxu0 %v2330
    %v2332 = vand.u32 %v564, 4294901760
    %2333 = vmatpush.msra.mxu0 %v2332
    %v2334 = vand.u32 %v556, 4294901760
    %2335 = vmatpush.msra.mxu0 %v2334
    %v2336 = vand.u32 %v548, 4294901760
    %2337 = vmatpush.msra.mxu0 %v2336
    %v2338 = vand.u32 %v540, 4294901760
    %2339 = vmatpush.msra.mxu0 %v2338
    %v2340 = vand.u32 %v532, 4294901760
    %2341 = vmatpush.msra.mxu0 %v2340
    %v2342 = vand.u32 %v524, 4294901760
    %2343 = vmatpush.msra.mxu0 %v2342
    %v2344 = vand.u32 %v516, 4294901760
    %2345 = vmatpush.msra.mxu0 %v2344
    %v2346 = vand.u32 %v508, 4294901760
    %2347 = vmatpush.msra.mxu0 %v2346
    %v2348 = vand.u32 %v500, 4294901760
    %2349 = vmatpush.msra.mxu0 %v2348
    %v2350 = vand.u32 %v492, 4294901760
    %2351 = vmatpush.msra.mxu0 %v2350
    %v2352 = vand.u32 %v486, 4294901760
    %v2353 = vsub.f32 %v486, %v2352
    %v2354 = vand.u32 %v2353, 4294901760
    %v2355 = vsub.f32 %v2353, %v2354
    %v2356 = vand.u32 %v2355, 4294901760
    %2357 = vmatmul.f32.gmra.mxu0 %v2356
    %v2358 = vpop.f32.mrf.mxu0
    %v2359 = vadd.f32 0.0, %v2358
    %2360 = vdwg.mxu0
    %v2361 = vand.u32 %v612, 4294901760
    %v2362 = vsub.f32 %v612, %v2361
    %v2363 = vand.u32 %v2362, 4294901760
    %v2364 = vsub.f32 %v2362, %v2363
    %v2365 = vand.u32 %v2364, 4294901760
    %2366 = vmatpush.msra.mxu0 %v2365
    %v2367 = vand.u32 %v604, 4294901760
    %v2368 = vsub.f32 %v604, %v2367
    %v2369 = vand.u32 %v2368, 4294901760
    %v2370 = vsub.f32 %v2368, %v2369
    %v2371 = vand.u32 %v2370, 4294901760
    %2372 = vmatpush.msra.mxu0 %v2371
    %v2373 = vand.u32 %v596, 4294901760
    %v2374 = vsub.f32 %v596, %v2373
    %v2375 = vand.u32 %v2374, 4294901760
    %v2376 = vsub.f32 %v2374, %v2375
    %v2377 = vand.u32 %v2376, 4294901760
    %2378 = vmatpush.msra.mxu0 %v2377
    %v2379 = vand.u32 %v588, 4294901760
    %v2380 = vsub.f32 %v588, %v2379
    %v2381 = vand.u32 %v2380, 4294901760
    %v2382 = vsub.f32 %v2380, %v2381
    %v2383 = vand.u32 %v2382, 4294901760
    %2384 = vmatpush.msra.mxu0 %v2383
    %v2385 = vand.u32 %v580, 4294901760
    %v2386 = vsub.f32 %v580, %v2385
    %v2387 = vand.u32 %v2386, 4294901760
    %v2388 = vsub.f32 %v2386, %v2387
    %v2389 = vand.u32 %v2388, 4294901760
    %2390 = vmatpush.msra.mxu0 %v2389
    %v2391 = vand.u32 %v572, 4294901760
    %v2392 = vsub.f32 %v572, %v2391
    %v2393 = vand.u32 %v2392, 4294901760
    %v2394 = vsub.f32 %v2392, %v2393
    %v2395 = vand.u32 %v2394, 4294901760
    %2396 = vmatpush.msra.mxu0 %v2395
    %v2397 = vand.u32 %v564, 4294901760
    %v2398 = vsub.f32 %v564, %v2397
    %v2399 = vand.u32 %v2398, 4294901760
    %v2400 = vsub.f32 %v2398, %v2399
    %v2401 = vand.u32 %v2400, 4294901760
    %2402 = vmatpush.msra.mxu0 %v2401
    %v2403 = vand.u32 %v556, 4294901760
    %v2404 = vsub.f32 %v556, %v2403
    %v2405 = vand.u32 %v2404, 4294901760
    %v2406 = vsub.f32 %v2404, %v2405
    %v2407 = vand.u32 %v2406, 4294901760
    %2408 = vmatpush.msra.mxu0 %v2407
    %v2409 = vand.u32 %v548, 4294901760
    %v2410 = vsub.f32 %v548, %v2409
    %v2411 = vand.u32 %v2410, 4294901760
    %v2412 = vsub.f32 %v2410, %v2411
    %v2413 = vand.u32 %v2412, 4294901760
    %2414 = vmatpush.msra.mxu0 %v2413
    %v2415 = vand.u32 %v540, 4294901760
    %v2416 = vsub.f32 %v540, %v2415
    %v2417 = vand.u32 %v2416, 4294901760
    %v2418 = vsub.f32 %v2416, %v2417
    %v2419 = vand.u32 %v2418, 4294901760
    %2420 = vmatpush.msra.mxu0 %v2419
    %v2421 = vand.u32 %v532, 4294901760
    %v2422 = vsub.f32 %v532, %v2421
    %v2423 = vand.u32 %v2422, 4294901760
    %v2424 = vsub.f32 %v2422, %v2423
    %v2425 = vand.u32 %v2424, 4294901760
    %2426 = vmatpush.msra.mxu0 %v2425
    %v2427 = vand.u32 %v524, 4294901760
    %v2428 = vsub.f32 %v524, %v2427
    %v2429 = vand.u32 %v2428, 4294901760
    %v2430 = vsub.f32 %v2428, %v2429
    %v2431 = vand.u32 %v2430, 4294901760
    %2432 = vmatpush.msra.mxu0 %v2431
    %v2433 = vand.u32 %v516, 4294901760
    %v2434 = vsub.f32 %v516, %v2433
    %v2435 = vand.u32 %v2434, 4294901760
    %v2436 = vsub.f32 %v2434, %v2435
    %v2437 = vand.u32 %v2436, 4294901760
    %2438 = vmatpush.msra.mxu0 %v2437
    %v2439 = vand.u32 %v508, 4294901760
    %v2440 = vsub.f32 %v508, %v2439
    %v2441 = vand.u32 %v2440, 4294901760
    %v2442 = vsub.f32 %v2440, %v2441
    %v2443 = vand.u32 %v2442, 4294901760
    %2444 = vmatpush.msra.mxu0 %v2443
    %v2445 = vand.u32 %v500, 4294901760
    %v2446 = vsub.f32 %v500, %v2445
    %v2447 = vand.u32 %v2446, 4294901760
    %v2448 = vsub.f32 %v2446, %v2447
    %v2449 = vand.u32 %v2448, 4294901760
    %2450 = vmatpush.msra.mxu0 %v2449
    %v2451 = vand.u32 %v492, 4294901760
    %v2452 = vsub.f32 %v492, %v2451
    %v2453 = vand.u32 %v2452, 4294901760
    %v2454 = vsub.f32 %v2452, %v2453
    %v2455 = vand.u32 %v2454, 4294901760
    %2456 = vmatpush.msra.mxu0 %v2455
    %v2457 = vand.u32 %v486, 4294901760
    %2458 = vmatmul.f32.gmra.mxu0 %v2457
    %v2459 = vpop.f32.mrf.mxu0
    %v2460 = vadd.f32 %v2359, %v2459
    %2461 = vdwg.mxu0
    %v2462 = vand.u32 %v612, 4294901760
    %v2463 = vsub.f32 %v612, %v2462
    %2464 = vmatpush.msra.mxu0 %v2463
    %v2465 = vand.u32 %v604, 4294901760
    %v2466 = vsub.f32 %v604, %v2465
    %2467 = vmatpush.msra.mxu0 %v2466
    %v2468 = vand.u32 %v596, 4294901760
    %v2469 = vsub.f32 %v596, %v2468
    %2470 = vmatpush.msra.mxu0 %v2469
    %v2471 = vand.u32 %v588, 4294901760
    %v2472 = vsub.f32 %v588, %v2471
    %2473 = vmatpush.msra.mxu0 %v2472
    %v2474 = vand.u32 %v580, 4294901760
    %v2475 = vsub.f32 %v580, %v2474
    %2476 = vmatpush.msra.mxu0 %v2475
    %v2477 = vand.u32 %v572, 4294901760
    %v2478 = vsub.f32 %v572, %v2477
    %2479 = vmatpush.msra.mxu0 %v2478
    %v2480 = vand.u32 %v564, 4294901760
    %v2481 = vsub.f32 %v564, %v2480
    %2482 = vmatpush.msra.mxu0 %v2481
    %v2483 = vand.u32 %v556, 4294901760
    %v2484 = vsub.f32 %v556, %v2483
    %2485 = vmatpush.msra.mxu0 %v2484
    %v2486 = vand.u32 %v548, 4294901760
    %v2487 = vsub.f32 %v548, %v2486
    %2488 = vmatpush.msra.mxu0 %v2487
    %v2489 = vand.u32 %v540, 4294901760
    %v2490 = vsub.f32 %v540, %v2489
    %2491 = vmatpush.msra.mxu0 %v2490
    %v2492 = vand.u32 %v532, 4294901760
    %v2493 = vsub.f32 %v532, %v2492
    %2494 = vmatpush.msra.mxu0 %v2493
    %v2495 = vand.u32 %v524, 4294901760
    %v2496 = vsub.f32 %v524, %v2495
    %2497 = vmatpush.msra.mxu0 %v2496
    %v2498 = vand.u32 %v516, 4294901760
    %v2499 = vsub.f32 %v516, %v2498
    %2500 = vmatpush.msra.mxu0 %v2499
    %v2501 = vand.u32 %v508, 4294901760
    %v2502 = vsub.f32 %v508, %v2501
    %2503 = vmatpush.msra.mxu0 %v2502
    %v2504 = vand.u32 %v500, 4294901760
    %v2505 = vsub.f32 %v500, %v2504
    %2506 = vmatpush.msra.mxu0 %v2505
    %v2507 = vand.u32 %v492, 4294901760
    %v2508 = vsub.f32 %v492, %v2507
    %2509 = vmatpush.msra.mxu0 %v2508
    %v2510 = vand.u32 %v486, 4294901760
    %v2511 = vsub.f32 %v486, %v2510
    %2512 = vmatmul.f32.gmra.mxu0 %v2511
    %v2513 = vpop.f32.mrf.mxu0
    %v2514 = vadd.f32 %v2460, %v2513
    %2515 = vdwg.mxu0
    %v2516 = vand.u32 %v612, 4294901760
    %2517 = vmatpush.msra.mxu0 %v2516
    %v2518 = vand.u32 %v604, 4294901760
    %2519 = vmatpush.msra.mxu0 %v2518
    %v2520 = vand.u32 %v596, 4294901760
    %2521 = vmatpush.msra.mxu0 %v2520
    %v2522 = vand.u32 %v588, 4294901760
    %2523 = vmatpush.msra.mxu0 %v2522
    %v2524 = vand.u32 %v580, 4294901760
    %2525 = vmatpush.msra.mxu0 %v2524
    %v2526 = vand.u32 %v572, 4294901760
    %2527 = vmatpush.msra.mxu0 %v2526
    %v2528 = vand.u32 %v564, 4294901760
    %2529 = vmatpush.msra.mxu0 %v2528
    %v2530 = vand.u32 %v556, 4294901760
    %2531 = vmatpush.msra.mxu0 %v2530
    %v2532 = vand.u32 %v548, 4294901760
    %2533 = vmatpush.msra.mxu0 %v2532
    %v2534 = vand.u32 %v540, 4294901760
    %2535 = vmatpush.msra.mxu0 %v2534
    %v2536 = vand.u32 %v532, 4294901760
    %2537 = vmatpush.msra.mxu0 %v2536
    %v2538 = vand.u32 %v524, 4294901760
    %2539 = vmatpush.msra.mxu0 %v2538
    %v2540 = vand.u32 %v516, 4294901760
    %2541 = vmatpush.msra.mxu0 %v2540
    %v2542 = vand.u32 %v508, 4294901760
    %2543 = vmatpush.msra.mxu0 %v2542
    %v2544 = vand.u32 %v500, 4294901760
    %2545 = vmatpush.msra.mxu0 %v2544
    %v2546 = vand.u32 %v492, 4294901760
    %2547 = vmatpush.msra.mxu0 %v2546
    %v2548 = vand.u32 %v486, 4294901760
    %v2549 = vsub.f32 %v486, %v2548
    %v2550 = vand.u32 %v2549, 4294901760
    %2551 = vmatmul.f32.gmra.mxu0 %v2550
    %v2552 = vpop.f32.mrf.mxu0
    %v2553 = vadd.f32 %v2514, %v2552
    %2554 = vdwg.mxu0
    %v2555 = vand.u32 %v612, 4294901760
    %v2556 = vsub.f32 %v612, %v2555
    %v2557 = vand.u32 %v2556, 4294901760
    %2558 = vmatpush.msra.mxu0 %v2557
    %v2559 = vand.u32 %v604, 4294901760
    %v2560 = vsub.f32 %v604, %v2559
    %v2561 = vand.u32 %v2560, 4294901760
    %2562 = vmatpush.msra.mxu0 %v2561
    %v2563 = vand.u32 %v596, 4294901760
    %v2564 = vsub.f32 %v596, %v2563
    %v2565 = vand.u32 %v2564, 4294901760
    %2566 = vmatpush.msra.mxu0 %v2565
    %v2567 = vand.u32 %v588, 4294901760
    %v2568 = vsub.f32 %v588, %v2567
    %v2569 = vand.u32 %v2568, 4294901760
    %2570 = vmatpush.msra.mxu0 %v2569
    %v2571 = vand.u32 %v580, 4294901760
    %v2572 = vsub.f32 %v580, %v2571
    %v2573 = vand.u32 %v2572, 4294901760
    %2574 = vmatpush.msra.mxu0 %v2573
    %v2575 = vand.u32 %v572, 4294901760
    %v2576 = vsub.f32 %v572, %v2575
    %v2577 = vand.u32 %v2576, 4294901760
    %2578 = vmatpush.msra.mxu0 %v2577
    %v2579 = vand.u32 %v564, 4294901760
    %v2580 = vsub.f32 %v564, %v2579
    %v2581 = vand.u32 %v2580, 4294901760
    %2582 = vmatpush.msra.mxu0 %v2581
    %v2583 = vand.u32 %v556, 4294901760
    %v2584 = vsub.f32 %v556, %v2583
    %v2585 = vand.u32 %v2584, 4294901760
    %2586 = vmatpush.msra.mxu0 %v2585
    %v2587 = vand.u32 %v548, 4294901760
    %v2588 = vsub.f32 %v548, %v2587
    %v2589 = vand.u32 %v2588, 4294901760
    %2590 = vmatpush.msra.mxu0 %v2589
    %v2591 = vand.u32 %v540, 4294901760
    %v2592 = vsub.f32 %v540, %v2591
    %v2593 = vand.u32 %v2592, 4294901760
    %2594 = vmatpush.msra.mxu0 %v2593
    %v2595 = vand.u32 %v532, 4294901760
    %v2596 = vsub.f32 %v532, %v2595
    %v2597 = vand.u32 %v2596, 4294901760
    %2598 = vmatpush.msra.mxu0 %v2597
    %v2599 = vand.u32 %v524, 4294901760
    %v2600 = vsub.f32 %v524, %v2599
    %v2601 = vand.u32 %v2600, 4294901760
    %2602 = vmatpush.msra.mxu0 %v2601
    %v2603 = vand.u32 %v516, 4294901760
    %v2604 = vsub.f32 %v516, %v2603
    %v2605 = vand.u32 %v2604, 4294901760
    %2606 = vmatpush.msra.mxu0 %v2605
    %v2607 = vand.u32 %v508, 4294901760
    %v2608 = vsub.f32 %v508, %v2607
    %v2609 = vand.u32 %v2608, 4294901760
    %2610 = vmatpush.msra.mxu0 %v2609
    %v2611 = vand.u32 %v500, 4294901760
    %v2612 = vsub.f32 %v500, %v2611
    %v2613 = vand.u32 %v2612, 4294901760
    %2614 = vmatpush.msra.mxu0 %v2613
    %v2615 = vand.u32 %v492, 4294901760
    %v2616 = vsub.f32 %v492, %v2615
    %v2617 = vand.u32 %v2616, 4294901760
    %2618 = vmatpush.msra.mxu0 %v2617
    %v2619 = vand.u32 %v486, 4294901760
    %2620 = vmatmul.f32.gmra.mxu0 %v2619
    %v2621 = vpop.f32.mrf.mxu0
    %v2622 = vadd.f32 %v2553, %v2621
    %2623 = vdwg.mxu0
    %v2624 = vand.u32 %v612, 4294901760
    %2625 = vmatpush.msra.mxu0 %v2624
    %v2626 = vand.u32 %v604, 4294901760
    %2627 = vmatpush.msra.mxu0 %v2626
    %v2628 = vand.u32 %v596, 4294901760
    %2629 = vmatpush.msra.mxu0 %v2628
    %v2630 = vand.u32 %v588, 4294901760
    %2631 = vmatpush.msra.mxu0 %v2630
    %v2632 = vand.u32 %v580, 4294901760
    %2633 = vmatpush.msra.mxu0 %v2632
    %v2634 = vand.u32 %v572, 4294901760
    %2635 = vmatpush.msra.mxu0 %v2634
    %v2636 = vand.u32 %v564, 4294901760
    %2637 = vmatpush.msra.mxu0 %v2636
    %v2638 = vand.u32 %v556, 4294901760
    %2639 = vmatpush.msra.mxu0 %v2638
    %v2640 = vand.u32 %v548, 4294901760
    %2641 = vmatpush.msra.mxu0 %v2640
    %v2642 = vand.u32 %v540, 4294901760
    %2643 = vmatpush.msra.mxu0 %v2642
    %v2644 = vand.u32 %v532, 4294901760
    %2645 = vmatpush.msra.mxu0 %v2644
    %v2646 = vand.u32 %v524, 4294901760
    %2647 = vmatpush.msra.mxu0 %v2646
    %v2648 = vand.u32 %v516, 4294901760
    %2649 = vmatpush.msra.mxu0 %v2648
    %v2650 = vand.u32 %v508, 4294901760
    %2651 = vmatpush.msra.mxu0 %v2650
    %v2652 = vand.u32 %v500, 4294901760
    %2653 = vmatpush.msra.mxu0 %v2652
    %v2654 = vand.u32 %v492, 4294901760
    %2655 = vmatpush.msra.mxu0 %v2654
    %v2656 = vand.u32 %v486, 4294901760
    %2657 = vmatmul.f32.gmra.mxu0 %v2656
    %v2658 = vpop.f32.mrf.mxu0
    %v2659 = vadd.f32 %v2622, %v2658
    %2660 = vdwg.mxu0
    %v2661 = vand.u32 %v613, 4294901760
    %2662 = vmatpush.msra.mxu0 %v2661
    %v2663 = vand.u32 %v605, 4294901760
    %2664 = vmatpush.msra.mxu0 %v2663
    %v2665 = vand.u32 %v597, 4294901760
    %2666 = vmatpush.msra.mxu0 %v2665
    %v2667 = vand.u32 %v589, 4294901760
    %2668 = vmatpush.msra.mxu0 %v2667
    %v2669 = vand.u32 %v581, 4294901760
    %2670 = vmatpush.msra.mxu0 %v2669
    %v2671 = vand.u32 %v573, 4294901760
    %2672 = vmatpush.msra.mxu0 %v2671
    %v2673 = vand.u32 %v565, 4294901760
    %2674 = vmatpush.msra.mxu0 %v2673
    %v2675 = vand.u32 %v557, 4294901760
    %2676 = vmatpush.msra.mxu0 %v2675
    %v2677 = vand.u32 %v549, 4294901760
    %2678 = vmatpush.msra.mxu0 %v2677
    %v2679 = vand.u32 %v541, 4294901760
    %2680 = vmatpush.msra.mxu0 %v2679
    %v2681 = vand.u32 %v533, 4294901760
    %2682 = vmatpush.msra.mxu0 %v2681
    %v2683 = vand.u32 %v525, 4294901760
    %2684 = vmatpush.msra.mxu0 %v2683
    %v2685 = vand.u32 %v517, 4294901760
    %2686 = vmatpush.msra.mxu0 %v2685
    %v2687 = vand.u32 %v509, 4294901760
    %2688 = vmatpush.msra.mxu0 %v2687
    %v2689 = vand.u32 %v501, 4294901760
    %2690 = vmatpush.msra.mxu0 %v2689
    %v2691 = vand.u32 %v493, 4294901760
    %2692 = vmatpush.msra.mxu0 %v2691
    %v2693 = vand.u32 %v486, 4294901760
    %v2694 = vsub.f32 %v486, %v2693
    %v2695 = vand.u32 %v2694, 4294901760
    %v2696 = vsub.f32 %v2694, %v2695
    %v2697 = vand.u32 %v2696, 4294901760
    %2698 = vmatmul.f32.gmra.mxu0 %v2697
    %v2699 = vpop.f32.mrf.mxu0
    %v2700 = vadd.f32 0.0, %v2699
    %2701 = vdwg.mxu0
    %v2702 = vand.u32 %v613, 4294901760
    %v2703 = vsub.f32 %v613, %v2702
    %v2704 = vand.u32 %v2703, 4294901760
    %v2705 = vsub.f32 %v2703, %v2704
    %v2706 = vand.u32 %v2705, 4294901760
    %2707 = vmatpush.msra.mxu0 %v2706
    %v2708 = vand.u32 %v605, 4294901760
    %v2709 = vsub.f32 %v605, %v2708
    %v2710 = vand.u32 %v2709, 4294901760
    %v2711 = vsub.f32 %v2709, %v2710
    %v2712 = vand.u32 %v2711, 4294901760
    %2713 = vmatpush.msra.mxu0 %v2712
    %v2714 = vand.u32 %v597, 4294901760
    %v2715 = vsub.f32 %v597, %v2714
    %v2716 = vand.u32 %v2715, 4294901760
    %v2717 = vsub.f32 %v2715, %v2716
    %v2718 = vand.u32 %v2717, 4294901760
    %2719 = vmatpush.msra.mxu0 %v2718
    %v2720 = vand.u32 %v589, 4294901760
    %v2721 = vsub.f32 %v589, %v2720
    %v2722 = vand.u32 %v2721, 4294901760
    %v2723 = vsub.f32 %v2721, %v2722
    %v2724 = vand.u32 %v2723, 4294901760
    %2725 = vmatpush.msra.mxu0 %v2724
    %v2726 = vand.u32 %v581, 4294901760
    %v2727 = vsub.f32 %v581, %v2726
    %v2728 = vand.u32 %v2727, 4294901760
    %v2729 = vsub.f32 %v2727, %v2728
    %v2730 = vand.u32 %v2729, 4294901760
    %2731 = vmatpush.msra.mxu0 %v2730
    %v2732 = vand.u32 %v573, 4294901760
    %v2733 = vsub.f32 %v573, %v2732
    %v2734 = vand.u32 %v2733, 4294901760
    %v2735 = vsub.f32 %v2733, %v2734
    %v2736 = vand.u32 %v2735, 4294901760
    %2737 = vmatpush.msra.mxu0 %v2736
    %v2738 = vand.u32 %v565, 4294901760
    %v2739 = vsub.f32 %v565, %v2738
    %v2740 = vand.u32 %v2739, 4294901760
    %v2741 = vsub.f32 %v2739, %v2740
    %v2742 = vand.u32 %v2741, 4294901760
    %2743 = vmatpush.msra.mxu0 %v2742
    %v2744 = vand.u32 %v557, 4294901760
    %v2745 = vsub.f32 %v557, %v2744
    %v2746 = vand.u32 %v2745, 4294901760
    %v2747 = vsub.f32 %v2745, %v2746
    %v2748 = vand.u32 %v2747, 4294901760
    %2749 = vmatpush.msra.mxu0 %v2748
    %v2750 = vand.u32 %v549, 4294901760
    %v2751 = vsub.f32 %v549, %v2750
    %v2752 = vand.u32 %v2751, 4294901760
    %v2753 = vsub.f32 %v2751, %v2752
    %v2754 = vand.u32 %v2753, 4294901760
    %2755 = vmatpush.msra.mxu0 %v2754
    %v2756 = vand.u32 %v541, 4294901760
    %v2757 = vsub.f32 %v541, %v2756
    %v2758 = vand.u32 %v2757, 4294901760
    %v2759 = vsub.f32 %v2757, %v2758
    %v2760 = vand.u32 %v2759, 4294901760
    %2761 = vmatpush.msra.mxu0 %v2760
    %v2762 = vand.u32 %v533, 4294901760
    %v2763 = vsub.f32 %v533, %v2762
    %v2764 = vand.u32 %v2763, 4294901760
    %v2765 = vsub.f32 %v2763, %v2764
    %v2766 = vand.u32 %v2765, 4294901760
    %2767 = vmatpush.msra.mxu0 %v2766
    %v2768 = vand.u32 %v525, 4294901760
    %v2769 = vsub.f32 %v525, %v2768
    %v2770 = vand.u32 %v2769, 4294901760
    %v2771 = vsub.f32 %v2769, %v2770
    %v2772 = vand.u32 %v2771, 4294901760
    %2773 = vmatpush.msra.mxu0 %v2772
    %v2774 = vand.u32 %v517, 4294901760
    %v2775 = vsub.f32 %v517, %v2774
    %v2776 = vand.u32 %v2775, 4294901760
    %v2777 = vsub.f32 %v2775, %v2776
    %v2778 = vand.u32 %v2777, 4294901760
    %2779 = vmatpush.msra.mxu0 %v2778
    %v2780 = vand.u32 %v509, 4294901760
    %v2781 = vsub.f32 %v509, %v2780
    %v2782 = vand.u32 %v2781, 4294901760
    %v2783 = vsub.f32 %v2781, %v2782
    %v2784 = vand.u32 %v2783, 4294901760
    %2785 = vmatpush.msra.mxu0 %v2784
    %v2786 = vand.u32 %v501, 4294901760
    %v2787 = vsub.f32 %v501, %v2786
    %v2788 = vand.u32 %v2787, 4294901760
    %v2789 = vsub.f32 %v2787, %v2788
    %v2790 = vand.u32 %v2789, 4294901760
    %2791 = vmatpush.msra.mxu0 %v2790
    %v2792 = vand.u32 %v493, 4294901760
    %v2793 = vsub.f32 %v493, %v2792
    %v2794 = vand.u32 %v2793, 4294901760
    %v2795 = vsub.f32 %v2793, %v2794
    %v2796 = vand.u32 %v2795, 4294901760
    %2797 = vmatpush.msra.mxu0 %v2796
    %v2798 = vand.u32 %v486, 4294901760
    %2799 = vmatmul.f32.gmra.mxu0 %v2798
    %v2800 = vpop.f32.mrf.mxu0
    %v2801 = vadd.f32 %v2700, %v2800
    %2802 = vdwg.mxu0
    %v2803 = vand.u32 %v613, 4294901760
    %v2804 = vsub.f32 %v613, %v2803
    %2805 = vmatpush.msra.mxu0 %v2804
    %v2806 = vand.u32 %v605, 4294901760
    %v2807 = vsub.f32 %v605, %v2806
    %2808 = vmatpush.msra.mxu0 %v2807
    %v2809 = vand.u32 %v597, 4294901760
    %v2810 = vsub.f32 %v597, %v2809
    %2811 = vmatpush.msra.mxu0 %v2810
    %v2812 = vand.u32 %v589, 4294901760
    %v2813 = vsub.f32 %v589, %v2812
    %2814 = vmatpush.msra.mxu0 %v2813
    %v2815 = vand.u32 %v581, 4294901760
    %v2816 = vsub.f32 %v581, %v2815
    %2817 = vmatpush.msra.mxu0 %v2816
    %v2818 = vand.u32 %v573, 4294901760
    %v2819 = vsub.f32 %v573, %v2818
    %2820 = vmatpush.msra.mxu0 %v2819
    %v2821 = vand.u32 %v565, 4294901760
    %v2822 = vsub.f32 %v565, %v2821
    %2823 = vmatpush.msra.mxu0 %v2822
    %v2824 = vand.u32 %v557, 4294901760
    %v2825 = vsub.f32 %v557, %v2824
    %2826 = vmatpush.msra.mxu0 %v2825
    %v2827 = vand.u32 %v549, 4294901760
    %v2828 = vsub.f32 %v549, %v2827
    %2829 = vmatpush.msra.mxu0 %v2828
    %v2830 = vand.u32 %v541, 4294901760
    %v2831 = vsub.f32 %v541, %v2830
    %2832 = vmatpush.msra.mxu0 %v2831
    %v2833 = vand.u32 %v533, 4294901760
    %v2834 = vsub.f32 %v533, %v2833
    %2835 = vmatpush.msra.mxu0 %v2834
    %v2836 = vand.u32 %v525, 4294901760
    %v2837 = vsub.f32 %v525, %v2836
    %2838 = vmatpush.msra.mxu0 %v2837
    %v2839 = vand.u32 %v517, 4294901760
    %v2840 = vsub.f32 %v517, %v2839
    %2841 = vmatpush.msra.mxu0 %v2840
    %v2842 = vand.u32 %v509, 4294901760
    %v2843 = vsub.f32 %v509, %v2842
    %2844 = vmatpush.msra.mxu0 %v2843
    %v2845 = vand.u32 %v501, 4294901760
    %v2846 = vsub.f32 %v501, %v2845
    %2847 = vmatpush.msra.mxu0 %v2846
    %v2848 = vand.u32 %v493, 4294901760
    %v2849 = vsub.f32 %v493, %v2848
    %2850 = vmatpush.msra.mxu0 %v2849
    %v2851 = vand.u32 %v486, 4294901760
    %v2852 = vsub.f32 %v486, %v2851
    %2853 = vmatmul.f32.gmra.mxu0 %v2852
    %v2854 = vpop.f32.mrf.mxu0
    %v2855 = vadd.f32 %v2801, %v2854
    %2856 = vdwg.mxu0
    %v2857 = vand.u32 %v613, 4294901760
    %2858 = vmatpush.msra.mxu0 %v2857
    %v2859 = vand.u32 %v605, 4294901760
    %2860 = vmatpush.msra.mxu0 %v2859
    %v2861 = vand.u32 %v597, 4294901760
    %2862 = vmatpush.msra.mxu0 %v2861
    %v2863 = vand.u32 %v589, 4294901760
    %2864 = vmatpush.msra.mxu0 %v2863
    %v2865 = vand.u32 %v581, 4294901760
    %2866 = vmatpush.msra.mxu0 %v2865
    %v2867 = vand.u32 %v573, 4294901760
    %2868 = vmatpush.msra.mxu0 %v2867
    %v2869 = vand.u32 %v565, 4294901760
    %2870 = vmatpush.msra.mxu0 %v2869
    %v2871 = vand.u32 %v557, 4294901760
    %2872 = vmatpush.msra.mxu0 %v2871
    %v2873 = vand.u32 %v549, 4294901760
    %2874 = vmatpush.msra.mxu0 %v2873
    %v2875 = vand.u32 %v541, 4294901760
    %2876 = vmatpush.msra.mxu0 %v2875
    %v2877 = vand.u32 %v533, 4294901760
    %2878 = vmatpush.msra.mxu0 %v2877
    %v2879 = vand.u32 %v525, 4294901760
    %2880 = vmatpush.msra.mxu0 %v2879
    %v2881 = vand.u32 %v517, 4294901760
    %2882 = vmatpush.msra.mxu0 %v2881
    %v2883 = vand.u32 %v509, 4294901760
    %2884 = vmatpush.msra.mxu0 %v2883
    %v2885 = vand.u32 %v501, 4294901760
    %2886 = vmatpush.msra.mxu0 %v2885
    %v2887 = vand.u32 %v493, 4294901760
    %2888 = vmatpush.msra.mxu0 %v2887
    %v2889 = vand.u32 %v486, 4294901760
    %v2890 = vsub.f32 %v486, %v2889
    %v2891 = vand.u32 %v2890, 4294901760
    %2892 = vmatmul.f32.gmra.mxu0 %v2891
    %v2893 = vpop.f32.mrf.mxu0
    %v2894 = vadd.f32 %v2855, %v2893
    %2895 = vdwg.mxu0
    %v2896 = vand.u32 %v613, 4294901760
    %v2897 = vsub.f32 %v613, %v2896
    %v2898 = vand.u32 %v2897, 4294901760
    %2899 = vmatpush.msra.mxu0 %v2898
    %v2900 = vand.u32 %v605, 4294901760
    %v2901 = vsub.f32 %v605, %v2900
    %v2902 = vand.u32 %v2901, 4294901760
    %2903 = vmatpush.msra.mxu0 %v2902
    %v2904 = vand.u32 %v597, 4294901760
    %v2905 = vsub.f32 %v597, %v2904
    %v2906 = vand.u32 %v2905, 4294901760
    %2907 = vmatpush.msra.mxu0 %v2906
    %v2908 = vand.u32 %v589, 4294901760
    %v2909 = vsub.f32 %v589, %v2908
    %v2910 = vand.u32 %v2909, 4294901760
    %2911 = vmatpush.msra.mxu0 %v2910
    %v2912 = vand.u32 %v581, 4294901760
    %v2913 = vsub.f32 %v581, %v2912
    %v2914 = vand.u32 %v2913, 4294901760
    %2915 = vmatpush.msra.mxu0 %v2914
    %v2916 = vand.u32 %v573, 4294901760
    %v2917 = vsub.f32 %v573, %v2916
    %v2918 = vand.u32 %v2917, 4294901760
    %2919 = vmatpush.msra.mxu0 %v2918
    %v2920 = vand.u32 %v565, 4294901760
    %v2921 = vsub.f32 %v565, %v2920
    %v2922 = vand.u32 %v2921, 4294901760
    %2923 = vmatpush.msra.mxu0 %v2922
    %v2924 = vand.u32 %v557, 4294901760
    %v2925 = vsub.f32 %v557, %v2924
    %v2926 = vand.u32 %v2925, 4294901760
    %2927 = vmatpush.msra.mxu0 %v2926
    %v2928 = vand.u32 %v549, 4294901760
    %v2929 = vsub.f32 %v549, %v2928
    %v2930 = vand.u32 %v2929, 4294901760
    %2931 = vmatpush.msra.mxu0 %v2930
    %v2932 = vand.u32 %v541, 4294901760
    %v2933 = vsub.f32 %v541, %v2932
    %v2934 = vand.u32 %v2933, 4294901760
    %2935 = vmatpush.msra.mxu0 %v2934
    %v2936 = vand.u32 %v533, 4294901760
    %v2937 = vsub.f32 %v533, %v2936
    %v2938 = vand.u32 %v2937, 4294901760
    %2939 = vmatpush.msra.mxu0 %v2938
    %v2940 = vand.u32 %v525, 4294901760
    %v2941 = vsub.f32 %v525, %v2940
    %v2942 = vand.u32 %v2941, 4294901760
    %2943 = vmatpush.msra.mxu0 %v2942
    %v2944 = vand.u32 %v517, 4294901760
    %v2945 = vsub.f32 %v517, %v2944
    %v2946 = vand.u32 %v2945, 4294901760
    %2947 = vmatpush.msra.mxu0 %v2946
    %v2948 = vand.u32 %v509, 4294901760
    %v2949 = vsub.f32 %v509, %v2948
    %v2950 = vand.u32 %v2949, 4294901760
    %2951 = vmatpush.msra.mxu0 %v2950
    %v2952 = vand.u32 %v501, 4294901760
    %v2953 = vsub.f32 %v501, %v2952
    %v2954 = vand.u32 %v2953, 4294901760
    %2955 = vmatpush.msra.mxu0 %v2954
    %v2956 = vand.u32 %v493, 4294901760
    %v2957 = vsub.f32 %v493, %v2956
    %v2958 = vand.u32 %v2957, 4294901760
    %2959 = vmatpush.msra.mxu0 %v2958
    %v2960 = vand.u32 %v486, 4294901760
    %2961 = vmatmul.f32.gmra.mxu0 %v2960
    %v2962 = vpop.f32.mrf.mxu0
    %v2963 = vadd.f32 %v2894, %v2962
    %2964 = vdwg.mxu0
    %v2965 = vand.u32 %v613, 4294901760
    %2966 = vmatpush.msra.mxu0 %v2965
    %v2967 = vand.u32 %v605, 4294901760
    %2968 = vmatpush.msra.mxu0 %v2967
    %v2969 = vand.u32 %v597, 4294901760
    %2970 = vmatpush.msra.mxu0 %v2969
    %v2971 = vand.u32 %v589, 4294901760
    %2972 = vmatpush.msra.mxu0 %v2971
    %v2973 = vand.u32 %v581, 4294901760
    %2974 = vmatpush.msra.mxu0 %v2973
    %v2975 = vand.u32 %v573, 4294901760
    %2976 = vmatpush.msra.mxu0 %v2975
    %v2977 = vand.u32 %v565, 4294901760
    %2978 = vmatpush.msra.mxu0 %v2977
    %v2979 = vand.u32 %v557, 4294901760
    %2980 = vmatpush.msra.mxu0 %v2979
    %v2981 = vand.u32 %v549, 4294901760
    %2982 = vmatpush.msra.mxu0 %v2981
    %v2983 = vand.u32 %v541, 4294901760
    %2984 = vmatpush.msra.mxu0 %v2983
    %v2985 = vand.u32 %v533, 4294901760
    %2986 = vmatpush.msra.mxu0 %v2985
    %v2987 = vand.u32 %v525, 4294901760
    %2988 = vmatpush.msra.mxu0 %v2987
    %v2989 = vand.u32 %v517, 4294901760
    %2990 = vmatpush.msra.mxu0 %v2989
    %v2991 = vand.u32 %v509, 4294901760
    %2992 = vmatpush.msra.mxu0 %v2991
    %v2993 = vand.u32 %v501, 4294901760
    %2994 = vmatpush.msra.mxu0 %v2993
    %v2995 = vand.u32 %v493, 4294901760
    %2996 = vmatpush.msra.mxu0 %v2995
    %v2997 = vand.u32 %v486, 4294901760
    %2998 = vmatmul.f32.gmra.mxu0 %v2997
    %v2999 = vpop.f32.mrf.mxu0
    %v3000 = vadd.f32 %v2963, %v2999
    %3001 = vdwg.mxu0
    %v3002 = vand.u32 %v614, 4294901760
    %3003 = vmatpush.msra.mxu0 %v3002
    %v3004 = vand.u32 %v606, 4294901760
    %3005 = vmatpush.msra.mxu0 %v3004
    %v3006 = vand.u32 %v598, 4294901760
    %3007 = vmatpush.msra.mxu0 %v3006
    %v3008 = vand.u32 %v590, 4294901760
    %3009 = vmatpush.msra.mxu0 %v3008
    %v3010 = vand.u32 %v582, 4294901760
    %3011 = vmatpush.msra.mxu0 %v3010
    %v3012 = vand.u32 %v574, 4294901760
    %3013 = vmatpush.msra.mxu0 %v3012
    %v3014 = vand.u32 %v566, 4294901760
    %3015 = vmatpush.msra.mxu0 %v3014
    %v3016 = vand.u32 %v558, 4294901760
    %3017 = vmatpush.msra.mxu0 %v3016
    %v3018 = vand.u32 %v550, 4294901760
    %3019 = vmatpush.msra.mxu0 %v3018
    %v3020 = vand.u32 %v542, 4294901760
    %3021 = vmatpush.msra.mxu0 %v3020
    %v3022 = vand.u32 %v534, 4294901760
    %3023 = vmatpush.msra.mxu0 %v3022
    %v3024 = vand.u32 %v526, 4294901760
    %3025 = vmatpush.msra.mxu0 %v3024
    %v3026 = vand.u32 %v518, 4294901760
    %3027 = vmatpush.msra.mxu0 %v3026
    %v3028 = vand.u32 %v510, 4294901760
    %3029 = vmatpush.msra.mxu0 %v3028
    %v3030 = vand.u32 %v502, 4294901760
    %3031 = vmatpush.msra.mxu0 %v3030
    %v3032 = vand.u32 %v494, 4294901760
    %3033 = vmatpush.msra.mxu0 %v3032
    %v3034 = vand.u32 %v486, 4294901760
    %v3035 = vsub.f32 %v486, %v3034
    %v3036 = vand.u32 %v3035, 4294901760
    %v3037 = vsub.f32 %v3035, %v3036
    %v3038 = vand.u32 %v3037, 4294901760
    %3039 = vmatmul.f32.gmra.mxu0 %v3038
    %v3040 = vpop.f32.mrf.mxu0
    %v3041 = vadd.f32 0.0, %v3040
    %3042 = vdwg.mxu0
    %v3043 = vand.u32 %v614, 4294901760
    %v3044 = vsub.f32 %v614, %v3043
    %v3045 = vand.u32 %v3044, 4294901760
    %v3046 = vsub.f32 %v3044, %v3045
    %v3047 = vand.u32 %v3046, 4294901760
    %3048 = vmatpush.msra.mxu0 %v3047
    %v3049 = vand.u32 %v606, 4294901760
    %v3050 = vsub.f32 %v606, %v3049
    %v3051 = vand.u32 %v3050, 4294901760
    %v3052 = vsub.f32 %v3050, %v3051
    %v3053 = vand.u32 %v3052, 4294901760
    %3054 = vmatpush.msra.mxu0 %v3053
    %v3055 = vand.u32 %v598, 4294901760
    %v3056 = vsub.f32 %v598, %v3055
    %v3057 = vand.u32 %v3056, 4294901760
    %v3058 = vsub.f32 %v3056, %v3057
    %v3059 = vand.u32 %v3058, 4294901760
    %3060 = vmatpush.msra.mxu0 %v3059
    %v3061 = vand.u32 %v590, 4294901760
    %v3062 = vsub.f32 %v590, %v3061
    %v3063 = vand.u32 %v3062, 4294901760
    %v3064 = vsub.f32 %v3062, %v3063
    %v3065 = vand.u32 %v3064, 4294901760
    %3066 = vmatpush.msra.mxu0 %v3065
    %v3067 = vand.u32 %v582, 4294901760
    %v3068 = vsub.f32 %v582, %v3067
    %v3069 = vand.u32 %v3068, 4294901760
    %v3070 = vsub.f32 %v3068, %v3069
    %v3071 = vand.u32 %v3070, 4294901760
    %3072 = vmatpush.msra.mxu0 %v3071
    %v3073 = vand.u32 %v574, 4294901760
    %v3074 = vsub.f32 %v574, %v3073
    %v3075 = vand.u32 %v3074, 4294901760
    %v3076 = vsub.f32 %v3074, %v3075
    %v3077 = vand.u32 %v3076, 4294901760
    %3078 = vmatpush.msra.mxu0 %v3077
    %v3079 = vand.u32 %v566, 4294901760
    %v3080 = vsub.f32 %v566, %v3079
    %v3081 = vand.u32 %v3080, 4294901760
    %v3082 = vsub.f32 %v3080, %v3081
    %v3083 = vand.u32 %v3082, 4294901760
    %3084 = vmatpush.msra.mxu0 %v3083
    %v3085 = vand.u32 %v558, 4294901760
    %v3086 = vsub.f32 %v558, %v3085
    %v3087 = vand.u32 %v3086, 4294901760
    %v3088 = vsub.f32 %v3086, %v3087
    %v3089 = vand.u32 %v3088, 4294901760
    %3090 = vmatpush.msra.mxu0 %v3089
    %v3091 = vand.u32 %v550, 4294901760
    %v3092 = vsub.f32 %v550, %v3091
    %v3093 = vand.u32 %v3092, 4294901760
    %v3094 = vsub.f32 %v3092, %v3093
    %v3095 = vand.u32 %v3094, 4294901760
    %3096 = vmatpush.msra.mxu0 %v3095
    %v3097 = vand.u32 %v542, 4294901760
    %v3098 = vsub.f32 %v542, %v3097
    %v3099 = vand.u32 %v3098, 4294901760
    %v3100 = vsub.f32 %v3098, %v3099
    %v3101 = vand.u32 %v3100, 4294901760
    %3102 = vmatpush.msra.mxu0 %v3101
    %v3103 = vand.u32 %v534, 4294901760
    %v3104 = vsub.f32 %v534, %v3103
    %v3105 = vand.u32 %v3104, 4294901760
    %v3106 = vsub.f32 %v3104, %v3105
    %v3107 = vand.u32 %v3106, 4294901760
    %3108 = vmatpush.msra.mxu0 %v3107
    %v3109 = vand.u32 %v526, 4294901760
    %v3110 = vsub.f32 %v526, %v3109
    %v3111 = vand.u32 %v3110, 4294901760
    %v3112 = vsub.f32 %v3110, %v3111
    %v3113 = vand.u32 %v3112, 4294901760
    %3114 = vmatpush.msra.mxu0 %v3113
    %v3115 = vand.u32 %v518, 4294901760
    %v3116 = vsub.f32 %v518, %v3115
    %v3117 = vand.u32 %v3116, 4294901760
    %v3118 = vsub.f32 %v3116, %v3117
    %v3119 = vand.u32 %v3118, 4294901760
    %3120 = vmatpush.msra.mxu0 %v3119
    %v3121 = vand.u32 %v510, 4294901760
    %v3122 = vsub.f32 %v510, %v3121
    %v3123 = vand.u32 %v3122, 4294901760
    %v3124 = vsub.f32 %v3122, %v3123
    %v3125 = vand.u32 %v3124, 4294901760
    %3126 = vmatpush.msra.mxu0 %v3125
    %v3127 = vand.u32 %v502, 4294901760
    %v3128 = vsub.f32 %v502, %v3127
    %v3129 = vand.u32 %v3128, 4294901760
    %v3130 = vsub.f32 %v3128, %v3129
    %v3131 = vand.u32 %v3130, 4294901760
    %3132 = vmatpush.msra.mxu0 %v3131
    %v3133 = vand.u32 %v494, 4294901760
    %v3134 = vsub.f32 %v494, %v3133
    %v3135 = vand.u32 %v3134, 4294901760
    %v3136 = vsub.f32 %v3134, %v3135
    %v3137 = vand.u32 %v3136, 4294901760
    %3138 = vmatpush.msra.mxu0 %v3137
    %v3139 = vand.u32 %v486, 4294901760
    %3140 = vmatmul.f32.gmra.mxu0 %v3139
    %v3141 = vpop.f32.mrf.mxu0
    %v3142 = vadd.f32 %v3041, %v3141
    %3143 = vdwg.mxu0
    %v3144 = vand.u32 %v614, 4294901760
    %v3145 = vsub.f32 %v614, %v3144
    %3146 = vmatpush.msra.mxu0 %v3145
    %v3147 = vand.u32 %v606, 4294901760
    %v3148 = vsub.f32 %v606, %v3147
    %3149 = vmatpush.msra.mxu0 %v3148
    %v3150 = vand.u32 %v598, 4294901760
    %v3151 = vsub.f32 %v598, %v3150
    %3152 = vmatpush.msra.mxu0 %v3151
    %v3153 = vand.u32 %v590, 4294901760
    %v3154 = vsub.f32 %v590, %v3153
    %3155 = vmatpush.msra.mxu0 %v3154
    %v3156 = vand.u32 %v582, 4294901760
    %v3157 = vsub.f32 %v582, %v3156
    %3158 = vmatpush.msra.mxu0 %v3157
    %v3159 = vand.u32 %v574, 4294901760
    %v3160 = vsub.f32 %v574, %v3159
    %3161 = vmatpush.msra.mxu0 %v3160
    %v3162 = vand.u32 %v566, 4294901760
    %v3163 = vsub.f32 %v566, %v3162
    %3164 = vmatpush.msra.mxu0 %v3163
    %v3165 = vand.u32 %v558, 4294901760
    %v3166 = vsub.f32 %v558, %v3165
    %3167 = vmatpush.msra.mxu0 %v3166
    %v3168 = vand.u32 %v550, 4294901760
    %v3169 = vsub.f32 %v550, %v3168
    %3170 = vmatpush.msra.mxu0 %v3169
    %v3171 = vand.u32 %v542, 4294901760
    %v3172 = vsub.f32 %v542, %v3171
    %3173 = vmatpush.msra.mxu0 %v3172
    %v3174 = vand.u32 %v534, 4294901760
    %v3175 = vsub.f32 %v534, %v3174
    %3176 = vmatpush.msra.mxu0 %v3175
    %v3177 = vand.u32 %v526, 4294901760
    %v3178 = vsub.f32 %v526, %v3177
    %3179 = vmatpush.msra.mxu0 %v3178
    %v3180 = vand.u32 %v518, 4294901760
    %v3181 = vsub.f32 %v518, %v3180
    %3182 = vmatpush.msra.mxu0 %v3181
    %v3183 = vand.u32 %v510, 4294901760
    %v3184 = vsub.f32 %v510, %v3183
    %3185 = vmatpush.msra.mxu0 %v3184
    %v3186 = vand.u32 %v502, 4294901760
    %v3187 = vsub.f32 %v502, %v3186
    %3188 = vmatpush.msra.mxu0 %v3187
    %v3189 = vand.u32 %v494, 4294901760
    %v3190 = vsub.f32 %v494, %v3189
    %3191 = vmatpush.msra.mxu0 %v3190
    %v3192 = vand.u32 %v486, 4294901760
    %v3193 = vsub.f32 %v486, %v3192
    %3194 = vmatmul.f32.gmra.mxu0 %v3193
    %v3195 = vpop.f32.mrf.mxu0
    %v3196 = vadd.f32 %v3142, %v3195
    %3197 = vdwg.mxu0
    %v3198 = vand.u32 %v614, 4294901760
    %3199 = vmatpush.msra.mxu0 %v3198
    %v3200 = vand.u32 %v606, 4294901760
    %3201 = vmatpush.msra.mxu0 %v3200
    %v3202 = vand.u32 %v598, 4294901760
    %3203 = vmatpush.msra.mxu0 %v3202
    %v3204 = vand.u32 %v590, 4294901760
    %3205 = vmatpush.msra.mxu0 %v3204
    %v3206 = vand.u32 %v582, 4294901760
    %3207 = vmatpush.msra.mxu0 %v3206
    %v3208 = vand.u32 %v574, 4294901760
    %3209 = vmatpush.msra.mxu0 %v3208
    %v3210 = vand.u32 %v566, 4294901760
    %3211 = vmatpush.msra.mxu0 %v3210
    %v3212 = vand.u32 %v558, 4294901760
    %3213 = vmatpush.msra.mxu0 %v3212
    %v3214 = vand.u32 %v550, 4294901760
    %3215 = vmatpush.msra.mxu0 %v3214
    %v3216 = vand.u32 %v542, 4294901760
    %3217 = vmatpush.msra.mxu0 %v3216
    %v3218 = vand.u32 %v534, 4294901760
    %3219 = vmatpush.msra.mxu0 %v3218
    %v3220 = vand.u32 %v526, 4294901760
    %3221 = vmatpush.msra.mxu0 %v3220
    %v3222 = vand.u32 %v518, 4294901760
    %3223 = vmatpush.msra.mxu0 %v3222
    %v3224 = vand.u32 %v510, 4294901760
    %3225 = vmatpush.msra.mxu0 %v3224
    %v3226 = vand.u32 %v502, 4294901760
    %3227 = vmatpush.msra.mxu0 %v3226
    %v3228 = vand.u32 %v494, 4294901760
    %3229 = vmatpush.msra.mxu0 %v3228
    %v3230 = vand.u32 %v486, 4294901760
    %v3231 = vsub.f32 %v486, %v3230
    %v3232 = vand.u32 %v3231, 4294901760
    %3233 = vmatmul.f32.gmra.mxu0 %v3232
    %v3234 = vpop.f32.mrf.mxu0
    %v3235 = vadd.f32 %v3196, %v3234
    %3236 = vdwg.mxu0
    %v3237 = vand.u32 %v614, 4294901760
    %v3238 = vsub.f32 %v614, %v3237
    %v3239 = vand.u32 %v3238, 4294901760
    %3240 = vmatpush.msra.mxu0 %v3239
    %v3241 = vand.u32 %v606, 4294901760
    %v3242 = vsub.f32 %v606, %v3241
    %v3243 = vand.u32 %v3242, 4294901760
    %3244 = vmatpush.msra.mxu0 %v3243
    %v3245 = vand.u32 %v598, 4294901760
    %v3246 = vsub.f32 %v598, %v3245
    %v3247 = vand.u32 %v3246, 4294901760
    %3248 = vmatpush.msra.mxu0 %v3247
    %v3249 = vand.u32 %v590, 4294901760
    %v3250 = vsub.f32 %v590, %v3249
    %v3251 = vand.u32 %v3250, 4294901760
    %3252 = vmatpush.msra.mxu0 %v3251
    %v3253 = vand.u32 %v582, 4294901760
    %v3254 = vsub.f32 %v582, %v3253
    %v3255 = vand.u32 %v3254, 4294901760
    %3256 = vmatpush.msra.mxu0 %v3255
    %v3257 = vand.u32 %v574, 4294901760
    %v3258 = vsub.f32 %v574, %v3257
    %v3259 = vand.u32 %v3258, 4294901760
    %3260 = vmatpush.msra.mxu0 %v3259
    %v3261 = vand.u32 %v566, 4294901760
    %v3262 = vsub.f32 %v566, %v3261
    %v3263 = vand.u32 %v3262, 4294901760
    %3264 = vmatpush.msra.mxu0 %v3263
    %v3265 = vand.u32 %v558, 4294901760
    %v3266 = vsub.f32 %v558, %v3265
    %v3267 = vand.u32 %v3266, 4294901760
    %3268 = vmatpush.msra.mxu0 %v3267
    %v3269 = vand.u32 %v550, 4294901760
    %v3270 = vsub.f32 %v550, %v3269
    %v3271 = vand.u32 %v3270, 4294901760
    %3272 = vmatpush.msra.mxu0 %v3271
    %v3273 = vand.u32 %v542, 4294901760
    %v3274 = vsub.f32 %v542, %v3273
    %v3275 = vand.u32 %v3274, 4294901760
    %3276 = vmatpush.msra.mxu0 %v3275
    %v3277 = vand.u32 %v534, 4294901760
    %v3278 = vsub.f32 %v534, %v3277
    %v3279 = vand.u32 %v3278, 4294901760
    %3280 = vmatpush.msra.mxu0 %v3279
    %v3281 = vand.u32 %v526, 4294901760
    %v3282 = vsub.f32 %v526, %v3281
    %v3283 = vand.u32 %v3282, 4294901760
    %3284 = vmatpush.msra.mxu0 %v3283
    %v3285 = vand.u32 %v518, 4294901760
    %v3286 = vsub.f32 %v518, %v3285
    %v3287 = vand.u32 %v3286, 4294901760
    %3288 = vmatpush.msra.mxu0 %v3287
    %v3289 = vand.u32 %v510, 4294901760
    %v3290 = vsub.f32 %v510, %v3289
    %v3291 = vand.u32 %v3290, 4294901760
    %3292 = vmatpush.msra.mxu0 %v3291
    %v3293 = vand.u32 %v502, 4294901760
    %v3294 = vsub.f32 %v502, %v3293
    %v3295 = vand.u32 %v3294, 4294901760
    %3296 = vmatpush.msra.mxu0 %v3295
    %v3297 = vand.u32 %v494, 4294901760
    %v3298 = vsub.f32 %v494, %v3297
    %v3299 = vand.u32 %v3298, 4294901760
    %3300 = vmatpush.msra.mxu0 %v3299
    %v3301 = vand.u32 %v486, 4294901760
    %3302 = vmatmul.f32.gmra.mxu0 %v3301
    %v3303 = vpop.f32.mrf.mxu0
    %v3304 = vadd.f32 %v3235, %v3303
    %3305 = vdwg.mxu0
    %v3306 = vand.u32 %v614, 4294901760
    %3307 = vmatpush.msra.mxu0 %v3306
    %v3308 = vand.u32 %v606, 4294901760
    %3309 = vmatpush.msra.mxu0 %v3308
    %v3310 = vand.u32 %v598, 4294901760
    %3311 = vmatpush.msra.mxu0 %v3310
    %v3312 = vand.u32 %v590, 4294901760
    %3313 = vmatpush.msra.mxu0 %v3312
    %v3314 = vand.u32 %v582, 4294901760
    %3315 = vmatpush.msra.mxu0 %v3314
    %v3316 = vand.u32 %v574, 4294901760
    %3317 = vmatpush.msra.mxu0 %v3316
    %v3318 = vand.u32 %v566, 4294901760
    %3319 = vmatpush.msra.mxu0 %v3318
    %v3320 = vand.u32 %v558, 4294901760
    %3321 = vmatpush.msra.mxu0 %v3320
    %v3322 = vand.u32 %v550, 4294901760
    %3323 = vmatpush.msra.mxu0 %v3322
    %v3324 = vand.u32 %v542, 4294901760
    %3325 = vmatpush.msra.mxu0 %v3324
    %v3326 = vand.u32 %v534, 4294901760
    %3327 = vmatpush.msra.mxu0 %v3326
    %v3328 = vand.u32 %v526, 4294901760
    %3329 = vmatpush.msra.mxu0 %v3328
    %v3330 = vand.u32 %v518, 4294901760
    %3331 = vmatpush.msra.mxu0 %v3330
    %v3332 = vand.u32 %v510, 4294901760
    %3333 = vmatpush.msra.mxu0 %v3332
    %v3334 = vand.u32 %v502, 4294901760
    %3335 = vmatpush.msra.mxu0 %v3334
    %v3336 = vand.u32 %v494, 4294901760
    %3337 = vmatpush.msra.mxu0 %v3336
    %v3338 = vand.u32 %v486, 4294901760
    %3339 = vmatmul.f32.gmra.mxu0 %v3338
    %v3340 = vpop.f32.mrf.mxu0
    %v3341 = vadd.f32 %v3304, %v3340
    %3342 = vdwg.mxu0
    %v3343 = vmul.f32 %v954, 0.01
    %v3344 = vmul.f32 %v1295, 0.01
    %v3345 = vmul.f32 %v1636, 0.01
    %v3346 = vmul.f32 %v1977, 0.01
    %v3347 = vmul.f32 %v2318, 0.01
    %v3348 = vmul.f32 %v2659, 0.01
    %v3349 = vmul.f32 %v3000, 0.01
    %v3350 = vmul.f32 %v3341, 0.01
    %v3351 = vmax.f32 %v954, %v3343
    %v3352 = vmax.f32 %v1295, %v3344
    %v3353 = vmax.f32 %v1636, %v3345
    %v3354 = vmax.f32 %v1977, %v3346
    %v3355 = vmax.f32 %v2318, %v3347
    %v3356 = vmax.f32 %v2659, %v3348
    %v3357 = vmax.f32 %v3000, %v3349
    %v3358 = vmax.f32 %v3341, %v3350
    %v3359 = vld [vmem:[%s4] sm:$0xff]
    %v3361 = vperm.slane %v3359, 0
    %v3362 = vperm.slane %v3359, 1
    %v3363 = vperm.slane %v3359, 2
    %v3364 = vperm.slane %v3359, 3
    %v3365 = vperm.slane %v3359, 4
    %v3366 = vperm.slane %v3359, 5
    %v3367 = vperm.slane %v3359, 6
    %v3368 = vperm.slane %v3359, 7
    %v3377 = vmul.f32 %v3351, %v3361
    %v3378 = vmul.f32 %v3352, %v3362
    %v3379 = vmul.f32 %v3353, %v3363
    %v3380 = vmul.f32 %v3354, %v3364
    %v3381 = vmul.f32 %v3355, %v3365
    %v3382 = vmul.f32 %v3356, %v3366
    %v3383 = vmul.f32 %v3357, %v3367
    %v3384 = vmul.f32 %v3358, %v3368
    %v3385 = vadd.f32 %v3377, %v3378
    %v3386 = vadd.f32 %v3379, %v3380
    %v3387 = vadd.f32 %v3381, %v3382
    %v3388 = vadd.f32 %v3383, %v3384
    %v3389 = vadd.f32 %v3385, %v3386
    %v3390 = vadd.f32 %v3387, %v3388
    %v3391 = vadd.f32 %v3389, %v3390
    %v3392 = vmul.f32 %v3391, 0.0001
    %v3393 = vmax.f32 %v3391, %v3392
    %v3394 = vrot.slane %v3393, 4
    %v3395 = vadd.f32 %v3393, %v3394
    %v3396 = vrot.slane %v3395, 2
    %v3397 = vadd.f32 %v3395, %v3396
    %v3398 = vrot.slane %v3397, 1
    %v3399 = vadd.f32 %v3397, %v3398
    %v3400 = vmul.f32 %v3399, %v449
    %v3401 = vsub.f32 %v3393, %v3400
    %v3402 = vmul.f32 %v3401, %v3401
    %v3403 = vrot.slane %v3402, 4
    %v3404 = vadd.f32 %v3402, %v3403
    %v3405 = vrot.slane %v3404, 2
    %v3406 = vadd.f32 %v3404, %v3405
    %v3407 = vrot.slane %v3406, 1
    %v3408 = vadd.f32 %v3406, %v3407
    %v3409 = vmul.f32 %v3408, %v449
    %v3410 = vadd.f32 %v3409, 1e-05
    %v3411 = vrsqrt.pop %v3410
    %v3412 = vmul.f32 %v3411, %v3410
    %v3413 = vmul.f32 %v3412, %v3411
    %v3414 = vmul.f32 0.5, %v3413
    %v3415 = vsub.f32 1.5, %v3414
    %v3416 = vmul.f32 %v3411, %v3415
    %vm3417 = vweird.f32 %v3410
    %vm3418 = vweird.f32 %v3411
    %vm3419 = vmor %vm3417, %vm3418
    %v3420 = vsel %vm3419, %v3411, %v3416
    %v3421 = vmul.f32 %v3401, %v3420
    %v3422 = vmul.f32 %v3421, %v3421
    %3423 = vadd.xlane.f32.xlu0 %v3422
    %v3424 = vpop.xlane.xlu0 %3423
    %v3425 = vmax.f32 %v3424, 1e-24
    %v3426 = vrsqrt.pop %v3425
    %v3427 = vmul.f32 %v3426, %v3425
    %v3428 = vmul.f32 %v3427, %v3426
    %v3429 = vmul.f32 0.5, %v3428
    %v3430 = vsub.f32 1.5, %v3429
    %v3431 = vmul.f32 %v3426, %v3430
    %vm3432 = vweird.f32 %v3425
    %vm3433 = vweird.f32 %v3426
    %vm3434 = vmor %vm3432, %vm3433
    %v3435 = vsel %vm3434, %v3426, %v3431
    %v3436 = vmul.f32 %v3421, %v3435
    %s3437 = scalar_lea.vmem [#allocation4], 1024
    %v3438 = vld [vmem:[%s3437] sm:$0xff]
    %v3439 = vld [vmem:[%s3437 + $0x8] sm:$0xff]
    %v3440 = vld [vmem:[%s3437 + $0x10] sm:$0xff]
    %v3441 = vld [vmem:[%s3437 + $0x18] sm:$0xff]
    %v3442 = vld [vmem:[%s3437 + $0x20] sm:$0xff]
    %v3443 = vld [vmem:[%s3437 + $0x28] sm:$0xff]
    %v3444 = vld [vmem:[%s3437 + $0x30] sm:$0xff]
    %v3445 = vld [vmem:[%s3437 + $0x38] sm:$0xff]
    %v3446 = vld [vmem:[%s3437 + $0x40] sm:$0xff]
    %v3447 = vld [vmem:[%s3437 + $0x48] sm:$0xff]
    %v3448 = vld [vmem:[%s3437 + $0x50] sm:$0xff]
    %v3449 = vld [vmem:[%s3437 + $0x58] sm:$0xff]
    %v3450 = vld [vmem:[%s3437 + $0x60] sm:$0xff]
    %v3451 = vld [vmem:[%s3437 + $0x68] sm:$0xff]
    %v3452 = vld [vmem:[%s3437 + $0x70] sm:$0xff]
    %v3453 = vld [vmem:[%s3437 + $0x78] sm:$0xff]
    %v3454 = vld [vmem:[%s3437 + $0x80] sm:$0xff]
    %v3455 = vld [vmem:[%s3437 + $0x88] sm:$0xff]
    %v3456 = vld [vmem:[%s3437 + $0x90] sm:$0xff]
    %v3457 = vld [vmem:[%s3437 + $0x98] sm:$0xff]
    %v3458 = vld [vmem:[%s3437 + $0xa0] sm:$0xff]
    %v3459 = vld [vmem:[%s3437 + $0xa8] sm:$0xff]
    %v3460 = vld [vmem:[%s3437 + $0xb0] sm:$0xff]
    %v3461 = vld [vmem:[%s3437 + $0xb8] sm:$0xff]
    %v3462 = vld [vmem:[%s3437 + $0xc0] sm:$0xff]
    %v3463 = vld [vmem:[%s3437 + $0xc8] sm:$0xff]
    %v3464 = vld [vmem:[%s3437 + $0xd0] sm:$0xff]
    %v3465 = vld [vmem:[%s3437 + $0xd8] sm:$0xff]
    %v3466 = vld [vmem:[%s3437 + $0xe0] sm:$0xff]
    %v3467 = vld [vmem:[%s3437 + $0xe8] sm:$0xff]
    %v3468 = vld [vmem:[%s3437 + $0xf0] sm:$0xff]
    %v3469 = vld [vmem:[%s3437 + $0xf8] sm:$0xff]
    %v3470 = vld [vmem:[%s3437 + $0x100] sm:$0xff]
    %v3471 = vld [vmem:[%s3437 + $0x108] sm:$0xff]
    %v3472 = vld [vmem:[%s3437 + $0x110] sm:$0xff]
    %v3473 = vld [vmem:[%s3437 + $0x118] sm:$0xff]
    %v3474 = vld [vmem:[%s3437 + $0x120] sm:$0xff]
    %v3475 = vld [vmem:[%s3437 + $0x128] sm:$0xff]
    %v3476 = vld [vmem:[%s3437 + $0x130] sm:$0xff]
    %v3477 = vld [vmem:[%s3437 + $0x138] sm:$0xff]
    %v3478 = vld [vmem:[%s3437 + $0x140] sm:$0xff]
    %v3479 = vld [vmem:[%s3437 + $0x148] sm:$0xff]
    %v3480 = vld [vmem:[%s3437 + $0x150] sm:$0xff]
    %v3481 = vld [vmem:[%s3437 + $0x158] sm:$0xff]
    %v3482 = vld [vmem:[%s3437 + $0x160] sm:$0xff]
    %v3483 = vld [vmem:[%s3437 + $0x168] sm:$0xff]
    %v3484 = vld [vmem:[%s3437 + $0x170] sm:$0xff]
    %v3485 = vld [vmem:[%s3437 + $0x178] sm:$0xff]
    %v3486 = vld [vmem:[%s3437 + $0x180] sm:$0xff]
    %v3487 = vld [vmem:[%s3437 + $0x188] sm:$0xff]
    %v3488 = vld [vmem:[%s3437 + $0x190] sm:$0xff]
    %v3489 = vld [vmem:[%s3437 + $0x198] sm:$0xff]
    %v3490 = vld [vmem:[%s3437 + $0x1a0] sm:$0xff]
    %v3491 = vld [vmem:[%s3437 + $0x1a8] sm:$0xff]
    %v3492 = vld [vmem:[%s3437 + $0x1b0] sm:$0xff]
    %v3493 = vld [vmem:[%s3437 + $0x1b8] sm:$0xff]
    %v3494 = vld [vmem:[%s3437 + $0x1c0] sm:$0xff]
    %v3495 = vld [vmem:[%s3437 + $0x1c8] sm:$0xff]
    %v3496 = vld [vmem:[%s3437 + $0x1d0] sm:$0xff]
    %v3497 = vld [vmem:[%s3437 + $0x1d8] sm:$0xff]
    %v3498 = vld [vmem:[%s3437 + $0x1e0] sm:$0xff]
    %v3499 = vld [vmem:[%s3437 + $0x1e8] sm:$0xff]
    %v3500 = vld [vmem:[%s3437 + $0x1f0] sm:$0xff]
    %v3501 = vld [vmem:[%s3437 + $0x1f8] sm:$0xff]
    %v3502 = vld [vmem:[%s3437 + $0x200] sm:$0xff]
    %v3503 = vld [vmem:[%s3437 + $0x208] sm:$0xff]
    %v3504 = vld [vmem:[%s3437 + $0x210] sm:$0xff]
    %v3505 = vld [vmem:[%s3437 + $0x218] sm:$0xff]
    %v3506 = vld [vmem:[%s3437 + $0x220] sm:$0xff]
    %v3507 = vld [vmem:[%s3437 + $0x228] sm:$0xff]
    %v3508 = vld [vmem:[%s3437 + $0x230] sm:$0xff]
    %v3509 = vld [vmem:[%s3437 + $0x238] sm:$0xff]
    %v3510 = vld [vmem:[%s3437 + $0x240] sm:$0xff]
    %v3511 = vld [vmem:[%s3437 + $0x248] sm:$0xff]
    %v3512 = vld [vmem:[%s3437 + $0x250] sm:$0xff]
    %v3513 = vld [vmem:[%s3437 + $0x258] sm:$0xff]
    %v3514 = vld [vmem:[%s3437 + $0x260] sm:$0xff]
    %v3515 = vld [vmem:[%s3437 + $0x268] sm:$0xff]
    %v3516 = vld [vmem:[%s3437 + $0x270] sm:$0xff]
    %v3517 = vld [vmem:[%s3437 + $0x278] sm:$0xff]
    %v3518 = vld [vmem:[%s3437 + $0x280] sm:$0xff]
    %v3519 = vld [vmem:[%s3437 + $0x288] sm:$0xff]
    %v3520 = vld [vmem:[%s3437 + $0x290] sm:$0xff]
    %v3521 = vld [vmem:[%s3437 + $0x298] sm:$0xff]
    %v3522 = vld [vmem:[%s3437 + $0x2a0] sm:$0xff]
    %v3523 = vld [vmem:[%s3437 + $0x2a8] sm:$0xff]
    %v3524 = vld [vmem:[%s3437 + $0x2b0] sm:$0xff]
    %v3525 = vld [vmem:[%s3437 + $0x2b8] sm:$0xff]
    %v3526 = vld [vmem:[%s3437 + $0x2c0] sm:$0xff]
    %v3527 = vld [vmem:[%s3437 + $0x2c8] sm:$0xff]
    %v3528 = vld [vmem:[%s3437 + $0x2d0] sm:$0xff]
    %v3529 = vld [vmem:[%s3437 + $0x2d8] sm:$0xff]
    %v3530 = vld [vmem:[%s3437 + $0x2e0] sm:$0xff]
    %v3531 = vld [vmem:[%s3437 + $0x2e8] sm:$0xff]
    %v3532 = vld [vmem:[%s3437 + $0x2f0] sm:$0xff]
    %v3533 = vld [vmem:[%s3437 + $0x2f8] sm:$0xff]
    %v3534 = vld [vmem:[%s3437 + $0x300] sm:$0xff]
    %v3535 = vld [vmem:[%s3437 + $0x308] sm:$0xff]
    %v3536 = vld [vmem:[%s3437 + $0x310] sm:$0xff]
    %v3537 = vld [vmem:[%s3437 + $0x318] sm:$0xff]
    %v3538 = vld [vmem:[%s3437 + $0x320] sm:$0xff]
    %v3539 = vld [vmem:[%s3437 + $0x328] sm:$0xff]
    %v3540 = vld [vmem:[%s3437 + $0x330] sm:$0xff]
    %v3541 = vld [vmem:[%s3437 + $0x338] sm:$0xff]
    %v3542 = vld [vmem:[%s3437 + $0x340] sm:$0xff]
    %v3543 = vld [vmem:[%s3437 + $0x348] sm:$0xff]
    %v3544 = vld [vmem:[%s3437 + $0x350] sm:$0xff]
    %v3545 = vld [vmem:[%s3437 + $0x358] sm:$0xff]
    %v3546 = vld [vmem:[%s3437 + $0x360] sm:$0xff]
    %v3547 = vld [vmem:[%s3437 + $0x368] sm:$0xff]
    %v3548 = vld [vmem:[%s3437 + $0x370] sm:$0xff]
    %v3549 = vld [vmem:[%s3437 + $0x378] sm:$0xff]
    %v3550 = vld [vmem:[%s3437 + $0x380] sm:$0xff]
    %v3551 = vld [vmem:[%s3437 + $0x388] sm:$0xff]
    %v3552 = vld [vmem:[%s3437 + $0x390] sm:$0xff]
    %v3553 = vld [vmem:[%s3437 + $0x398] sm:$0xff]
    %v3554 = vld [vmem:[%s3437 + $0x3a0] sm:$0xff]
    %v3555 = vld [vmem:[%s3437 + $0x3a8] sm:$0xff]
    %v3556 = vld [vmem:[%s3437 + $0x3b0] sm:$0xff]
    %v3557 = vld [vmem:[%s3437 + $0x3b8] sm:$0xff]
    %v3558 = vld [vmem:[%s3437 + $0x3c0] sm:$0xff]
    %v3559 = vld [vmem:[%s3437 + $0x3c8] sm:$0xff]
    %v3560 = vld [vmem:[%s3437 + $0x3d0] sm:$0xff]
    %v3561 = vld [vmem:[%s3437 + $0x3d8] sm:$0xff]
    %v3562 = vld [vmem:[%s3437 + $0x3e0] sm:$0xff]
    %v3563 = vld [vmem:[%s3437 + $0x3e8] sm:$0xff]
    %v3564 = vld [vmem:[%s3437 + $0x3f0] sm:$0xff]
    %v3565 = vld [vmem:[%s3437 + $0x3f8] sm:$0xff]
    %v3566 = vand.u32 %v3558, 4294901760
    %3567 = vmatpush.msra.mxu0 %v3566
    %v3568 = vand.u32 %v3550, 4294901760
    %3569 = vmatpush.msra.mxu0 %v3568
    %v3570 = vand.u32 %v3542, 4294901760
    %3571 = vmatpush.msra.mxu0 %v3570
    %v3572 = vand.u32 %v3534, 4294901760
    %3573 = vmatpush.msra.mxu0 %v3572
    %v3574 = vand.u32 %v3526, 4294901760
    %3575 = vmatpush.msra.mxu0 %v3574
    %v3576 = vand.u32 %v3518, 4294901760
    %3577 = vmatpush.msra.mxu0 %v3576
    %v3578 = vand.u32 %v3510, 4294901760
    %3579 = vmatpush.msra.mxu0 %v3578
    %v3580 = vand.u32 %v3502, 4294901760
    %3581 = vmatpush.msra.mxu0 %v3580
    %v3582 = vand.u32 %v3494, 4294901760
    %3583 = vmatpush.msra.mxu0 %v3582
    %v3584 = vand.u32 %v3486, 4294901760
    %3585 = vmatpush.msra.mxu0 %v3584
    %v3586 = vand.u32 %v3478, 4294901760
    %3587 = vmatpush.msra.mxu0 %v3586
    %v3588 = vand.u32 %v3470, 4294901760
    %3589 = vmatpush.msra.mxu0 %v3588
    %v3590 = vand.u32 %v3462, 4294901760
    %3591 = vmatpush.msra.mxu0 %v3590
    %v3592 = vand.u32 %v3454, 4294901760
    %3593 = vmatpush.msra.mxu0 %v3592
    %v3594 = vand.u32 %v3446, 4294901760
    %3595 = vmatpush.msra.mxu0 %v3594
    %v3596 = vand.u32 %v3438, 4294901760
    %3597 = vmatpush.msra.mxu0 %v3596
    %v3598 = vand.u32 %v3436, 4294901760
    %v3599 = vsub.f32 %v3436, %v3598
    %v3600 = vand.u32 %v3599, 4294901760
    %v3601 = vsub.f32 %v3599, %v3600
    %v3602 = vand.u32 %v3601, 4294901760
    %3603 = vmatmul.f32.gmra.mxu0 %v3602
    %v3604 = vpop.f32.mrf.mxu0
    %v3605 = vadd.f32 0.0, %v3604
    %3606 = vdwg.mxu0
    %v3607 = vand.u32 %v3558, 4294901760
    %v3608 = vsub.f32 %v3558, %v3607
    %v3609 = vand.u32 %v3608, 4294901760
    %v3610 = vsub.f32 %v3608, %v3609
    %v3611 = vand.u32 %v3610, 4294901760
    %3612 = vmatpush.msra.mxu0 %v3611
    %v3613 = vand.u32 %v3550, 4294901760
    %v3614 = vsub.f32 %v3550, %v3613
    %v3615 = vand.u32 %v3614, 4294901760
    %v3616 = vsub.f32 %v3614, %v3615
    %v3617 = vand.u32 %v3616, 4294901760
    %3618 = vmatpush.msra.mxu0 %v3617
    %v3619 = vand.u32 %v3542, 4294901760
    %v3620 = vsub.f32 %v3542, %v3619
    %v3621 = vand.u32 %v3620, 4294901760
    %v3622 = vsub.f32 %v3620, %v3621
    %v3623 = vand.u32 %v3622, 4294901760
    %3624 = vmatpush.msra.mxu0 %v3623
    %v3625 = vand.u32 %v3534, 4294901760
    %v3626 = vsub.f32 %v3534, %v3625
    %v3627 = vand.u32 %v3626, 4294901760
    %v3628 = vsub.f32 %v3626, %v3627
    %v3629 = vand.u32 %v3628, 4294901760
    %3630 = vmatpush.msra.mxu0 %v3629
    %v3631 = vand.u32 %v3526, 4294901760
    %v3632 = vsub.f32 %v3526, %v3631
    %v3633 = vand.u32 %v3632, 4294901760
    %v3634 = vsub.f32 %v3632, %v3633
    %v3635 = vand.u32 %v3634, 4294901760
    %3636 = vmatpush.msra.mxu0 %v3635
    %v3637 = vand.u32 %v3518, 4294901760
    %v3638 = vsub.f32 %v3518, %v3637
    %v3639 = vand.u32 %v3638, 4294901760
    %v3640 = vsub.f32 %v3638, %v3639
    %v3641 = vand.u32 %v3640, 4294901760
    %3642 = vmatpush.msra.mxu0 %v3641
    %v3643 = vand.u32 %v3510, 4294901760
    %v3644 = vsub.f32 %v3510, %v3643
    %v3645 = vand.u32 %v3644, 4294901760
    %v3646 = vsub.f32 %v3644, %v3645
    %v3647 = vand.u32 %v3646, 4294901760
    %3648 = vmatpush.msra.mxu0 %v3647
    %v3649 = vand.u32 %v3502, 4294901760
    %v3650 = vsub.f32 %v3502, %v3649
    %v3651 = vand.u32 %v3650, 4294901760
    %v3652 = vsub.f32 %v3650, %v3651
    %v3653 = vand.u32 %v3652, 4294901760
    %3654 = vmatpush.msra.mxu0 %v3653
    %v3655 = vand.u32 %v3494, 4294901760
    %v3656 = vsub.f32 %v3494, %v3655
    %v3657 = vand.u32 %v3656, 4294901760
    %v3658 = vsub.f32 %v3656, %v3657
    %v3659 = vand.u32 %v3658, 4294901760
    %3660 = vmatpush.msra.mxu0 %v3659
    %v3661 = vand.u32 %v3486, 4294901760
    %v3662 = vsub.f32 %v3486, %v3661
    %v3663 = vand.u32 %v3662, 4294901760
    %v3664 = vsub.f32 %v3662, %v3663
    %v3665 = vand.u32 %v3664, 4294901760
    %3666 = vmatpush.msra.mxu0 %v3665
    %v3667 = vand.u32 %v3478, 4294901760
    %v3668 = vsub.f32 %v3478, %v3667
    %v3669 = vand.u32 %v3668, 4294901760
    %v3670 = vsub.f32 %v3668, %v3669
    %v3671 = vand.u32 %v3670, 4294901760
    %3672 = vmatpush.msra.mxu0 %v3671
    %v3673 = vand.u32 %v3470, 4294901760
    %v3674 = vsub.f32 %v3470, %v3673
    %v3675 = vand.u32 %v3674, 4294901760
    %v3676 = vsub.f32 %v3674, %v3675
    %v3677 = vand.u32 %v3676, 4294901760
    %3678 = vmatpush.msra.mxu0 %v3677
    %v3679 = vand.u32 %v3462, 4294901760
    %v3680 = vsub.f32 %v3462, %v3679
    %v3681 = vand.u32 %v3680, 4294901760
    %v3682 = vsub.f32 %v3680, %v3681
    %v3683 = vand.u32 %v3682, 4294901760
    %3684 = vmatpush.msra.mxu0 %v3683
    %v3685 = vand.u32 %v3454, 4294901760
    %v3686 = vsub.f32 %v3454, %v3685
    %v3687 = vand.u32 %v3686, 4294901760
    %v3688 = vsub.f32 %v3686, %v3687
    %v3689 = vand.u32 %v3688, 4294901760
    %3690 = vmatpush.msra.mxu0 %v3689
    %v3691 = vand.u32 %v3446, 4294901760
    %v3692 = vsub.f32 %v3446, %v3691
    %v3693 = vand.u32 %v3692, 4294901760
    %v3694 = vsub.f32 %v3692, %v3693
    %v3695 = vand.u32 %v3694, 4294901760
    %3696 = vmatpush.msra.mxu0 %v3695
    %v3697 = vand.u32 %v3438, 4294901760
    %v3698 = vsub.f32 %v3438, %v3697
    %v3699 = vand.u32 %v3698, 4294901760
    %v3700 = vsub.f32 %v3698, %v3699
    %v3701 = vand.u32 %v3700, 4294901760
    %3702 = vmatpush.msra.mxu0 %v3701
    %v3703 = vand.u32 %v3436, 4294901760
    %3704 = vmatmul.f32.gmra.mxu0 %v3703
    %v3705 = vpop.f32.mrf.mxu0
    %v3706 = vadd.f32 %v3605, %v3705
    %3707 = vdwg.mxu0
    %v3708 = vand.u32 %v3558, 4294901760
    %v3709 = vsub.f32 %v3558, %v3708
    %3710 = vmatpush.msra.mxu0 %v3709
    %v3711 = vand.u32 %v3550, 4294901760
    %v3712 = vsub.f32 %v3550, %v3711
    %3713 = vmatpush.msra.mxu0 %v3712
    %v3714 = vand.u32 %v3542, 4294901760
    %v3715 = vsub.f32 %v3542, %v3714
    %3716 = vmatpush.msra.mxu0 %v3715
    %v3717 = vand.u32 %v3534, 4294901760
    %v3718 = vsub.f32 %v3534, %v3717
    %3719 = vmatpush.msra.mxu0 %v3718
    %v3720 = vand.u32 %v3526, 4294901760
    %v3721 = vsub.f32 %v3526, %v3720
    %3722 = vmatpush.msra.mxu0 %v3721
    %v3723 = vand.u32 %v3518, 4294901760
    %v3724 = vsub.f32 %v3518, %v3723
    %3725 = vmatpush.msra.mxu0 %v3724
    %v3726 = vand.u32 %v3510, 4294901760
    %v3727 = vsub.f32 %v3510, %v3726
    %3728 = vmatpush.msra.mxu0 %v3727
    %v3729 = vand.u32 %v3502, 4294901760
    %v3730 = vsub.f32 %v3502, %v3729
    %3731 = vmatpush.msra.mxu0 %v3730
    %v3732 = vand.u32 %v3494, 4294901760
    %v3733 = vsub.f32 %v3494, %v3732
    %3734 = vmatpush.msra.mxu0 %v3733
    %v3735 = vand.u32 %v3486, 4294901760
    %v3736 = vsub.f32 %v3486, %v3735
    %3737 = vmatpush.msra.mxu0 %v3736
    %v3738 = vand.u32 %v3478, 4294901760
    %v3739 = vsub.f32 %v3478, %v3738
    %3740 = vmatpush.msra.mxu0 %v3739
    %v3741 = vand.u32 %v3470, 4294901760
    %v3742 = vsub.f32 %v3470, %v3741
    %3743 = vmatpush.msra.mxu0 %v3742
    %v3744 = vand.u32 %v3462, 4294901760
    %v3745 = vsub.f32 %v3462, %v3744
    %3746 = vmatpush.msra.mxu0 %v3745
    %v3747 = vand.u32 %v3454, 4294901760
    %v3748 = vsub.f32 %v3454, %v3747
    %3749 = vmatpush.msra.mxu0 %v3748
    %v3750 = vand.u32 %v3446, 4294901760
    %v3751 = vsub.f32 %v3446, %v3750
    %3752 = vmatpush.msra.mxu0 %v3751
    %v3753 = vand.u32 %v3438, 4294901760
    %v3754 = vsub.f32 %v3438, %v3753
    %3755 = vmatpush.msra.mxu0 %v3754
    %v3756 = vand.u32 %v3436, 4294901760
    %v3757 = vsub.f32 %v3436, %v3756
    %3758 = vmatmul.f32.gmra.mxu0 %v3757
    %v3759 = vpop.f32.mrf.mxu0
    %v3760 = vadd.f32 %v3706, %v3759
    %3761 = vdwg.mxu0
    %v3762 = vand.u32 %v3558, 4294901760
    %3763 = vmatpush.msra.mxu0 %v3762
    %v3764 = vand.u32 %v3550, 4294901760
    %3765 = vmatpush.msra.mxu0 %v3764
    %v3766 = vand.u32 %v3542, 4294901760
    %3767 = vmatpush.msra.mxu0 %v3766
    %v3768 = vand.u32 %v3534, 4294901760
    %3769 = vmatpush.msra.mxu0 %v3768
    %v3770 = vand.u32 %v3526, 4294901760
    %3771 = vmatpush.msra.mxu0 %v3770
    %v3772 = vand.u32 %v3518, 4294901760
    %3773 = vmatpush.msra.mxu0 %v3772
    %v3774 = vand.u32 %v3510, 4294901760
    %3775 = vmatpush.msra.mxu0 %v3774
    %v3776 = vand.u32 %v3502, 4294901760
    %3777 = vmatpush.msra.mxu0 %v3776
    %v3778 = vand.u32 %v3494, 4294901760
    %3779 = vmatpush.msra.mxu0 %v3778
    %v3780 = vand.u32 %v3486, 4294901760
    %3781 = vmatpush.msra.mxu0 %v3780
    %v3782 = vand.u32 %v3478, 4294901760
    %3783 = vmatpush.msra.mxu0 %v3782
    %v3784 = vand.u32 %v3470, 4294901760
    %3785 = vmatpush.msra.mxu0 %v3784
    %v3786 = vand.u32 %v3462, 4294901760
    %3787 = vmatpush.msra.mxu0 %v3786
    %v3788 = vand.u32 %v3454, 4294901760
    %3789 = vmatpush.msra.mxu0 %v3788
    %v3790 = vand.u32 %v3446, 4294901760
    %3791 = vmatpush.msra.mxu0 %v3790
    %v3792 = vand.u32 %v3438, 4294901760
    %3793 = vmatpush.msra.mxu0 %v3792
    %v3794 = vand.u32 %v3436, 4294901760
    %v3795 = vsub.f32 %v3436, %v3794
    %v3796 = vand.u32 %v3795, 4294901760
    %3797 = vmatmul.f32.gmra.mxu0 %v3796
    %v3798 = vpop.f32.mrf.mxu0
    %v3799 = vadd.f32 %v3760, %v3798
    %3800 = vdwg.mxu0
    %v3801 = vand.u32 %v3558, 4294901760
    %v3802 = vsub.f32 %v3558, %v3801
    %v3803 = vand.u32 %v3802, 4294901760
    %3804 = vmatpush.msra.mxu0 %v3803
    %v3805 = vand.u32 %v3550, 4294901760
    %v3806 = vsub.f32 %v3550, %v3805
    %v3807 = vand.u32 %v3806, 4294901760
    %3808 = vmatpush.msra.mxu0 %v3807
    %v3809 = vand.u32 %v3542, 4294901760
    %v3810 = vsub.f32 %v3542, %v3809
    %v3811 = vand.u32 %v3810, 4294901760
    %3812 = vmatpush.msra.mxu0 %v3811
    %v3813 = vand.u32 %v3534, 4294901760
    %v3814 = vsub.f32 %v3534, %v3813
    %v3815 = vand.u32 %v3814, 4294901760
    %3816 = vmatpush.msra.mxu0 %v3815
    %v3817 = vand.u32 %v3526, 4294901760
    %v3818 = vsub.f32 %v3526, %v3817
    %v3819 = vand.u32 %v3818, 4294901760
    %3820 = vmatpush.msra.mxu0 %v3819
    %v3821 = vand.u32 %v3518, 4294901760
    %v3822 = vsub.f32 %v3518, %v3821
    %v3823 = vand.u32 %v3822, 4294901760
    %3824 = vmatpush.msra.mxu0 %v3823
    %v3825 = vand.u32 %v3510, 4294901760
    %v3826 = vsub.f32 %v3510, %v3825
    %v3827 = vand.u32 %v3826, 4294901760
    %3828 = vmatpush.msra.mxu0 %v3827
    %v3829 = vand.u32 %v3502, 4294901760
    %v3830 = vsub.f32 %v3502, %v3829
    %v3831 = vand.u32 %v3830, 4294901760
    %3832 = vmatpush.msra.mxu0 %v3831
    %v3833 = vand.u32 %v3494, 4294901760
    %v3834 = vsub.f32 %v3494, %v3833
    %v3835 = vand.u32 %v3834, 4294901760
    %3836 = vmatpush.msra.mxu0 %v3835
    %v3837 = vand.u32 %v3486, 4294901760
    %v3838 = vsub.f32 %v3486, %v3837
    %v3839 = vand.u32 %v3838, 4294901760
    %3840 = vmatpush.msra.mxu0 %v3839
    %v3841 = vand.u32 %v3478, 4294901760
    %v3842 = vsub.f32 %v3478, %v3841
    %v3843 = vand.u32 %v3842, 4294901760
    %3844 = vmatpush.msra.mxu0 %v3843
    %v3845 = vand.u32 %v3470, 4294901760
    %v3846 = vsub.f32 %v3470, %v3845
    %v3847 = vand.u32 %v3846, 4294901760
    %3848 = vmatpush.msra.mxu0 %v3847
    %v3849 = vand.u32 %v3462, 4294901760
    %v3850 = vsub.f32 %v3462, %v3849
    %v3851 = vand.u32 %v3850, 4294901760
    %3852 = vmatpush.msra.mxu0 %v3851
    %v3853 = vand.u32 %v3454, 4294901760
    %v3854 = vsub.f32 %v3454, %v3853
    %v3855 = vand.u32 %v3854, 4294901760
    %3856 = vmatpush.msra.mxu0 %v3855
    %v3857 = vand.u32 %v3446, 4294901760
    %v3858 = vsub.f32 %v3446, %v3857
    %v3859 = vand.u32 %v3858, 4294901760
    %3860 = vmatpush.msra.mxu0 %v3859
    %v3861 = vand.u32 %v3438, 4294901760
    %v3862 = vsub.f32 %v3438, %v3861
    %v3863 = vand.u32 %v3862, 4294901760
    %3864 = vmatpush.msra.mxu0 %v3863
    %v3865 = vand.u32 %v3436, 4294901760
    %3866 = vmatmul.f32.gmra.mxu0 %v3865
    %v3867 = vpop.f32.mrf.mxu0
    %v3868 = vadd.f32 %v3799, %v3867
    %3869 = vdwg.mxu0
    %v3870 = vand.u32 %v3558, 4294901760
    %3871 = vmatpush.msra.mxu0 %v3870
    %v3872 = vand.u32 %v3550, 4294901760
    %3873 = vmatpush.msra.mxu0 %v3872
    %v3874 = vand.u32 %v3542, 4294901760
    %3875 = vmatpush.msra.mxu0 %v3874
    %v3876 = vand.u32 %v3534, 4294901760
    %3877 = vmatpush.msra.mxu0 %v3876
    %v3878 = vand.u32 %v3526, 4294901760
    %3879 = vmatpush.msra.mxu0 %v3878
    %v3880 = vand.u32 %v3518, 4294901760
    %3881 = vmatpush.msra.mxu0 %v3880
    %v3882 = vand.u32 %v3510, 4294901760
    %3883 = vmatpush.msra.mxu0 %v3882
    %v3884 = vand.u32 %v3502, 4294901760
    %3885 = vmatpush.msra.mxu0 %v3884
    %v3886 = vand.u32 %v3494, 4294901760
    %3887 = vmatpush.msra.mxu0 %v3886
    %v3888 = vand.u32 %v3486, 4294901760
    %3889 = vmatpush.msra.mxu0 %v3888
    %v3890 = vand.u32 %v3478, 4294901760
    %3891 = vmatpush.msra.mxu0 %v3890
    %v3892 = vand.u32 %v3470, 4294901760
    %3893 = vmatpush.msra.mxu0 %v3892
    %v3894 = vand.u32 %v3462, 4294901760
    %3895 = vmatpush.msra.mxu0 %v3894
    %v3896 = vand.u32 %v3454, 4294901760
    %3897 = vmatpush.msra.mxu0 %v3896
    %v3898 = vand.u32 %v3446, 4294901760
    %3899 = vmatpush.msra.mxu0 %v3898
    %v3900 = vand.u32 %v3438, 4294901760
    %3901 = vmatpush.msra.mxu0 %v3900
    %v3902 = vand.u32 %v3436, 4294901760
    %3903 = vmatmul.f32.gmra.mxu0 %v3902
    %v3904 = vpop.f32.mrf.mxu0
    %v3905 = vadd.f32 %v3868, %v3904
    %3906 = vdwg.mxu0
    %v3907 = vand.u32 %v3559, 4294901760
    %3908 = vmatpush.msra.mxu0 %v3907
    %v3909 = vand.u32 %v3551, 4294901760
    %3910 = vmatpush.msra.mxu0 %v3909
    %v3911 = vand.u32 %v3543, 4294901760
    %3912 = vmatpush.msra.mxu0 %v3911
    %v3913 = vand.u32 %v3535, 4294901760
    %3914 = vmatpush.msra.mxu0 %v3913
    %v3915 = vand.u32 %v3527, 4294901760
    %3916 = vmatpush.msra.mxu0 %v3915
    %v3917 = vand.u32 %v3519, 4294901760
    %3918 = vmatpush.msra.mxu0 %v3917
    %v3919 = vand.u32 %v3511, 4294901760
    %3920 = vmatpush.msra.mxu0 %v3919
    %v3921 = vand.u32 %v3503, 4294901760
    %3922 = vmatpush.msra.mxu0 %v3921
    %v3923 = vand.u32 %v3495, 4294901760
    %3924 = vmatpush.msra.mxu0 %v3923
    %v3925 = vand.u32 %v3487, 4294901760
    %3926 = vmatpush.msra.mxu0 %v3925
    %v3927 = vand.u32 %v3479, 4294901760
    %3928 = vmatpush.msra.mxu0 %v3927
    %v3929 = vand.u32 %v3471, 4294901760
    %3930 = vmatpush.msra.mxu0 %v3929
    %v3931 = vand.u32 %v3463, 4294901760
    %3932 = vmatpush.msra.mxu0 %v3931
    %v3933 = vand.u32 %v3455, 4294901760
    %3934 = vmatpush.msra.mxu0 %v3933
    %v3935 = vand.u32 %v3447, 4294901760
    %3936 = vmatpush.msra.mxu0 %v3935
    %v3937 = vand.u32 %v3439, 4294901760
    %3938 = vmatpush.msra.mxu0 %v3937
    %v3939 = vand.u32 %v3436, 4294901760
    %v3940 = vsub.f32 %v3436, %v3939
    %v3941 = vand.u32 %v3940, 4294901760
    %v3942 = vsub.f32 %v3940, %v3941
    %v3943 = vand.u32 %v3942, 4294901760
    %3944 = vmatmul.f32.gmra.mxu0 %v3943
    %v3945 = vpop.f32.mrf.mxu0
    %v3946 = vadd.f32 0.0, %v3945
    %3947 = vdwg.mxu0
    %v3948 = vand.u32 %v3559, 4294901760
    %v3949 = vsub.f32 %v3559, %v3948
    %v3950 = vand.u32 %v3949, 4294901760
    %v3951 = vsub.f32 %v3949, %v3950
    %v3952 = vand.u32 %v3951, 4294901760
    %3953 = vmatpush.msra.mxu0 %v3952
    %v3954 = vand.u32 %v3551, 4294901760
    %v3955 = vsub.f32 %v3551, %v3954
    %v3956 = vand.u32 %v3955, 4294901760
    %v3957 = vsub.f32 %v3955, %v3956
    %v3958 = vand.u32 %v3957, 4294901760
    %3959 = vmatpush.msra.mxu0 %v3958
    %v3960 = vand.u32 %v3543, 4294901760
    %v3961 = vsub.f32 %v3543, %v3960
    %v3962 = vand.u32 %v3961, 4294901760
    %v3963 = vsub.f32 %v3961, %v3962
    %v3964 = vand.u32 %v3963, 4294901760
    %3965 = vmatpush.msra.mxu0 %v3964
    %v3966 = vand.u32 %v3535, 4294901760
    %v3967 = vsub.f32 %v3535, %v3966
    %v3968 = vand.u32 %v3967, 4294901760
    %v3969 = vsub.f32 %v3967, %v3968
    %v3970 = vand.u32 %v3969, 4294901760
    %3971 = vmatpush.msra.mxu0 %v3970
    %v3972 = vand.u32 %v3527, 4294901760
    %v3973 = vsub.f32 %v3527, %v3972
    %v3974 = vand.u32 %v3973, 4294901760
    %v3975 = vsub.f32 %v3973, %v3974
    %v3976 = vand.u32 %v3975, 4294901760
    %3977 = vmatpush.msra.mxu0 %v3976
    %v3978 = vand.u32 %v3519, 4294901760
    %v3979 = vsub.f32 %v3519, %v3978
    %v3980 = vand.u32 %v3979, 4294901760
    %v3981 = vsub.f32 %v3979, %v3980
    %v3982 = vand.u32 %v3981, 4294901760
    %3983 = vmatpush.msra.mxu0 %v3982
    %v3984 = vand.u32 %v3511, 4294901760
    %v3985 = vsub.f32 %v3511, %v3984
    %v3986 = vand.u32 %v3985, 4294901760
    %v3987 = vsub.f32 %v3985, %v3986
    %v3988 = vand.u32 %v3987, 4294901760
    %3989 = vmatpush.msra.mxu0 %v3988
    %v3990 = vand.u32 %v3503, 4294901760
    %v3991 = vsub.f32 %v3503, %v3990
    %v3992 = vand.u32 %v3991, 4294901760
    %v3993 = vsub.f32 %v3991, %v3992
    %v3994 = vand.u32 %v3993, 4294901760
    %3995 = vmatpush.msra.mxu0 %v3994
    %v3996 = vand.u32 %v3495, 4294901760
    %v3997 = vsub.f32 %v3495, %v3996
    %v3998 = vand.u32 %v3997, 4294901760
    %v3999 = vsub.f32 %v3997, %v3998
    %v4000 = vand.u32 %v3999, 4294901760
    %4001 = vmatpush.msra.mxu0 %v4000
    %v4002 = vand.u32 %v3487, 4294901760
    %v4003 = vsub.f32 %v3487, %v4002
    %v4004 = vand.u32 %v4003, 4294901760
    %v4005 = vsub.f32 %v4003, %v4004
    %v4006 = vand.u32 %v4005, 4294901760
    %4007 = vmatpush.msra.mxu0 %v4006
    %v4008 = vand.u32 %v3479, 4294901760
    %v4009 = vsub.f32 %v3479, %v4008
    %v4010 = vand.u32 %v4009, 4294901760
    %v4011 = vsub.f32 %v4009, %v4010
    %v4012 = vand.u32 %v4011, 4294901760
    %4013 = vmatpush.msra.mxu0 %v4012
    %v4014 = vand.u32 %v3471, 4294901760
    %v4015 = vsub.f32 %v3471, %v4014
    %v4016 = vand.u32 %v4015, 4294901760
    %v4017 = vsub.f32 %v4015, %v4016
    %v4018 = vand.u32 %v4017, 4294901760
    %4019 = vmatpush.msra.mxu0 %v4018
    %v4020 = vand.u32 %v3463, 4294901760
    %v4021 = vsub.f32 %v3463, %v4020
    %v4022 = vand.u32 %v4021, 4294901760
    %v4023 = vsub.f32 %v4021, %v4022
    %v4024 = vand.u32 %v4023, 4294901760
    %4025 = vmatpush.msra.mxu0 %v4024
    %v4026 = vand.u32 %v3455, 4294901760
    %v4027 = vsub.f32 %v3455, %v4026
    %v4028 = vand.u32 %v4027, 4294901760
    %v4029 = vsub.f32 %v4027, %v4028
    %v4030 = vand.u32 %v4029, 4294901760
    %4031 = vmatpush.msra.mxu0 %v4030
    %v4032 = vand.u32 %v3447, 4294901760
    %v4033 = vsub.f32 %v3447, %v4032
    %v4034 = vand.u32 %v4033, 4294901760
    %v4035 = vsub.f32 %v4033, %v4034
    %v4036 = vand.u32 %v4035, 4294901760
    %4037 = vmatpush.msra.mxu0 %v4036
    %v4038 = vand.u32 %v3439, 4294901760
    %v4039 = vsub.f32 %v3439, %v4038
    %v4040 = vand.u32 %v4039, 4294901760
    %v4041 = vsub.f32 %v4039, %v4040
    %v4042 = vand.u32 %v4041, 4294901760
    %4043 = vmatpush.msra.mxu0 %v4042
    %v4044 = vand.u32 %v3436, 4294901760
    %4045 = vmatmul.f32.gmra.mxu0 %v4044
    %v4046 = vpop.f32.mrf.mxu0
    %v4047 = vadd.f32 %v3946, %v4046
    %4048 = vdwg.mxu0
    %v4049 = vand.u32 %v3559, 4294901760
    %v4050 = vsub.f32 %v3559, %v4049
    %4051 = vmatpush.msra.mxu0 %v4050
    %v4052 = vand.u32 %v3551, 4294901760
    %v4053 = vsub.f32 %v3551, %v4052
    %4054 = vmatpush.msra.mxu0 %v4053
    %v4055 = vand.u32 %v3543, 4294901760
    %v4056 = vsub.f32 %v3543, %v4055
    %4057 = vmatpush.msra.mxu0 %v4056
    %v4058 = vand.u32 %v3535, 4294901760
    %v4059 = vsub.f32 %v3535, %v4058
    %4060 = vmatpush.msra.mxu0 %v4059
    %v4061 = vand.u32 %v3527, 4294901760
    %v4062 = vsub.f32 %v3527, %v4061
    %4063 = vmatpush.msra.mxu0 %v4062
    %v4064 = vand.u32 %v3519, 4294901760
    %v4065 = vsub.f32 %v3519, %v4064
    %4066 = vmatpush.msra.mxu0 %v4065
    %v4067 = vand.u32 %v3511, 4294901760
    %v4068 = vsub.f32 %v3511, %v4067
    %4069 = vmatpush.msra.mxu0 %v4068
    %v4070 = vand.u32 %v3503, 4294901760
    %v4071 = vsub.f32 %v3503, %v4070
    %4072 = vmatpush.msra.mxu0 %v4071
    %v4073 = vand.u32 %v3495, 4294901760
    %v4074 = vsub.f32 %v3495, %v4073
    %4075 = vmatpush.msra.mxu0 %v4074
    %v4076 = vand.u32 %v3487, 4294901760
    %v4077 = vsub.f32 %v3487, %v4076
    %4078 = vmatpush.msra.mxu0 %v4077
    %v4079 = vand.u32 %v3479, 4294901760
    %v4080 = vsub.f32 %v3479, %v4079
    %4081 = vmatpush.msra.mxu0 %v4080
    %v4082 = vand.u32 %v3471, 4294901760
    %v4083 = vsub.f32 %v3471, %v4082
    %4084 = vmatpush.msra.mxu0 %v4083
    %v4085 = vand.u32 %v3463, 4294901760
    %v4086 = vsub.f32 %v3463, %v4085
    %4087 = vmatpush.msra.mxu0 %v4086
    %v4088 = vand.u32 %v3455, 4294901760
    %v4089 = vsub.f32 %v3455, %v4088
    %4090 = vmatpush.msra.mxu0 %v4089
    %v4091 = vand.u32 %v3447, 4294901760
    %v4092 = vsub.f32 %v3447, %v4091
    %4093 = vmatpush.msra.mxu0 %v4092
    %v4094 = vand.u32 %v3439, 4294901760
    %v4095 = vsub.f32 %v3439, %v4094
    %4096 = vmatpush.msra.mxu0 %v4095
    %v4097 = vand.u32 %v3436, 4294901760
    %v4098 = vsub.f32 %v3436, %v4097
    %4099 = vmatmul.f32.gmra.mxu0 %v4098
    %v4100 = vpop.f32.mrf.mxu0
    %v4101 = vadd.f32 %v4047, %v4100
    %4102 = vdwg.mxu0
    %v4103 = vand.u32 %v3559, 4294901760
    %4104 = vmatpush.msra.mxu0 %v4103
    %v4105 = vand.u32 %v3551, 4294901760
    %4106 = vmatpush.msra.mxu0 %v4105
    %v4107 = vand.u32 %v3543, 4294901760
    %4108 = vmatpush.msra.mxu0 %v4107
    %v4109 = vand.u32 %v3535, 4294901760
    %4110 = vmatpush.msra.mxu0 %v4109
    %v4111 = vand.u32 %v3527, 4294901760
    %4112 = vmatpush.msra.mxu0 %v4111
    %v4113 = vand.u32 %v3519, 4294901760
    %4114 = vmatpush.msra.mxu0 %v4113
    %v4115 = vand.u32 %v3511, 4294901760
    %4116 = vmatpush.msra.mxu0 %v4115
    %v4117 = vand.u32 %v3503, 4294901760
    %4118 = vmatpush.msra.mxu0 %v4117
    %v4119 = vand.u32 %v3495, 4294901760
    %4120 = vmatpush.msra.mxu0 %v4119
    %v4121 = vand.u32 %v3487, 4294901760
    %4122 = vmatpush.msra.mxu0 %v4121
    %v4123 = vand.u32 %v3479, 4294901760
    %4124 = vmatpush.msra.mxu0 %v4123
    %v4125 = vand.u32 %v3471, 4294901760
    %4126 = vmatpush.msra.mxu0 %v4125
    %v4127 = vand.u32 %v3463, 4294901760
    %4128 = vmatpush.msra.mxu0 %v4127
    %v4129 = vand.u32 %v3455, 4294901760
    %4130 = vmatpush.msra.mxu0 %v4129
    %v4131 = vand.u32 %v3447, 4294901760
    %4132 = vmatpush.msra.mxu0 %v4131
    %v4133 = vand.u32 %v3439, 4294901760
    %4134 = vmatpush.msra.mxu0 %v4133
    %v4135 = vand.u32 %v3436, 4294901760
    %v4136 = vsub.f32 %v3436, %v4135
    %v4137 = vand.u32 %v4136, 4294901760
    %4138 = vmatmul.f32.gmra.mxu0 %v4137
    %v4139 = vpop.f32.mrf.mxu0
    %v4140 = vadd.f32 %v4101, %v4139
    %4141 = vdwg.mxu0
    %v4142 = vand.u32 %v3559, 4294901760
    %v4143 = vsub.f32 %v3559, %v4142
    %v4144 = vand.u32 %v4143, 4294901760
    %4145 = vmatpush.msra.mxu0 %v4144
    %v4146 = vand.u32 %v3551, 4294901760
    %v4147 = vsub.f32 %v3551, %v4146
    %v4148 = vand.u32 %v4147, 4294901760
    %4149 = vmatpush.msra.mxu0 %v4148
    %v4150 = vand.u32 %v3543, 4294901760
    %v4151 = vsub.f32 %v3543, %v4150
    %v4152 = vand.u32 %v4151, 4294901760
    %4153 = vmatpush.msra.mxu0 %v4152
    %v4154 = vand.u32 %v3535, 4294901760
    %v4155 = vsub.f32 %v3535, %v4154
    %v4156 = vand.u32 %v4155, 4294901760
    %4157 = vmatpush.msra.mxu0 %v4156
    %v4158 = vand.u32 %v3527, 4294901760
    %v4159 = vsub.f32 %v3527, %v4158
    %v4160 = vand.u32 %v4159, 4294901760
    %4161 = vmatpush.msra.mxu0 %v4160
    %v4162 = vand.u32 %v3519, 4294901760
    %v4163 = vsub.f32 %v3519, %v4162
    %v4164 = vand.u32 %v4163, 4294901760
    %4165 = vmatpush.msra.mxu0 %v4164
    %v4166 = vand.u32 %v3511, 4294901760
    %v4167 = vsub.f32 %v3511, %v4166
    %v4168 = vand.u32 %v4167, 4294901760
    %4169 = vmatpush.msra.mxu0 %v4168
    %v4170 = vand.u32 %v3503, 4294901760
    %v4171 = vsub.f32 %v3503, %v4170
    %v4172 = vand.u32 %v4171, 4294901760
    %4173 = vmatpush.msra.mxu0 %v4172
    %v4174 = vand.u32 %v3495, 4294901760
    %v4175 = vsub.f32 %v3495, %v4174
    %v4176 = vand.u32 %v4175, 4294901760
    %4177 = vmatpush.msra.mxu0 %v4176
    %v4178 = vand.u32 %v3487, 4294901760
    %v4179 = vsub.f32 %v3487, %v4178
    %v4180 = vand.u32 %v4179, 4294901760
    %4181 = vmatpush.msra.mxu0 %v4180
    %v4182 = vand.u32 %v3479, 4294901760
    %v4183 = vsub.f32 %v3479, %v4182
    %v4184 = vand.u32 %v4183, 4294901760
    %4185 = vmatpush.msra.mxu0 %v4184
    %v4186 = vand.u32 %v3471, 4294901760
    %v4187 = vsub.f32 %v3471, %v4186
    %v4188 = vand.u32 %v4187, 4294901760
    %4189 = vmatpush.msra.mxu0 %v4188
    %v4190 = vand.u32 %v3463, 4294901760
    %v4191 = vsub.f32 %v3463, %v4190
    %v4192 = vand.u32 %v4191, 4294901760
    %4193 = vmatpush.msra.mxu0 %v4192
    %v4194 = vand.u32 %v3455, 4294901760
    %v4195 = vsub.f32 %v3455, %v4194
    %v4196 = vand.u32 %v4195, 4294901760
    %4197 = vmatpush.msra.mxu0 %v4196
    %v4198 = vand.u32 %v3447, 4294901760
    %v4199 = vsub.f32 %v3447, %v4198
    %v4200 = vand.u32 %v4199, 4294901760
    %4201 = vmatpush.msra.mxu0 %v4200
    %v4202 = vand.u32 %v3439, 4294901760
    %v4203 = vsub.f32 %v3439, %v4202
    %v4204 = vand.u32 %v4203, 4294901760
    %4205 = vmatpush.msra.mxu0 %v4204
    %v4206 = vand.u32 %v3436, 4294901760
    %4207 = vmatmul.f32.gmra.mxu0 %v4206
    %v4208 = vpop.f32.mrf.mxu0
    %v4209 = vadd.f32 %v4140, %v4208
    %4210 = vdwg.mxu0
    %v4211 = vand.u32 %v3559, 4294901760
    %4212 = vmatpush.msra.mxu0 %v4211
    %v4213 = vand.u32 %v3551, 4294901760
    %4214 = vmatpush.msra.mxu0 %v4213
    %v4215 = vand.u32 %v3543, 4294901760
    %4216 = vmatpush.msra.mxu0 %v4215
    %v4217 = vand.u32 %v3535, 4294901760
    %4218 = vmatpush.msra.mxu0 %v4217
    %v4219 = vand.u32 %v3527, 4294901760
    %4220 = vmatpush.msra.mxu0 %v4219
    %v4221 = vand.u32 %v3519, 4294901760
    %4222 = vmatpush.msra.mxu0 %v4221
    %v4223 = vand.u32 %v3511, 4294901760
    %4224 = vmatpush.msra.mxu0 %v4223
    %v4225 = vand.u32 %v3503, 4294901760
    %4226 = vmatpush.msra.mxu0 %v4225
    %v4227 = vand.u32 %v3495, 4294901760
    %4228 = vmatpush.msra.mxu0 %v4227
    %v4229 = vand.u32 %v3487, 4294901760
    %4230 = vmatpush.msra.mxu0 %v4229
    %v4231 = vand.u32 %v3479, 4294901760
    %4232 = vmatpush.msra.mxu0 %v4231
    %v4233 = vand.u32 %v3471, 4294901760
    %4234 = vmatpush.msra.mxu0 %v4233
    %v4235 = vand.u32 %v3463, 4294901760
    %4236 = vmatpush.msra.mxu0 %v4235
    %v4237 = vand.u32 %v3455, 4294901760
    %4238 = vmatpush.msra.mxu0 %v4237
    %v4239 = vand.u32 %v3447, 4294901760
    %4240 = vmatpush.msra.mxu0 %v4239
    %v4241 = vand.u32 %v3439, 4294901760
    %4242 = vmatpush.msra.mxu0 %v4241
    %v4243 = vand.u32 %v3436, 4294901760
    %4244 = vmatmul.f32.gmra.mxu0 %v4243
    %v4245 = vpop.f32.mrf.mxu0
    %v4246 = vadd.f32 %v4209, %v4245
    %4247 = vdwg.mxu0
    %v4248 = vand.u32 %v3560, 4294901760
    %4249 = vmatpush.msra.mxu0 %v4248
    %v4250 = vand.u32 %v3552, 4294901760
    %4251 = vmatpush.msra.mxu0 %v4250
    %v4252 = vand.u32 %v3544, 4294901760
    %4253 = vmatpush.msra.mxu0 %v4252
    %v4254 = vand.u32 %v3536, 4294901760
    %4255 = vmatpush.msra.mxu0 %v4254
    %v4256 = vand.u32 %v3528, 4294901760
    %4257 = vmatpush.msra.mxu0 %v4256
    %v4258 = vand.u32 %v3520, 4294901760
    %4259 = vmatpush.msra.mxu0 %v4258
    %v4260 = vand.u32 %v3512, 4294901760
    %4261 = vmatpush.msra.mxu0 %v4260
    %v4262 = vand.u32 %v3504, 4294901760
    %4263 = vmatpush.msra.mxu0 %v4262
    %v4264 = vand.u32 %v3496, 4294901760
    %4265 = vmatpush.msra.mxu0 %v4264
    %v4266 = vand.u32 %v3488, 4294901760
    %4267 = vmatpush.msra.mxu0 %v4266
    %v4268 = vand.u32 %v3480, 4294901760
    %4269 = vmatpush.msra.mxu0 %v4268
    %v4270 = vand.u32 %v3472, 4294901760
    %4271 = vmatpush.msra.mxu0 %v4270
    %v4272 = vand.u32 %v3464, 4294901760
    %4273 = vmatpush.msra.mxu0 %v4272
    %v4274 = vand.u32 %v3456, 4294901760
    %4275 = vmatpush.msra.mxu0 %v4274
    %v4276 = vand.u32 %v3448, 4294901760
    %4277 = vmatpush.msra.mxu0 %v4276
    %v4278 = vand.u32 %v3440, 4294901760
    %4279 = vmatpush.msra.mxu0 %v4278
    %v4280 = vand.u32 %v3436, 4294901760
    %v4281 = vsub.f32 %v3436, %v4280
    %v4282 = vand.u32 %v4281, 4294901760
    %v4283 = vsub.f32 %v4281, %v4282
    %v4284 = vand.u32 %v4283, 4294901760
    %4285 = vmatmul.f32.gmra.mxu0 %v4284
    %v4286 = vpop.f32.mrf.mxu0
    %v4287 = vadd.f32 0.0, %v4286
    %4288 = vdwg.mxu0
    %v4289 = vand.u32 %v3560, 4294901760
    %v4290 = vsub.f32 %v3560, %v4289
    %v4291 = vand.u32 %v4290, 4294901760
    %v4292 = vsub.f32 %v4290, %v4291
    %v4293 = vand.u32 %v4292, 4294901760
    %4294 = vmatpush.msra.mxu0 %v4293
    %v4295 = vand.u32 %v3552, 4294901760
    %v4296 = vsub.f32 %v3552, %v4295
    %v4297 = vand.u32 %v4296, 4294901760
    %v4298 = vsub.f32 %v4296, %v4297
    %v4299 = vand.u32 %v4298, 4294901760
    %4300 = vmatpush.msra.mxu0 %v4299
    %v4301 = vand.u32 %v3544, 4294901760
    %v4302 = vsub.f32 %v3544, %v4301
    %v4303 = vand.u32 %v4302, 4294901760
    %v4304 = vsub.f32 %v4302, %v4303
    %v4305 = vand.u32 %v4304, 4294901760
    %4306 = vmatpush.msra.mxu0 %v4305
    %v4307 = vand.u32 %v3536, 4294901760
    %v4308 = vsub.f32 %v3536, %v4307
    %v4309 = vand.u32 %v4308, 4294901760
    %v4310 = vsub.f32 %v4308, %v4309
    %v4311 = vand.u32 %v4310, 4294901760
    %4312 = vmatpush.msra.mxu0 %v4311
    %v4313 = vand.u32 %v3528, 4294901760
    %v4314 = vsub.f32 %v3528, %v4313
    %v4315 = vand.u32 %v4314, 4294901760
    %v4316 = vsub.f32 %v4314, %v4315
    %v4317 = vand.u32 %v4316, 4294901760
    %4318 = vmatpush.msra.mxu0 %v4317
    %v4319 = vand.u32 %v3520, 4294901760
    %v4320 = vsub.f32 %v3520, %v4319
    %v4321 = vand.u32 %v4320, 4294901760
    %v4322 = vsub.f32 %v4320, %v4321
    %v4323 = vand.u32 %v4322, 4294901760
    %4324 = vmatpush.msra.mxu0 %v4323
    %v4325 = vand.u32 %v3512, 4294901760
    %v4326 = vsub.f32 %v3512, %v4325
    %v4327 = vand.u32 %v4326, 4294901760
    %v4328 = vsub.f32 %v4326, %v4327
    %v4329 = vand.u32 %v4328, 4294901760
    %4330 = vmatpush.msra.mxu0 %v4329
    %v4331 = vand.u32 %v3504, 4294901760
    %v4332 = vsub.f32 %v3504, %v4331
    %v4333 = vand.u32 %v4332, 4294901760
    %v4334 = vsub.f32 %v4332, %v4333
    %v4335 = vand.u32 %v4334, 4294901760
    %4336 = vmatpush.msra.mxu0 %v4335
    %v4337 = vand.u32 %v3496, 4294901760
    %v4338 = vsub.f32 %v3496, %v4337
    %v4339 = vand.u32 %v4338, 4294901760
    %v4340 = vsub.f32 %v4338, %v4339
    %v4341 = vand.u32 %v4340, 4294901760
    %4342 = vmatpush.msra.mxu0 %v4341
    %v4343 = vand.u32 %v3488, 4294901760
    %v4344 = vsub.f32 %v3488, %v4343
    %v4345 = vand.u32 %v4344, 4294901760
    %v4346 = vsub.f32 %v4344, %v4345
    %v4347 = vand.u32 %v4346, 4294901760
    %4348 = vmatpush.msra.mxu0 %v4347
    %v4349 = vand.u32 %v3480, 4294901760
    %v4350 = vsub.f32 %v3480, %v4349
    %v4351 = vand.u32 %v4350, 4294901760
    %v4352 = vsub.f32 %v4350, %v4351
    %v4353 = vand.u32 %v4352, 4294901760
    %4354 = vmatpush.msra.mxu0 %v4353
    %v4355 = vand.u32 %v3472, 4294901760
    %v4356 = vsub.f32 %v3472, %v4355
    %v4357 = vand.u32 %v4356, 4294901760
    %v4358 = vsub.f32 %v4356, %v4357
    %v4359 = vand.u32 %v4358, 4294901760
    %4360 = vmatpush.msra.mxu0 %v4359
    %v4361 = vand.u32 %v3464, 4294901760
    %v4362 = vsub.f32 %v3464, %v4361
    %v4363 = vand.u32 %v4362, 4294901760
    %v4364 = vsub.f32 %v4362, %v4363
    %v4365 = vand.u32 %v4364, 4294901760
    %4366 = vmatpush.msra.mxu0 %v4365
    %v4367 = vand.u32 %v3456, 4294901760
    %v4368 = vsub.f32 %v3456, %v4367
    %v4369 = vand.u32 %v4368, 4294901760
    %v4370 = vsub.f32 %v4368, %v4369
    %v4371 = vand.u32 %v4370, 4294901760
    %4372 = vmatpush.msra.mxu0 %v4371
    %v4373 = vand.u32 %v3448, 4294901760
    %v4374 = vsub.f32 %v3448, %v4373
    %v4375 = vand.u32 %v4374, 4294901760
    %v4376 = vsub.f32 %v4374, %v4375
    %v4377 = vand.u32 %v4376, 4294901760
    %4378 = vmatpush.msra.mxu0 %v4377
    %v4379 = vand.u32 %v3440, 4294901760
    %v4380 = vsub.f32 %v3440, %v4379
    %v4381 = vand.u32 %v4380, 4294901760
    %v4382 = vsub.f32 %v4380, %v4381
    %v4383 = vand.u32 %v4382, 4294901760
    %4384 = vmatpush.msra.mxu0 %v4383
    %v4385 = vand.u32 %v3436, 4294901760
    %4386 = vmatmul.f32.gmra.mxu0 %v4385
    %v4387 = vpop.f32.mrf.mxu0
    %v4388 = vadd.f32 %v4287, %v4387
    %4389 = vdwg.mxu0
    %v4390 = vand.u32 %v3560, 4294901760
    %v4391 = vsub.f32 %v3560, %v4390
    %4392 = vmatpush.msra.mxu0 %v4391
    %v4393 = vand.u32 %v3552, 4294901760
    %v4394 = vsub.f32 %v3552, %v4393
    %4395 = vmatpush.msra.mxu0 %v4394
    %v4396 = vand.u32 %v3544, 4294901760
    %v4397 = vsub.f32 %v3544, %v4396
    %4398 = vmatpush.msra.mxu0 %v4397
    %v4399 = vand.u32 %v3536, 4294901760
    %v4400 = vsub.f32 %v3536, %v4399
    %4401 = vmatpush.msra.mxu0 %v4400
    %v4402 = vand.u32 %v3528, 4294901760
    %v4403 = vsub.f32 %v3528, %v4402
    %4404 = vmatpush.msra.mxu0 %v4403
    %v4405 = vand.u32 %v3520, 4294901760
    %v4406 = vsub.f32 %v3520, %v4405
    %4407 = vmatpush.msra.mxu0 %v4406
    %v4408 = vand.u32 %v3512, 4294901760
    %v4409 = vsub.f32 %v3512, %v4408
    %4410 = vmatpush.msra.mxu0 %v4409
    %v4411 = vand.u32 %v3504, 4294901760
    %v4412 = vsub.f32 %v3504, %v4411
    %4413 = vmatpush.msra.mxu0 %v4412
    %v4414 = vand.u32 %v3496, 4294901760
    %v4415 = vsub.f32 %v3496, %v4414
    %4416 = vmatpush.msra.mxu0 %v4415
    %v4417 = vand.u32 %v3488, 4294901760
    %v4418 = vsub.f32 %v3488, %v4417
    %4419 = vmatpush.msra.mxu0 %v4418
    %v4420 = vand.u32 %v3480, 4294901760
    %v4421 = vsub.f32 %v3480, %v4420
    %4422 = vmatpush.msra.mxu0 %v4421
    %v4423 = vand.u32 %v3472, 4294901760
    %v4424 = vsub.f32 %v3472, %v4423
    %4425 = vmatpush.msra.mxu0 %v4424
    %v4426 = vand.u32 %v3464, 4294901760
    %v4427 = vsub.f32 %v3464, %v4426
    %4428 = vmatpush.msra.mxu0 %v4427
    %v4429 = vand.u32 %v3456, 4294901760
    %v4430 = vsub.f32 %v3456, %v4429
    %4431 = vmatpush.msra.mxu0 %v4430
    %v4432 = vand.u32 %v3448, 4294901760
    %v4433 = vsub.f32 %v3448, %v4432
    %4434 = vmatpush.msra.mxu0 %v4433
    %v4435 = vand.u32 %v3440, 4294901760
    %v4436 = vsub.f32 %v3440, %v4435
    %4437 = vmatpush.msra.mxu0 %v4436
    %v4438 = vand.u32 %v3436, 4294901760
    %v4439 = vsub.f32 %v3436, %v4438
    %4440 = vmatmul.f32.gmra.mxu0 %v4439
    %v4441 = vpop.f32.mrf.mxu0
    %v4442 = vadd.f32 %v4388, %v4441
    %4443 = vdwg.mxu0
    %v4444 = vand.u32 %v3560, 4294901760
    %4445 = vmatpush.msra.mxu0 %v4444
    %v4446 = vand.u32 %v3552, 4294901760
    %4447 = vmatpush.msra.mxu0 %v4446
    %v4448 = vand.u32 %v3544, 4294901760
    %4449 = vmatpush.msra.mxu0 %v4448
    %v4450 = vand.u32 %v3536, 4294901760
    %4451 = vmatpush.msra.mxu0 %v4450
    %v4452 = vand.u32 %v3528, 4294901760
    %4453 = vmatpush.msra.mxu0 %v4452
    %v4454 = vand.u32 %v3520, 4294901760
    %4455 = vmatpush.msra.mxu0 %v4454
    %v4456 = vand.u32 %v3512, 4294901760
    %4457 = vmatpush.msra.mxu0 %v4456
    %v4458 = vand.u32 %v3504, 4294901760
    %4459 = vmatpush.msra.mxu0 %v4458
    %v4460 = vand.u32 %v3496, 4294901760
    %4461 = vmatpush.msra.mxu0 %v4460
    %v4462 = vand.u32 %v3488, 4294901760
    %4463 = vmatpush.msra.mxu0 %v4462
    %v4464 = vand.u32 %v3480, 4294901760
    %4465 = vmatpush.msra.mxu0 %v4464
    %v4466 = vand.u32 %v3472, 4294901760
    %4467 = vmatpush.msra.mxu0 %v4466
    %v4468 = vand.u32 %v3464, 4294901760
    %4469 = vmatpush.msra.mxu0 %v4468
    %v4470 = vand.u32 %v3456, 4294901760
    %4471 = vmatpush.msra.mxu0 %v4470
    %v4472 = vand.u32 %v3448, 4294901760
    %4473 = vmatpush.msra.mxu0 %v4472
    %v4474 = vand.u32 %v3440, 4294901760
    %4475 = vmatpush.msra.mxu0 %v4474
    %v4476 = vand.u32 %v3436, 4294901760
    %v4477 = vsub.f32 %v3436, %v4476
    %v4478 = vand.u32 %v4477, 4294901760
    %4479 = vmatmul.f32.gmra.mxu0 %v4478
    %v4480 = vpop.f32.mrf.mxu0
    %v4481 = vadd.f32 %v4442, %v4480
    %4482 = vdwg.mxu0
    %v4483 = vand.u32 %v3560, 4294901760
    %v4484 = vsub.f32 %v3560, %v4483
    %v4485 = vand.u32 %v4484, 4294901760
    %4486 = vmatpush.msra.mxu0 %v4485
    %v4487 = vand.u32 %v3552, 4294901760
    %v4488 = vsub.f32 %v3552, %v4487
    %v4489 = vand.u32 %v4488, 4294901760
    %4490 = vmatpush.msra.mxu0 %v4489
    %v4491 = vand.u32 %v3544, 4294901760
    %v4492 = vsub.f32 %v3544, %v4491
    %v4493 = vand.u32 %v4492, 4294901760
    %4494 = vmatpush.msra.mxu0 %v4493
    %v4495 = vand.u32 %v3536, 4294901760
    %v4496 = vsub.f32 %v3536, %v4495
    %v4497 = vand.u32 %v4496, 4294901760
    %4498 = vmatpush.msra.mxu0 %v4497
    %v4499 = vand.u32 %v3528, 4294901760
    %v4500 = vsub.f32 %v3528, %v4499
    %v4501 = vand.u32 %v4500, 4294901760
    %4502 = vmatpush.msra.mxu0 %v4501
    %v4503 = vand.u32 %v3520, 4294901760
    %v4504 = vsub.f32 %v3520, %v4503
    %v4505 = vand.u32 %v4504, 4294901760
    %4506 = vmatpush.msra.mxu0 %v4505
    %v4507 = vand.u32 %v3512, 4294901760
    %v4508 = vsub.f32 %v3512, %v4507
    %v4509 = vand.u32 %v4508, 4294901760
    %4510 = vmatpush.msra.mxu0 %v4509
    %v4511 = vand.u32 %v3504, 4294901760
    %v4512 = vsub.f32 %v3504, %v4511
    %v4513 = vand.u32 %v4512, 4294901760
    %4514 = vmatpush.msra.mxu0 %v4513
    %v4515 = vand.u32 %v3496, 4294901760
    %v4516 = vsub.f32 %v3496, %v4515
    %v4517 = vand.u32 %v4516, 4294901760
    %4518 = vmatpush.msra.mxu0 %v4517
    %v4519 = vand.u32 %v3488, 4294901760
    %v4520 = vsub.f32 %v3488, %v4519
    %v4521 = vand.u32 %v4520, 4294901760
    %4522 = vmatpush.msra.mxu0 %v4521
    %v4523 = vand.u32 %v3480, 4294901760
    %v4524 = vsub.f32 %v3480, %v4523
    %v4525 = vand.u32 %v4524, 4294901760
    %4526 = vmatpush.msra.mxu0 %v4525
    %v4527 = vand.u32 %v3472, 4294901760
    %v4528 = vsub.f32 %v3472, %v4527
    %v4529 = vand.u32 %v4528, 4294901760
    %4530 = vmatpush.msra.mxu0 %v4529
    %v4531 = vand.u32 %v3464, 4294901760
    %v4532 = vsub.f32 %v3464, %v4531
    %v4533 = vand.u32 %v4532, 4294901760
    %4534 = vmatpush.msra.mxu0 %v4533
    %v4535 = vand.u32 %v3456, 4294901760
    %v4536 = vsub.f32 %v3456, %v4535
    %v4537 = vand.u32 %v4536, 4294901760
    %4538 = vmatpush.msra.mxu0 %v4537
    %v4539 = vand.u32 %v3448, 4294901760
    %v4540 = vsub.f32 %v3448, %v4539
    %v4541 = vand.u32 %v4540, 4294901760
    %4542 = vmatpush.msra.mxu0 %v4541
    %v4543 = vand.u32 %v3440, 4294901760
    %v4544 = vsub.f32 %v3440, %v4543
    %v4545 = vand.u32 %v4544, 4294901760
    %4546 = vmatpush.msra.mxu0 %v4545
    %v4547 = vand.u32 %v3436, 4294901760
    %4548 = vmatmul.f32.gmra.mxu0 %v4547
    %v4549 = vpop.f32.mrf.mxu0
    %v4550 = vadd.f32 %v4481, %v4549
    %4551 = vdwg.mxu0
    %v4552 = vand.u32 %v3560, 4294901760
    %4553 = vmatpush.msra.mxu0 %v4552
    %v4554 = vand.u32 %v3552, 4294901760
    %4555 = vmatpush.msra.mxu0 %v4554
    %v4556 = vand.u32 %v3544, 4294901760
    %4557 = vmatpush.msra.mxu0 %v4556
    %v4558 = vand.u32 %v3536, 4294901760
    %4559 = vmatpush.msra.mxu0 %v4558
    %v4560 = vand.u32 %v3528, 4294901760
    %4561 = vmatpush.msra.mxu0 %v4560
    %v4562 = vand.u32 %v3520, 4294901760
    %4563 = vmatpush.msra.mxu0 %v4562
    %v4564 = vand.u32 %v3512, 4294901760
    %4565 = vmatpush.msra.mxu0 %v4564
    %v4566 = vand.u32 %v3504, 4294901760
    %4567 = vmatpush.msra.mxu0 %v4566
    %v4568 = vand.u32 %v3496, 4294901760
    %4569 = vmatpush.msra.mxu0 %v4568
    %v4570 = vand.u32 %v3488, 4294901760
    %4571 = vmatpush.msra.mxu0 %v4570
    %v4572 = vand.u32 %v3480, 4294901760
    %4573 = vmatpush.msra.mxu0 %v4572
    %v4574 = vand.u32 %v3472, 4294901760
    %4575 = vmatpush.msra.mxu0 %v4574
    %v4576 = vand.u32 %v3464, 4294901760
    %4577 = vmatpush.msra.mxu0 %v4576
    %v4578 = vand.u32 %v3456, 4294901760
    %4579 = vmatpush.msra.mxu0 %v4578
    %v4580 = vand.u32 %v3448, 4294901760
    %4581 = vmatpush.msra.mxu0 %v4580
    %v4582 = vand.u32 %v3440, 4294901760
    %4583 = vmatpush.msra.mxu0 %v4582
    %v4584 = vand.u32 %v3436, 4294901760
    %4585 = vmatmul.f32.gmra.mxu0 %v4584
    %v4586 = vpop.f32.mrf.mxu0
    %v4587 = vadd.f32 %v4550, %v4586
    %4588 = vdwg.mxu0
    %v4589 = vand.u32 %v3561, 4294901760
    %4590 = vmatpush.msra.mxu0 %v4589
    %v4591 = vand.u32 %v3553, 4294901760
    %4592 = vmatpush.msra.mxu0 %v4591
    %v4593 = vand.u32 %v3545, 4294901760
    %4594 = vmatpush.msra.mxu0 %v4593
    %v4595 = vand.u32 %v3537, 4294901760
    %4596 = vmatpush.msra.mxu0 %v4595
    %v4597 = vand.u32 %v3529, 4294901760
    %4598 = vmatpush.msra.mxu0 %v4597
    %v4599 = vand.u32 %v3521, 4294901760
    %4600 = vmatpush.msra.mxu0 %v4599
    %v4601 = vand.u32 %v3513, 4294901760
    %4602 = vmatpush.msra.mxu0 %v4601
    %v4603 = vand.u32 %v3505, 4294901760
    %4604 = vmatpush.msra.mxu0 %v4603
    %v4605 = vand.u32 %v3497, 4294901760
    %4606 = vmatpush.msra.mxu0 %v4605
    %v4607 = vand.u32 %v3489, 4294901760
    %4608 = vmatpush.msra.mxu0 %v4607
    %v4609 = vand.u32 %v3481, 4294901760
    %4610 = vmatpush.msra.mxu0 %v4609
    %v4611 = vand.u32 %v3473, 4294901760
    %4612 = vmatpush.msra.mxu0 %v4611
    %v4613 = vand.u32 %v3465, 4294901760
    %4614 = vmatpush.msra.mxu0 %v4613
    %v4615 = vand.u32 %v3457, 4294901760
    %4616 = vmatpush.msra.mxu0 %v4615
    %v4617 = vand.u32 %v3449, 4294901760
    %4618 = vmatpush.msra.mxu0 %v4617
    %v4619 = vand.u32 %v3441, 4294901760
    %4620 = vmatpush.msra.mxu0 %v4619
    %v4621 = vand.u32 %v3436, 4294901760
    %v4622 = vsub.f32 %v3436, %v4621
    %v4623 = vand.u32 %v4622, 4294901760
    %v4624 = vsub.f32 %v4622, %v4623
    %v4625 = vand.u32 %v4624, 4294901760
    %4626 = vmatmul.f32.gmra.mxu0 %v4625
    %v4627 = vpop.f32.mrf.mxu0
    %v4628 = vadd.f32 0.0, %v4627
    %4629 = vdwg.mxu0
    %v4630 = vand.u32 %v3561, 4294901760
    %v4631 = vsub.f32 %v3561, %v4630
    %v4632 = vand.u32 %v4631, 4294901760
    %v4633 = vsub.f32 %v4631, %v4632
    %v4634 = vand.u32 %v4633, 4294901760
    %4635 = vmatpush.msra.mxu0 %v4634
    %v4636 = vand.u32 %v3553, 4294901760
    %v4637 = vsub.f32 %v3553, %v4636
    %v4638 = vand.u32 %v4637, 4294901760
    %v4639 = vsub.f32 %v4637, %v4638
    %v4640 = vand.u32 %v4639, 4294901760
    %4641 = vmatpush.msra.mxu0 %v4640
    %v4642 = vand.u32 %v3545, 4294901760
    %v4643 = vsub.f32 %v3545, %v4642
    %v4644 = vand.u32 %v4643, 4294901760
    %v4645 = vsub.f32 %v4643, %v4644
    %v4646 = vand.u32 %v4645, 4294901760
    %4647 = vmatpush.msra.mxu0 %v4646
    %v4648 = vand.u32 %v3537, 4294901760
    %v4649 = vsub.f32 %v3537, %v4648
    %v4650 = vand.u32 %v4649, 4294901760
    %v4651 = vsub.f32 %v4649, %v4650
    %v4652 = vand.u32 %v4651, 4294901760
    %4653 = vmatpush.msra.mxu0 %v4652
    %v4654 = vand.u32 %v3529, 4294901760
    %v4655 = vsub.f32 %v3529, %v4654
    %v4656 = vand.u32 %v4655, 4294901760
    %v4657 = vsub.f32 %v4655, %v4656
    %v4658 = vand.u32 %v4657, 4294901760
    %4659 = vmatpush.msra.mxu0 %v4658
    %v4660 = vand.u32 %v3521, 4294901760
    %v4661 = vsub.f32 %v3521, %v4660
    %v4662 = vand.u32 %v4661, 4294901760
    %v4663 = vsub.f32 %v4661, %v4662
    %v4664 = vand.u32 %v4663, 4294901760
    %4665 = vmatpush.msra.mxu0 %v4664
    %v4666 = vand.u32 %v3513, 4294901760
    %v4667 = vsub.f32 %v3513, %v4666
    %v4668 = vand.u32 %v4667, 4294901760
    %v4669 = vsub.f32 %v4667, %v4668
    %v4670 = vand.u32 %v4669, 4294901760
    %4671 = vmatpush.msra.mxu0 %v4670
    %v4672 = vand.u32 %v3505, 4294901760
    %v4673 = vsub.f32 %v3505, %v4672
    %v4674 = vand.u32 %v4673, 4294901760
    %v4675 = vsub.f32 %v4673, %v4674
    %v4676 = vand.u32 %v4675, 4294901760
    %4677 = vmatpush.msra.mxu0 %v4676
    %v4678 = vand.u32 %v3497, 4294901760
    %v4679 = vsub.f32 %v3497, %v4678
    %v4680 = vand.u32 %v4679, 4294901760
    %v4681 = vsub.f32 %v4679, %v4680
    %v4682 = vand.u32 %v4681, 4294901760
    %4683 = vmatpush.msra.mxu0 %v4682
    %v4684 = vand.u32 %v3489, 4294901760
    %v4685 = vsub.f32 %v3489, %v4684
    %v4686 = vand.u32 %v4685, 4294901760
    %v4687 = vsub.f32 %v4685, %v4686
    %v4688 = vand.u32 %v4687, 4294901760
    %4689 = vmatpush.msra.mxu0 %v4688
    %v4690 = vand.u32 %v3481, 4294901760
    %v4691 = vsub.f32 %v3481, %v4690
    %v4692 = vand.u32 %v4691, 4294901760
    %v4693 = vsub.f32 %v4691, %v4692
    %v4694 = vand.u32 %v4693, 4294901760
    %4695 = vmatpush.msra.mxu0 %v4694
    %v4696 = vand.u32 %v3473, 4294901760
    %v4697 = vsub.f32 %v3473, %v4696
    %v4698 = vand.u32 %v4697, 4294901760
    %v4699 = vsub.f32 %v4697, %v4698
    %v4700 = vand.u32 %v4699, 4294901760
    %4701 = vmatpush.msra.mxu0 %v4700
    %v4702 = vand.u32 %v3465, 4294901760
    %v4703 = vsub.f32 %v3465, %v4702
    %v4704 = vand.u32 %v4703, 4294901760
    %v4705 = vsub.f32 %v4703, %v4704
    %v4706 = vand.u32 %v4705, 4294901760
    %4707 = vmatpush.msra.mxu0 %v4706
    %v4708 = vand.u32 %v3457, 4294901760
    %v4709 = vsub.f32 %v3457, %v4708
    %v4710 = vand.u32 %v4709, 4294901760
    %v4711 = vsub.f32 %v4709, %v4710
    %v4712 = vand.u32 %v4711, 4294901760
    %4713 = vmatpush.msra.mxu0 %v4712
    %v4714 = vand.u32 %v3449, 4294901760
    %v4715 = vsub.f32 %v3449, %v4714
    %v4716 = vand.u32 %v4715, 4294901760
    %v4717 = vsub.f32 %v4715, %v4716
    %v4718 = vand.u32 %v4717, 4294901760
    %4719 = vmatpush.msra.mxu0 %v4718
    %v4720 = vand.u32 %v3441, 4294901760
    %v4721 = vsub.f32 %v3441, %v4720
    %v4722 = vand.u32 %v4721, 4294901760
    %v4723 = vsub.f32 %v4721, %v4722
    %v4724 = vand.u32 %v4723, 4294901760
    %4725 = vmatpush.msra.mxu0 %v4724
    %v4726 = vand.u32 %v3436, 4294901760
    %4727 = vmatmul.f32.gmra.mxu0 %v4726
    %v4728 = vpop.f32.mrf.mxu0
    %v4729 = vadd.f32 %v4628, %v4728
    %4730 = vdwg.mxu0
    %v4731 = vand.u32 %v3561, 4294901760
    %v4732 = vsub.f32 %v3561, %v4731
    %4733 = vmatpush.msra.mxu0 %v4732
    %v4734 = vand.u32 %v3553, 4294901760
    %v4735 = vsub.f32 %v3553, %v4734
    %4736 = vmatpush.msra.mxu0 %v4735
    %v4737 = vand.u32 %v3545, 4294901760
    %v4738 = vsub.f32 %v3545, %v4737
    %4739 = vmatpush.msra.mxu0 %v4738
    %v4740 = vand.u32 %v3537, 4294901760
    %v4741 = vsub.f32 %v3537, %v4740
    %4742 = vmatpush.msra.mxu0 %v4741
    %v4743 = vand.u32 %v3529, 4294901760
    %v4744 = vsub.f32 %v3529, %v4743
    %4745 = vmatpush.msra.mxu0 %v4744
    %v4746 = vand.u32 %v3521, 4294901760
    %v4747 = vsub.f32 %v3521, %v4746
    %4748 = vmatpush.msra.mxu0 %v4747
    %v4749 = vand.u32 %v3513, 4294901760
    %v4750 = vsub.f32 %v3513, %v4749
    %4751 = vmatpush.msra.mxu0 %v4750
    %v4752 = vand.u32 %v3505, 4294901760
    %v4753 = vsub.f32 %v3505, %v4752
    %4754 = vmatpush.msra.mxu0 %v4753
    %v4755 = vand.u32 %v3497, 4294901760
    %v4756 = vsub.f32 %v3497, %v4755
    %4757 = vmatpush.msra.mxu0 %v4756
    %v4758 = vand.u32 %v3489, 4294901760
    %v4759 = vsub.f32 %v3489, %v4758
    %4760 = vmatpush.msra.mxu0 %v4759
    %v4761 = vand.u32 %v3481, 4294901760
    %v4762 = vsub.f32 %v3481, %v4761
    %4763 = vmatpush.msra.mxu0 %v4762
    %v4764 = vand.u32 %v3473, 4294901760
    %v4765 = vsub.f32 %v3473, %v4764
    %4766 = vmatpush.msra.mxu0 %v4765
    %v4767 = vand.u32 %v3465, 4294901760
    %v4768 = vsub.f32 %v3465, %v4767
    %4769 = vmatpush.msra.mxu0 %v4768
    %v4770 = vand.u32 %v3457, 4294901760
    %v4771 = vsub.f32 %v3457, %v4770
    %4772 = vmatpush.msra.mxu0 %v4771
    %v4773 = vand.u32 %v3449, 4294901760
    %v4774 = vsub.f32 %v3449, %v4773
    %4775 = vmatpush.msra.mxu0 %v4774
    %v4776 = vand.u32 %v3441, 4294901760
    %v4777 = vsub.f32 %v3441, %v4776
    %4778 = vmatpush.msra.mxu0 %v4777
    %v4779 = vand.u32 %v3436, 4294901760
    %v4780 = vsub.f32 %v3436, %v4779
    %4781 = vmatmul.f32.gmra.mxu0 %v4780
    %v4782 = vpop.f32.mrf.mxu0
    %v4783 = vadd.f32 %v4729, %v4782
    %4784 = vdwg.mxu0
    %v4785 = vand.u32 %v3561, 4294901760
    %4786 = vmatpush.msra.mxu0 %v4785
    %v4787 = vand.u32 %v3553, 4294901760
    %4788 = vmatpush.msra.mxu0 %v4787
    %v4789 = vand.u32 %v3545, 4294901760
    %4790 = vmatpush.msra.mxu0 %v4789
    %v4791 = vand.u32 %v3537, 4294901760
    %4792 = vmatpush.msra.mxu0 %v4791
    %v4793 = vand.u32 %v3529, 4294901760
    %4794 = vmatpush.msra.mxu0 %v4793
    %v4795 = vand.u32 %v3521, 4294901760
    %4796 = vmatpush.msra.mxu0 %v4795
    %v4797 = vand.u32 %v3513, 4294901760
    %4798 = vmatpush.msra.mxu0 %v4797
    %v4799 = vand.u32 %v3505, 4294901760
    %4800 = vmatpush.msra.mxu0 %v4799
    %v4801 = vand.u32 %v3497, 4294901760
    %4802 = vmatpush.msra.mxu0 %v4801
    %v4803 = vand.u32 %v3489, 4294901760
    %4804 = vmatpush.msra.mxu0 %v4803
    %v4805 = vand.u32 %v3481, 4294901760
    %4806 = vmatpush.msra.mxu0 %v4805
    %v4807 = vand.u32 %v3473, 4294901760
    %4808 = vmatpush.msra.mxu0 %v4807
    %v4809 = vand.u32 %v3465, 4294901760
    %4810 = vmatpush.msra.mxu0 %v4809
    %v4811 = vand.u32 %v3457, 4294901760
    %4812 = vmatpush.msra.mxu0 %v4811
    %v4813 = vand.u32 %v3449, 4294901760
    %4814 = vmatpush.msra.mxu0 %v4813
    %v4815 = vand.u32 %v3441, 4294901760
    %4816 = vmatpush.msra.mxu0 %v4815
    %v4817 = vand.u32 %v3436, 4294901760
    %v4818 = vsub.f32 %v3436, %v4817
    %v4819 = vand.u32 %v4818, 4294901760
    %4820 = vmatmul.f32.gmra.mxu0 %v4819
    %v4821 = vpop.f32.mrf.mxu0
    %v4822 = vadd.f32 %v4783, %v4821
    %4823 = vdwg.mxu0
    %v4824 = vand.u32 %v3561, 4294901760
    %v4825 = vsub.f32 %v3561, %v4824
    %v4826 = vand.u32 %v4825, 4294901760
    %4827 = vmatpush.msra.mxu0 %v4826
    %v4828 = vand.u32 %v3553, 4294901760
    %v4829 = vsub.f32 %v3553, %v4828
    %v4830 = vand.u32 %v4829, 4294901760
    %4831 = vmatpush.msra.mxu0 %v4830
    %v4832 = vand.u32 %v3545, 4294901760
    %v4833 = vsub.f32 %v3545, %v4832
    %v4834 = vand.u32 %v4833, 4294901760
    %4835 = vmatpush.msra.mxu0 %v4834
    %v4836 = vand.u32 %v3537, 4294901760
    %v4837 = vsub.f32 %v3537, %v4836
    %v4838 = vand.u32 %v4837, 4294901760
    %4839 = vmatpush.msra.mxu0 %v4838
    %v4840 = vand.u32 %v3529, 4294901760
    %v4841 = vsub.f32 %v3529, %v4840
    %v4842 = vand.u32 %v4841, 4294901760
    %4843 = vmatpush.msra.mxu0 %v4842
    %v4844 = vand.u32 %v3521, 4294901760
    %v4845 = vsub.f32 %v3521, %v4844
    %v4846 = vand.u32 %v4845, 4294901760
    %4847 = vmatpush.msra.mxu0 %v4846
    %v4848 = vand.u32 %v3513, 4294901760
    %v4849 = vsub.f32 %v3513, %v4848
    %v4850 = vand.u32 %v4849, 4294901760
    %4851 = vmatpush.msra.mxu0 %v4850
    %v4852 = vand.u32 %v3505, 4294901760
    %v4853 = vsub.f32 %v3505, %v4852
    %v4854 = vand.u32 %v4853, 4294901760
    %4855 = vmatpush.msra.mxu0 %v4854
    %v4856 = vand.u32 %v3497, 4294901760
    %v4857 = vsub.f32 %v3497, %v4856
    %v4858 = vand.u32 %v4857, 4294901760
    %4859 = vmatpush.msra.mxu0 %v4858
    %v4860 = vand.u32 %v3489, 4294901760
    %v4861 = vsub.f32 %v3489, %v4860
    %v4862 = vand.u32 %v4861, 4294901760
    %4863 = vmatpush.msra.mxu0 %v4862
    %v4864 = vand.u32 %v3481, 4294901760
    %v4865 = vsub.f32 %v3481, %v4864
    %v4866 = vand.u32 %v4865, 4294901760
    %4867 = vmatpush.msra.mxu0 %v4866
    %v4868 = vand.u32 %v3473, 4294901760
    %v4869 = vsub.f32 %v3473, %v4868
    %v4870 = vand.u32 %v4869, 4294901760
    %4871 = vmatpush.msra.mxu0 %v4870
    %v4872 = vand.u32 %v3465, 4294901760
    %v4873 = vsub.f32 %v3465, %v4872
    %v4874 = vand.u32 %v4873, 4294901760
    %4875 = vmatpush.msra.mxu0 %v4874
    %v4876 = vand.u32 %v3457, 4294901760
    %v4877 = vsub.f32 %v3457, %v4876
    %v4878 = vand.u32 %v4877, 4294901760
    %4879 = vmatpush.msra.mxu0 %v4878
    %v4880 = vand.u32 %v3449, 4294901760
    %v4881 = vsub.f32 %v3449, %v4880
    %v4882 = vand.u32 %v4881, 4294901760
    %4883 = vmatpush.msra.mxu0 %v4882
    %v4884 = vand.u32 %v3441, 4294901760
    %v4885 = vsub.f32 %v3441, %v4884
    %v4886 = vand.u32 %v4885, 4294901760
    %4887 = vmatpush.msra.mxu0 %v4886
    %v4888 = vand.u32 %v3436, 4294901760
    %4889 = vmatmul.f32.gmra.mxu0 %v4888
    %v4890 = vpop.f32.mrf.mxu0
    %v4891 = vadd.f32 %v4822, %v4890
    %4892 = vdwg.mxu0
    %v4893 = vand.u32 %v3561, 4294901760
    %4894 = vmatpush.msra.mxu0 %v4893
    %v4895 = vand.u32 %v3553, 4294901760
    %4896 = vmatpush.msra.mxu0 %v4895
    %v4897 = vand.u32 %v3545, 4294901760
    %4898 = vmatpush.msra.mxu0 %v4897
    %v4899 = vand.u32 %v3537, 4294901760
    %4900 = vmatpush.msra.mxu0 %v4899
    %v4901 = vand.u32 %v3529, 4294901760
    %4902 = vmatpush.msra.mxu0 %v4901
    %v4903 = vand.u32 %v3521, 4294901760
    %4904 = vmatpush.msra.mxu0 %v4903
    %v4905 = vand.u32 %v3513, 4294901760
    %4906 = vmatpush.msra.mxu0 %v4905
    %v4907 = vand.u32 %v3505, 4294901760
    %4908 = vmatpush.msra.mxu0 %v4907
    %v4909 = vand.u32 %v3497, 4294901760
    %4910 = vmatpush.msra.mxu0 %v4909
    %v4911 = vand.u32 %v3489, 4294901760
    %4912 = vmatpush.msra.mxu0 %v4911
    %v4913 = vand.u32 %v3481, 4294901760
    %4914 = vmatpush.msra.mxu0 %v4913
    %v4915 = vand.u32 %v3473, 4294901760
    %4916 = vmatpush.msra.mxu0 %v4915
    %v4917 = vand.u32 %v3465, 4294901760
    %4918 = vmatpush.msra.mxu0 %v4917
    %v4919 = vand.u32 %v3457, 4294901760
    %4920 = vmatpush.msra.mxu0 %v4919
    %v4921 = vand.u32 %v3449, 4294901760
    %4922 = vmatpush.msra.mxu0 %v4921
    %v4923 = vand.u32 %v3441, 4294901760
    %4924 = vmatpush.msra.mxu0 %v4923
    %v4925 = vand.u32 %v3436, 4294901760
    %4926 = vmatmul.f32.gmra.mxu0 %v4925
    %v4927 = vpop.f32.mrf.mxu0
    %v4928 = vadd.f32 %v4891, %v4927
    %4929 = vdwg.mxu0
    %v4930 = vand.u32 %v3562, 4294901760
    %4931 = vmatpush.msra.mxu0 %v4930
    %v4932 = vand.u32 %v3554, 4294901760
    %4933 = vmatpush.msra.mxu0 %v4932
    %v4934 = vand.u32 %v3546, 4294901760
    %4935 = vmatpush.msra.mxu0 %v4934
    %v4936 = vand.u32 %v3538, 4294901760
    %4937 = vmatpush.msra.mxu0 %v4936
    %v4938 = vand.u32 %v3530, 4294901760
    %4939 = vmatpush.msra.mxu0 %v4938
    %v4940 = vand.u32 %v3522, 4294901760
    %4941 = vmatpush.msra.mxu0 %v4940
    %v4942 = vand.u32 %v3514, 4294901760
    %4943 = vmatpush.msra.mxu0 %v4942
    %v4944 = vand.u32 %v3506, 4294901760
    %4945 = vmatpush.msra.mxu0 %v4944
    %v4946 = vand.u32 %v3498, 4294901760
    %4947 = vmatpush.msra.mxu0 %v4946
    %v4948 = vand.u32 %v3490, 4294901760
    %4949 = vmatpush.msra.mxu0 %v4948
    %v4950 = vand.u32 %v3482, 4294901760
    %4951 = vmatpush.msra.mxu0 %v4950
    %v4952 = vand.u32 %v3474, 4294901760
    %4953 = vmatpush.msra.mxu0 %v4952
    %v4954 = vand.u32 %v3466, 4294901760
    %4955 = vmatpush.msra.mxu0 %v4954
    %v4956 = vand.u32 %v3458, 4294901760
    %4957 = vmatpush.msra.mxu0 %v4956
    %v4958 = vand.u32 %v3450, 4294901760
    %4959 = vmatpush.msra.mxu0 %v4958
    %v4960 = vand.u32 %v3442, 4294901760
    %4961 = vmatpush.msra.mxu0 %v4960
    %v4962 = vand.u32 %v3436, 4294901760
    %v4963 = vsub.f32 %v3436, %v4962
    %v4964 = vand.u32 %v4963, 4294901760
    %v4965 = vsub.f32 %v4963, %v4964
    %v4966 = vand.u32 %v4965, 4294901760
    %4967 = vmatmul.f32.gmra.mxu0 %v4966
    %v4968 = vpop.f32.mrf.mxu0
    %v4969 = vadd.f32 0.0, %v4968
    %4970 = vdwg.mxu0
    %v4971 = vand.u32 %v3562, 4294901760
    %v4972 = vsub.f32 %v3562, %v4971
    %v4973 = vand.u32 %v4972, 4294901760
    %v4974 = vsub.f32 %v4972, %v4973
    %v4975 = vand.u32 %v4974, 4294901760
    %4976 = vmatpush.msra.mxu0 %v4975
    %v4977 = vand.u32 %v3554, 4294901760
    %v4978 = vsub.f32 %v3554, %v4977
    %v4979 = vand.u32 %v4978, 4294901760
    %v4980 = vsub.f32 %v4978, %v4979
    %v4981 = vand.u32 %v4980, 4294901760
    %4982 = vmatpush.msra.mxu0 %v4981
    %v4983 = vand.u32 %v3546, 4294901760
    %v4984 = vsub.f32 %v3546, %v4983
    %v4985 = vand.u32 %v4984, 4294901760
    %v4986 = vsub.f32 %v4984, %v4985
    %v4987 = vand.u32 %v4986, 4294901760
    %4988 = vmatpush.msra.mxu0 %v4987
    %v4989 = vand.u32 %v3538, 4294901760
    %v4990 = vsub.f32 %v3538, %v4989
    %v4991 = vand.u32 %v4990, 4294901760
    %v4992 = vsub.f32 %v4990, %v4991
    %v4993 = vand.u32 %v4992, 4294901760
    %4994 = vmatpush.msra.mxu0 %v4993
    %v4995 = vand.u32 %v3530, 4294901760
    %v4996 = vsub.f32 %v3530, %v4995
    %v4997 = vand.u32 %v4996, 4294901760
    %v4998 = vsub.f32 %v4996, %v4997
    %v4999 = vand.u32 %v4998, 4294901760
    %5000 = vmatpush.msra.mxu0 %v4999
    %v5001 = vand.u32 %v3522, 4294901760
    %v5002 = vsub.f32 %v3522, %v5001
    %v5003 = vand.u32 %v5002, 4294901760
    %v5004 = vsub.f32 %v5002, %v5003
    %v5005 = vand.u32 %v5004, 4294901760
    %5006 = vmatpush.msra.mxu0 %v5005
    %v5007 = vand.u32 %v3514, 4294901760
    %v5008 = vsub.f32 %v3514, %v5007
    %v5009 = vand.u32 %v5008, 4294901760
    %v5010 = vsub.f32 %v5008, %v5009
    %v5011 = vand.u32 %v5010, 4294901760
    %5012 = vmatpush.msra.mxu0 %v5011
    %v5013 = vand.u32 %v3506, 4294901760
    %v5014 = vsub.f32 %v3506, %v5013
    %v5015 = vand.u32 %v5014, 4294901760
    %v5016 = vsub.f32 %v5014, %v5015
    %v5017 = vand.u32 %v5016, 4294901760
    %5018 = vmatpush.msra.mxu0 %v5017
    %v5019 = vand.u32 %v3498, 4294901760
    %v5020 = vsub.f32 %v3498, %v5019
    %v5021 = vand.u32 %v5020, 4294901760
    %v5022 = vsub.f32 %v5020, %v5021
    %v5023 = vand.u32 %v5022, 4294901760
    %5024 = vmatpush.msra.mxu0 %v5023
    %v5025 = vand.u32 %v3490, 4294901760
    %v5026 = vsub.f32 %v3490, %v5025
    %v5027 = vand.u32 %v5026, 4294901760
    %v5028 = vsub.f32 %v5026, %v5027
    %v5029 = vand.u32 %v5028, 4294901760
    %5030 = vmatpush.msra.mxu0 %v5029
    %v5031 = vand.u32 %v3482, 4294901760
    %v5032 = vsub.f32 %v3482, %v5031
    %v5033 = vand.u32 %v5032, 4294901760
    %v5034 = vsub.f32 %v5032, %v5033
    %v5035 = vand.u32 %v5034, 4294901760
    %5036 = vmatpush.msra.mxu0 %v5035
    %v5037 = vand.u32 %v3474, 4294901760
    %v5038 = vsub.f32 %v3474, %v5037
    %v5039 = vand.u32 %v5038, 4294901760
    %v5040 = vsub.f32 %v5038, %v5039
    %v5041 = vand.u32 %v5040, 4294901760
    %5042 = vmatpush.msra.mxu0 %v5041
    %v5043 = vand.u32 %v3466, 4294901760
    %v5044 = vsub.f32 %v3466, %v5043
    %v5045 = vand.u32 %v5044, 4294901760
    %v5046 = vsub.f32 %v5044, %v5045
    %v5047 = vand.u32 %v5046, 4294901760
    %5048 = vmatpush.msra.mxu0 %v5047
    %v5049 = vand.u32 %v3458, 4294901760
    %v5050 = vsub.f32 %v3458, %v5049
    %v5051 = vand.u32 %v5050, 4294901760
    %v5052 = vsub.f32 %v5050, %v5051
    %v5053 = vand.u32 %v5052, 4294901760
    %5054 = vmatpush.msra.mxu0 %v5053
    %v5055 = vand.u32 %v3450, 4294901760
    %v5056 = vsub.f32 %v3450, %v5055
    %v5057 = vand.u32 %v5056, 4294901760
    %v5058 = vsub.f32 %v5056, %v5057
    %v5059 = vand.u32 %v5058, 4294901760
    %5060 = vmatpush.msra.mxu0 %v5059
    %v5061 = vand.u32 %v3442, 4294901760
    %v5062 = vsub.f32 %v3442, %v5061
    %v5063 = vand.u32 %v5062, 4294901760
    %v5064 = vsub.f32 %v5062, %v5063
    %v5065 = vand.u32 %v5064, 4294901760
    %5066 = vmatpush.msra.mxu0 %v5065
    %v5067 = vand.u32 %v3436, 4294901760
    %5068 = vmatmul.f32.gmra.mxu0 %v5067
    %v5069 = vpop.f32.mrf.mxu0
    %v5070 = vadd.f32 %v4969, %v5069
    %5071 = vdwg.mxu0
    %v5072 = vand.u32 %v3562, 4294901760
    %v5073 = vsub.f32 %v3562, %v5072
    %5074 = vmatpush.msra.mxu0 %v5073
    %v5075 = vand.u32 %v3554, 4294901760
    %v5076 = vsub.f32 %v3554, %v5075
    %5077 = vmatpush.msra.mxu0 %v5076
    %v5078 = vand.u32 %v3546, 4294901760
    %v5079 = vsub.f32 %v3546, %v5078
    %5080 = vmatpush.msra.mxu0 %v5079
    %v5081 = vand.u32 %v3538, 4294901760
    %v5082 = vsub.f32 %v3538, %v5081
    %5083 = vmatpush.msra.mxu0 %v5082
    %v5084 = vand.u32 %v3530, 4294901760
    %v5085 = vsub.f32 %v3530, %v5084
    %5086 = vmatpush.msra.mxu0 %v5085
    %v5087 = vand.u32 %v3522, 4294901760
    %v5088 = vsub.f32 %v3522, %v5087
    %5089 = vmatpush.msra.mxu0 %v5088
    %v5090 = vand.u32 %v3514, 4294901760
    %v5091 = vsub.f32 %v3514, %v5090
    %5092 = vmatpush.msra.mxu0 %v5091
    %v5093 = vand.u32 %v3506, 4294901760
    %v5094 = vsub.f32 %v3506, %v5093
    %5095 = vmatpush.msra.mxu0 %v5094
    %v5096 = vand.u32 %v3498, 4294901760
    %v5097 = vsub.f32 %v3498, %v5096
    %5098 = vmatpush.msra.mxu0 %v5097
    %v5099 = vand.u32 %v3490, 4294901760
    %v5100 = vsub.f32 %v3490, %v5099
    %5101 = vmatpush.msra.mxu0 %v5100
    %v5102 = vand.u32 %v3482, 4294901760
    %v5103 = vsub.f32 %v3482, %v5102
    %5104 = vmatpush.msra.mxu0 %v5103
    %v5105 = vand.u32 %v3474, 4294901760
    %v5106 = vsub.f32 %v3474, %v5105
    %5107 = vmatpush.msra.mxu0 %v5106
    %v5108 = vand.u32 %v3466, 4294901760
    %v5109 = vsub.f32 %v3466, %v5108
    %5110 = vmatpush.msra.mxu0 %v5109
    %v5111 = vand.u32 %v3458, 4294901760
    %v5112 = vsub.f32 %v3458, %v5111
    %5113 = vmatpush.msra.mxu0 %v5112
    %v5114 = vand.u32 %v3450, 4294901760
    %v5115 = vsub.f32 %v3450, %v5114
    %5116 = vmatpush.msra.mxu0 %v5115
    %v5117 = vand.u32 %v3442, 4294901760
    %v5118 = vsub.f32 %v3442, %v5117
    %5119 = vmatpush.msra.mxu0 %v5118
    %v5120 = vand.u32 %v3436, 4294901760
    %v5121 = vsub.f32 %v3436, %v5120
    %5122 = vmatmul.f32.gmra.mxu0 %v5121
    %v5123 = vpop.f32.mrf.mxu0
    %v5124 = vadd.f32 %v5070, %v5123
    %5125 = vdwg.mxu0
    %v5126 = vand.u32 %v3562, 4294901760
    %5127 = vmatpush.msra.mxu0 %v5126
    %v5128 = vand.u32 %v3554, 4294901760
    %5129 = vmatpush.msra.mxu0 %v5128
    %v5130 = vand.u32 %v3546, 4294901760
    %5131 = vmatpush.msra.mxu0 %v5130
    %v5132 = vand.u32 %v3538, 4294901760
    %5133 = vmatpush.msra.mxu0 %v5132
    %v5134 = vand.u32 %v3530, 4294901760
    %5135 = vmatpush.msra.mxu0 %v5134
    %v5136 = vand.u32 %v3522, 4294901760
    %5137 = vmatpush.msra.mxu0 %v5136
    %v5138 = vand.u32 %v3514, 4294901760
    %5139 = vmatpush.msra.mxu0 %v5138
    %v5140 = vand.u32 %v3506, 4294901760
    %5141 = vmatpush.msra.mxu0 %v5140
    %v5142 = vand.u32 %v3498, 4294901760
    %5143 = vmatpush.msra.mxu0 %v5142
    %v5144 = vand.u32 %v3490, 4294901760
    %5145 = vmatpush.msra.mxu0 %v5144
    %v5146 = vand.u32 %v3482, 4294901760
    %5147 = vmatpush.msra.mxu0 %v5146
    %v5148 = vand.u32 %v3474, 4294901760
    %5149 = vmatpush.msra.mxu0 %v5148
    %v5150 = vand.u32 %v3466, 4294901760
    %5151 = vmatpush.msra.mxu0 %v5150
    %v5152 = vand.u32 %v3458, 4294901760
    %5153 = vmatpush.msra.mxu0 %v5152
    %v5154 = vand.u32 %v3450, 4294901760
    %5155 = vmatpush.msra.mxu0 %v5154
    %v5156 = vand.u32 %v3442, 4294901760
    %5157 = vmatpush.msra.mxu0 %v5156
    %v5158 = vand.u32 %v3436, 4294901760
    %v5159 = vsub.f32 %v3436, %v5158
    %v5160 = vand.u32 %v5159, 4294901760
    %5161 = vmatmul.f32.gmra.mxu0 %v5160
    %v5162 = vpop.f32.mrf.mxu0
    %v5163 = vadd.f32 %v5124, %v5162
    %5164 = vdwg.mxu0
    %v5165 = vand.u32 %v3562, 4294901760
    %v5166 = vsub.f32 %v3562, %v5165
    %v5167 = vand.u32 %v5166, 4294901760
    %5168 = vmatpush.msra.mxu0 %v5167
    %v5169 = vand.u32 %v3554, 4294901760
    %v5170 = vsub.f32 %v3554, %v5169
    %v5171 = vand.u32 %v5170, 4294901760
    %5172 = vmatpush.msra.mxu0 %v5171
    %v5173 = vand.u32 %v3546, 4294901760
    %v5174 = vsub.f32 %v3546, %v5173
    %v5175 = vand.u32 %v5174, 4294901760
    %5176 = vmatpush.msra.mxu0 %v5175
    %v5177 = vand.u32 %v3538, 4294901760
    %v5178 = vsub.f32 %v3538, %v5177
    %v5179 = vand.u32 %v5178, 4294901760
    %5180 = vmatpush.msra.mxu0 %v5179
    %v5181 = vand.u32 %v3530, 4294901760
    %v5182 = vsub.f32 %v3530, %v5181
    %v5183 = vand.u32 %v5182, 4294901760
    %5184 = vmatpush.msra.mxu0 %v5183
    %v5185 = vand.u32 %v3522, 4294901760
    %v5186 = vsub.f32 %v3522, %v5185
    %v5187 = vand.u32 %v5186, 4294901760
    %5188 = vmatpush.msra.mxu0 %v5187
    %v5189 = vand.u32 %v3514, 4294901760
    %v5190 = vsub.f32 %v3514, %v5189
    %v5191 = vand.u32 %v5190, 4294901760
    %5192 = vmatpush.msra.mxu0 %v5191
    %v5193 = vand.u32 %v3506, 4294901760
    %v5194 = vsub.f32 %v3506, %v5193
    %v5195 = vand.u32 %v5194, 4294901760
    %5196 = vmatpush.msra.mxu0 %v5195
    %v5197 = vand.u32 %v3498, 4294901760
    %v5198 = vsub.f32 %v3498, %v5197
    %v5199 = vand.u32 %v5198, 4294901760
    %5200 = vmatpush.msra.mxu0 %v5199
    %v5201 = vand.u32 %v3490, 4294901760
    %v5202 = vsub.f32 %v3490, %v5201
    %v5203 = vand.u32 %v5202, 4294901760
    %5204 = vmatpush.msra.mxu0 %v5203
    %v5205 = vand.u32 %v3482, 4294901760
    %v5206 = vsub.f32 %v3482, %v5205
    %v5207 = vand.u32 %v5206, 4294901760
    %5208 = vmatpush.msra.mxu0 %v5207
    %v5209 = vand.u32 %v3474, 4294901760
    %v5210 = vsub.f32 %v3474, %v5209
    %v5211 = vand.u32 %v5210, 4294901760
    %5212 = vmatpush.msra.mxu0 %v5211
    %v5213 = vand.u32 %v3466, 4294901760
    %v5214 = vsub.f32 %v3466, %v5213
    %v5215 = vand.u32 %v5214, 4294901760
    %5216 = vmatpush.msra.mxu0 %v5215
    %v5217 = vand.u32 %v3458, 4294901760
    %v5218 = vsub.f32 %v3458, %v5217
    %v5219 = vand.u32 %v5218, 4294901760
    %5220 = vmatpush.msra.mxu0 %v5219
    %v5221 = vand.u32 %v3450, 4294901760
    %v5222 = vsub.f32 %v3450, %v5221
    %v5223 = vand.u32 %v5222, 4294901760
    %5224 = vmatpush.msra.mxu0 %v5223
    %v5225 = vand.u32 %v3442, 4294901760
    %v5226 = vsub.f32 %v3442, %v5225
    %v5227 = vand.u32 %v5226, 4294901760
    %5228 = vmatpush.msra.mxu0 %v5227
    %v5229 = vand.u32 %v3436, 4294901760
    %5230 = vmatmul.f32.gmra.mxu0 %v5229
    %v5231 = vpop.f32.mrf.mxu0
    %v5232 = vadd.f32 %v5163, %v5231
    %5233 = vdwg.mxu0
    %v5234 = vand.u32 %v3562, 4294901760
    %5235 = vmatpush.msra.mxu0 %v5234
    %v5236 = vand.u32 %v3554, 4294901760
    %5237 = vmatpush.msra.mxu0 %v5236
    %v5238 = vand.u32 %v3546, 4294901760
    %5239 = vmatpush.msra.mxu0 %v5238
    %v5240 = vand.u32 %v3538, 4294901760
    %5241 = vmatpush.msra.mxu0 %v5240
    %v5242 = vand.u32 %v3530, 4294901760
    %5243 = vmatpush.msra.mxu0 %v5242
    %v5244 = vand.u32 %v3522, 4294901760
    %5245 = vmatpush.msra.mxu0 %v5244
    %v5246 = vand.u32 %v3514, 4294901760
    %5247 = vmatpush.msra.mxu0 %v5246
    %v5248 = vand.u32 %v3506, 4294901760
    %5249 = vmatpush.msra.mxu0 %v5248
    %v5250 = vand.u32 %v3498, 4294901760
    %5251 = vmatpush.msra.mxu0 %v5250
    %v5252 = vand.u32 %v3490, 4294901760
    %5253 = vmatpush.msra.mxu0 %v5252
    %v5254 = vand.u32 %v3482, 4294901760
    %5255 = vmatpush.msra.mxu0 %v5254
    %v5256 = vand.u32 %v3474, 4294901760
    %5257 = vmatpush.msra.mxu0 %v5256
    %v5258 = vand.u32 %v3466, 4294901760
    %5259 = vmatpush.msra.mxu0 %v5258
    %v5260 = vand.u32 %v3458, 4294901760
    %5261 = vmatpush.msra.mxu0 %v5260
    %v5262 = vand.u32 %v3450, 4294901760
    %5263 = vmatpush.msra.mxu0 %v5262
    %v5264 = vand.u32 %v3442, 4294901760
    %5265 = vmatpush.msra.mxu0 %v5264
    %v5266 = vand.u32 %v3436, 4294901760
    %5267 = vmatmul.f32.gmra.mxu0 %v5266
    %v5268 = vpop.f32.mrf.mxu0
    %v5269 = vadd.f32 %v5232, %v5268
    %5270 = vdwg.mxu0
    %v5271 = vand.u32 %v3563, 4294901760
    %5272 = vmatpush.msra.mxu0 %v5271
    %v5273 = vand.u32 %v3555, 4294901760
    %5274 = vmatpush.msra.mxu0 %v5273
    %v5275 = vand.u32 %v3547, 4294901760
    %5276 = vmatpush.msra.mxu0 %v5275
    %v5277 = vand.u32 %v3539, 4294901760
    %5278 = vmatpush.msra.mxu0 %v5277
    %v5279 = vand.u32 %v3531, 4294901760
    %5280 = vmatpush.msra.mxu0 %v5279
    %v5281 = vand.u32 %v3523, 4294901760
    %5282 = vmatpush.msra.mxu0 %v5281
    %v5283 = vand.u32 %v3515, 4294901760
    %5284 = vmatpush.msra.mxu0 %v5283
    %v5285 = vand.u32 %v3507, 4294901760
    %5286 = vmatpush.msra.mxu0 %v5285
    %v5287 = vand.u32 %v3499, 4294901760
    %5288 = vmatpush.msra.mxu0 %v5287
    %v5289 = vand.u32 %v3491, 4294901760
    %5290 = vmatpush.msra.mxu0 %v5289
    %v5291 = vand.u32 %v3483, 4294901760
    %5292 = vmatpush.msra.mxu0 %v5291
    %v5293 = vand.u32 %v3475, 4294901760
    %5294 = vmatpush.msra.mxu0 %v5293
    %v5295 = vand.u32 %v3467, 4294901760
    %5296 = vmatpush.msra.mxu0 %v5295
    %v5297 = vand.u32 %v3459, 4294901760
    %5298 = vmatpush.msra.mxu0 %v5297
    %v5299 = vand.u32 %v3451, 4294901760
    %5300 = vmatpush.msra.mxu0 %v5299
    %v5301 = vand.u32 %v3443, 4294901760
    %5302 = vmatpush.msra.mxu0 %v5301
    %v5303 = vand.u32 %v3436, 4294901760
    %v5304 = vsub.f32 %v3436, %v5303
    %v5305 = vand.u32 %v5304, 4294901760
    %v5306 = vsub.f32 %v5304, %v5305
    %v5307 = vand.u32 %v5306, 4294901760
    %5308 = vmatmul.f32.gmra.mxu0 %v5307
    %v5309 = vpop.f32.mrf.mxu0
    %v5310 = vadd.f32 0.0, %v5309
    %5311 = vdwg.mxu0
    %v5312 = vand.u32 %v3563, 4294901760
    %v5313 = vsub.f32 %v3563, %v5312
    %v5314 = vand.u32 %v5313, 4294901760
    %v5315 = vsub.f32 %v5313, %v5314
    %v5316 = vand.u32 %v5315, 4294901760
    %5317 = vmatpush.msra.mxu0 %v5316
    %v5318 = vand.u32 %v3555, 4294901760
    %v5319 = vsub.f32 %v3555, %v5318
    %v5320 = vand.u32 %v5319, 4294901760
    %v5321 = vsub.f32 %v5319, %v5320
    %v5322 = vand.u32 %v5321, 4294901760
    %5323 = vmatpush.msra.mxu0 %v5322
    %v5324 = vand.u32 %v3547, 4294901760
    %v5325 = vsub.f32 %v3547, %v5324
    %v5326 = vand.u32 %v5325, 4294901760
    %v5327 = vsub.f32 %v5325, %v5326
    %v5328 = vand.u32 %v5327, 4294901760
    %5329 = vmatpush.msra.mxu0 %v5328
    %v5330 = vand.u32 %v3539, 4294901760
    %v5331 = vsub.f32 %v3539, %v5330
    %v5332 = vand.u32 %v5331, 4294901760
    %v5333 = vsub.f32 %v5331, %v5332
    %v5334 = vand.u32 %v5333, 4294901760
    %5335 = vmatpush.msra.mxu0 %v5334
    %v5336 = vand.u32 %v3531, 4294901760
    %v5337 = vsub.f32 %v3531, %v5336
    %v5338 = vand.u32 %v5337, 4294901760
    %v5339 = vsub.f32 %v5337, %v5338
    %v5340 = vand.u32 %v5339, 4294901760
    %5341 = vmatpush.msra.mxu0 %v5340
    %v5342 = vand.u32 %v3523, 4294901760
    %v5343 = vsub.f32 %v3523, %v5342
    %v5344 = vand.u32 %v5343, 4294901760
    %v5345 = vsub.f32 %v5343, %v5344
    %v5346 = vand.u32 %v5345, 4294901760
    %5347 = vmatpush.msra.mxu0 %v5346
    %v5348 = vand.u32 %v3515, 4294901760
    %v5349 = vsub.f32 %v3515, %v5348
    %v5350 = vand.u32 %v5349, 4294901760
    %v5351 = vsub.f32 %v5349, %v5350
    %v5352 = vand.u32 %v5351, 4294901760
    %5353 = vmatpush.msra.mxu0 %v5352
    %v5354 = vand.u32 %v3507, 4294901760
    %v5355 = vsub.f32 %v3507, %v5354
    %v5356 = vand.u32 %v5355, 4294901760
    %v5357 = vsub.f32 %v5355, %v5356
    %v5358 = vand.u32 %v5357, 4294901760
    %5359 = vmatpush.msra.mxu0 %v5358
    %v5360 = vand.u32 %v3499, 4294901760
    %v5361 = vsub.f32 %v3499, %v5360
    %v5362 = vand.u32 %v5361, 4294901760
    %v5363 = vsub.f32 %v5361, %v5362
    %v5364 = vand.u32 %v5363, 4294901760
    %5365 = vmatpush.msra.mxu0 %v5364
    %v5366 = vand.u32 %v3491, 4294901760
    %v5367 = vsub.f32 %v3491, %v5366
    %v5368 = vand.u32 %v5367, 4294901760
    %v5369 = vsub.f32 %v5367, %v5368
    %v5370 = vand.u32 %v5369, 4294901760
    %5371 = vmatpush.msra.mxu0 %v5370
    %v5372 = vand.u32 %v3483, 4294901760
    %v5373 = vsub.f32 %v3483, %v5372
    %v5374 = vand.u32 %v5373, 4294901760
    %v5375 = vsub.f32 %v5373, %v5374
    %v5376 = vand.u32 %v5375, 4294901760
    %5377 = vmatpush.msra.mxu0 %v5376
    %v5378 = vand.u32 %v3475, 4294901760
    %v5379 = vsub.f32 %v3475, %v5378
    %v5380 = vand.u32 %v5379, 4294901760
    %v5381 = vsub.f32 %v5379, %v5380
    %v5382 = vand.u32 %v5381, 4294901760
    %5383 = vmatpush.msra.mxu0 %v5382
    %v5384 = vand.u32 %v3467, 4294901760
    %v5385 = vsub.f32 %v3467, %v5384
    %v5386 = vand.u32 %v5385, 4294901760
    %v5387 = vsub.f32 %v5385, %v5386
    %v5388 = vand.u32 %v5387, 4294901760
    %5389 = vmatpush.msra.mxu0 %v5388
    %v5390 = vand.u32 %v3459, 4294901760
    %v5391 = vsub.f32 %v3459, %v5390
    %v5392 = vand.u32 %v5391, 4294901760
    %v5393 = vsub.f32 %v5391, %v5392
    %v5394 = vand.u32 %v5393, 4294901760
    %5395 = vmatpush.msra.mxu0 %v5394
    %v5396 = vand.u32 %v3451, 4294901760
    %v5397 = vsub.f32 %v3451, %v5396
    %v5398 = vand.u32 %v5397, 4294901760
    %v5399 = vsub.f32 %v5397, %v5398
    %v5400 = vand.u32 %v5399, 4294901760
    %5401 = vmatpush.msra.mxu0 %v5400
    %v5402 = vand.u32 %v3443, 4294901760
    %v5403 = vsub.f32 %v3443, %v5402
    %v5404 = vand.u32 %v5403, 4294901760
    %v5405 = vsub.f32 %v5403, %v5404
    %v5406 = vand.u32 %v5405, 4294901760
    %5407 = vmatpush.msra.mxu0 %v5406
    %v5408 = vand.u32 %v3436, 4294901760
    %5409 = vmatmul.f32.gmra.mxu0 %v5408
    %v5410 = vpop.f32.mrf.mxu0
    %v5411 = vadd.f32 %v5310, %v5410
    %5412 = vdwg.mxu0
    %v5413 = vand.u32 %v3563, 4294901760
    %v5414 = vsub.f32 %v3563, %v5413
    %5415 = vmatpush.msra.mxu0 %v5414
    %v5416 = vand.u32 %v3555, 4294901760
    %v5417 = vsub.f32 %v3555, %v5416
    %5418 = vmatpush.msra.mxu0 %v5417
    %v5419 = vand.u32 %v3547, 4294901760
    %v5420 = vsub.f32 %v3547, %v5419
    %5421 = vmatpush.msra.mxu0 %v5420
    %v5422 = vand.u32 %v3539, 4294901760
    %v5423 = vsub.f32 %v3539, %v5422
    %5424 = vmatpush.msra.mxu0 %v5423
    %v5425 = vand.u32 %v3531, 4294901760
    %v5426 = vsub.f32 %v3531, %v5425
    %5427 = vmatpush.msra.mxu0 %v5426
    %v5428 = vand.u32 %v3523, 4294901760
    %v5429 = vsub.f32 %v3523, %v5428
    %5430 = vmatpush.msra.mxu0 %v5429
    %v5431 = vand.u32 %v3515, 4294901760
    %v5432 = vsub.f32 %v3515, %v5431
    %5433 = vmatpush.msra.mxu0 %v5432
    %v5434 = vand.u32 %v3507, 4294901760
    %v5435 = vsub.f32 %v3507, %v5434
    %5436 = vmatpush.msra.mxu0 %v5435
    %v5437 = vand.u32 %v3499, 4294901760
    %v5438 = vsub.f32 %v3499, %v5437
    %5439 = vmatpush.msra.mxu0 %v5438
    %v5440 = vand.u32 %v3491, 4294901760
    %v5441 = vsub.f32 %v3491, %v5440
    %5442 = vmatpush.msra.mxu0 %v5441
    %v5443 = vand.u32 %v3483, 4294901760
    %v5444 = vsub.f32 %v3483, %v5443
    %5445 = vmatpush.msra.mxu0 %v5444
    %v5446 = vand.u32 %v3475, 4294901760
    %v5447 = vsub.f32 %v3475, %v5446
    %5448 = vmatpush.msra.mxu0 %v5447
    %v5449 = vand.u32 %v3467, 4294901760
    %v5450 = vsub.f32 %v3467, %v5449
    %5451 = vmatpush.msra.mxu0 %v5450
    %v5452 = vand.u32 %v3459, 4294901760
    %v5453 = vsub.f32 %v3459, %v5452
    %5454 = vmatpush.msra.mxu0 %v5453
    %v5455 = vand.u32 %v3451, 4294901760
    %v5456 = vsub.f32 %v3451, %v5455
    %5457 = vmatpush.msra.mxu0 %v5456
    %v5458 = vand.u32 %v3443, 4294901760
    %v5459 = vsub.f32 %v3443, %v5458
    %5460 = vmatpush.msra.mxu0 %v5459
    %v5461 = vand.u32 %v3436, 4294901760
    %v5462 = vsub.f32 %v3436, %v5461
    %5463 = vmatmul.f32.gmra.mxu0 %v5462
    %v5464 = vpop.f32.mrf.mxu0
    %v5465 = vadd.f32 %v5411, %v5464
    %5466 = vdwg.mxu0
    %v5467 = vand.u32 %v3563, 4294901760
    %5468 = vmatpush.msra.mxu0 %v5467
    %v5469 = vand.u32 %v3555, 4294901760
    %5470 = vmatpush.msra.mxu0 %v5469
    %v5471 = vand.u32 %v3547, 4294901760
    %5472 = vmatpush.msra.mxu0 %v5471
    %v5473 = vand.u32 %v3539, 4294901760
    %5474 = vmatpush.msra.mxu0 %v5473
    %v5475 = vand.u32 %v3531, 4294901760
    %5476 = vmatpush.msra.mxu0 %v5475
    %v5477 = vand.u32 %v3523, 4294901760
    %5478 = vmatpush.msra.mxu0 %v5477
    %v5479 = vand.u32 %v3515, 4294901760
    %5480 = vmatpush.msra.mxu0 %v5479
    %v5481 = vand.u32 %v3507, 4294901760
    %5482 = vmatpush.msra.mxu0 %v5481
    %v5483 = vand.u32 %v3499, 4294901760
    %5484 = vmatpush.msra.mxu0 %v5483
    %v5485 = vand.u32 %v3491, 4294901760
    %5486 = vmatpush.msra.mxu0 %v5485
    %v5487 = vand.u32 %v3483, 4294901760
    %5488 = vmatpush.msra.mxu0 %v5487
    %v5489 = vand.u32 %v3475, 4294901760
    %5490 = vmatpush.msra.mxu0 %v5489
    %v5491 = vand.u32 %v3467, 4294901760
    %5492 = vmatpush.msra.mxu0 %v5491
    %v5493 = vand.u32 %v3459, 4294901760
    %5494 = vmatpush.msra.mxu0 %v5493
    %v5495 = vand.u32 %v3451, 4294901760
    %5496 = vmatpush.msra.mxu0 %v5495
    %v5497 = vand.u32 %v3443, 4294901760
    %5498 = vmatpush.msra.mxu0 %v5497
    %v5499 = vand.u32 %v3436, 4294901760
    %v5500 = vsub.f32 %v3436, %v5499
    %v5501 = vand.u32 %v5500, 4294901760
    %5502 = vmatmul.f32.gmra.mxu0 %v5501
    %v5503 = vpop.f32.mrf.mxu0
    %v5504 = vadd.f32 %v5465, %v5503
    %5505 = vdwg.mxu0
    %v5506 = vand.u32 %v3563, 4294901760
    %v5507 = vsub.f32 %v3563, %v5506
    %v5508 = vand.u32 %v5507, 4294901760
    %5509 = vmatpush.msra.mxu0 %v5508
    %v5510 = vand.u32 %v3555, 4294901760
    %v5511 = vsub.f32 %v3555, %v5510
    %v5512 = vand.u32 %v5511, 4294901760
    %5513 = vmatpush.msra.mxu0 %v5512
    %v5514 = vand.u32 %v3547, 4294901760
    %v5515 = vsub.f32 %v3547, %v5514
    %v5516 = vand.u32 %v5515, 4294901760
    %5517 = vmatpush.msra.mxu0 %v5516
    %v5518 = vand.u32 %v3539, 4294901760
    %v5519 = vsub.f32 %v3539, %v5518
    %v5520 = vand.u32 %v5519, 4294901760
    %5521 = vmatpush.msra.mxu0 %v5520
    %v5522 = vand.u32 %v3531, 4294901760
    %v5523 = vsub.f32 %v3531, %v5522
    %v5524 = vand.u32 %v5523, 4294901760
    %5525 = vmatpush.msra.mxu0 %v5524
    %v5526 = vand.u32 %v3523, 4294901760
    %v5527 = vsub.f32 %v3523, %v5526
    %v5528 = vand.u32 %v5527, 4294901760
    %5529 = vmatpush.msra.mxu0 %v5528
    %v5530 = vand.u32 %v3515, 4294901760
    %v5531 = vsub.f32 %v3515, %v5530
    %v5532 = vand.u32 %v5531, 4294901760
    %5533 = vmatpush.msra.mxu0 %v5532
    %v5534 = vand.u32 %v3507, 4294901760
    %v5535 = vsub.f32 %v3507, %v5534
    %v5536 = vand.u32 %v5535, 4294901760
    %5537 = vmatpush.msra.mxu0 %v5536
    %v5538 = vand.u32 %v3499, 4294901760
    %v5539 = vsub.f32 %v3499, %v5538
    %v5540 = vand.u32 %v5539, 4294901760
    %5541 = vmatpush.msra.mxu0 %v5540
    %v5542 = vand.u32 %v3491, 4294901760
    %v5543 = vsub.f32 %v3491, %v5542
    %v5544 = vand.u32 %v5543, 4294901760
    %5545 = vmatpush.msra.mxu0 %v5544
    %v5546 = vand.u32 %v3483, 4294901760
    %v5547 = vsub.f32 %v3483, %v5546
    %v5548 = vand.u32 %v5547, 4294901760
    %5549 = vmatpush.msra.mxu0 %v5548
    %v5550 = vand.u32 %v3475, 4294901760
    %v5551 = vsub.f32 %v3475, %v5550
    %v5552 = vand.u32 %v5551, 4294901760
    %5553 = vmatpush.msra.mxu0 %v5552
    %v5554 = vand.u32 %v3467, 4294901760
    %v5555 = vsub.f32 %v3467, %v5554
    %v5556 = vand.u32 %v5555, 4294901760
    %5557 = vmatpush.msra.mxu0 %v5556
    %v5558 = vand.u32 %v3459, 4294901760
    %v5559 = vsub.f32 %v3459, %v5558
    %v5560 = vand.u32 %v5559, 4294901760
    %5561 = vmatpush.msra.mxu0 %v5560
    %v5562 = vand.u32 %v3451, 4294901760
    %v5563 = vsub.f32 %v3451, %v5562
    %v5564 = vand.u32 %v5563, 4294901760
    %5565 = vmatpush.msra.mxu0 %v5564
    %v5566 = vand.u32 %v3443, 4294901760
    %v5567 = vsub.f32 %v3443, %v5566
    %v5568 = vand.u32 %v5567, 4294901760
    %5569 = vmatpush.msra.mxu0 %v5568
    %v5570 = vand.u32 %v3436, 4294901760
    %5571 = vmatmul.f32.gmra.mxu0 %v5570
    %v5572 = vpop.f32.mrf.mxu0
    %v5573 = vadd.f32 %v5504, %v5572
    %5574 = vdwg.mxu0
    %v5575 = vand.u32 %v3563, 4294901760
    %5576 = vmatpush.msra.mxu0 %v5575
    %v5577 = vand.u32 %v3555, 4294901760
    %5578 = vmatpush.msra.mxu0 %v5577
    %v5579 = vand.u32 %v3547, 4294901760
    %5580 = vmatpush.msra.mxu0 %v5579
    %v5581 = vand.u32 %v3539, 4294901760
    %5582 = vmatpush.msra.mxu0 %v5581
    %v5583 = vand.u32 %v3531, 4294901760
    %5584 = vmatpush.msra.mxu0 %v5583
    %v5585 = vand.u32 %v3523, 4294901760
    %5586 = vmatpush.msra.mxu0 %v5585
    %v5587 = vand.u32 %v3515, 4294901760
    %5588 = vmatpush.msra.mxu0 %v5587
    %v5589 = vand.u32 %v3507, 4294901760
    %5590 = vmatpush.msra.mxu0 %v5589
    %v5591 = vand.u32 %v3499, 4294901760
    %5592 = vmatpush.msra.mxu0 %v5591
    %v5593 = vand.u32 %v3491, 4294901760
    %5594 = vmatpush.msra.mxu0 %v5593
    %v5595 = vand.u32 %v3483, 4294901760
    %5596 = vmatpush.msra.mxu0 %v5595
    %v5597 = vand.u32 %v3475, 4294901760
    %5598 = vmatpush.msra.mxu0 %v5597
    %v5599 = vand.u32 %v3467, 4294901760
    %5600 = vmatpush.msra.mxu0 %v5599
    %v5601 = vand.u32 %v3459, 4294901760
    %5602 = vmatpush.msra.mxu0 %v5601
    %v5603 = vand.u32 %v3451, 4294901760
    %5604 = vmatpush.msra.mxu0 %v5603
    %v5605 = vand.u32 %v3443, 4294901760
    %5606 = vmatpush.msra.mxu0 %v5605
    %v5607 = vand.u32 %v3436, 4294901760
    %5608 = vmatmul.f32.gmra.mxu0 %v5607
    %v5609 = vpop.f32.mrf.mxu0
    %v5610 = vadd.f32 %v5573, %v5609
    %5611 = vdwg.mxu0
    %v5612 = vand.u32 %v3564, 4294901760
    %5613 = vmatpush.msra.mxu0 %v5612
    %v5614 = vand.u32 %v3556, 4294901760
    %5615 = vmatpush.msra.mxu0 %v5614
    %v5616 = vand.u32 %v3548, 4294901760
    %5617 = vmatpush.msra.mxu0 %v5616
    %v5618 = vand.u32 %v3540, 4294901760
    %5619 = vmatpush.msra.mxu0 %v5618
    %v5620 = vand.u32 %v3532, 4294901760
    %5621 = vmatpush.msra.mxu0 %v5620
    %v5622 = vand.u32 %v3524, 4294901760
    %5623 = vmatpush.msra.mxu0 %v5622
    %v5624 = vand.u32 %v3516, 4294901760
    %5625 = vmatpush.msra.mxu0 %v5624
    %v5626 = vand.u32 %v3508, 4294901760
    %5627 = vmatpush.msra.mxu0 %v5626
    %v5628 = vand.u32 %v3500, 4294901760
    %5629 = vmatpush.msra.mxu0 %v5628
    %v5630 = vand.u32 %v3492, 4294901760
    %5631 = vmatpush.msra.mxu0 %v5630
    %v5632 = vand.u32 %v3484, 4294901760
    %5633 = vmatpush.msra.mxu0 %v5632
    %v5634 = vand.u32 %v3476, 4294901760
    %5635 = vmatpush.msra.mxu0 %v5634
    %v5636 = vand.u32 %v3468, 4294901760
    %5637 = vmatpush.msra.mxu0 %v5636
    %v5638 = vand.u32 %v3460, 4294901760
    %5639 = vmatpush.msra.mxu0 %v5638
    %v5640 = vand.u32 %v3452, 4294901760
    %5641 = vmatpush.msra.mxu0 %v5640
    %v5642 = vand.u32 %v3444, 4294901760
    %5643 = vmatpush.msra.mxu0 %v5642
    %v5644 = vand.u32 %v3436, 4294901760
    %v5645 = vsub.f32 %v3436, %v5644
    %v5646 = vand.u32 %v5645, 4294901760
    %v5647 = vsub.f32 %v5645, %v5646
    %v5648 = vand.u32 %v5647, 4294901760
    %5649 = vmatmul.f32.gmra.mxu0 %v5648
    %v5650 = vpop.f32.mrf.mxu0
    %v5651 = vadd.f32 0.0, %v5650
    %5652 = vdwg.mxu0
    %v5653 = vand.u32 %v3564, 4294901760
    %v5654 = vsub.f32 %v3564, %v5653
    %v5655 = vand.u32 %v5654, 4294901760
    %v5656 = vsub.f32 %v5654, %v5655
    %v5657 = vand.u32 %v5656, 4294901760
    %5658 = vmatpush.msra.mxu0 %v5657
    %v5659 = vand.u32 %v3556, 4294901760
    %v5660 = vsub.f32 %v3556, %v5659
    %v5661 = vand.u32 %v5660, 4294901760
    %v5662 = vsub.f32 %v5660, %v5661
    %v5663 = vand.u32 %v5662, 4294901760
    %5664 = vmatpush.msra.mxu0 %v5663
    %v5665 = vand.u32 %v3548, 4294901760
    %v5666 = vsub.f32 %v3548, %v5665
    %v5667 = vand.u32 %v5666, 4294901760
    %v5668 = vsub.f32 %v5666, %v5667
    %v5669 = vand.u32 %v5668, 4294901760
    %5670 = vmatpush.msra.mxu0 %v5669
    %v5671 = vand.u32 %v3540, 4294901760
    %v5672 = vsub.f32 %v3540, %v5671
    %v5673 = vand.u32 %v5672, 4294901760
    %v5674 = vsub.f32 %v5672, %v5673
    %v5675 = vand.u32 %v5674, 4294901760
    %5676 = vmatpush.msra.mxu0 %v5675
    %v5677 = vand.u32 %v3532, 4294901760
    %v5678 = vsub.f32 %v3532, %v5677
    %v5679 = vand.u32 %v5678, 4294901760
    %v5680 = vsub.f32 %v5678, %v5679
    %v5681 = vand.u32 %v5680, 4294901760
    %5682 = vmatpush.msra.mxu0 %v5681
    %v5683 = vand.u32 %v3524, 4294901760
    %v5684 = vsub.f32 %v3524, %v5683
    %v5685 = vand.u32 %v5684, 4294901760
    %v5686 = vsub.f32 %v5684, %v5685
    %v5687 = vand.u32 %v5686, 4294901760
    %5688 = vmatpush.msra.mxu0 %v5687
    %v5689 = vand.u32 %v3516, 4294901760
    %v5690 = vsub.f32 %v3516, %v5689
    %v5691 = vand.u32 %v5690, 4294901760
    %v5692 = vsub.f32 %v5690, %v5691
    %v5693 = vand.u32 %v5692, 4294901760
    %5694 = vmatpush.msra.mxu0 %v5693
    %v5695 = vand.u32 %v3508, 4294901760
    %v5696 = vsub.f32 %v3508, %v5695
    %v5697 = vand.u32 %v5696, 4294901760
    %v5698 = vsub.f32 %v5696, %v5697
    %v5699 = vand.u32 %v5698, 4294901760
    %5700 = vmatpush.msra.mxu0 %v5699
    %v5701 = vand.u32 %v3500, 4294901760
    %v5702 = vsub.f32 %v3500, %v5701
    %v5703 = vand.u32 %v5702, 4294901760
    %v5704 = vsub.f32 %v5702, %v5703
    %v5705 = vand.u32 %v5704, 4294901760
    %5706 = vmatpush.msra.mxu0 %v5705
    %v5707 = vand.u32 %v3492, 4294901760
    %v5708 = vsub.f32 %v3492, %v5707
    %v5709 = vand.u32 %v5708, 4294901760
    %v5710 = vsub.f32 %v5708, %v5709
    %v5711 = vand.u32 %v5710, 4294901760
    %5712 = vmatpush.msra.mxu0 %v5711
    %v5713 = vand.u32 %v3484, 4294901760
    %v5714 = vsub.f32 %v3484, %v5713
    %v5715 = vand.u32 %v5714, 4294901760
    %v5716 = vsub.f32 %v5714, %v5715
    %v5717 = vand.u32 %v5716, 4294901760
    %5718 = vmatpush.msra.mxu0 %v5717
    %v5719 = vand.u32 %v3476, 4294901760
    %v5720 = vsub.f32 %v3476, %v5719
    %v5721 = vand.u32 %v5720, 4294901760
    %v5722 = vsub.f32 %v5720, %v5721
    %v5723 = vand.u32 %v5722, 4294901760
    %5724 = vmatpush.msra.mxu0 %v5723
    %v5725 = vand.u32 %v3468, 4294901760
    %v5726 = vsub.f32 %v3468, %v5725
    %v5727 = vand.u32 %v5726, 4294901760
    %v5728 = vsub.f32 %v5726, %v5727
    %v5729 = vand.u32 %v5728, 4294901760
    %5730 = vmatpush.msra.mxu0 %v5729
    %v5731 = vand.u32 %v3460, 4294901760
    %v5732 = vsub.f32 %v3460, %v5731
    %v5733 = vand.u32 %v5732, 4294901760
    %v5734 = vsub.f32 %v5732, %v5733
    %v5735 = vand.u32 %v5734, 4294901760
    %5736 = vmatpush.msra.mxu0 %v5735
    %v5737 = vand.u32 %v3452, 4294901760
    %v5738 = vsub.f32 %v3452, %v5737
    %v5739 = vand.u32 %v5738, 4294901760
    %v5740 = vsub.f32 %v5738, %v5739
    %v5741 = vand.u32 %v5740, 4294901760
    %5742 = vmatpush.msra.mxu0 %v5741
    %v5743 = vand.u32 %v3444, 4294901760
    %v5744 = vsub.f32 %v3444, %v5743
    %v5745 = vand.u32 %v5744, 4294901760
    %v5746 = vsub.f32 %v5744, %v5745
    %v5747 = vand.u32 %v5746, 4294901760
    %5748 = vmatpush.msra.mxu0 %v5747
    %v5749 = vand.u32 %v3436, 4294901760
    %5750 = vmatmul.f32.gmra.mxu0 %v5749
    %v5751 = vpop.f32.mrf.mxu0
    %v5752 = vadd.f32 %v5651, %v5751
    %5753 = vdwg.mxu0
    %v5754 = vand.u32 %v3564, 4294901760
    %v5755 = vsub.f32 %v3564, %v5754
    %5756 = vmatpush.msra.mxu0 %v5755
    %v5757 = vand.u32 %v3556, 4294901760
    %v5758 = vsub.f32 %v3556, %v5757
    %5759 = vmatpush.msra.mxu0 %v5758
    %v5760 = vand.u32 %v3548, 4294901760
    %v5761 = vsub.f32 %v3548, %v5760
    %5762 = vmatpush.msra.mxu0 %v5761
    %v5763 = vand.u32 %v3540, 4294901760
    %v5764 = vsub.f32 %v3540, %v5763
    %5765 = vmatpush.msra.mxu0 %v5764
    %v5766 = vand.u32 %v3532, 4294901760
    %v5767 = vsub.f32 %v3532, %v5766
    %5768 = vmatpush.msra.mxu0 %v5767
    %v5769 = vand.u32 %v3524, 4294901760
    %v5770 = vsub.f32 %v3524, %v5769
    %5771 = vmatpush.msra.mxu0 %v5770
    %v5772 = vand.u32 %v3516, 4294901760
    %v5773 = vsub.f32 %v3516, %v5772
    %5774 = vmatpush.msra.mxu0 %v5773
    %v5775 = vand.u32 %v3508, 4294901760
    %v5776 = vsub.f32 %v3508, %v5775
    %5777 = vmatpush.msra.mxu0 %v5776
    %v5778 = vand.u32 %v3500, 4294901760
    %v5779 = vsub.f32 %v3500, %v5778
    %5780 = vmatpush.msra.mxu0 %v5779
    %v5781 = vand.u32 %v3492, 4294901760
    %v5782 = vsub.f32 %v3492, %v5781
    %5783 = vmatpush.msra.mxu0 %v5782
    %v5784 = vand.u32 %v3484, 4294901760
    %v5785 = vsub.f32 %v3484, %v5784
    %5786 = vmatpush.msra.mxu0 %v5785
    %v5787 = vand.u32 %v3476, 4294901760
    %v5788 = vsub.f32 %v3476, %v5787
    %5789 = vmatpush.msra.mxu0 %v5788
    %v5790 = vand.u32 %v3468, 4294901760
    %v5791 = vsub.f32 %v3468, %v5790
    %5792 = vmatpush.msra.mxu0 %v5791
    %v5793 = vand.u32 %v3460, 4294901760
    %v5794 = vsub.f32 %v3460, %v5793
    %5795 = vmatpush.msra.mxu0 %v5794
    %v5796 = vand.u32 %v3452, 4294901760
    %v5797 = vsub.f32 %v3452, %v5796
    %5798 = vmatpush.msra.mxu0 %v5797
    %v5799 = vand.u32 %v3444, 4294901760
    %v5800 = vsub.f32 %v3444, %v5799
    %5801 = vmatpush.msra.mxu0 %v5800
    %v5802 = vand.u32 %v3436, 4294901760
    %v5803 = vsub.f32 %v3436, %v5802
    %5804 = vmatmul.f32.gmra.mxu0 %v5803
    %v5805 = vpop.f32.mrf.mxu0
    %v5806 = vadd.f32 %v5752, %v5805
    %5807 = vdwg.mxu0
    %v5808 = vand.u32 %v3564, 4294901760
    %5809 = vmatpush.msra.mxu0 %v5808
    %v5810 = vand.u32 %v3556, 4294901760
    %5811 = vmatpush.msra.mxu0 %v5810
    %v5812 = vand.u32 %v3548, 4294901760
    %5813 = vmatpush.msra.mxu0 %v5812
    %v5814 = vand.u32 %v3540, 4294901760
    %5815 = vmatpush.msra.mxu0 %v5814
    %v5816 = vand.u32 %v3532, 4294901760
    %5817 = vmatpush.msra.mxu0 %v5816
    %v5818 = vand.u32 %v3524, 4294901760
    %5819 = vmatpush.msra.mxu0 %v5818
    %v5820 = vand.u32 %v3516, 4294901760
    %5821 = vmatpush.msra.mxu0 %v5820
    %v5822 = vand.u32 %v3508, 4294901760
    %5823 = vmatpush.msra.mxu0 %v5822
    %v5824 = vand.u32 %v3500, 4294901760
    %5825 = vmatpush.msra.mxu0 %v5824
    %v5826 = vand.u32 %v3492, 4294901760
    %5827 = vmatpush.msra.mxu0 %v5826
    %v5828 = vand.u32 %v3484, 4294901760
    %5829 = vmatpush.msra.mxu0 %v5828
    %v5830 = vand.u32 %v3476, 4294901760
    %5831 = vmatpush.msra.mxu0 %v5830
    %v5832 = vand.u32 %v3468, 4294901760
    %5833 = vmatpush.msra.mxu0 %v5832
    %v5834 = vand.u32 %v3460, 4294901760
    %5835 = vmatpush.msra.mxu0 %v5834
    %v5836 = vand.u32 %v3452, 4294901760
    %5837 = vmatpush.msra.mxu0 %v5836
    %v5838 = vand.u32 %v3444, 4294901760
    %5839 = vmatpush.msra.mxu0 %v5838
    %v5840 = vand.u32 %v3436, 4294901760
    %v5841 = vsub.f32 %v3436, %v5840
    %v5842 = vand.u32 %v5841, 4294901760
    %5843 = vmatmul.f32.gmra.mxu0 %v5842
    %v5844 = vpop.f32.mrf.mxu0
    %v5845 = vadd.f32 %v5806, %v5844
    %5846 = vdwg.mxu0
    %v5847 = vand.u32 %v3564, 4294901760
    %v5848 = vsub.f32 %v3564, %v5847
    %v5849 = vand.u32 %v5848, 4294901760
    %5850 = vmatpush.msra.mxu0 %v5849
    %v5851 = vand.u32 %v3556, 4294901760
    %v5852 = vsub.f32 %v3556, %v5851
    %v5853 = vand.u32 %v5852, 4294901760
    %5854 = vmatpush.msra.mxu0 %v5853
    %v5855 = vand.u32 %v3548, 4294901760
    %v5856 = vsub.f32 %v3548, %v5855
    %v5857 = vand.u32 %v5856, 4294901760
    %5858 = vmatpush.msra.mxu0 %v5857
    %v5859 = vand.u32 %v3540, 4294901760
    %v5860 = vsub.f32 %v3540, %v5859
    %v5861 = vand.u32 %v5860, 4294901760
    %5862 = vmatpush.msra.mxu0 %v5861
    %v5863 = vand.u32 %v3532, 4294901760
    %v5864 = vsub.f32 %v3532, %v5863
    %v5865 = vand.u32 %v5864, 4294901760
    %5866 = vmatpush.msra.mxu0 %v5865
    %v5867 = vand.u32 %v3524, 4294901760
    %v5868 = vsub.f32 %v3524, %v5867
    %v5869 = vand.u32 %v5868, 4294901760
    %5870 = vmatpush.msra.mxu0 %v5869
    %v5871 = vand.u32 %v3516, 4294901760
    %v5872 = vsub.f32 %v3516, %v5871
    %v5873 = vand.u32 %v5872, 4294901760
    %5874 = vmatpush.msra.mxu0 %v5873
    %v5875 = vand.u32 %v3508, 4294901760
    %v5876 = vsub.f32 %v3508, %v5875
    %v5877 = vand.u32 %v5876, 4294901760
    %5878 = vmatpush.msra.mxu0 %v5877
    %v5879 = vand.u32 %v3500, 4294901760
    %v5880 = vsub.f32 %v3500, %v5879
    %v5881 = vand.u32 %v5880, 4294901760
    %5882 = vmatpush.msra.mxu0 %v5881
    %v5883 = vand.u32 %v3492, 4294901760
    %v5884 = vsub.f32 %v3492, %v5883
    %v5885 = vand.u32 %v5884, 4294901760
    %5886 = vmatpush.msra.mxu0 %v5885
    %v5887 = vand.u32 %v3484, 4294901760
    %v5888 = vsub.f32 %v3484, %v5887
    %v5889 = vand.u32 %v5888, 4294901760
    %5890 = vmatpush.msra.mxu0 %v5889
    %v5891 = vand.u32 %v3476, 4294901760
    %v5892 = vsub.f32 %v3476, %v5891
    %v5893 = vand.u32 %v5892, 4294901760
    %5894 = vmatpush.msra.mxu0 %v5893
    %v5895 = vand.u32 %v3468, 4294901760
    %v5896 = vsub.f32 %v3468, %v5895
    %v5897 = vand.u32 %v5896, 4294901760
    %5898 = vmatpush.msra.mxu0 %v5897
    %v5899 = vand.u32 %v3460, 4294901760
    %v5900 = vsub.f32 %v3460, %v5899
    %v5901 = vand.u32 %v5900, 4294901760
    %5902 = vmatpush.msra.mxu0 %v5901
    %v5903 = vand.u32 %v3452, 4294901760
    %v5904 = vsub.f32 %v3452, %v5903
    %v5905 = vand.u32 %v5904, 4294901760
    %5906 = vmatpush.msra.mxu0 %v5905
    %v5907 = vand.u32 %v3444, 4294901760
    %v5908 = vsub.f32 %v3444, %v5907
    %v5909 = vand.u32 %v5908, 4294901760
    %5910 = vmatpush.msra.mxu0 %v5909
    %v5911 = vand.u32 %v3436, 4294901760
    %5912 = vmatmul.f32.gmra.mxu0 %v5911
    %v5913 = vpop.f32.mrf.mxu0
    %v5914 = vadd.f32 %v5845, %v5913
    %5915 = vdwg.mxu0
    %v5916 = vand.u32 %v3564, 4294901760
    %5917 = vmatpush.msra.mxu0 %v5916
    %v5918 = vand.u32 %v3556, 4294901760
    %5919 = vmatpush.msra.mxu0 %v5918
    %v5920 = vand.u32 %v3548, 4294901760
    %5921 = vmatpush.msra.mxu0 %v5920
    %v5922 = vand.u32 %v3540, 4294901760
    %5923 = vmatpush.msra.mxu0 %v5922
    %v5924 = vand.u32 %v3532, 4294901760
    %5925 = vmatpush.msra.mxu0 %v5924
    %v5926 = vand.u32 %v3524, 4294901760
    %5927 = vmatpush.msra.mxu0 %v5926
    %v5928 = vand.u32 %v3516, 4294901760
    %5929 = vmatpush.msra.mxu0 %v5928
    %v5930 = vand.u32 %v3508, 4294901760
    %5931 = vmatpush.msra.mxu0 %v5930
    %v5932 = vand.u32 %v3500, 4294901760
    %5933 = vmatpush.msra.mxu0 %v5932
    %v5934 = vand.u32 %v3492, 4294901760
    %5935 = vmatpush.msra.mxu0 %v5934
    %v5936 = vand.u32 %v3484, 4294901760
    %5937 = vmatpush.msra.mxu0 %v5936
    %v5938 = vand.u32 %v3476, 4294901760
    %5939 = vmatpush.msra.mxu0 %v5938
    %v5940 = vand.u32 %v3468, 4294901760
    %5941 = vmatpush.msra.mxu0 %v5940
    %v5942 = vand.u32 %v3460, 4294901760
    %5943 = vmatpush.msra.mxu0 %v5942
    %v5944 = vand.u32 %v3452, 4294901760
    %5945 = vmatpush.msra.mxu0 %v5944
    %v5946 = vand.u32 %v3444, 4294901760
    %5947 = vmatpush.msra.mxu0 %v5946
    %v5948 = vand.u32 %v3436, 4294901760
    %5949 = vmatmul.f32.gmra.mxu0 %v5948
    %v5950 = vpop.f32.mrf.mxu0
    %v5951 = vadd.f32 %v5914, %v5950
    %5952 = vdwg.mxu0
    %v5953 = vand.u32 %v3565, 4294901760
    %5954 = vmatpush.msra.mxu0 %v5953
    %v5955 = vand.u32 %v3557, 4294901760
    %5956 = vmatpush.msra.mxu0 %v5955
    %v5957 = vand.u32 %v3549, 4294901760
    %5958 = vmatpush.msra.mxu0 %v5957
    %v5959 = vand.u32 %v3541, 4294901760
    %5960 = vmatpush.msra.mxu0 %v5959
    %v5961 = vand.u32 %v3533, 4294901760
    %5962 = vmatpush.msra.mxu0 %v5961
    %v5963 = vand.u32 %v3525, 4294901760
    %5964 = vmatpush.msra.mxu0 %v5963
    %v5965 = vand.u32 %v3517, 4294901760
    %5966 = vmatpush.msra.mxu0 %v5965
    %v5967 = vand.u32 %v3509, 4294901760
    %5968 = vmatpush.msra.mxu0 %v5967
    %v5969 = vand.u32 %v3501, 4294901760
    %5970 = vmatpush.msra.mxu0 %v5969
    %v5971 = vand.u32 %v3493, 4294901760
    %5972 = vmatpush.msra.mxu0 %v5971
    %v5973 = vand.u32 %v3485, 4294901760
    %5974 = vmatpush.msra.mxu0 %v5973
    %v5975 = vand.u32 %v3477, 4294901760
    %5976 = vmatpush.msra.mxu0 %v5975
    %v5977 = vand.u32 %v3469, 4294901760
    %5978 = vmatpush.msra.mxu0 %v5977
    %v5979 = vand.u32 %v3461, 4294901760
    %5980 = vmatpush.msra.mxu0 %v5979
    %v5981 = vand.u32 %v3453, 4294901760
    %5982 = vmatpush.msra.mxu0 %v5981
    %v5983 = vand.u32 %v3445, 4294901760
    %5984 = vmatpush.msra.mxu0 %v5983
    %v5985 = vand.u32 %v3436, 4294901760
    %v5986 = vsub.f32 %v3436, %v5985
    %v5987 = vand.u32 %v5986, 4294901760
    %v5988 = vsub.f32 %v5986, %v5987
    %v5989 = vand.u32 %v5988, 4294901760
    %5990 = vmatmul.f32.gmra.mxu0 %v5989
    %v5991 = vpop.f32.mrf.mxu0
    %v5992 = vadd.f32 0.0, %v5991
    %5993 = vdwg.mxu0
    %v5994 = vand.u32 %v3565, 4294901760
    %v5995 = vsub.f32 %v3565, %v5994
    %v5996 = vand.u32 %v5995, 4294901760
    %v5997 = vsub.f32 %v5995, %v5996
    %v5998 = vand.u32 %v5997, 4294901760
    %5999 = vmatpush.msra.mxu0 %v5998
    %v6000 = vand.u32 %v3557, 4294901760
    %v6001 = vsub.f32 %v3557, %v6000
    %v6002 = vand.u32 %v6001, 4294901760
    %v6003 = vsub.f32 %v6001, %v6002
    %v6004 = vand.u32 %v6003, 4294901760
    %6005 = vmatpush.msra.mxu0 %v6004
    %v6006 = vand.u32 %v3549, 4294901760
    %v6007 = vsub.f32 %v3549, %v6006
    %v6008 = vand.u32 %v6007, 4294901760
    %v6009 = vsub.f32 %v6007, %v6008
    %v6010 = vand.u32 %v6009, 4294901760
    %6011 = vmatpush.msra.mxu0 %v6010
    %v6012 = vand.u32 %v3541, 4294901760
    %v6013 = vsub.f32 %v3541, %v6012
    %v6014 = vand.u32 %v6013, 4294901760
    %v6015 = vsub.f32 %v6013, %v6014
    %v6016 = vand.u32 %v6015, 4294901760
    %6017 = vmatpush.msra.mxu0 %v6016
    %v6018 = vand.u32 %v3533, 4294901760
    %v6019 = vsub.f32 %v3533, %v6018
    %v6020 = vand.u32 %v6019, 4294901760
    %v6021 = vsub.f32 %v6019, %v6020
    %v6022 = vand.u32 %v6021, 4294901760
    %6023 = vmatpush.msra.mxu0 %v6022
    %v6024 = vand.u32 %v3525, 4294901760
    %v6025 = vsub.f32 %v3525, %v6024
    %v6026 = vand.u32 %v6025, 4294901760
    %v6027 = vsub.f32 %v6025, %v6026
    %v6028 = vand.u32 %v6027, 4294901760
    %6029 = vmatpush.msra.mxu0 %v6028
    %v6030 = vand.u32 %v3517, 4294901760
    %v6031 = vsub.f32 %v3517, %v6030
    %v6032 = vand.u32 %v6031, 4294901760
    %v6033 = vsub.f32 %v6031, %v6032
    %v6034 = vand.u32 %v6033, 4294901760
    %6035 = vmatpush.msra.mxu0 %v6034
    %v6036 = vand.u32 %v3509, 4294901760
    %v6037 = vsub.f32 %v3509, %v6036
    %v6038 = vand.u32 %v6037, 4294901760
    %v6039 = vsub.f32 %v6037, %v6038
    %v6040 = vand.u32 %v6039, 4294901760
    %6041 = vmatpush.msra.mxu0 %v6040
    %v6042 = vand.u32 %v3501, 4294901760
    %v6043 = vsub.f32 %v3501, %v6042
    %v6044 = vand.u32 %v6043, 4294901760
    %v6045 = vsub.f32 %v6043, %v6044
    %v6046 = vand.u32 %v6045, 4294901760
    %6047 = vmatpush.msra.mxu0 %v6046
    %v6048 = vand.u32 %v3493, 4294901760
    %v6049 = vsub.f32 %v3493, %v6048
    %v6050 = vand.u32 %v6049, 4294901760
    %v6051 = vsub.f32 %v6049, %v6050
    %v6052 = vand.u32 %v6051, 4294901760
    %6053 = vmatpush.msra.mxu0 %v6052
    %v6054 = vand.u32 %v3485, 4294901760
    %v6055 = vsub.f32 %v3485, %v6054
    %v6056 = vand.u32 %v6055, 4294901760
    %v6057 = vsub.f32 %v6055, %v6056
    %v6058 = vand.u32 %v6057, 4294901760
    %6059 = vmatpush.msra.mxu0 %v6058
    %v6060 = vand.u32 %v3477, 4294901760
    %v6061 = vsub.f32 %v3477, %v6060
    %v6062 = vand.u32 %v6061, 4294901760
    %v6063 = vsub.f32 %v6061, %v6062
    %v6064 = vand.u32 %v6063, 4294901760
    %6065 = vmatpush.msra.mxu0 %v6064
    %v6066 = vand.u32 %v3469, 4294901760
    %v6067 = vsub.f32 %v3469, %v6066
    %v6068 = vand.u32 %v6067, 4294901760
    %v6069 = vsub.f32 %v6067, %v6068
    %v6070 = vand.u32 %v6069, 4294901760
    %6071 = vmatpush.msra.mxu0 %v6070
    %v6072 = vand.u32 %v3461, 4294901760
    %v6073 = vsub.f32 %v3461, %v6072
    %v6074 = vand.u32 %v6073, 4294901760
    %v6075 = vsub.f32 %v6073, %v6074
    %v6076 = vand.u32 %v6075, 4294901760
    %6077 = vmatpush.msra.mxu0 %v6076
    %v6078 = vand.u32 %v3453, 4294901760
    %v6079 = vsub.f32 %v3453, %v6078
    %v6080 = vand.u32 %v6079, 4294901760
    %v6081 = vsub.f32 %v6079, %v6080
    %v6082 = vand.u32 %v6081, 4294901760
    %6083 = vmatpush.msra.mxu0 %v6082
    %v6084 = vand.u32 %v3445, 4294901760
    %v6085 = vsub.f32 %v3445, %v6084
    %v6086 = vand.u32 %v6085, 4294901760
    %v6087 = vsub.f32 %v6085, %v6086
    %v6088 = vand.u32 %v6087, 4294901760
    %6089 = vmatpush.msra.mxu0 %v6088
    %v6090 = vand.u32 %v3436, 4294901760
    %6091 = vmatmul.f32.gmra.mxu0 %v6090
    %v6092 = vpop.f32.mrf.mxu0
    %v6093 = vadd.f32 %v5992, %v6092
    %6094 = vdwg.mxu0
    %v6095 = vand.u32 %v3565, 4294901760
    %v6096 = vsub.f32 %v3565, %v6095
    %6097 = vmatpush.msra.mxu0 %v6096
    %v6098 = vand.u32 %v3557, 4294901760
    %v6099 = vsub.f32 %v3557, %v6098
    %6100 = vmatpush.msra.mxu0 %v6099
    %v6101 = vand.u32 %v3549, 4294901760
    %v6102 = vsub.f32 %v3549, %v6101
    %6103 = vmatpush.msra.mxu0 %v6102
    %v6104 = vand.u32 %v3541, 4294901760
    %v6105 = vsub.f32 %v3541, %v6104
    %6106 = vmatpush.msra.mxu0 %v6105
    %v6107 = vand.u32 %v3533, 4294901760
    %v6108 = vsub.f32 %v3533, %v6107
    %6109 = vmatpush.msra.mxu0 %v6108
    %v6110 = vand.u32 %v3525, 4294901760
    %v6111 = vsub.f32 %v3525, %v6110
    %6112 = vmatpush.msra.mxu0 %v6111
    %v6113 = vand.u32 %v3517, 4294901760
    %v6114 = vsub.f32 %v3517, %v6113
    %6115 = vmatpush.msra.mxu0 %v6114
    %v6116 = vand.u32 %v3509, 4294901760
    %v6117 = vsub.f32 %v3509, %v6116
    %6118 = vmatpush.msra.mxu0 %v6117
    %v6119 = vand.u32 %v3501, 4294901760
    %v6120 = vsub.f32 %v3501, %v6119
    %6121 = vmatpush.msra.mxu0 %v6120
    %v6122 = vand.u32 %v3493, 4294901760
    %v6123 = vsub.f32 %v3493, %v6122
    %6124 = vmatpush.msra.mxu0 %v6123
    %v6125 = vand.u32 %v3485, 4294901760
    %v6126 = vsub.f32 %v3485, %v6125
    %6127 = vmatpush.msra.mxu0 %v6126
    %v6128 = vand.u32 %v3477, 4294901760
    %v6129 = vsub.f32 %v3477, %v6128
    %6130 = vmatpush.msra.mxu0 %v6129
    %v6131 = vand.u32 %v3469, 4294901760
    %v6132 = vsub.f32 %v3469, %v6131
    %6133 = vmatpush.msra.mxu0 %v6132
    %v6134 = vand.u32 %v3461, 4294901760
    %v6135 = vsub.f32 %v3461, %v6134
    %6136 = vmatpush.msra.mxu0 %v6135
    %v6137 = vand.u32 %v3453, 4294901760
    %v6138 = vsub.f32 %v3453, %v6137
    %6139 = vmatpush.msra.mxu0 %v6138
    %v6140 = vand.u32 %v3445, 4294901760
    %v6141 = vsub.f32 %v3445, %v6140
    %6142 = vmatpush.msra.mxu0 %v6141
    %v6143 = vand.u32 %v3436, 4294901760
    %v6144 = vsub.f32 %v3436, %v6143
    %6145 = vmatmul.f32.gmra.mxu0 %v6144
    %v6146 = vpop.f32.mrf.mxu0
    %v6147 = vadd.f32 %v6093, %v6146
    %6148 = vdwg.mxu0
    %v6149 = vand.u32 %v3565, 4294901760
    %6150 = vmatpush.msra.mxu0 %v6149
    %v6151 = vand.u32 %v3557, 4294901760
    %6152 = vmatpush.msra.mxu0 %v6151
    %v6153 = vand.u32 %v3549, 4294901760
    %6154 = vmatpush.msra.mxu0 %v6153
    %v6155 = vand.u32 %v3541, 4294901760
    %6156 = vmatpush.msra.mxu0 %v6155
    %v6157 = vand.u32 %v3533, 4294901760
    %6158 = vmatpush.msra.mxu0 %v6157
    %v6159 = vand.u32 %v3525, 4294901760
    %6160 = vmatpush.msra.mxu0 %v6159
    %v6161 = vand.u32 %v3517, 4294901760
    %6162 = vmatpush.msra.mxu0 %v6161
    %v6163 = vand.u32 %v3509, 4294901760
    %6164 = vmatpush.msra.mxu0 %v6163
    %v6165 = vand.u32 %v3501, 4294901760
    %6166 = vmatpush.msra.mxu0 %v6165
    %v6167 = vand.u32 %v3493, 4294901760
    %6168 = vmatpush.msra.mxu0 %v6167
    %v6169 = vand.u32 %v3485, 4294901760
    %6170 = vmatpush.msra.mxu0 %v6169
    %v6171 = vand.u32 %v3477, 4294901760
    %6172 = vmatpush.msra.mxu0 %v6171
    %v6173 = vand.u32 %v3469, 4294901760
    %6174 = vmatpush.msra.mxu0 %v6173
    %v6175 = vand.u32 %v3461, 4294901760
    %6176 = vmatpush.msra.mxu0 %v6175
    %v6177 = vand.u32 %v3453, 4294901760
    %6178 = vmatpush.msra.mxu0 %v6177
    %v6179 = vand.u32 %v3445, 4294901760
    %6180 = vmatpush.msra.mxu0 %v6179
    %v6181 = vand.u32 %v3436, 4294901760
    %v6182 = vsub.f32 %v3436, %v6181
    %v6183 = vand.u32 %v6182, 4294901760
    %6184 = vmatmul.f32.gmra.mxu0 %v6183
    %v6185 = vpop.f32.mrf.mxu0
    %v6186 = vadd.f32 %v6147, %v6185
    %6187 = vdwg.mxu0
    %v6188 = vand.u32 %v3565, 4294901760
    %v6189 = vsub.f32 %v3565, %v6188
    %v6190 = vand.u32 %v6189, 4294901760
    %6191 = vmatpush.msra.mxu0 %v6190
    %v6192 = vand.u32 %v3557, 4294901760
    %v6193 = vsub.f32 %v3557, %v6192
    %v6194 = vand.u32 %v6193, 4294901760
    %6195 = vmatpush.msra.mxu0 %v6194
    %v6196 = vand.u32 %v3549, 4294901760
    %v6197 = vsub.f32 %v3549, %v6196
    %v6198 = vand.u32 %v6197, 4294901760
    %6199 = vmatpush.msra.mxu0 %v6198
    %v6200 = vand.u32 %v3541, 4294901760
    %v6201 = vsub.f32 %v3541, %v6200
    %v6202 = vand.u32 %v6201, 4294901760
    %6203 = vmatpush.msra.mxu0 %v6202
    %v6204 = vand.u32 %v3533, 4294901760
    %v6205 = vsub.f32 %v3533, %v6204
    %v6206 = vand.u32 %v6205, 4294901760
    %6207 = vmatpush.msra.mxu0 %v6206
    %v6208 = vand.u32 %v3525, 4294901760
    %v6209 = vsub.f32 %v3525, %v6208
    %v6210 = vand.u32 %v6209, 4294901760
    %6211 = vmatpush.msra.mxu0 %v6210
    %v6212 = vand.u32 %v3517, 4294901760
    %v6213 = vsub.f32 %v3517, %v6212
    %v6214 = vand.u32 %v6213, 4294901760
    %6215 = vmatpush.msra.mxu0 %v6214
    %v6216 = vand.u32 %v3509, 4294901760
    %v6217 = vsub.f32 %v3509, %v6216
    %v6218 = vand.u32 %v6217, 4294901760
    %6219 = vmatpush.msra.mxu0 %v6218
    %v6220 = vand.u32 %v3501, 4294901760
    %v6221 = vsub.f32 %v3501, %v6220
    %v6222 = vand.u32 %v6221, 4294901760
    %6223 = vmatpush.msra.mxu0 %v6222
    %v6224 = vand.u32 %v3493, 4294901760
    %v6225 = vsub.f32 %v3493, %v6224
    %v6226 = vand.u32 %v6225, 4294901760
    %6227 = vmatpush.msra.mxu0 %v6226
    %v6228 = vand.u32 %v3485, 4294901760
    %v6229 = vsub.f32 %v3485, %v6228
    %v6230 = vand.u32 %v6229, 4294901760
    %6231 = vmatpush.msra.mxu0 %v6230
    %v6232 = vand.u32 %v3477, 4294901760
    %v6233 = vsub.f32 %v3477, %v6232
    %v6234 = vand.u32 %v6233, 4294901760
    %6235 = vmatpush.msra.mxu0 %v6234
    %v6236 = vand.u32 %v3469, 4294901760
    %v6237 = vsub.f32 %v3469, %v6236
    %v6238 = vand.u32 %v6237, 4294901760
    %6239 = vmatpush.msra.mxu0 %v6238
    %v6240 = vand.u32 %v3461, 4294901760
    %v6241 = vsub.f32 %v3461, %v6240
    %v6242 = vand.u32 %v6241, 4294901760
    %6243 = vmatpush.msra.mxu0 %v6242
    %v6244 = vand.u32 %v3453, 4294901760
    %v6245 = vsub.f32 %v3453, %v6244
    %v6246 = vand.u32 %v6245, 4294901760
    %6247 = vmatpush.msra.mxu0 %v6246
    %v6248 = vand.u32 %v3445, 4294901760
    %v6249 = vsub.f32 %v3445, %v6248
    %v6250 = vand.u32 %v6249, 4294901760
    %6251 = vmatpush.msra.mxu0 %v6250
    %v6252 = vand.u32 %v3436, 4294901760
    %6253 = vmatmul.f32.gmra.mxu0 %v6252
    %v6254 = vpop.f32.mrf.mxu0
    %v6255 = vadd.f32 %v6186, %v6254
    %6256 = vdwg.mxu0
    %v6257 = vand.u32 %v3565, 4294901760
    %6258 = vmatpush.msra.mxu0 %v6257
    %v6259 = vand.u32 %v3557, 4294901760
    %6260 = vmatpush.msra.mxu0 %v6259
    %v6261 = vand.u32 %v3549, 4294901760
    %6262 = vmatpush.msra.mxu0 %v6261
    %v6263 = vand.u32 %v3541, 4294901760
    %6264 = vmatpush.msra.mxu0 %v6263
    %v6265 = vand.u32 %v3533, 4294901760
    %6266 = vmatpush.msra.mxu0 %v6265
    %v6267 = vand.u32 %v3525, 4294901760
    %6268 = vmatpush.msra.mxu0 %v6267
    %v6269 = vand.u32 %v3517, 4294901760
    %6270 = vmatpush.msra.mxu0 %v6269
    %v6271 = vand.u32 %v3509, 4294901760
    %6272 = vmatpush.msra.mxu0 %v6271
    %v6273 = vand.u32 %v3501, 4294901760
    %6274 = vmatpush.msra.mxu0 %v6273
    %v6275 = vand.u32 %v3493, 4294901760
    %6276 = vmatpush.msra.mxu0 %v6275
    %v6277 = vand.u32 %v3485, 4294901760
    %6278 = vmatpush.msra.mxu0 %v6277
    %v6279 = vand.u32 %v3477, 4294901760
    %6280 = vmatpush.msra.mxu0 %v6279
    %v6281 = vand.u32 %v3469, 4294901760
    %6282 = vmatpush.msra.mxu0 %v6281
    %v6283 = vand.u32 %v3461, 4294901760
    %6284 = vmatpush.msra.mxu0 %v6283
    %v6285 = vand.u32 %v3453, 4294901760
    %6286 = vmatpush.msra.mxu0 %v6285
    %v6287 = vand.u32 %v3445, 4294901760
    %6288 = vmatpush.msra.mxu0 %v6287
    %v6289 = vand.u32 %v3436, 4294901760
    %6290 = vmatmul.f32.gmra.mxu0 %v6289
    %v6291 = vpop.f32.mrf.mxu0
    %v6292 = vadd.f32 %v6255, %v6291
    %6293 = vdwg.mxu0
    %v6294 = vmul.f32 %v3905, 0.01
    %v6295 = vmul.f32 %v4246, 0.01
    %v6296 = vmul.f32 %v4587, 0.01
    %v6297 = vmul.f32 %v4928, 0.01
    %v6298 = vmul.f32 %v5269, 0.01
    %v6299 = vmul.f32 %v5610, 0.01
    %v6300 = vmul.f32 %v5951, 0.01
    %v6301 = vmul.f32 %v6292, 0.01
    %v6302 = vmax.f32 %v3905, %v6294
    %v6303 = vmax.f32 %v4246, %v6295
    %v6304 = vmax.f32 %v4587, %v6296
    %v6305 = vmax.f32 %v4928, %v6297
    %v6306 = vmax.f32 %v5269, %v6298
    %v6307 = vmax.f32 %v5610, %v6299
    %v6308 = vmax.f32 %v5951, %v6300
    %v6309 = vmax.f32 %v6292, %v6301
    %s6310 = scalar_lea.vmem %s4, 8
    %v6311 = vld [vmem:[%s6310] sm:$0xff]
    %v6313 = vperm.slane %v6311, 0
    %v6314 = vperm.slane %v6311, 1
    %v6315 = vperm.slane %v6311, 2
    %v6316 = vperm.slane %v6311, 3
    %v6317 = vperm.slane %v6311, 4
    %v6318 = vperm.slane %v6311, 5
    %v6319 = vperm.slane %v6311, 6
    %v6320 = vperm.slane %v6311, 7
    %v6329 = vmul.f32 %v6302, %v6313
    %v6330 = vmul.f32 %v6303, %v6314
    %v6331 = vmul.f32 %v6304, %v6315
    %v6332 = vmul.f32 %v6305, %v6316
    %v6333 = vmul.f32 %v6306, %v6317
    %v6334 = vmul.f32 %v6307, %v6318
    %v6335 = vmul.f32 %v6308, %v6319
    %v6336 = vmul.f32 %v6309, %v6320
    %v6337 = vadd.f32 %v6329, %v6330
    %v6338 = vadd.f32 %v6331, %v6332
    %v6339 = vadd.f32 %v6333, %v6334
    %v6340 = vadd.f32 %v6335, %v6336
    %v6341 = vadd.f32 %v6337, %v6338
    %v6342 = vadd.f32 %v6339, %v6340
    %v6343 = vadd.f32 %v6341, %v6342
    %v6344 = vmul.f32 %v6343, 0.0001
    %v6345 = vmax.f32 %v6343, %v6344
    %v6346 = vrot.slane %v6345, 4
    %v6347 = vadd.f32 %v6345, %v6346
    %v6348 = vrot.slane %v6347, 2
    %v6349 = vadd.f32 %v6347, %v6348
    %v6350 = vrot.slane %v6349, 1
    %v6351 = vadd.f32 %v6349, %v6350
    %v6352 = vmul.f32 %v6351, %v449
    %v6353 = vsub.f32 %v6345, %v6352
    %v6354 = vmul.f32 %v6353, %v6353
    %v6355 = vrot.slane %v6354, 4
    %v6356 = vadd.f32 %v6354, %v6355
    %v6357 = vrot.slane %v6356, 2
    %v6358 = vadd.f32 %v6356, %v6357
    %v6359 = vrot.slane %v6358, 1
    %v6360 = vadd.f32 %v6358, %v6359
    %v6361 = vmul.f32 %v6360, %v449
    %v6362 = vadd.f32 %v6361, 1e-05
    %v6363 = vrsqrt.pop %v6362
    %v6364 = vmul.f32 %v6363, %v6362
    %v6365 = vmul.f32 %v6364, %v6363
    %v6366 = vmul.f32 0.5, %v6365
    %v6367 = vsub.f32 1.5, %v6366
    %v6368 = vmul.f32 %v6363, %v6367
    %vm6369 = vweird.f32 %v6362
    %vm6370 = vweird.f32 %v6363
    %vm6371 = vmor %vm6369, %vm6370
    %v6372 = vsel %vm6371, %v6363, %v6368
    %v6373 = vmul.f32 %v6353, %v6372
    %v6374 = vld [vmem:[#allocation6] sm:$0xff]
    %v6375 = vld [vmem:[#allocation6 + $0x8] sm:$0xff]
    %v6376 = vld [vmem:[#allocation6 + $0x10] sm:$0xff]
    %v6377 = vld [vmem:[#allocation6 + $0x18] sm:$0xff]
    %v6378 = vld [vmem:[#allocation6 + $0x20] sm:$0xff]
    %v6379 = vld [vmem:[#allocation6 + $0x28] sm:$0xff]
    %v6380 = vld [vmem:[#allocation6 + $0x30] sm:$0xff]
    %v6381 = vld [vmem:[#allocation6 + $0x38] sm:$0xff]
    %v6382 = vld [vmem:[#allocation6 + $0x40] sm:$0xff]
    %v6383 = vld [vmem:[#allocation6 + $0x48] sm:$0xff]
    %v6384 = vld [vmem:[#allocation6 + $0x50] sm:$0xff]
    %v6385 = vld [vmem:[#allocation6 + $0x58] sm:$0xff]
    %v6386 = vld [vmem:[#allocation6 + $0x60] sm:$0xff]
    %v6387 = vld [vmem:[#allocation6 + $0x68] sm:$0xff]
    %v6388 = vld [vmem:[#allocation6 + $0x70] sm:$0xff]
    %v6389 = vld [vmem:[#allocation6 + $0x78] sm:$0xff]
    %v6390 = vld [vmem:[%s6] sm:$0x1]
    %v6392 = vperm.slane %v6390, 0
    %v6394 = vand.u32 %v6389, 4294901760
    %6395 = vmatpush.msra.mxu0 %v6394
    %v6396 = vand.u32 %v6388, 4294901760
    %6397 = vmatpush.msra.mxu0 %v6396
    %v6398 = vand.u32 %v6387, 4294901760
    %6399 = vmatpush.msra.mxu0 %v6398
    %v6400 = vand.u32 %v6386, 4294901760
    %6401 = vmatpush.msra.mxu0 %v6400
    %v6402 = vand.u32 %v6385, 4294901760
    %6403 = vmatpush.msra.mxu0 %v6402
    %v6404 = vand.u32 %v6384, 4294901760
    %6405 = vmatpush.msra.mxu0 %v6404
    %v6406 = vand.u32 %v6383, 4294901760
    %6407 = vmatpush.msra.mxu0 %v6406
    %v6408 = vand.u32 %v6382, 4294901760
    %6409 = vmatpush.msra.mxu0 %v6408
    %v6410 = vand.u32 %v6381, 4294901760
    %6411 = vmatpush.msra.mxu0 %v6410
    %v6412 = vand.u32 %v6380, 4294901760
    %6413 = vmatpush.msra.mxu0 %v6412
    %v6414 = vand.u32 %v6379, 4294901760
    %6415 = vmatpush.msra.mxu0 %v6414
    %v6416 = vand.u32 %v6378, 4294901760
    %6417 = vmatpush.msra.mxu0 %v6416
    %v6418 = vand.u32 %v6377, 4294901760
    %6419 = vmatpush.msra.mxu0 %v6418
    %v6420 = vand.u32 %v6376, 4294901760
    %6421 = vmatpush.msra.mxu0 %v6420
    %v6422 = vand.u32 %v6375, 4294901760
    %6423 = vmatpush.msra.mxu0 %v6422
    %v6424 = vand.u32 %v6374, 4294901760
    %6425 = vmatpush.msra.mxu0 %v6424
    %v6426 = vand.u32 %v6373, 4294901760
    %v6427 = vsub.f32 %v6373, %v6426
    %v6428 = vand.u32 %v6427, 4294901760
    %v6429 = vsub.f32 %v6427, %v6428
    %v6430 = vand.u32 %v6429, 4294901760
    %6431 = vmatmul.f32.gmra.mxu0 %v6430
    %v6432 = vpop.f32.mrf.mxu0
    %v6433 = vadd.f32 %v6392, %v6432
    %6434 = vdwg.mxu0
    %v6435 = vand.u32 %v6389, 4294901760
    %v6436 = vsub.f32 %v6389, %v6435
    %v6437 = vand.u32 %v6436, 4294901760
    %v6438 = vsub.f32 %v6436, %v6437
    %v6439 = vand.u32 %v6438, 4294901760
    %6440 = vmatpush.msra.mxu0 %v6439
    %v6441 = vand.u32 %v6388, 4294901760
    %v6442 = vsub.f32 %v6388, %v6441
    %v6443 = vand.u32 %v6442, 4294901760
    %v6444 = vsub.f32 %v6442, %v6443
    %v6445 = vand.u32 %v6444, 4294901760
    %6446 = vmatpush.msra.mxu0 %v6445
    %v6447 = vand.u32 %v6387, 4294901760
    %v6448 = vsub.f32 %v6387, %v6447
    %v6449 = vand.u32 %v6448, 4294901760
    %v6450 = vsub.f32 %v6448, %v6449
    %v6451 = vand.u32 %v6450, 4294901760
    %6452 = vmatpush.msra.mxu0 %v6451
    %v6453 = vand.u32 %v6386, 4294901760
    %v6454 = vsub.f32 %v6386, %v6453
    %v6455 = vand.u32 %v6454, 4294901760
    %v6456 = vsub.f32 %v6454, %v6455
    %v6457 = vand.u32 %v6456, 4294901760
    %6458 = vmatpush.msra.mxu0 %v6457
    %v6459 = vand.u32 %v6385, 4294901760
    %v6460 = vsub.f32 %v6385, %v6459
    %v6461 = vand.u32 %v6460, 4294901760
    %v6462 = vsub.f32 %v6460, %v6461
    %v6463 = vand.u32 %v6462, 4294901760
    %6464 = vmatpush.msra.mxu0 %v6463
    %v6465 = vand.u32 %v6384, 4294901760
    %v6466 = vsub.f32 %v6384, %v6465
    %v6467 = vand.u32 %v6466, 4294901760
    %v6468 = vsub.f32 %v6466, %v6467
    %v6469 = vand.u32 %v6468, 4294901760
    %6470 = vmatpush.msra.mxu0 %v6469
    %v6471 = vand.u32 %v6383, 4294901760
    %v6472 = vsub.f32 %v6383, %v6471
    %v6473 = vand.u32 %v6472, 4294901760
    %v6474 = vsub.f32 %v6472, %v6473
    %v6475 = vand.u32 %v6474, 4294901760
    %6476 = vmatpush.msra.mxu0 %v6475
    %v6477 = vand.u32 %v6382, 4294901760
    %v6478 = vsub.f32 %v6382, %v6477
    %v6479 = vand.u32 %v6478, 4294901760
    %v6480 = vsub.f32 %v6478, %v6479
    %v6481 = vand.u32 %v6480, 4294901760
    %6482 = vmatpush.msra.mxu0 %v6481
    %v6483 = vand.u32 %v6381, 4294901760
    %v6484 = vsub.f32 %v6381, %v6483
    %v6485 = vand.u32 %v6484, 4294901760
    %v6486 = vsub.f32 %v6484, %v6485
    %v6487 = vand.u32 %v6486, 4294901760
    %6488 = vmatpush.msra.mxu0 %v6487
    %v6489 = vand.u32 %v6380, 4294901760
    %v6490 = vsub.f32 %v6380, %v6489
    %v6491 = vand.u32 %v6490, 4294901760
    %v6492 = vsub.f32 %v6490, %v6491
    %v6493 = vand.u32 %v6492, 4294901760
    %6494 = vmatpush.msra.mxu0 %v6493
    %v6495 = vand.u32 %v6379, 4294901760
    %v6496 = vsub.f32 %v6379, %v6495
    %v6497 = vand.u32 %v6496, 4294901760
    %v6498 = vsub.f32 %v6496, %v6497
    %v6499 = vand.u32 %v6498, 4294901760
    %6500 = vmatpush.msra.mxu0 %v6499
    %v6501 = vand.u32 %v6378, 4294901760
    %v6502 = vsub.f32 %v6378, %v6501
    %v6503 = vand.u32 %v6502, 4294901760
    %v6504 = vsub.f32 %v6502, %v6503
    %v6505 = vand.u32 %v6504, 4294901760
    %6506 = vmatpush.msra.mxu0 %v6505
    %v6507 = vand.u32 %v6377, 4294901760
    %v6508 = vsub.f32 %v6377, %v6507
    %v6509 = vand.u32 %v6508, 4294901760
    %v6510 = vsub.f32 %v6508, %v6509
    %v6511 = vand.u32 %v6510, 4294901760
    %6512 = vmatpush.msra.mxu0 %v6511
    %v6513 = vand.u32 %v6376, 4294901760
    %v6514 = vsub.f32 %v6376, %v6513
    %v6515 = vand.u32 %v6514, 4294901760
    %v6516 = vsub.f32 %v6514, %v6515
    %v6517 = vand.u32 %v6516, 4294901760
    %6518 = vmatpush.msra.mxu0 %v6517
    %v6519 = vand.u32 %v6375, 4294901760
    %v6520 = vsub.f32 %v6375, %v6519
    %v6521 = vand.u32 %v6520, 4294901760
    %v6522 = vsub.f32 %v6520, %v6521
    %v6523 = vand.u32 %v6522, 4294901760
    %6524 = vmatpush.msra.mxu0 %v6523
    %v6525 = vand.u32 %v6374, 4294901760
    %v6526 = vsub.f32 %v6374, %v6525
    %v6527 = vand.u32 %v6526, 4294901760
    %v6528 = vsub.f32 %v6526, %v6527
    %v6529 = vand.u32 %v6528, 4294901760
    %6530 = vmatpush.msra.mxu0 %v6529
    %v6531 = vand.u32 %v6373, 4294901760
    %6532 = vmatmul.f32.gmra.mxu0 %v6531
    %v6533 = vpop.f32.mrf.mxu0
    %v6534 = vadd.f32 %v6433, %v6533
    %6535 = vdwg.mxu0
    %v6536 = vand.u32 %v6389, 4294901760
    %v6537 = vsub.f32 %v6389, %v6536
    %6538 = vmatpush.msra.mxu0 %v6537
    %v6539 = vand.u32 %v6388, 4294901760
    %v6540 = vsub.f32 %v6388, %v6539
    %6541 = vmatpush.msra.mxu0 %v6540
    %v6542 = vand.u32 %v6387, 4294901760
    %v6543 = vsub.f32 %v6387, %v6542
    %6544 = vmatpush.msra.mxu0 %v6543
    %v6545 = vand.u32 %v6386, 4294901760
    %v6546 = vsub.f32 %v6386, %v6545
    %6547 = vmatpush.msra.mxu0 %v6546
    %v6548 = vand.u32 %v6385, 4294901760
    %v6549 = vsub.f32 %v6385, %v6548
    %6550 = vmatpush.msra.mxu0 %v6549
    %v6551 = vand.u32 %v6384, 4294901760
    %v6552 = vsub.f32 %v6384, %v6551
    %6553 = vmatpush.msra.mxu0 %v6552
    %v6554 = vand.u32 %v6383, 4294901760
    %v6555 = vsub.f32 %v6383, %v6554
    %6556 = vmatpush.msra.mxu0 %v6555
    %v6557 = vand.u32 %v6382, 4294901760
    %v6558 = vsub.f32 %v6382, %v6557
    %6559 = vmatpush.msra.mxu0 %v6558
    %v6560 = vand.u32 %v6381, 4294901760
    %v6561 = vsub.f32 %v6381, %v6560
    %6562 = vmatpush.msra.mxu0 %v6561
    %v6563 = vand.u32 %v6380, 4294901760
    %v6564 = vsub.f32 %v6380, %v6563
    %6565 = vmatpush.msra.mxu0 %v6564
    %v6566 = vand.u32 %v6379, 4294901760
    %v6567 = vsub.f32 %v6379, %v6566
    %6568 = vmatpush.msra.mxu0 %v6567
    %v6569 = vand.u32 %v6378, 4294901760
    %v6570 = vsub.f32 %v6378, %v6569
    %6571 = vmatpush.msra.mxu0 %v6570
    %v6572 = vand.u32 %v6377, 4294901760
    %v6573 = vsub.f32 %v6377, %v6572
    %6574 = vmatpush.msra.mxu0 %v6573
    %v6575 = vand.u32 %v6376, 4294901760
    %v6576 = vsub.f32 %v6376, %v6575
    %6577 = vmatpush.msra.mxu0 %v6576
    %v6578 = vand.u32 %v6375, 4294901760
    %v6579 = vsub.f32 %v6375, %v6578
    %6580 = vmatpush.msra.mxu0 %v6579
    %v6581 = vand.u32 %v6374, 4294901760
    %v6582 = vsub.f32 %v6374, %v6581
    %6583 = vmatpush.msra.mxu0 %v6582
    %v6584 = vand.u32 %v6373, 4294901760
    %v6585 = vsub.f32 %v6373, %v6584
    %6586 = vmatmul.f32.gmra.mxu0 %v6585
    %v6587 = vpop.f32.mrf.mxu0
    %v6588 = vadd.f32 %v6534, %v6587
    %6589 = vdwg.mxu0
    %v6590 = vand.u32 %v6389, 4294901760
    %6591 = vmatpush.msra.mxu0 %v6590
    %v6592 = vand.u32 %v6388, 4294901760
    %6593 = vmatpush.msra.mxu0 %v6592
    %v6594 = vand.u32 %v6387, 4294901760
    %6595 = vmatpush.msra.mxu0 %v6594
    %v6596 = vand.u32 %v6386, 4294901760
    %6597 = vmatpush.msra.mxu0 %v6596
    %v6598 = vand.u32 %v6385, 4294901760
    %6599 = vmatpush.msra.mxu0 %v6598
    %v6600 = vand.u32 %v6384, 4294901760
    %6601 = vmatpush.msra.mxu0 %v6600
    %v6602 = vand.u32 %v6383, 4294901760
    %6603 = vmatpush.msra.mxu0 %v6602
    %v6604 = vand.u32 %v6382, 4294901760
    %6605 = vmatpush.msra.mxu0 %v6604
    %v6606 = vand.u32 %v6381, 4294901760
    %6607 = vmatpush.msra.mxu0 %v6606
    %v6608 = vand.u32 %v6380, 4294901760
    %6609 = vmatpush.msra.mxu0 %v6608
    %v6610 = vand.u32 %v6379, 4294901760
    %6611 = vmatpush.msra.mxu0 %v6610
    %v6612 = vand.u32 %v6378, 4294901760
    %6613 = vmatpush.msra.mxu0 %v6612
    %v6614 = vand.u32 %v6377, 4294901760
    %6615 = vmatpush.msra.mxu0 %v6614
    %v6616 = vand.u32 %v6376, 4294901760
    %6617 = vmatpush.msra.mxu0 %v6616
    %v6618 = vand.u32 %v6375, 4294901760
    %6619 = vmatpush.msra.mxu0 %v6618
    %v6620 = vand.u32 %v6374, 4294901760
    %6621 = vmatpush.msra.mxu0 %v6620
    %v6622 = vand.u32 %v6373, 4294901760
    %v6623 = vsub.f32 %v6373, %v6622
    %v6624 = vand.u32 %v6623, 4294901760
    %6625 = vmatmul.f32.gmra.mxu0 %v6624
    %v6626 = vpop.f32.mrf.mxu0
    %v6627 = vadd.f32 %v6588, %v6626
    %6628 = vdwg.mxu0
    %v6629 = vand.u32 %v6389, 4294901760
    %v6630 = vsub.f32 %v6389, %v6629
    %v6631 = vand.u32 %v6630, 4294901760
    %6632 = vmatpush.msra.mxu0 %v6631
    %v6633 = vand.u32 %v6388, 4294901760
    %v6634 = vsub.f32 %v6388, %v6633
    %v6635 = vand.u32 %v6634, 4294901760
    %6636 = vmatpush.msra.mxu0 %v6635
    %v6637 = vand.u32 %v6387, 4294901760
    %v6638 = vsub.f32 %v6387, %v6637
    %v6639 = vand.u32 %v6638, 4294901760
    %6640 = vmatpush.msra.mxu0 %v6639
    %v6641 = vand.u32 %v6386, 4294901760
    %v6642 = vsub.f32 %v6386, %v6641
    %v6643 = vand.u32 %v6642, 4294901760
    %6644 = vmatpush.msra.mxu0 %v6643
    %v6645 = vand.u32 %v6385, 4294901760
    %v6646 = vsub.f32 %v6385, %v6645
    %v6647 = vand.u32 %v6646, 4294901760
    %6648 = vmatpush.msra.mxu0 %v6647
    %v6649 = vand.u32 %v6384, 4294901760
    %v6650 = vsub.f32 %v6384, %v6649
    %v6651 = vand.u32 %v6650, 4294901760
    %6652 = vmatpush.msra.mxu0 %v6651
    %v6653 = vand.u32 %v6383, 4294901760
    %v6654 = vsub.f32 %v6383, %v6653
    %v6655 = vand.u32 %v6654, 4294901760
    %6656 = vmatpush.msra.mxu0 %v6655
    %v6657 = vand.u32 %v6382, 4294901760
    %v6658 = vsub.f32 %v6382, %v6657
    %v6659 = vand.u32 %v6658, 4294901760
    %6660 = vmatpush.msra.mxu0 %v6659
    %v6661 = vand.u32 %v6381, 4294901760
    %v6662 = vsub.f32 %v6381, %v6661
    %v6663 = vand.u32 %v6662, 4294901760
    %6664 = vmatpush.msra.mxu0 %v6663
    %v6665 = vand.u32 %v6380, 4294901760
    %v6666 = vsub.f32 %v6380, %v6665
    %v6667 = vand.u32 %v6666, 4294901760
    %6668 = vmatpush.msra.mxu0 %v6667
    %v6669 = vand.u32 %v6379, 4294901760
    %v6670 = vsub.f32 %v6379, %v6669
    %v6671 = vand.u32 %v6670, 4294901760
    %6672 = vmatpush.msra.mxu0 %v6671
    %v6673 = vand.u32 %v6378, 4294901760
    %v6674 = vsub.f32 %v6378, %v6673
    %v6675 = vand.u32 %v6674, 4294901760
    %6676 = vmatpush.msra.mxu0 %v6675
    %v6677 = vand.u32 %v6377, 4294901760
    %v6678 = vsub.f32 %v6377, %v6677
    %v6679 = vand.u32 %v6678, 4294901760
    %6680 = vmatpush.msra.mxu0 %v6679
    %v6681 = vand.u32 %v6376, 4294901760
    %v6682 = vsub.f32 %v6376, %v6681
    %v6683 = vand.u32 %v6682, 4294901760
    %6684 = vmatpush.msra.mxu0 %v6683
    %v6685 = vand.u32 %v6375, 4294901760
    %v6686 = vsub.f32 %v6375, %v6685
    %v6687 = vand.u32 %v6686, 4294901760
    %6688 = vmatpush.msra.mxu0 %v6687
    %v6689 = vand.u32 %v6374, 4294901760
    %v6690 = vsub.f32 %v6374, %v6689
    %v6691 = vand.u32 %v6690, 4294901760
    %6692 = vmatpush.msra.mxu0 %v6691
    %v6693 = vand.u32 %v6373, 4294901760
    %6694 = vmatmul.f32.gmra.mxu0 %v6693
    %v6695 = vpop.f32.mrf.mxu0
    %v6696 = vadd.f32 %v6627, %v6695
    %6697 = vdwg.mxu0
    %v6698 = vand.u32 %v6389, 4294901760
    %6699 = vmatpush.msra.mxu0 %v6698
    %v6700 = vand.u32 %v6388, 4294901760
    %6701 = vmatpush.msra.mxu0 %v6700
    %v6702 = vand.u32 %v6387, 4294901760
    %6703 = vmatpush.msra.mxu0 %v6702
    %v6704 = vand.u32 %v6386, 4294901760
    %6705 = vmatpush.msra.mxu0 %v6704
    %v6706 = vand.u32 %v6385, 4294901760
    %6707 = vmatpush.msra.mxu0 %v6706
    %v6708 = vand.u32 %v6384, 4294901760
    %6709 = vmatpush.msra.mxu0 %v6708
    %v6710 = vand.u32 %v6383, 4294901760
    %6711 = vmatpush.msra.mxu0 %v6710
    %v6712 = vand.u32 %v6382, 4294901760
    %6713 = vmatpush.msra.mxu0 %v6712
    %v6714 = vand.u32 %v6381, 4294901760
    %6715 = vmatpush.msra.mxu0 %v6714
    %v6716 = vand.u32 %v6380, 4294901760
    %6717 = vmatpush.msra.mxu0 %v6716
    %v6718 = vand.u32 %v6379, 4294901760
    %6719 = vmatpush.msra.mxu0 %v6718
    %v6720 = vand.u32 %v6378, 4294901760
    %6721 = vmatpush.msra.mxu0 %v6720
    %v6722 = vand.u32 %v6377, 4294901760
    %6723 = vmatpush.msra.mxu0 %v6722
    %v6724 = vand.u32 %v6376, 4294901760
    %6725 = vmatpush.msra.mxu0 %v6724
    %v6726 = vand.u32 %v6375, 4294901760
    %6727 = vmatpush.msra.mxu0 %v6726
    %v6728 = vand.u32 %v6374, 4294901760
    %6729 = vmatpush.msra.mxu0 %v6728
    %v6730 = vand.u32 %v6373, 4294901760
    %6731 = vmatmul.f32.gmra.mxu0 %v6730
    %v6732 = vpop.f32.mrf.mxu0
    %v6733 = vadd.f32 %v6696, %v6732
    %6734 = vdwg.mxu0
    %6735 = vst [vmem:[%s7] sm:$0xff] %v6733
    // Predicated region
    $region42: #{forward.1} parent=1 // pred_check
      _
    $region43: #{forward.1} parent=1 // pred_check_branch
      %6737 = sbr.rel (0) target = $region45
    $region44: #{forward.1} parent=1 // pred_region
      _
    $region45: #{forward.1} parent=1 // pred_fallthru
      _
    // Predicated region
    $region46: #{forward.1} parent=1 // pred_check
      _
    $region47: #{forward.1} parent=1 // pred_check_branch
      %6739 = sbr.rel (0) target = $region49
    $region48: #{forward.1} parent=1 // pred_region
      _
    $region49: #{forward.1} parent=1 // pred_fallthru
      _
    %6740 = vsyncpa [#allocation3], 1
    %6741 = vsyncpa [#allocation5], 1

</llo_original>
